<compile_context>
chip_gen: v6e
topology: v6e:2x2x1
jax: 0.10.0
libtpu: 0.0.40
codegen_flags: <defaults>
</compile_context>

<pallas_src>
import jax
import jax.numpy as jnp
from jax import lax
from jax.experimental import pallas as pl
from jax.experimental.pallas import tpu as pltpu


ALL_LEVELS = ['phylum', 'class', 'order', 'family', 'genus', 'species', 'leaf']
_LANE = 128


def _make_ce_kernel(num_levels, num_ones, ones_idx_for_level):
    """One grid step = one batch tile; every selected level handled inside (static unroll)."""

    def kernel(tgt_ref, *rest):
        ones_refs = rest[:num_ones]
        logit_refs = rest[num_ones:num_ones + num_levels]
        out_ref = rest[num_ones + num_levels]

        labels_all = tgt_ref[...]                                 # (TN, L) int32, tiny block
        tn = labels_all.shape[0]
        loss_rows = jnp.zeros((tn, 1), jnp.float32)               # per-row loss accumulator

        for l in range(num_levels):                               # static unroll over levels
            logits = logit_refs[l][...].astype(jnp.float32)       # (TN, C_l) f32 (cast in-kernel)
            c = logits.shape[1]
            labels = labels_all[:, l:l + 1]                       # (TN, 1) int32

            # Numerically stable CE; only the row max stays on the XLU.
            m = jnp.max(logits, axis=-1, keepdims=True)           # (TN, 1)
            shifted = logits - m
            exps = jnp.exp(shifted)                               # EUP

            col = lax.broadcasted_iota(jnp.int32, (tn, c), 1)     # lane index iota
            masked = jnp.where(col == labels, shifted, 0.0)       # one-hot select (VPU)

            # Lane sums offloaded to the (otherwise idle) MXU via resident ones RHS.
            ones_rhs = ones_refs[ones_idx_for_level[l]][...]      # (C_l, 128) f32, VMEM-resident
            sumexp = jnp.dot(exps, ones_rhs,
                             preferred_element_type=jnp.float32,
                             precision=jax.lax.Precision.HIGHEST)[:, 0:1]   # (TN, 1)
            picked = jnp.dot(masked, ones_rhs,
                             preferred_element_type=jnp.float32,
                             precision=jax.lax.Precision.HIGHEST)[:, 0:1]   # (TN, 1)

            # CE_row = logsumexp(logits) - logits[label] ; the row max cancels exactly.
            loss_rows = loss_rows + (jnp.log(sumexp) - picked)

        out_ref[0, 0] = jnp.sum(loss_rows)                        # one reduction + SMEM write/tile

    return kernel


def _pick_vmem_limit_bytes():
    """Per-generation scoped-VMEM request: ~75% of physical, clamped to [32, 100] MiB."""
    cap = None
    try:
        info = pltpu.get_tpu_info()
        cap = getattr(info, "vmem_capacity_bytes", None)
    except Exception:
        cap = None
    if not cap:
        return 48 * 1024 * 1024          # safe default: fits v7x (64 MiB) and v5e/v6e (128 MiB)
    return int(max(32 * 1024 * 1024, min(0.75 * cap, 100 * 1024 * 1024)))


def _padded_lane_bytes(c, dtype):
    """Per-row VMEM bytes once the class axis is padded to 128 lanes."""
    return ((int(c) + _LANE - 1) // _LANE) * _LANE * jnp.dtype(dtype).itemsize


def _choose_tile_rows(n_total, cap_rows, force_split):
    """Largest multiple-of-8 divisor of n_total under the VMEM-derived row cap."""
    cap = max(8, int(cap_rows))
    if force_split:
        cap = min(cap, max(8, n_total // 2))   # >= 2 grid steps: feeds both v7x TensorCores
    if n_total <= cap and not force_split:
        return n_total
    best = 0
    t = 8
    limit = min(cap, n_total)
    while t <= limit:
        if n_total % t == 0:
            best = t
        t += 8
    if best:
        return best
    # No multiple-of-8 divisor fits the cap: run the whole batch as one tile.
    # TODO(synk): pad + mask ragged batches instead of a single-tile fallback.
    return n_total


def cross_entropy_per_rank_pallas(outputs, targets, selected_levels=None,
                                  all_levels=ALL_LEVELS, mil_mode=False):
    """outputs: list of (N, C_l) logit arrays (one per selected level).
       targets: (N, num_all_levels) integer class labels."""
    if not isinstance(outputs, (list, tuple)):
        outputs = [outputs]
    if not selected_levels:
        selected_levels = all_levels
    level2idx = {lv: i for i, lv in enumerate(all_levels)}
    sel_idx = [level2idx[lv] for lv in selected_levels]
    num_levels = len(sel_idx)
    assert len(outputs) == num_levels

    outputs = [jnp.asarray(o) for o in outputs]
    targets = jnp.asarray(targets)
    if mil_mode:
        targets = targets.reshape((-1,) + targets.shape[2:])

    n_total = int(outputs[0].shape[0])
    class_counts = tuple(int(o.shape[1]) for o in outputs)

    # Selected target columns -> (N, L) int32 (tiny; identity when all levels selected).
    tgt_sel = targets[:, jnp.asarray(sel_idx, dtype=jnp.int32)].astype(jnp.int32)

    # One VMEM-resident (C, 128) ones block per *distinct* class count (MXU lane-sum RHS).
    distinct_cs = []
    ones_idx_for_level = []
    for c in class_counts:
        if c not in distinct_cs:
            distinct_cs.append(c)
        ones_idx_for_level.append(distinct_cs.index(c))
    ones_arrays = [jnp.ones((c, _LANE), jnp.float32) for c in distinct_cs]

    # --- VMEM budget with lane padding + in-kernel f32 temporaries ---
    vmem_limit = _pick_vmem_limit_bytes()
    per_row_in = sum(_padded_lane_bytes(c, o.dtype)
                     for c, o in zip(class_counts, outputs)) + _LANE * 4   # labels pad to 128 lanes
    per_row_f32 = sum(_padded_lane_bytes(c, jnp.float32) for c in class_counts)
    resident = sum(2 * c * _LANE * 4 for c in distinct_cs)                 # ones RHS blocks
    per_row_cost = 2 * per_row_in + 2 * per_row_f32 + 1024                 # 2x dbl-buffer + temps + slack
    avail = max(per_row_cost * 8, int(vmem_limit * 0.6) - resident)
    cap_rows = avail // per_row_cost

    tn = _choose_tile_rows(n_total, cap_rows, force_split=(n_total >= 128))
    grid_n = max(1, n_total // tn)

    in_specs = [pl.BlockSpec((tn, num_levels), lambda n: (n, 0))]                   # labels
    in_specs += [pl.BlockSpec((c, _LANE), lambda n: (0, 0)) for c in distinct_cs]   # ones RHS (resident)
    in_specs += [pl.BlockSpec((tn, c), lambda n: (n, 0)) for c in class_counts]     # per-level logits

    partials = pl.pallas_call(
        _make_ce_kernel(num_levels, len(distinct_cs), tuple(ones_idx_for_level)),
        out_shape=jax.ShapeDtypeStruct((grid_n, 1), jnp.float32),
        grid_spec=pltpu.PrefetchScalarGridSpec(
            num_scalar_prefetch=0,
            grid=(grid_n,),
            in_specs=in_specs,
            out_specs=pl.BlockSpec((1, 1), lambda n: (n, 0),
                                   memory_space=pltpu.SMEM),
        ),
        compiler_params=pltpu.CompilerParams(
            dimension_semantics=("parallel",),          # independent batch tiles (v7x megacore)
            vmem_limit_bytes=int(vmem_limit)),
    )(tgt_sel, *ones_arrays, *outputs)

    # batchmean over the *total* batch, applied once (not per tile).
    return jnp.sum(partials) / jnp.float32(n_total)


def cross_entropy_per_rank_ref(outputs, targets, selected_levels=None,
                               all_levels=ALL_LEVELS, mil_mode=False):
    """Pure-JAX reference mirroring the PyTorch forward."""
    if not isinstance(outputs, (list, tuple)):
        outputs = [outputs]
    if not selected_levels:
        selected_levels = all_levels
    level2idx = {lv: i for i, lv in enumerate(all_levels)}
    sel_idx = [level2idx[lv] for lv in selected_levels]

    targets = jnp.asarray(targets)
    if mil_mode:
        targets = targets.reshape((-1,) + targets.shape[2:])
    tgt_t = targets.T                                   # (num_all_levels, N)

    res = 0.0
    for idx, output in zip(sel_idx, outputs):
        o = jnp.asarray(output).astype(jnp.float32)
        t = tgt_t[idx].astype(jnp.int32)                # (N,)
        logp = jax.nn.log_softmax(o, axis=-1)
        loss = -jnp.take_along_axis(logp, t[:, None], axis=-1)[:, 0]
        res = res + loss
    return jnp.mean(res)


if __name__ == "__main__":
    key = jax.random.PRNGKey(0)
    L = len(ALL_LEVELS)                       # 7 taxonomy levels
    N = 8                                     # batch
    class_counts = [16, 32, 48, 64, 96, 112, 128]   # classes per level (grow with depth)

    keys = jax.random.split(key, 2 * L)
    outputs = [jax.random.normal(keys[i], (N, class_counts[i]), dtype=jnp.float32)
               for i in range(L)]
    targets = jnp.stack(
        [jax.random.randint(keys[L + i], (N,), 0, class_counts[i], dtype=jnp.int32)
         for i in range(L)], axis=1)          # (N, L) integer labels

    res = jax.block_until_ready(cross_entropy_per_rank_pallas(outputs, targets))
    ref = jax.block_until_ready(cross_entropy_per_rank_ref(outputs, targets))
    assert jnp.allclose(res, ref, rtol=2e-3, atol=2e-3), (res, ref)

    print("KERNEL_OK")
</pallas_src>

<mosaic_0001>
module attributes {stable_mosaic.version = 11 : i64} {
  func.func @kernel(%arg0: i32, %arg1: memref<8x7xi32, #tpu.memory_space<vmem>>, %arg2: memref<16x128xf32, #tpu.memory_space<vmem>>, %arg3: memref<32x128xf32, #tpu.memory_space<vmem>>, %arg4: memref<48x128xf32, #tpu.memory_space<vmem>>, %arg5: memref<64x128xf32, #tpu.memory_space<vmem>>, %arg6: memref<96x128xf32, #tpu.memory_space<vmem>>, %arg7: memref<112x128xf32, #tpu.memory_space<vmem>>, %arg8: memref<128x128xf32, #tpu.memory_space<vmem>>, %arg9: memref<8x16xf32, #tpu.memory_space<vmem>>, %arg10: memref<8x32xf32, #tpu.memory_space<vmem>>, %arg11: memref<8x48xf32, #tpu.memory_space<vmem>>, %arg12: memref<8x64xf32, #tpu.memory_space<vmem>>, %arg13: memref<8x96xf32, #tpu.memory_space<vmem>>, %arg14: memref<8x112xf32, #tpu.memory_space<vmem>>, %arg15: memref<8x128xf32, #tpu.memory_space<vmem>>, %arg16: memref<1x1xf32, #tpu.memory_space<smem>>) attributes {dimension_semantics = [#tpu.dimension_semantics<parallel>], iteration_bounds = array<i64: 1>, scalar_prefetch = 0 : i64, scratch_operands = 0 : i64, tpu.core_type = #tpu.core_type<tc>, window_params = [{transform_indices = @transform_0, window_bounds = array<i64: 8, 7>}, {pipeline_mode = #tpu.pipeline_mode<synchronous>, transform_indices = @transform_1, window_bounds = array<i64: 16, 128>}, {pipeline_mode = #tpu.pipeline_mode<synchronous>, transform_indices = @transform_2, window_bounds = array<i64: 32, 128>}, {pipeline_mode = #tpu.pipeline_mode<synchronous>, transform_indices = @transform_3, window_bounds = array<i64: 48, 128>}, {pipeline_mode = #tpu.pipeline_mode<synchronous>, transform_indices = @transform_4, window_bounds = array<i64: 64, 128>}, {pipeline_mode = #tpu.pipeline_mode<synchronous>, transform_indices = @transform_5, window_bounds = array<i64: 96, 128>}, {pipeline_mode = #tpu.pipeline_mode<synchronous>, transform_indices = @transform_6, window_bounds = array<i64: 112, 128>}, {pipeline_mode = #tpu.pipeline_mode<synchronous>, transform_indices = @transform_7, window_bounds = array<i64: 128, 128>}, {transform_indices = @transform_8, window_bounds = array<i64: 8, 16>}, {transform_indices = @transform_9, window_bounds = array<i64: 8, 32>}, {transform_indices = @transform_10, window_bounds = array<i64: 8, 48>}, {transform_indices = @transform_11, window_bounds = array<i64: 8, 64>}, {transform_indices = @transform_12, window_bounds = array<i64: 8, 96>}, {transform_indices = @transform_13, window_bounds = array<i64: 8, 112>}, {transform_indices = @transform_14, window_bounds = array<i64: 8, 128>}, {transform_indices = @transform_15, window_bounds = array<i64: 1, 1>}]} {
    %c0 = arith.constant 0 : index
    %c0_0 = arith.constant 0 : index
    %0 = vector.load %arg1[%c0, %c0_0] : memref<8x7xi32, #tpu.memory_space<vmem>>, vector<8x7xi32>
    %cst = arith.constant 0.000000e+00 : f32
    %1 = vector.broadcast %cst : f32 to vector<8x1xf32>
    %c0_1 = arith.constant 0 : index
    %c0_2 = arith.constant 0 : index
    %2 = vector.load %arg9[%c0_1, %c0_2] : memref<8x16xf32, #tpu.memory_space<vmem>>, vector<8x16xf32>
    %3 = vector.extract_strided_slice %0 {offsets = [0, 0], sizes = [8, 1], strides = [1, 1]} : vector<8x7xi32> to vector<8x1xi32>
    %cst_3 = arith.constant dense<0xFF800000> : vector<8xf32>
    %4 = vector.multi_reduction <maximumf>, %2, %cst_3 [1] : vector<8x16xf32> to vector<8xf32>
    %5 = vector.shape_cast %4 : vector<8xf32> to vector<8x1xf32>
    %6 = vector.broadcast %5 : vector<8x1xf32> to vector<8x16xf32>
    %7 = arith.subf %2, %6 : vector<8x16xf32>
    %8 = math.exp %7 : vector<8x16xf32>
    %9 = tpu.iota {dimensions = array<i32: 1>} : vector<8x16xi32>
    %10 = vector.broadcast %3 : vector<8x1xi32> to vector<8x16xi32>
    %11 = arith.cmpi eq, %9, %10 : vector<8x16xi32>
    %cst_4 = arith.constant 0.000000e+00 : f32
    %12 = vector.broadcast %cst_4 : f32 to vector<8x16xf32>
    %13 = arith.select %11, %7, %12 : vector<8x16xi1>, vector<8x16xf32>
    %c0_5 = arith.constant 0 : index
    %c0_6 = arith.constant 0 : index
    %14 = vector.load %arg2[%c0_5, %c0_6] : memref<16x128xf32, #tpu.memory_space<vmem>>, vector<16x128xf32>
    %cst_7 = arith.constant dense<0.000000e+00> : vector<8x128xf32>
    %15 = tpu.matmul %8, %14, %cst_7 {dimension_numbers = #tpu.dot_dimension_numbers<[1], [0], [0], [1], [0, 0, 1, 1], [], []>, precision = #tpu.contract_precision<fp32>} : vector<8x16xf32>, vector<16x128xf32>, vector<8x128xf32> -> vector<8x128xf32>
    %16 = vector.extract_strided_slice %15 {offsets = [0, 0], sizes = [8, 1], strides = [1, 1]} : vector<8x128xf32> to vector<8x1xf32>
    %cst_8 = arith.constant dense<0.000000e+00> : vector<8x128xf32>
    %17 = tpu.matmul %13, %14, %cst_8 {dimension_numbers = #tpu.dot_dimension_numbers<[1], [0], [0], [1], [0, 0, 1, 1], [], []>, precision = #tpu.contract_precision<fp32>} : vector<8x16xf32>, vector<16x128xf32>, vector<8x128xf32> -> vector<8x128xf32>
    %18 = vector.extract_strided_slice %17 {offsets = [0, 0], sizes = [8, 1], strides = [1, 1]} : vector<8x128xf32> to vector<8x1xf32>
    %19 = math.log %16 : vector<8x1xf32>
    %20 = arith.subf %19, %18 : vector<8x1xf32>
    %21 = arith.addf %1, %20 : vector<8x1xf32>
    %c0_9 = arith.constant 0 : index
    %c0_10 = arith.constant 0 : index
    %22 = vector.load %arg10[%c0_9, %c0_10] : memref<8x32xf32, #tpu.memory_space<vmem>>, vector<8x32xf32>
    %23 = vector.extract_strided_slice %0 {offsets = [0, 1], sizes = [8, 1], strides = [1, 1]} : vector<8x7xi32> to vector<8x1xi32>
    %cst_11 = arith.constant dense<0xFF800000> : vector<8xf32>
    %24 = vector.multi_reduction <maximumf>, %22, %cst_11 [1] : vector<8x32xf32> to vector<8xf32>
    %25 = vector.shape_cast %24 : vector<8xf32> to vector<8x1xf32>
    %26 = vector.broadcast %25 : vector<8x1xf32> to vector<8x32xf32>
    %27 = arith.subf %22, %26 : vector<8x32xf32>
    %28 = math.exp %27 : vector<8x32xf32>
    %29 = tpu.iota {dimensions = array<i32: 1>} : vector<8x32xi32>
    %30 = vector.broadcast %23 : vector<8x1xi32> to vector<8x32xi32>
    %31 = arith.cmpi eq, %29, %30 : vector<8x32xi32>
    %cst_12 = arith.constant 0.000000e+00 : f32
    %32 = vector.broadcast %cst_12 : f32 to vector<8x32xf32>
    %33 = arith.select %31, %27, %32 : vector<8x32xi1>, vector<8x32xf32>
    %c0_13 = arith.constant 0 : index
    %c0_14 = arith.constant 0 : index
    %34 = vector.load %arg3[%c0_13, %c0_14] : memref<32x128xf32, #tpu.memory_space<vmem>>, vector<32x128xf32>
    %cst_15 = arith.constant dense<0.000000e+00> : vector<8x128xf32>
    %35 = tpu.matmul %28, %34, %cst_15 {dimension_numbers = #tpu.dot_dimension_numbers<[1], [0], [0], [1], [0, 0, 1, 1], [], []>, precision = #tpu.contract_precision<fp32>} : vector<8x32xf32>, vector<32x128xf32>, vector<8x128xf32> -> vector<8x128xf32>
    %36 = vector.extract_strided_slice %35 {offsets = [0, 0], sizes = [8, 1], strides = [1, 1]} : vector<8x128xf32> to vector<8x1xf32>
    %cst_16 = arith.constant dense<0.000000e+00> : vector<8x128xf32>
    %37 = tpu.matmul %33, %34, %cst_16 {dimension_numbers = #tpu.dot_dimension_numbers<[1], [0], [0], [1], [0, 0, 1, 1], [], []>, precision = #tpu.contract_precision<fp32>} : vector<8x32xf32>, vector<32x128xf32>, vector<8x128xf32> -> vector<8x128xf32>
    %38 = vector.extract_strided_slice %37 {offsets = [0, 0], sizes = [8, 1], strides = [1, 1]} : vector<8x128xf32> to vector<8x1xf32>
    %39 = math.log %36 : vector<8x1xf32>
    %40 = arith.subf %39, %38 : vector<8x1xf32>
    %41 = arith.addf %21, %40 : vector<8x1xf32>
    %c0_17 = arith.constant 0 : index
    %c0_18 = arith.constant 0 : index
    %42 = vector.load %arg11[%c0_17, %c0_18] : memref<8x48xf32, #tpu.memory_space<vmem>>, vector<8x48xf32>
    %43 = vector.extract_strided_slice %0 {offsets = [0, 2], sizes = [8, 1], strides = [1, 1]} : vector<8x7xi32> to vector<8x1xi32>
    %cst_19 = arith.constant dense<0xFF800000> : vector<8xf32>
    %44 = vector.multi_reduction <maximumf>, %42, %cst_19 [1] : vector<8x48xf32> to vector<8xf32>
    %45 = vector.shape_cast %44 : vector<8xf32> to vector<8x1xf32>
    %46 = vector.broadcast %45 : vector<8x1xf32> to vector<8x48xf32>
    %47 = arith.subf %42, %46 : vector<8x48xf32>
    %48 = math.exp %47 : vector<8x48xf32>
    %49 = tpu.iota {dimensions = array<i32: 1>} : vector<8x48xi32>
    %50 = vector.broadcast %43 : vector<8x1xi32> to vector<8x48xi32>
    %51 = arith.cmpi eq, %49, %50 : vector<8x48xi32>
    %cst_20 = arith.constant 0.000000e+00 : f32
    %52 = vector.broadcast %cst_20 : f32 to vector<8x48xf32>
    %53 = arith.select %51, %47, %52 : vector<8x48xi1>, vector<8x48xf32>
    %c0_21 = arith.constant 0 : index
    %c0_22 = arith.constant 0 : index
    %54 = vector.load %arg4[%c0_21, %c0_22] : memref<48x128xf32, #tpu.memory_space<vmem>>, vector<48x128xf32>
    %cst_23 = arith.constant dense<0.000000e+00> : vector<8x128xf32>
    %55 = tpu.matmul %48, %54, %cst_23 {dimension_numbers = #tpu.dot_dimension_numbers<[1], [0], [0], [1], [0, 0, 1, 1], [], []>, precision = #tpu.contract_precision<fp32>} : vector<8x48xf32>, vector<48x128xf32>, vector<8x128xf32> -> vector<8x128xf32>
    %56 = vector.extract_strided_slice %55 {offsets = [0, 0], sizes = [8, 1], strides = [1, 1]} : vector<8x128xf32> to vector<8x1xf32>
    %cst_24 = arith.constant dense<0.000000e+00> : vector<8x128xf32>
    %57 = tpu.matmul %53, %54, %cst_24 {dimension_numbers = #tpu.dot_dimension_numbers<[1], [0], [0], [1], [0, 0, 1, 1], [], []>, precision = #tpu.contract_precision<fp32>} : vector<8x48xf32>, vector<48x128xf32>, vector<8x128xf32> -> vector<8x128xf32>
    %58 = vector.extract_strided_slice %57 {offsets = [0, 0], sizes = [8, 1], strides = [1, 1]} : vector<8x128xf32> to vector<8x1xf32>
    %59 = math.log %56 : vector<8x1xf32>
    %60 = arith.subf %59, %58 : vector<8x1xf32>
    %61 = arith.addf %41, %60 : vector<8x1xf32>
    %c0_25 = arith.constant 0 : index
    %c0_26 = arith.constant 0 : index
    %62 = vector.load %arg12[%c0_25, %c0_26] : memref<8x64xf32, #tpu.memory_space<vmem>>, vector<8x64xf32>
    %63 = vector.extract_strided_slice %0 {offsets = [0, 3], sizes = [8, 1], strides = [1, 1]} : vector<8x7xi32> to vector<8x1xi32>
    %cst_27 = arith.constant dense<0xFF800000> : vector<8xf32>
    %64 = vector.multi_reduction <maximumf>, %62, %cst_27 [1] : vector<8x64xf32> to vector<8xf32>
    %65 = vector.shape_cast %64 : vector<8xf32> to vector<8x1xf32>
    %66 = vector.broadcast %65 : vector<8x1xf32> to vector<8x64xf32>
    %67 = arith.subf %62, %66 : vector<8x64xf32>
    %68 = math.exp %67 : vector<8x64xf32>
    %69 = tpu.iota {dimensions = array<i32: 1>} : vector<8x64xi32>
    %70 = vector.broadcast %63 : vector<8x1xi32> to vector<8x64xi32>
    %71 = arith.cmpi eq, %69, %70 : vector<8x64xi32>
    %cst_28 = arith.constant 0.000000e+00 : f32
    %72 = vector.broadcast %cst_28 : f32 to vector<8x64xf32>
    %73 = arith.select %71, %67, %72 : vector<8x64xi1>, vector<8x64xf32>
    %c0_29 = arith.constant 0 : index
    %c0_30 = arith.constant 0 : index
    %74 = vector.load %arg5[%c0_29, %c0_30] : memref<64x128xf32, #tpu.memory_space<vmem>>, vector<64x128xf32>
    %cst_31 = arith.constant dense<0.000000e+00> : vector<8x128xf32>
    %75 = tpu.matmul %68, %74, %cst_31 {dimension_numbers = #tpu.dot_dimension_numbers<[1], [0], [0], [1], [0, 0, 1, 1], [], []>, precision = #tpu.contract_precision<fp32>} : vector<8x64xf32>, vector<64x128xf32>, vector<8x128xf32> -> vector<8x128xf32>
    %76 = vector.extract_strided_slice %75 {offsets = [0, 0], sizes = [8, 1], strides = [1, 1]} : vector<8x128xf32> to vector<8x1xf32>
    %cst_32 = arith.constant dense<0.000000e+00> : vector<8x128xf32>
    %77 = tpu.matmul %73, %74, %cst_32 {dimension_numbers = #tpu.dot_dimension_numbers<[1], [0], [0], [1], [0, 0, 1, 1], [], []>, precision = #tpu.contract_precision<fp32>} : vector<8x64xf32>, vector<64x128xf32>, vector<8x128xf32> -> vector<8x128xf32>
    %78 = vector.extract_strided_slice %77 {offsets = [0, 0], sizes = [8, 1], strides = [1, 1]} : vector<8x128xf32> to vector<8x1xf32>
    %79 = math.log %76 : vector<8x1xf32>
    %80 = arith.subf %79, %78 : vector<8x1xf32>
    %81 = arith.addf %61, %80 : vector<8x1xf32>
    %c0_33 = arith.constant 0 : index
    %c0_34 = arith.constant 0 : index
    %82 = vector.load %arg13[%c0_33, %c0_34] : memref<8x96xf32, #tpu.memory_space<vmem>>, vector<8x96xf32>
    %83 = vector.extract_strided_slice %0 {offsets = [0, 4], sizes = [8, 1], strides = [1, 1]} : vector<8x7xi32> to vector<8x1xi32>
    %cst_35 = arith.constant dense<0xFF800000> : vector<8xf32>
    %84 = vector.multi_reduction <maximumf>, %82, %cst_35 [1] : vector<8x96xf32> to vector<8xf32>
    %85 = vector.shape_cast %84 : vector<8xf32> to vector<8x1xf32>
    %86 = vector.broadcast %85 : vector<8x1xf32> to vector<8x96xf32>
    %87 = arith.subf %82, %86 : vector<8x96xf32>
    %88 = math.exp %87 : vector<8x96xf32>
    %89 = tpu.iota {dimensions = array<i32: 1>} : vector<8x96xi32>
    %90 = vector.broadcast %83 : vector<8x1xi32> to vector<8x96xi32>
    %91 = arith.cmpi eq, %89, %90 : vector<8x96xi32>
    %cst_36 = arith.constant 0.000000e+00 : f32
    %92 = vector.broadcast %cst_36 : f32 to vector<8x96xf32>
    %93 = arith.select %91, %87, %92 : vector<8x96xi1>, vector<8x96xf32>
    %c0_37 = arith.constant 0 : index
    %c0_38 = arith.constant 0 : index
    %94 = vector.load %arg6[%c0_37, %c0_38] : memref<96x128xf32, #tpu.memory_space<vmem>>, vector<96x128xf32>
    %cst_39 = arith.constant dense<0.000000e+00> : vector<8x128xf32>
    %95 = tpu.matmul %88, %94, %cst_39 {dimension_numbers = #tpu.dot_dimension_numbers<[1], [0], [0], [1], [0, 0, 1, 1], [], []>, precision = #tpu.contract_precision<fp32>} : vector<8x96xf32>, vector<96x128xf32>, vector<8x128xf32> -> vector<8x128xf32>
    %96 = vector.extract_strided_slice %95 {offsets = [0, 0], sizes = [8, 1], strides = [1, 1]} : vector<8x128xf32> to vector<8x1xf32>
    %cst_40 = arith.constant dense<0.000000e+00> : vector<8x128xf32>
    %97 = tpu.matmul %93, %94, %cst_40 {dimension_numbers = #tpu.dot_dimension_numbers<[1], [0], [0], [1], [0, 0, 1, 1], [], []>, precision = #tpu.contract_precision<fp32>} : vector<8x96xf32>, vector<96x128xf32>, vector<8x128xf32> -> vector<8x128xf32>
    %98 = vector.extract_strided_slice %97 {offsets = [0, 0], sizes = [8, 1], strides = [1, 1]} : vector<8x128xf32> to vector<8x1xf32>
    %99 = math.log %96 : vector<8x1xf32>
    %100 = arith.subf %99, %98 : vector<8x1xf32>
    %101 = arith.addf %81, %100 : vector<8x1xf32>
    %c0_41 = arith.constant 0 : index
    %c0_42 = arith.constant 0 : index
    %102 = vector.load %arg14[%c0_41, %c0_42] : memref<8x112xf32, #tpu.memory_space<vmem>>, vector<8x112xf32>
    %103 = vector.extract_strided_slice %0 {offsets = [0, 5], sizes = [8, 1], strides = [1, 1]} : vector<8x7xi32> to vector<8x1xi32>
    %cst_43 = arith.constant dense<0xFF800000> : vector<8xf32>
    %104 = vector.multi_reduction <maximumf>, %102, %cst_43 [1] : vector<8x112xf32> to vector<8xf32>
    %105 = vector.shape_cast %104 : vector<8xf32> to vector<8x1xf32>
    %106 = vector.broadcast %105 : vector<8x1xf32> to vector<8x112xf32>
    %107 = arith.subf %102, %106 : vector<8x112xf32>
    %108 = math.exp %107 : vector<8x112xf32>
    %109 = tpu.iota {dimensions = array<i32: 1>} : vector<8x112xi32>
    %110 = vector.broadcast %103 : vector<8x1xi32> to vector<8x112xi32>
    %111 = arith.cmpi eq, %109, %110 : vector<8x112xi32>
    %cst_44 = arith.constant 0.000000e+00 : f32
    %112 = vector.broadcast %cst_44 : f32 to vector<8x112xf32>
    %113 = arith.select %111, %107, %112 : vector<8x112xi1>, vector<8x112xf32>
    %c0_45 = arith.constant 0 : index
    %c0_46 = arith.constant 0 : index
    %114 = vector.load %arg7[%c0_45, %c0_46] : memref<112x128xf32, #tpu.memory_space<vmem>>, vector<112x128xf32>
    %cst_47 = arith.constant dense<0.000000e+00> : vector<8x128xf32>
    %115 = tpu.matmul %108, %114, %cst_47 {dimension_numbers = #tpu.dot_dimension_numbers<[1], [0], [0], [1], [0, 0, 1, 1], [], []>, precision = #tpu.contract_precision<fp32>} : vector<8x112xf32>, vector<112x128xf32>, vector<8x128xf32> -> vector<8x128xf32>
    %116 = vector.extract_strided_slice %115 {offsets = [0, 0], sizes = [8, 1], strides = [1, 1]} : vector<8x128xf32> to vector<8x1xf32>
    %cst_48 = arith.constant dense<0.000000e+00> : vector<8x128xf32>
    %117 = tpu.matmul %113, %114, %cst_48 {dimension_numbers = #tpu.dot_dimension_numbers<[1], [0], [0], [1], [0, 0, 1, 1], [], []>, precision = #tpu.contract_precision<fp32>} : vector<8x112xf32>, vector<112x128xf32>, vector<8x128xf32> -> vector<8x128xf32>
    %118 = vector.extract_strided_slice %117 {offsets = [0, 0], sizes = [8, 1], strides = [1, 1]} : vector<8x128xf32> to vector<8x1xf32>
    %119 = math.log %116 : vector<8x1xf32>
    %120 = arith.subf %119, %118 : vector<8x1xf32>
    %121 = arith.addf %101, %120 : vector<8x1xf32>
    %c0_49 = arith.constant 0 : index
    %c0_50 = arith.constant 0 : index
    %122 = vector.load %arg15[%c0_49, %c0_50] : memref<8x128xf32, #tpu.memory_space<vmem>>, vector<8x128xf32>
    %123 = vector.extract_strided_slice %0 {offsets = [0, 6], sizes = [8, 1], strides = [1, 1]} : vector<8x7xi32> to vector<8x1xi32>
    %cst_51 = arith.constant dense<0xFF800000> : vector<8xf32>
    %124 = vector.multi_reduction <maximumf>, %122, %cst_51 [1] : vector<8x128xf32> to vector<8xf32>
    %125 = vector.shape_cast %124 : vector<8xf32> to vector<8x1xf32>
    %126 = vector.broadcast %125 : vector<8x1xf32> to vector<8x128xf32>
    %127 = arith.subf %122, %126 : vector<8x128xf32>
    %128 = math.exp %127 : vector<8x128xf32>
    %129 = tpu.iota {dimensions = array<i32: 1>} : vector<8x128xi32>
    %130 = vector.broadcast %123 : vector<8x1xi32> to vector<8x128xi32>
    %131 = arith.cmpi eq, %129, %130 : vector<8x128xi32>
    %cst_52 = arith.constant 0.000000e+00 : f32
    %132 = vector.broadcast %cst_52 : f32 to vector<8x128xf32>
    %133 = arith.select %131, %127, %132 : vector<8x128xi1>, vector<8x128xf32>
    %c0_53 = arith.constant 0 : index
    %c0_54 = arith.constant 0 : index
    %134 = vector.load %arg8[%c0_53, %c0_54] : memref<128x128xf32, #tpu.memory_space<vmem>>, vector<128x128xf32>
    %cst_55 = arith.constant dense<0.000000e+00> : vector<8x128xf32>
    %135 = tpu.matmul %128, %134, %cst_55 {dimension_numbers = #tpu.dot_dimension_numbers<[1], [0], [0], [1], [0, 0, 1, 1], [], []>, precision = #tpu.contract_precision<fp32>} : vector<8x128xf32>, vector<128x128xf32>, vector<8x128xf32> -> vector<8x128xf32>
    %136 = vector.extract_strided_slice %135 {offsets = [0, 0], sizes = [8, 1], strides = [1, 1]} : vector<8x128xf32> to vector<8x1xf32>
    %cst_56 = arith.constant dense<0.000000e+00> : vector<8x128xf32>
    %137 = tpu.matmul %133, %134, %cst_56 {dimension_numbers = #tpu.dot_dimension_numbers<[1], [0], [0], [1], [0, 0, 1, 1], [], []>, precision = #tpu.contract_precision<fp32>} : vector<8x128xf32>, vector<128x128xf32>, vector<8x128xf32> -> vector<8x128xf32>
    %138 = vector.extract_strided_slice %137 {offsets = [0, 0], sizes = [8, 1], strides = [1, 1]} : vector<8x128xf32> to vector<8x1xf32>
    %139 = math.log %136 : vector<8x1xf32>
    %140 = arith.subf %139, %138 : vector<8x1xf32>
    %141 = arith.addf %121, %140 : vector<8x1xf32>
    %142 = vector.shape_cast %141 : vector<8x1xf32> to vector<1x8x1xf32>
    %cst_57 = arith.constant dense<0.000000e+00> : vector<1xf32>
    %143 = vector.multi_reduction <add>, %142, %cst_57 [1, 2] : vector<1x8x1xf32> to vector<1xf32>
    %144 = vector.shape_cast %143 : vector<1xf32> to vector<1x1x1xf32>
    %145 = vector.extract %144[0, 0, 0] : f32 from vector<1x1x1xf32>
    %c0_58 = arith.constant 0 : index
    %c0_59 = arith.constant 0 : index
    %146 = memref.load %arg16[%c0_58, %c0_59] : memref<1x1xf32, #tpu.memory_space<smem>>
    memref.store %145, %arg16[%c0_58, %c0_59] : memref<1x1xf32, #tpu.memory_space<smem>>
    return
  }
  func.func @transform_0(%arg0: i32) -> (i32, i32) {
    %c0_i32 = arith.constant 0 : i32
    %c0_i32_0 = arith.constant 0 : i32
    return %arg0, %c0_i32 : i32, i32
  }
  func.func @transform_1(%arg0: i32) -> (i32, i32) {
    %c0_i32 = arith.constant 0 : i32
    %c0_i32_0 = arith.constant 0 : i32
    %c0_i32_1 = arith.constant 0 : i32
    return %c0_i32, %c0_i32_0 : i32, i32
  }
  func.func @transform_2(%arg0: i32) -> (i32, i32) {
    %c0_i32 = arith.constant 0 : i32
    %c0_i32_0 = arith.constant 0 : i32
    %c0_i32_1 = arith.constant 0 : i32
    return %c0_i32, %c0_i32_0 : i32, i32
  }
  func.func @transform_3(%arg0: i32) -> (i32, i32) {
    %c0_i32 = arith.constant 0 : i32
    %c0_i32_0 = arith.constant 0 : i32
    %c0_i32_1 = arith.constant 0 : i32
    return %c0_i32, %c0_i32_0 : i32, i32
  }
  func.func @transform_4(%arg0: i32) -> (i32, i32) {
    %c0_i32 = arith.constant 0 : i32
    %c0_i32_0 = arith.constant 0 : i32
    %c0_i32_1 = arith.constant 0 : i32
    return %c0_i32, %c0_i32_0 : i32, i32
  }
  func.func @transform_5(%arg0: i32) -> (i32, i32) {
    %c0_i32 = arith.constant 0 : i32
    %c0_i32_0 = arith.constant 0 : i32
    %c0_i32_1 = arith.constant 0 : i32
    return %c0_i32, %c0_i32_0 : i32, i32
  }
  func.func @transform_6(%arg0: i32) -> (i32, i32) {
    %c0_i32 = arith.constant 0 : i32
    %c0_i32_0 = arith.constant 0 : i32
    %c0_i32_1 = arith.constant 0 : i32
    return %c0_i32, %c0_i32_0 : i32, i32
  }
  func.func @transform_7(%arg0: i32) -> (i32, i32) {
    %c0_i32 = arith.constant 0 : i32
    %c0_i32_0 = arith.constant 0 : i32
    %c0_i32_1 = arith.constant 0 : i32
    return %c0_i32, %c0_i32_0 : i32, i32
  }
  func.func @transform_8(%arg0: i32) -> (i32, i32) {
    %c0_i32 = arith.constant 0 : i32
    %c0_i32_0 = arith.constant 0 : i32
    return %arg0, %c0_i32 : i32, i32
  }
  func.func @transform_9(%arg0: i32) -> (i32, i32) {
    %c0_i32 = arith.constant 0 : i32
    %c0_i32_0 = arith.constant 0 : i32
    return %arg0, %c0_i32 : i32, i32
  }
  func.func @transform_10(%arg0: i32) -> (i32, i32) {
    %c0_i32 = arith.constant 0 : i32
    %c0_i32_0 = arith.constant 0 : i32
    return %arg0, %c0_i32 : i32, i32
  }
  func.func @transform_11(%arg0: i32) -> (i32, i32) {
    %c0_i32 = arith.constant 0 : i32
    %c0_i32_0 = arith.constant 0 : i32
    return %arg0, %c0_i32 : i32, i32
  }
  func.func @transform_12(%arg0: i32) -> (i32, i32) {
    %c0_i32 = arith.constant 0 : i32
    %c0_i32_0 = arith.constant 0 : i32
    return %arg0, %c0_i32 : i32, i32
  }
  func.func @transform_13(%arg0: i32) -> (i32, i32) {
    %c0_i32 = arith.constant 0 : i32
    %c0_i32_0 = arith.constant 0 : i32
    return %arg0, %c0_i32 : i32, i32
  }
  func.func @transform_14(%arg0: i32) -> (i32, i32) {
    %c0_i32 = arith.constant 0 : i32
    %c0_i32_0 = arith.constant 0 : i32
    return %arg0, %c0_i32 : i32, i32
  }
  func.func @transform_15(%arg0: i32) -> (i32, i32) {
    %c0_i32 = arith.constant 0 : i32
    %c0_i32_0 = arith.constant 0 : i32
    return %arg0, %c0_i32 : i32, i32
  }
}

</mosaic_0001>

<llo_original>
// kernel: tpu_custom_call.1
$region0: #{tpu_custom_call.1}
  #allocation0 [shape = 'u32[]', space=smem, size = 0x4, offset = 0x4, fixed_abs, tag = 'smem constant byte address 0x4 - core index']
  #allocation1 [shape = 'u32[144,128]{1,0:T(1,128)}', space=vmem, size = 0x12000, scoped, tag = 'internal scratch']
  %s0 = inlined_call_operand.hbm [shape: s32[8,7], index: 0, kind: input, shape index: {}]
  %s1 = inlined_call_operand.hbm [shape: f32[16,128], index: 1, kind: input, shape index: {}]
  %s2 = inlined_call_operand.hbm [shape: f32[32,128], index: 2, kind: input, shape index: {}]
  %s3 = inlined_call_operand.hbm [shape: f32[48,128], index: 3, kind: input, shape index: {}]
  %s4 = inlined_call_operand.hbm [shape: f32[64,128], index: 4, kind: input, shape index: {}]
  %s5 = inlined_call_operand.hbm [shape: f32[96,128], index: 5, kind: input, shape index: {}]
  %s6 = inlined_call_operand.hbm [shape: f32[112,128], index: 6, kind: input, shape index: {}]
  %s7 = inlined_call_operand.hbm [shape: f32[128,128], index: 7, kind: input, shape index: {}]
  %s8 = inlined_call_operand.vmem [shape: f32[8,16], index: 8, kind: input, shape index: {}]
  %s9 = inlined_call_operand.vmem [shape: f32[8,32], index: 9, kind: input, shape index: {}]
  %s10 = inlined_call_operand.hbm [shape: f32[8,48], index: 10, kind: input, shape index: {}]
  %s11 = inlined_call_operand.hbm [shape: f32[8,64], index: 11, kind: input, shape index: {}]
  %s12 = inlined_call_operand.hbm [shape: f32[8,96], index: 12, kind: input, shape index: {}]
  %s13 = inlined_call_operand.hbm [shape: f32[8,112], index: 13, kind: input, shape index: {}]
  %s14 = inlined_call_operand.vmem [shape: f32[8,128], index: 14, kind: input, shape index: {}]
  %s15 = inlined_call_operand.hbm [shape: f32[1,1], index: 15, kind: output, shape index: {}]
  %s16 = sld [smem:[#allocation0]]
  $region118: #{tpu_custom_call.1} parent=0
    _
  %s18 = ssub.s32 1, %s16
  %s19 = scalar_select 0, %s18, %s16
  $region1: #{tpu_custom_call.1} parent=0
    #allocation2 [shape = 'u8[4096]{0}', space=vmem, size = 0x1000, scoped, tag = 'input window, operand 0, single buffered']
    #allocation3 [shape = 's32[1]{0}', space=sflag, size = 0x4, scoped, tag = 'scoped memory for tpu_custom_call.1']
    #allocation4 [shape = 's32[1]{0}', space=sflag, size = 0x4, scoped, tag = 'scoped memory for tpu_custom_call.1']
    #allocation5 [shape = 'u8[8192]{0}', space=vmem, size = 0x2000, scoped, tag = 'input window, operand 1, single buffered']
    #allocation6 [shape = 's32[1]{0}', space=sflag, size = 0x4, scoped, tag = 'scoped memory for tpu_custom_call.1']
    #allocation7 [shape = 'u8[16384]{0}', space=vmem, size = 0x4000, scoped, tag = 'input window, operand 2, single buffered']
    #allocation8 [shape = 'u8[24576]{0}', space=vmem, size = 0x6000, scoped, tag = 'input window, operand 3, single buffered']
    #allocation9 [shape = 's32[1]{0}', space=sflag, size = 0x4, scoped, tag = 'scoped memory for tpu_custom_call.1']
    #allocation10 [shape = 'u8[32768]{0}', space=vmem, size = 0x8000, scoped, tag = 'input window, operand 4, single buffered']
    #allocation11 [shape = 'u8[49152]{0}', space=vmem, size = 0xc000, scoped, tag = 'input window, operand 5, single buffered']
    #allocation12 [shape = 's32[1]{0}', space=sflag, size = 0x4, scoped, tag = 'scoped memory for tpu_custom_call.1']
    #allocation13 [shape = 'u8[57344]{0}', space=vmem, size = 0xe000, scoped, tag = 'input window, operand 6, single buffered']
    #allocation14 [shape = 'u8[65536]{0}', space=vmem, size = 0x10000, scoped, tag = 'input window, operand 7, single buffered']
    #allocation15 [shape = 's32[1]{0}', space=sflag, size = 0x4, scoped, tag = 'scoped memory for tpu_custom_call.1']
    #allocation16 [shape = 'u8[4096]{0}', space=vmem, size = 0x1000, scoped, tag = 'input window, operand 10, single buffered']
    #allocation17 [shape = 'u8[4096]{0}', space=vmem, size = 0x1000, scoped, tag = 'input window, operand 11, single buffered']
    #allocation18 [shape = 's32[1]{0}', space=sflag, size = 0x4, scoped, tag = 'scoped memory for tpu_custom_call.1']
    #allocation19 [shape = 'u8[4096]{0}', space=vmem, size = 0x1000, scoped, tag = 'input window, operand 12, single buffered']
    #allocation20 [shape = 'u8[4096]{0}', space=vmem, size = 0x1000, scoped, tag = 'input window, operand 13, single buffered']
    #allocation21 [shape = 's32[1]{0}', space=sflag, size = 0x4, scoped, tag = 'scoped memory for tpu_custom_call.1']
    #allocation22 [shape = 'u8[512]{0}', space=smem, size = 0x200, scoped, tag = 'output window, operand 0, single buffered']
    %20 = vsyncpa [#allocation3], 0
    %21 = vsyncpa [#allocation6], 0
    %22 = vsyncpa [#allocation9], 0
    %23 = vsyncpa [#allocation12], 0
    %24 = vsyncpa [#allocation15], 0
    %25 = vsyncpa [#allocation18], 0
    %26 = vsyncpa [#allocation21], 0
    %27 = vsyncpa [#allocation4], 0
    // Predicated region
    $region2: #{tpu_custom_call.1} parent=1 // pred_check
      _
    $region3: #{tpu_custom_call.1} parent=1 // pred_check_branch
      %29 = sbr.rel (0) target = $region5
    $region4: #{tpu_custom_call.1} parent=1 // pred_region
      %s31 = ssub.s32 128, 128
      %32 = vsyncadd [#allocation3], %s31
      %s34 = sshll.u32 [#allocation2], 4
      %s35 = int_to_ptr.vmem [resolvable:$true] %s34
      %37 = dma.hbm_to_vmem [thread:$0]  %s0, 128, %s35, [#allocation3]
    $region5: #{tpu_custom_call.1} parent=1 // pred_fallthru
      _
    // Predicated region
    $region6: #{tpu_custom_call.1} parent=1 // pred_check
      _
    $region7: #{tpu_custom_call.1} parent=1 // pred_check_branch
      %39 = sbr.rel (0) target = $region9
    $region8: #{tpu_custom_call.1} parent=1 // pred_region
      %s41 = ssub.s32 256, 256
      %42 = vsyncadd [#allocation6], %s41
      %s43 = sshll.u32 [#allocation5], 4
      %s44 = int_to_ptr.vmem [resolvable:$true] %s43
      %49 = dma.hbm_to_vmem [thread:$0]  %s1, 256, %s44, [#allocation6], 128, 128, 8
    $region9: #{tpu_custom_call.1} parent=1 // pred_fallthru
      _
    // Predicated region
    $region10: #{tpu_custom_call.1} parent=1 // pred_check
      _
    $region11: #{tpu_custom_call.1} parent=1 // pred_check_branch
      %51 = sbr.rel (0) target = $region13
    $region12: #{tpu_custom_call.1} parent=1 // pred_region
      %s53 = ssub.s32 512, 512
      %54 = vsyncadd [#allocation6], %s53
      %s55 = sshll.u32 [#allocation7], 4
      %s56 = int_to_ptr.vmem [resolvable:$true] %s55
      %61 = dma.hbm_to_vmem [thread:$0]  %s2, 512, %s56, [#allocation6], 128, 128, 8
    $region13: #{tpu_custom_call.1} parent=1 // pred_fallthru
      _
    // Predicated region
    $region14: #{tpu_custom_call.1} parent=1 // pred_check
      _
    $region15: #{tpu_custom_call.1} parent=1 // pred_check_branch
      %63 = sbr.rel (0) target = $region17
    $region16: #{tpu_custom_call.1} parent=1 // pred_region
      %s65 = ssub.s32 768, 768
      %66 = vsyncadd [#allocation9], %s65
      %s67 = sshll.u32 [#allocation8], 4
      %s68 = int_to_ptr.vmem [resolvable:$true] %s67
      %73 = dma.hbm_to_vmem [thread:$0]  %s3, 768, %s68, [#allocation9], 128, 128, 8
    $region17: #{tpu_custom_call.1} parent=1 // pred_fallthru
      _
    // Predicated region
    $region18: #{tpu_custom_call.1} parent=1 // pred_check
      _
    $region19: #{tpu_custom_call.1} parent=1 // pred_check_branch
      %75 = sbr.rel (0) target = $region21
    $region20: #{tpu_custom_call.1} parent=1 // pred_region
      %s77 = ssub.s32 1024, 1024
      %78 = vsyncadd [#allocation9], %s77
      %s79 = sshll.u32 [#allocation10], 4
      %s80 = int_to_ptr.vmem [resolvable:$true] %s79
      %85 = dma.hbm_to_vmem [thread:$0]  %s4, 1024, %s80, [#allocation9], 128, 128, 8
    $region21: #{tpu_custom_call.1} parent=1 // pred_fallthru
      _
    // Predicated region
    $region22: #{tpu_custom_call.1} parent=1 // pred_check
      _
    $region23: #{tpu_custom_call.1} parent=1 // pred_check_branch
      %87 = sbr.rel (0) target = $region25
    $region24: #{tpu_custom_call.1} parent=1 // pred_region
      %s89 = ssub.s32 1536, 1536
      %90 = vsyncadd [#allocation12], %s89
      %s91 = sshll.u32 [#allocation11], 4
      %s92 = int_to_ptr.vmem [resolvable:$true] %s91
      %97 = dma.hbm_to_vmem [thread:$0]  %s5, 1536, %s92, [#allocation12], 128, 128, 8
    $region25: #{tpu_custom_call.1} parent=1 // pred_fallthru
      _
    // Predicated region
    $region26: #{tpu_custom_call.1} parent=1 // pred_check
      _
    $region27: #{tpu_custom_call.1} parent=1 // pred_check_branch
      %99 = sbr.rel (0) target = $region29
    $region28: #{tpu_custom_call.1} parent=1 // pred_region
      %s101 = ssub.s32 1792, 1792
      %102 = vsyncadd [#allocation12], %s101
      %s103 = sshll.u32 [#allocation13], 4
      %s104 = int_to_ptr.vmem [resolvable:$true] %s103
      %109 = dma.hbm_to_vmem [thread:$0]  %s6, 1792, %s104, [#allocation12], 128, 128, 8
    $region29: #{tpu_custom_call.1} parent=1 // pred_fallthru
      _
    // Predicated region
    $region30: #{tpu_custom_call.1} parent=1 // pred_check
      _
    $region31: #{tpu_custom_call.1} parent=1 // pred_check_branch
      %111 = sbr.rel (0) target = $region33
    $region32: #{tpu_custom_call.1} parent=1 // pred_region
      %s113 = ssub.s32 2048, 2048
      %114 = vsyncadd [#allocation15], %s113
      %s115 = sshll.u32 [#allocation14], 4
      %s116 = int_to_ptr.vmem [resolvable:$true] %s115
      %121 = dma.hbm_to_vmem [thread:$0]  %s7, 2048, %s116, [#allocation15], 128, 128, 8
    $region33: #{tpu_custom_call.1} parent=1 // pred_fallthru
      _
    // Predicated region
    $region34: #{tpu_custom_call.1} parent=1 // pred_check
      _
    $region35: #{tpu_custom_call.1} parent=1 // pred_check_branch
      %123 = sbr.rel (0) target = $region37
    $region36: #{tpu_custom_call.1} parent=1 // pred_region
      _
    $region37: #{tpu_custom_call.1} parent=1 // pred_fallthru
      _
    // Predicated region
    $region38: #{tpu_custom_call.1} parent=1 // pred_check
      _
    $region39: #{tpu_custom_call.1} parent=1 // pred_check_branch
      %125 = sbr.rel (0) target = $region41
    $region40: #{tpu_custom_call.1} parent=1 // pred_region
      _
    $region41: #{tpu_custom_call.1} parent=1 // pred_fallthru
      _
    // Predicated region
    $region42: #{tpu_custom_call.1} parent=1 // pred_check
      _
    $region43: #{tpu_custom_call.1} parent=1 // pred_check_branch
      %127 = sbr.rel (0) target = $region45
    $region44: #{tpu_custom_call.1} parent=1 // pred_region
      %s129 = ssub.s32 128, 128
      %130 = vsyncadd [#allocation15], %s129
      %s132 = sshll.u32 [#allocation16], 4
      %s133 = int_to_ptr.vmem [resolvable:$true] %s132
      %135 = dma.hbm_to_vmem [thread:$0]  %s10, 128, %s133, [#allocation15]
    $region45: #{tpu_custom_call.1} parent=1 // pred_fallthru
      _
    // Predicated region
    $region46: #{tpu_custom_call.1} parent=1 // pred_check
      _
    $region47: #{tpu_custom_call.1} parent=1 // pred_check_branch
      %137 = sbr.rel (0) target = $region49
    $region48: #{tpu_custom_call.1} parent=1 // pred_region
      %s139 = ssub.s32 128, 128
      %140 = vsyncadd [#allocation18], %s139
      %s142 = sshll.u32 [#allocation17], 4
      %s143 = int_to_ptr.vmem [resolvable:$true] %s142
      %145 = dma.hbm_to_vmem [thread:$0]  %s11, 128, %s143, [#allocation18]
    $region49: #{tpu_custom_call.1} parent=1 // pred_fallthru
      _
    // Predicated region
    $region50: #{tpu_custom_call.1} parent=1 // pred_check
      _
    $region51: #{tpu_custom_call.1} parent=1 // pred_check_branch
      %147 = sbr.rel (0) target = $region53
    $region52: #{tpu_custom_call.1} parent=1 // pred_region
      %s149 = ssub.s32 128, 128
      %150 = vsyncadd [#allocation18], %s149
      %s152 = sshll.u32 [#allocation19], 4
      %s153 = int_to_ptr.vmem [resolvable:$true] %s152
      %155 = dma.hbm_to_vmem [thread:$0]  %s12, 128, %s153, [#allocation18]
    $region53: #{tpu_custom_call.1} parent=1 // pred_fallthru
      _
    // Predicated region
    $region54: #{tpu_custom_call.1} parent=1 // pred_check
      _
    $region55: #{tpu_custom_call.1} parent=1 // pred_check_branch
      %157 = sbr.rel (0) target = $region57
    $region56: #{tpu_custom_call.1} parent=1 // pred_region
      %s159 = ssub.s32 128, 128
      %160 = vsyncadd [#allocation21], %s159
      %s162 = sshll.u32 [#allocation20], 4
      %s163 = int_to_ptr.vmem [resolvable:$true] %s162
      %165 = dma.hbm_to_vmem [thread:$0]  %s13, 128, %s163, [#allocation21]
    $region57: #{tpu_custom_call.1} parent=1 // pred_fallthru
      _
    // Predicated region
    $region58: #{tpu_custom_call.1} parent=1 // pred_check
      _
    $region59: #{tpu_custom_call.1} parent=1 // pred_check_branch
      %167 = sbr.rel (0) target = $region61
    $region60: #{tpu_custom_call.1} parent=1 // pred_region
      _
    $region61: #{tpu_custom_call.1} parent=1 // pred_fallthru
      _
    // Predicated region
    $region62: #{tpu_custom_call.1} parent=1 // pred_check
      _
    $region63: #{tpu_custom_call.1} parent=1 // pred_check_branch
      %169 = sbr.rel (0) target = $region65
    $region64: #{tpu_custom_call.1} parent=1 // pred_region
      %170 = dma.done [#allocation3], 128
    $region65: #{tpu_custom_call.1} parent=1 // pred_fallthru
      _
    // Predicated region
    $region66: #{tpu_custom_call.1} parent=1 // pred_check
      _
    $region67: #{tpu_custom_call.1} parent=1 // pred_check_branch
      %172 = sbr.rel (0) target = $region69
    $region68: #{tpu_custom_call.1} parent=1 // pred_region
      %173 = dma.done [#allocation6], 256
    $region69: #{tpu_custom_call.1} parent=1 // pred_fallthru
      _
    // Predicated region
    $region70: #{tpu_custom_call.1} parent=1 // pred_check
      _
    $region71: #{tpu_custom_call.1} parent=1 // pred_check_branch
      %175 = sbr.rel (0) target = $region73
    $region72: #{tpu_custom_call.1} parent=1 // pred_region
      %176 = dma.done [#allocation6], 512
    $region73: #{tpu_custom_call.1} parent=1 // pred_fallthru
      _
    // Predicated region
    $region74: #{tpu_custom_call.1} parent=1 // pred_check
      _
    $region75: #{tpu_custom_call.1} parent=1 // pred_check_branch
      %178 = sbr.rel (0) target = $region77
    $region76: #{tpu_custom_call.1} parent=1 // pred_region
      %179 = dma.done [#allocation9], 768
    $region77: #{tpu_custom_call.1} parent=1 // pred_fallthru
      _
    // Predicated region
    $region78: #{tpu_custom_call.1} parent=1 // pred_check
      _
    $region79: #{tpu_custom_call.1} parent=1 // pred_check_branch
      %181 = sbr.rel (0) target = $region81
    $region80: #{tpu_custom_call.1} parent=1 // pred_region
      %182 = dma.done [#allocation9], 1024
    $region81: #{tpu_custom_call.1} parent=1 // pred_fallthru
      _
    // Predicated region
    $region82: #{tpu_custom_call.1} parent=1 // pred_check
      _
    $region83: #{tpu_custom_call.1} parent=1 // pred_check_branch
      %184 = sbr.rel (0) target = $region85
    $region84: #{tpu_custom_call.1} parent=1 // pred_region
      %185 = dma.done [#allocation12], 1536
    $region85: #{tpu_custom_call.1} parent=1 // pred_fallthru
      _
    // Predicated region
    $region86: #{tpu_custom_call.1} parent=1 // pred_check
      _
    $region87: #{tpu_custom_call.1} parent=1 // pred_check_branch
      %187 = sbr.rel (0) target = $region89
    $region88: #{tpu_custom_call.1} parent=1 // pred_region
      %188 = dma.done [#allocation12], 1792
    $region89: #{tpu_custom_call.1} parent=1 // pred_fallthru
      _
    // Predicated region
    $region90: #{tpu_custom_call.1} parent=1 // pred_check
      _
    $region91: #{tpu_custom_call.1} parent=1 // pred_check_branch
      %190 = sbr.rel (0) target = $region93
    $region92: #{tpu_custom_call.1} parent=1 // pred_region
      %191 = dma.done [#allocation15], 2048
    $region93: #{tpu_custom_call.1} parent=1 // pred_fallthru
      _
    // Predicated region
    $region94: #{tpu_custom_call.1} parent=1 // pred_check
      _
    $region95: #{tpu_custom_call.1} parent=1 // pred_check_branch
      %193 = sbr.rel (0) target = $region97
    $region96: #{tpu_custom_call.1} parent=1 // pred_region
      %194 = dma.done [#allocation15], 128
    $region97: #{tpu_custom_call.1} parent=1 // pred_fallthru
      _
    // Predicated region
    $region98: #{tpu_custom_call.1} parent=1 // pred_check
      _
    $region99: #{tpu_custom_call.1} parent=1 // pred_check_branch
      %196 = sbr.rel (0) target = $region101
    $region100: #{tpu_custom_call.1} parent=1 // pred_region
      %197 = dma.done [#allocation18], 128
    $region101: #{tpu_custom_call.1} parent=1 // pred_fallthru
      _
    // Predicated region
    $region102: #{tpu_custom_call.1} parent=1 // pred_check
      _
    $region103: #{tpu_custom_call.1} parent=1 // pred_check_branch
      %199 = sbr.rel (0) target = $region105
    $region104: #{tpu_custom_call.1} parent=1 // pred_region
      %200 = dma.done [#allocation18], 128
    $region105: #{tpu_custom_call.1} parent=1 // pred_fallthru
      _
    // Predicated region
    $region106: #{tpu_custom_call.1} parent=1 // pred_check
      _
    $region107: #{tpu_custom_call.1} parent=1 // pred_check_branch
      %202 = sbr.rel (0) target = $region109
    $region108: #{tpu_custom_call.1} parent=1 // pred_region
      %203 = dma.done [#allocation21], 128
    $region109: #{tpu_custom_call.1} parent=1 // pred_fallthru
      _
    %v204 = vld [vmem:[#allocation2] sm:$0xff]
    %v205 = vld [vmem:[%s8] sm:$0xff]
    %vm206 = vcmask 130048
    %v207 = vsel %vm206, %v205, -inf
    %208 = vmax.xlane.f32.xlu0 %v207
    %v209 = vpop.xlane.xlu0 %208
    %v210 = vsub.f32 %v205, %v209
    %v211 = vmul.f32 %v210, 1.442695
    %v212 = vpow.pop %v211
    %v213 = vlaneseq
    %v214 = vand.u32 %v213, 127
    %215 = vset.pattern.permute.xlu0 0
    %216 = vperm.xlu0 %215, %v204
    %v217 = vpop.permute.xlu0 %216
    %vm218 = vcmp.eq.s32.totalorder %v214, %v217
    %v219 = vsel %vm218, %v210, 0.0
    %v220 = vld [vmem:[#allocation5] sm:$0xff]
    %v221 = vld [vmem:[#allocation5 + $0x8] sm:$0xff]
    %v223 = vsel %vm206, %v212, 0
    %225 = vmatprep.subr.mxu0 0.0
    %226 = vmatpush1.msra.mxu0 0.0
    %227 = vmatprep.subr.mxu0 0.0
    %228 = vmatpush1.msra.mxu0 0.0
    %229 = vmatprep.subr.mxu0 0.0
    %230 = vmatpush1.msra.mxu0 0.0
    %231 = vmatprep.subr.mxu0 0.0
    %232 = vmatpush1.msra.mxu0 0.0
    %233 = vmatprep.subr.mxu0 0.0
    %234 = vmatpush1.msra.mxu0 0.0
    %235 = vmatprep.subr.mxu0 0.0
    %236 = vmatpush1.msra.mxu0 0.0
    %237 = vmatprep.subr.mxu0 0.0
    %238 = vmatpush1.msra.mxu0 0.0
    %239 = vmatprep.subr.mxu0 0.0
    %240 = vmatpush1.msra.mxu0 0.0
    %241 = vmatprep.subr.mxu0 0.0
    %242 = vmatpush1.msra.mxu0 0.0
    %243 = vmatprep.subr.mxu0 0.0
    %244 = vmatpush1.msra.mxu0 0.0
    %245 = vmatprep.subr.mxu0 0.0
    %246 = vmatpush1.msra.mxu0 0.0
    %247 = vmatprep.subr.mxu0 0.0
    %248 = vmatpush1.msra.mxu0 0.0
    %249 = vmatprep.subr.mxu0 0.0
    %250 = vmatpush1.msra.mxu0 0.0
    %251 = vmatprep.subr.mxu0 0.0
    %252 = vmatpush1.msra.mxu0 0.0
    %253 = vmatprep.subr.mxu0 0.0
    %v254 = vand.u32 %v221, 4294901760
    %255 = vmatpush1.msra.mxu0 %v254
    %256 = vmatprep.subr.mxu0 0.0
    %v257 = vand.u32 %v220, 4294901760
    %258 = vmatpush1.msra.mxu0 %v257
    %259 = vmatprep.subr.mxu0 0.0
    %260 = vmatpush2.msra.mxu0 0.0
    %261 = vmatprep.subr.mxu0 0.0
    %262 = vmatpush2.msra.mxu0 0.0
    %263 = vmatprep.subr.mxu0 0.0
    %264 = vmatpush2.msra.mxu0 0.0
    %265 = vmatprep.subr.mxu0 0.0
    %266 = vmatpush2.msra.mxu0 0.0
    %267 = vmatprep.subr.mxu0 0.0
    %268 = vmatpush2.msra.mxu0 0.0
    %269 = vmatprep.subr.mxu0 0.0
    %270 = vmatpush2.msra.mxu0 0.0
    %271 = vmatprep.subr.mxu0 0.0
    %272 = vmatpush2.msra.mxu0 0.0
    %273 = vmatprep.subr.mxu0 0.0
    %274 = vmatpush2.msra.mxu0 0.0
    %275 = vmatprep.subr.mxu0 0.0
    %276 = vmatpush2.msra.mxu0 0.0
    %277 = vmatprep.subr.mxu0 0.0
    %278 = vmatpush2.msra.mxu0 0.0
    %279 = vmatprep.subr.mxu0 0.0
    %280 = vmatpush2.msra.mxu0 0.0
    %281 = vmatprep.subr.mxu0 0.0
    %282 = vmatpush2.msra.mxu0 0.0
    %283 = vmatprep.subr.mxu0 0.0
    %284 = vmatpush2.msra.mxu0 0.0
    %285 = vmatprep.subr.mxu0 0.0
    %286 = vmatpush2.msra.mxu0 0.0
    %287 = vmatprep.subr.mxu0 0.0
    %288 = vmatpush2.msra.mxu0 0.0
    %289 = vmatprep.subr.mxu0 0.0
    %290 = vmatpush2.msra.mxu0 0.0
    %291 = vmatprep.mubr.f32.mxu0 0.0
    %v292 = vand.u32 %v223, 4294901760
    %v293 = vsub.f32 %v223, %v292
    %v294 = vand.u32 %v293, 4294901760
    %v295 = vsub.f32 %v293, %v294
    %v296 = vand.u32 %v295, 4294901760
    %297 = vmatmul.mubr.f32.gmra.mxu0 %v296
    %v298 = vpop.f32.mrf.mxu0
    %v299 = vadd.f32 0.0, %v298
    %v300 = vpop.f32.mrf.mxu0
    %301 = vdwg.mxu0
    %302 = vmatprep.subr.mxu0 0.0
    %303 = vmatpush1.msra.mxu0 0.0
    %304 = vmatprep.subr.mxu0 0.0
    %305 = vmatpush1.msra.mxu0 0.0
    %306 = vmatprep.subr.mxu0 0.0
    %307 = vmatpush1.msra.mxu0 0.0
    %308 = vmatprep.subr.mxu0 0.0
    %309 = vmatpush1.msra.mxu0 0.0
    %310 = vmatprep.subr.mxu0 0.0
    %311 = vmatpush1.msra.mxu0 0.0
    %312 = vmatprep.subr.mxu0 0.0
    %313 = vmatpush1.msra.mxu0 0.0
    %314 = vmatprep.subr.mxu0 0.0
    %315 = vmatpush1.msra.mxu0 0.0
    %316 = vmatprep.subr.mxu0 0.0
    %317 = vmatpush1.msra.mxu0 0.0
    %318 = vmatprep.subr.mxu0 0.0
    %319 = vmatpush1.msra.mxu0 0.0
    %320 = vmatprep.subr.mxu0 0.0
    %321 = vmatpush1.msra.mxu0 0.0
    %322 = vmatprep.subr.mxu0 0.0
    %323 = vmatpush1.msra.mxu0 0.0
    %324 = vmatprep.subr.mxu0 0.0
    %325 = vmatpush1.msra.mxu0 0.0
    %326 = vmatprep.subr.mxu0 0.0
    %327 = vmatpush1.msra.mxu0 0.0
    %328 = vmatprep.subr.mxu0 0.0
    %329 = vmatpush1.msra.mxu0 0.0
    %330 = vmatprep.subr.mxu0 0.0
    %v331 = vand.u32 %v221, 4294901760
    %v332 = vsub.f32 %v221, %v331
    %v333 = vand.u32 %v332, 4294901760
    %v334 = vsub.f32 %v332, %v333
    %v335 = vand.u32 %v334, 4294901760
    %336 = vmatpush1.msra.mxu0 %v335
    %337 = vmatprep.subr.mxu0 0.0
    %v338 = vand.u32 %v220, 4294901760
    %v339 = vsub.f32 %v220, %v338
    %v340 = vand.u32 %v339, 4294901760
    %v341 = vsub.f32 %v339, %v340
    %v342 = vand.u32 %v341, 4294901760
    %343 = vmatpush1.msra.mxu0 %v342
    %344 = vmatprep.subr.mxu0 0.0
    %345 = vmatpush2.msra.mxu0 0.0
    %346 = vmatprep.subr.mxu0 0.0
    %347 = vmatpush2.msra.mxu0 0.0
    %348 = vmatprep.subr.mxu0 0.0
    %349 = vmatpush2.msra.mxu0 0.0
    %350 = vmatprep.subr.mxu0 0.0
    %351 = vmatpush2.msra.mxu0 0.0
    %352 = vmatprep.subr.mxu0 0.0
    %353 = vmatpush2.msra.mxu0 0.0
    %354 = vmatprep.subr.mxu0 0.0
    %355 = vmatpush2.msra.mxu0 0.0
    %356 = vmatprep.subr.mxu0 0.0
    %357 = vmatpush2.msra.mxu0 0.0
    %358 = vmatprep.subr.mxu0 0.0
    %359 = vmatpush2.msra.mxu0 0.0
    %360 = vmatprep.subr.mxu0 0.0
    %361 = vmatpush2.msra.mxu0 0.0
    %362 = vmatprep.subr.mxu0 0.0
    %363 = vmatpush2.msra.mxu0 0.0
    %364 = vmatprep.subr.mxu0 0.0
    %365 = vmatpush2.msra.mxu0 0.0
    %366 = vmatprep.subr.mxu0 0.0
    %367 = vmatpush2.msra.mxu0 0.0
    %368 = vmatprep.subr.mxu0 0.0
    %369 = vmatpush2.msra.mxu0 0.0
    %370 = vmatprep.subr.mxu0 0.0
    %371 = vmatpush2.msra.mxu0 0.0
    %372 = vmatprep.subr.mxu0 0.0
    %373 = vmatpush2.msra.mxu0 0.0
    %374 = vmatprep.subr.mxu0 0.0
    %375 = vmatpush2.msra.mxu0 0.0
    %376 = vmatprep.mubr.f32.mxu0 0.0
    %v377 = vand.u32 %v223, 4294901760
    %378 = vmatmul.mubr.f32.gmra.mxu0 %v377
    %v379 = vpop.f32.mrf.mxu0
    %v380 = vadd.f32 %v299, %v379
    %v381 = vpop.f32.mrf.mxu0
    %382 = vdwg.mxu0
    %383 = vmatprep.subr.mxu0 0.0
    %384 = vmatpush1.msra.mxu0 0.0
    %385 = vmatprep.subr.mxu0 0.0
    %386 = vmatpush1.msra.mxu0 0.0
    %387 = vmatprep.subr.mxu0 0.0
    %388 = vmatpush1.msra.mxu0 0.0
    %389 = vmatprep.subr.mxu0 0.0
    %390 = vmatpush1.msra.mxu0 0.0
    %391 = vmatprep.subr.mxu0 0.0
    %392 = vmatpush1.msra.mxu0 0.0
    %393 = vmatprep.subr.mxu0 0.0
    %394 = vmatpush1.msra.mxu0 0.0
    %395 = vmatprep.subr.mxu0 0.0
    %396 = vmatpush1.msra.mxu0 0.0
    %397 = vmatprep.subr.mxu0 0.0
    %398 = vmatpush1.msra.mxu0 0.0
    %399 = vmatprep.subr.mxu0 0.0
    %400 = vmatpush1.msra.mxu0 0.0
    %401 = vmatprep.subr.mxu0 0.0
    %402 = vmatpush1.msra.mxu0 0.0
    %403 = vmatprep.subr.mxu0 0.0
    %404 = vmatpush1.msra.mxu0 0.0
    %405 = vmatprep.subr.mxu0 0.0
    %406 = vmatpush1.msra.mxu0 0.0
    %407 = vmatprep.subr.mxu0 0.0
    %408 = vmatpush1.msra.mxu0 0.0
    %409 = vmatprep.subr.mxu0 0.0
    %410 = vmatpush1.msra.mxu0 0.0
    %411 = vmatprep.subr.mxu0 0.0
    %v412 = vand.u32 %v221, 4294901760
    %v413 = vsub.f32 %v221, %v412
    %414 = vmatpush1.msra.mxu0 %v413
    %415 = vmatprep.subr.mxu0 0.0
    %v416 = vand.u32 %v220, 4294901760
    %v417 = vsub.f32 %v220, %v416
    %418 = vmatpush1.msra.mxu0 %v417
    %419 = vmatprep.subr.mxu0 0.0
    %420 = vmatpush2.msra.mxu0 0.0
    %421 = vmatprep.subr.mxu0 0.0
    %422 = vmatpush2.msra.mxu0 0.0
    %423 = vmatprep.subr.mxu0 0.0
    %424 = vmatpush2.msra.mxu0 0.0
    %425 = vmatprep.subr.mxu0 0.0
    %426 = vmatpush2.msra.mxu0 0.0
    %427 = vmatprep.subr.mxu0 0.0
    %428 = vmatpush2.msra.mxu0 0.0
    %429 = vmatprep.subr.mxu0 0.0
    %430 = vmatpush2.msra.mxu0 0.0
    %431 = vmatprep.subr.mxu0 0.0
    %432 = vmatpush2.msra.mxu0 0.0
    %433 = vmatprep.subr.mxu0 0.0
    %434 = vmatpush2.msra.mxu0 0.0
    %435 = vmatprep.subr.mxu0 0.0
    %436 = vmatpush2.msra.mxu0 0.0
    %437 = vmatprep.subr.mxu0 0.0
    %438 = vmatpush2.msra.mxu0 0.0
    %439 = vmatprep.subr.mxu0 0.0
    %440 = vmatpush2.msra.mxu0 0.0
    %441 = vmatprep.subr.mxu0 0.0
    %442 = vmatpush2.msra.mxu0 0.0
    %443 = vmatprep.subr.mxu0 0.0
    %444 = vmatpush2.msra.mxu0 0.0
    %445 = vmatprep.subr.mxu0 0.0
    %446 = vmatpush2.msra.mxu0 0.0
    %447 = vmatprep.subr.mxu0 0.0
    %448 = vmatpush2.msra.mxu0 0.0
    %449 = vmatprep.subr.mxu0 0.0
    %450 = vmatpush2.msra.mxu0 0.0
    %451 = vmatprep.mubr.f32.mxu0 0.0
    %v452 = vand.u32 %v223, 4294901760
    %v453 = vsub.f32 %v223, %v452
    %454 = vmatmul.mubr.f32.gmra.mxu0 %v453
    %v455 = vpop.f32.mrf.mxu0
    %v456 = vadd.f32 %v380, %v455
    %v457 = vpop.f32.mrf.mxu0
    %458 = vdwg.mxu0
    %459 = vmatprep.subr.mxu0 0.0
    %460 = vmatpush1.msra.mxu0 0.0
    %461 = vmatprep.subr.mxu0 0.0
    %462 = vmatpush1.msra.mxu0 0.0
    %463 = vmatprep.subr.mxu0 0.0
    %464 = vmatpush1.msra.mxu0 0.0
    %465 = vmatprep.subr.mxu0 0.0
    %466 = vmatpush1.msra.mxu0 0.0
    %467 = vmatprep.subr.mxu0 0.0
    %468 = vmatpush1.msra.mxu0 0.0
    %469 = vmatprep.subr.mxu0 0.0
    %470 = vmatpush1.msra.mxu0 0.0
    %471 = vmatprep.subr.mxu0 0.0
    %472 = vmatpush1.msra.mxu0 0.0
    %473 = vmatprep.subr.mxu0 0.0
    %474 = vmatpush1.msra.mxu0 0.0
    %475 = vmatprep.subr.mxu0 0.0
    %476 = vmatpush1.msra.mxu0 0.0
    %477 = vmatprep.subr.mxu0 0.0
    %478 = vmatpush1.msra.mxu0 0.0
    %479 = vmatprep.subr.mxu0 0.0
    %480 = vmatpush1.msra.mxu0 0.0
    %481 = vmatprep.subr.mxu0 0.0
    %482 = vmatpush1.msra.mxu0 0.0
    %483 = vmatprep.subr.mxu0 0.0
    %484 = vmatpush1.msra.mxu0 0.0
    %485 = vmatprep.subr.mxu0 0.0
    %486 = vmatpush1.msra.mxu0 0.0
    %487 = vmatprep.subr.mxu0 0.0
    %v488 = vand.u32 %v221, 4294901760
    %489 = vmatpush1.msra.mxu0 %v488
    %490 = vmatprep.subr.mxu0 0.0
    %v491 = vand.u32 %v220, 4294901760
    %492 = vmatpush1.msra.mxu0 %v491
    %493 = vmatprep.subr.mxu0 0.0
    %494 = vmatpush2.msra.mxu0 0.0
    %495 = vmatprep.subr.mxu0 0.0
    %496 = vmatpush2.msra.mxu0 0.0
    %497 = vmatprep.subr.mxu0 0.0
    %498 = vmatpush2.msra.mxu0 0.0
    %499 = vmatprep.subr.mxu0 0.0
    %500 = vmatpush2.msra.mxu0 0.0
    %501 = vmatprep.subr.mxu0 0.0
    %502 = vmatpush2.msra.mxu0 0.0
    %503 = vmatprep.subr.mxu0 0.0
    %504 = vmatpush2.msra.mxu0 0.0
    %505 = vmatprep.subr.mxu0 0.0
    %506 = vmatpush2.msra.mxu0 0.0
    %507 = vmatprep.subr.mxu0 0.0
    %508 = vmatpush2.msra.mxu0 0.0
    %509 = vmatprep.subr.mxu0 0.0
    %510 = vmatpush2.msra.mxu0 0.0
    %511 = vmatprep.subr.mxu0 0.0
    %512 = vmatpush2.msra.mxu0 0.0
    %513 = vmatprep.subr.mxu0 0.0
    %514 = vmatpush2.msra.mxu0 0.0
    %515 = vmatprep.subr.mxu0 0.0
    %516 = vmatpush2.msra.mxu0 0.0
    %517 = vmatprep.subr.mxu0 0.0
    %518 = vmatpush2.msra.mxu0 0.0
    %519 = vmatprep.subr.mxu0 0.0
    %520 = vmatpush2.msra.mxu0 0.0
    %521 = vmatprep.subr.mxu0 0.0
    %522 = vmatpush2.msra.mxu0 0.0
    %523 = vmatprep.subr.mxu0 0.0
    %524 = vmatpush2.msra.mxu0 0.0
    %525 = vmatprep.mubr.f32.mxu0 0.0
    %v526 = vand.u32 %v223, 4294901760
    %v527 = vsub.f32 %v223, %v526
    %v528 = vand.u32 %v527, 4294901760
    %529 = vmatmul.mubr.f32.gmra.mxu0 %v528
    %v530 = vpop.f32.mrf.mxu0
    %v531 = vadd.f32 %v456, %v530
    %v532 = vpop.f32.mrf.mxu0
    %533 = vdwg.mxu0
    %534 = vmatprep.subr.mxu0 0.0
    %535 = vmatpush1.msra.mxu0 0.0
    %536 = vmatprep.subr.mxu0 0.0
    %537 = vmatpush1.msra.mxu0 0.0
    %538 = vmatprep.subr.mxu0 0.0
    %539 = vmatpush1.msra.mxu0 0.0
    %540 = vmatprep.subr.mxu0 0.0
    %541 = vmatpush1.msra.mxu0 0.0
    %542 = vmatprep.subr.mxu0 0.0
    %543 = vmatpush1.msra.mxu0 0.0
    %544 = vmatprep.subr.mxu0 0.0
    %545 = vmatpush1.msra.mxu0 0.0
    %546 = vmatprep.subr.mxu0 0.0
    %547 = vmatpush1.msra.mxu0 0.0
    %548 = vmatprep.subr.mxu0 0.0
    %549 = vmatpush1.msra.mxu0 0.0
    %550 = vmatprep.subr.mxu0 0.0
    %551 = vmatpush1.msra.mxu0 0.0
    %552 = vmatprep.subr.mxu0 0.0
    %553 = vmatpush1.msra.mxu0 0.0
    %554 = vmatprep.subr.mxu0 0.0
    %555 = vmatpush1.msra.mxu0 0.0
    %556 = vmatprep.subr.mxu0 0.0
    %557 = vmatpush1.msra.mxu0 0.0
    %558 = vmatprep.subr.mxu0 0.0
    %559 = vmatpush1.msra.mxu0 0.0
    %560 = vmatprep.subr.mxu0 0.0
    %561 = vmatpush1.msra.mxu0 0.0
    %562 = vmatprep.subr.mxu0 0.0
    %v563 = vand.u32 %v221, 4294901760
    %v564 = vsub.f32 %v221, %v563
    %v565 = vand.u32 %v564, 4294901760
    %566 = vmatpush1.msra.mxu0 %v565
    %567 = vmatprep.subr.mxu0 0.0
    %v568 = vand.u32 %v220, 4294901760
    %v569 = vsub.f32 %v220, %v568
    %v570 = vand.u32 %v569, 4294901760
    %571 = vmatpush1.msra.mxu0 %v570
    %572 = vmatprep.subr.mxu0 0.0
    %573 = vmatpush2.msra.mxu0 0.0
    %574 = vmatprep.subr.mxu0 0.0
    %575 = vmatpush2.msra.mxu0 0.0
    %576 = vmatprep.subr.mxu0 0.0
    %577 = vmatpush2.msra.mxu0 0.0
    %578 = vmatprep.subr.mxu0 0.0
    %579 = vmatpush2.msra.mxu0 0.0
    %580 = vmatprep.subr.mxu0 0.0
    %581 = vmatpush2.msra.mxu0 0.0
    %582 = vmatprep.subr.mxu0 0.0
    %583 = vmatpush2.msra.mxu0 0.0
    %584 = vmatprep.subr.mxu0 0.0
    %585 = vmatpush2.msra.mxu0 0.0
    %586 = vmatprep.subr.mxu0 0.0
    %587 = vmatpush2.msra.mxu0 0.0
    %588 = vmatprep.subr.mxu0 0.0
    %589 = vmatpush2.msra.mxu0 0.0
    %590 = vmatprep.subr.mxu0 0.0
    %591 = vmatpush2.msra.mxu0 0.0
    %592 = vmatprep.subr.mxu0 0.0
    %593 = vmatpush2.msra.mxu0 0.0
    %594 = vmatprep.subr.mxu0 0.0
    %595 = vmatpush2.msra.mxu0 0.0
    %596 = vmatprep.subr.mxu0 0.0
    %597 = vmatpush2.msra.mxu0 0.0
    %598 = vmatprep.subr.mxu0 0.0
    %599 = vmatpush2.msra.mxu0 0.0
    %600 = vmatprep.subr.mxu0 0.0
    %601 = vmatpush2.msra.mxu0 0.0
    %602 = vmatprep.subr.mxu0 0.0
    %603 = vmatpush2.msra.mxu0 0.0
    %604 = vmatprep.mubr.f32.mxu0 0.0
    %v605 = vand.u32 %v223, 4294901760
    %606 = vmatmul.mubr.f32.gmra.mxu0 %v605
    %v607 = vpop.f32.mrf.mxu0
    %v608 = vadd.f32 %v531, %v607
    %v609 = vpop.f32.mrf.mxu0
    %610 = vdwg.mxu0
    %611 = vmatprep.subr.mxu0 0.0
    %612 = vmatpush1.msra.mxu0 0.0
    %613 = vmatprep.subr.mxu0 0.0
    %614 = vmatpush1.msra.mxu0 0.0
    %615 = vmatprep.subr.mxu0 0.0
    %616 = vmatpush1.msra.mxu0 0.0
    %617 = vmatprep.subr.mxu0 0.0
    %618 = vmatpush1.msra.mxu0 0.0
    %619 = vmatprep.subr.mxu0 0.0
    %620 = vmatpush1.msra.mxu0 0.0
    %621 = vmatprep.subr.mxu0 0.0
    %622 = vmatpush1.msra.mxu0 0.0
    %623 = vmatprep.subr.mxu0 0.0
    %624 = vmatpush1.msra.mxu0 0.0
    %625 = vmatprep.subr.mxu0 0.0
    %626 = vmatpush1.msra.mxu0 0.0
    %627 = vmatprep.subr.mxu0 0.0
    %628 = vmatpush1.msra.mxu0 0.0
    %629 = vmatprep.subr.mxu0 0.0
    %630 = vmatpush1.msra.mxu0 0.0
    %631 = vmatprep.subr.mxu0 0.0
    %632 = vmatpush1.msra.mxu0 0.0
    %633 = vmatprep.subr.mxu0 0.0
    %634 = vmatpush1.msra.mxu0 0.0
    %635 = vmatprep.subr.mxu0 0.0
    %636 = vmatpush1.msra.mxu0 0.0
    %637 = vmatprep.subr.mxu0 0.0
    %638 = vmatpush1.msra.mxu0 0.0
    %639 = vmatprep.subr.mxu0 0.0
    %v640 = vand.u32 %v221, 4294901760
    %641 = vmatpush1.msra.mxu0 %v640
    %642 = vmatprep.subr.mxu0 0.0
    %v643 = vand.u32 %v220, 4294901760
    %644 = vmatpush1.msra.mxu0 %v643
    %645 = vmatprep.subr.mxu0 0.0
    %646 = vmatpush2.msra.mxu0 0.0
    %647 = vmatprep.subr.mxu0 0.0
    %648 = vmatpush2.msra.mxu0 0.0
    %649 = vmatprep.subr.mxu0 0.0
    %650 = vmatpush2.msra.mxu0 0.0
    %651 = vmatprep.subr.mxu0 0.0
    %652 = vmatpush2.msra.mxu0 0.0
    %653 = vmatprep.subr.mxu0 0.0
    %654 = vmatpush2.msra.mxu0 0.0
    %655 = vmatprep.subr.mxu0 0.0
    %656 = vmatpush2.msra.mxu0 0.0
    %657 = vmatprep.subr.mxu0 0.0
    %658 = vmatpush2.msra.mxu0 0.0
    %659 = vmatprep.subr.mxu0 0.0
    %660 = vmatpush2.msra.mxu0 0.0
    %661 = vmatprep.subr.mxu0 0.0
    %662 = vmatpush2.msra.mxu0 0.0
    %663 = vmatprep.subr.mxu0 0.0
    %664 = vmatpush2.msra.mxu0 0.0
    %665 = vmatprep.subr.mxu0 0.0
    %666 = vmatpush2.msra.mxu0 0.0
    %667 = vmatprep.subr.mxu0 0.0
    %668 = vmatpush2.msra.mxu0 0.0
    %669 = vmatprep.subr.mxu0 0.0
    %670 = vmatpush2.msra.mxu0 0.0
    %671 = vmatprep.subr.mxu0 0.0
    %672 = vmatpush2.msra.mxu0 0.0
    %673 = vmatprep.subr.mxu0 0.0
    %674 = vmatpush2.msra.mxu0 0.0
    %675 = vmatprep.subr.mxu0 0.0
    %676 = vmatpush2.msra.mxu0 0.0
    %677 = vmatprep.mubr.f32.mxu0 0.0
    %v678 = vand.u32 %v223, 4294901760
    %679 = vmatmul.mubr.f32.gmra.mxu0 %v678
    %v680 = vpop.f32.mrf.mxu0
    %v681 = vadd.f32 %v608, %v680
    %v682 = vpop.f32.mrf.mxu0
    %683 = vdwg.mxu0
    %v685 = vsel %vm206, %v219, 0
    %687 = vmatprep.subr.mxu0 0.0
    %688 = vmatpush1.msra.mxu0 0.0
    %689 = vmatprep.subr.mxu0 0.0
    %690 = vmatpush1.msra.mxu0 0.0
    %691 = vmatprep.subr.mxu0 0.0
    %692 = vmatpush1.msra.mxu0 0.0
    %693 = vmatprep.subr.mxu0 0.0
    %694 = vmatpush1.msra.mxu0 0.0
    %695 = vmatprep.subr.mxu0 0.0
    %696 = vmatpush1.msra.mxu0 0.0
    %697 = vmatprep.subr.mxu0 0.0
    %698 = vmatpush1.msra.mxu0 0.0
    %699 = vmatprep.subr.mxu0 0.0
    %700 = vmatpush1.msra.mxu0 0.0
    %701 = vmatprep.subr.mxu0 0.0
    %702 = vmatpush1.msra.mxu0 0.0
    %703 = vmatprep.subr.mxu0 0.0
    %704 = vmatpush1.msra.mxu0 0.0
    %705 = vmatprep.subr.mxu0 0.0
    %706 = vmatpush1.msra.mxu0 0.0
    %707 = vmatprep.subr.mxu0 0.0
    %708 = vmatpush1.msra.mxu0 0.0
    %709 = vmatprep.subr.mxu0 0.0
    %710 = vmatpush1.msra.mxu0 0.0
    %711 = vmatprep.subr.mxu0 0.0
    %712 = vmatpush1.msra.mxu0 0.0
    %713 = vmatprep.subr.mxu0 0.0
    %714 = vmatpush1.msra.mxu0 0.0
    %715 = vmatprep.subr.mxu0 0.0
    %v716 = vand.u32 %v221, 4294901760
    %717 = vmatpush1.msra.mxu0 %v716
    %718 = vmatprep.subr.mxu0 0.0
    %v719 = vand.u32 %v220, 4294901760
    %720 = vmatpush1.msra.mxu0 %v719
    %721 = vmatprep.subr.mxu0 0.0
    %722 = vmatpush2.msra.mxu0 0.0
    %723 = vmatprep.subr.mxu0 0.0
    %724 = vmatpush2.msra.mxu0 0.0
    %725 = vmatprep.subr.mxu0 0.0
    %726 = vmatpush2.msra.mxu0 0.0
    %727 = vmatprep.subr.mxu0 0.0
    %728 = vmatpush2.msra.mxu0 0.0
    %729 = vmatprep.subr.mxu0 0.0
    %730 = vmatpush2.msra.mxu0 0.0
    %731 = vmatprep.subr.mxu0 0.0
    %732 = vmatpush2.msra.mxu0 0.0
    %733 = vmatprep.subr.mxu0 0.0
    %734 = vmatpush2.msra.mxu0 0.0
    %735 = vmatprep.subr.mxu0 0.0
    %736 = vmatpush2.msra.mxu0 0.0
    %737 = vmatprep.subr.mxu0 0.0
    %738 = vmatpush2.msra.mxu0 0.0
    %739 = vmatprep.subr.mxu0 0.0
    %740 = vmatpush2.msra.mxu0 0.0
    %741 = vmatprep.subr.mxu0 0.0
    %742 = vmatpush2.msra.mxu0 0.0
    %743 = vmatprep.subr.mxu0 0.0
    %744 = vmatpush2.msra.mxu0 0.0
    %745 = vmatprep.subr.mxu0 0.0
    %746 = vmatpush2.msra.mxu0 0.0
    %747 = vmatprep.subr.mxu0 0.0
    %748 = vmatpush2.msra.mxu0 0.0
    %749 = vmatprep.subr.mxu0 0.0
    %750 = vmatpush2.msra.mxu0 0.0
    %751 = vmatprep.subr.mxu0 0.0
    %752 = vmatpush2.msra.mxu0 0.0
    %753 = vmatprep.mubr.f32.mxu0 0.0
    %v754 = vand.u32 %v685, 4294901760
    %v755 = vsub.f32 %v685, %v754
    %v756 = vand.u32 %v755, 4294901760
    %v757 = vsub.f32 %v755, %v756
    %v758 = vand.u32 %v757, 4294901760
    %759 = vmatmul.mubr.f32.gmra.mxu0 %v758
    %v760 = vpop.f32.mrf.mxu0
    %v761 = vadd.f32 0.0, %v760
    %v762 = vpop.f32.mrf.mxu0
    %763 = vdwg.mxu0
    %764 = vmatprep.subr.mxu0 0.0
    %765 = vmatpush1.msra.mxu0 0.0
    %766 = vmatprep.subr.mxu0 0.0
    %767 = vmatpush1.msra.mxu0 0.0
    %768 = vmatprep.subr.mxu0 0.0
    %769 = vmatpush1.msra.mxu0 0.0
    %770 = vmatprep.subr.mxu0 0.0
    %771 = vmatpush1.msra.mxu0 0.0
    %772 = vmatprep.subr.mxu0 0.0
    %773 = vmatpush1.msra.mxu0 0.0
    %774 = vmatprep.subr.mxu0 0.0
    %775 = vmatpush1.msra.mxu0 0.0
    %776 = vmatprep.subr.mxu0 0.0
    %777 = vmatpush1.msra.mxu0 0.0
    %778 = vmatprep.subr.mxu0 0.0
    %779 = vmatpush1.msra.mxu0 0.0
    %780 = vmatprep.subr.mxu0 0.0
    %781 = vmatpush1.msra.mxu0 0.0
    %782 = vmatprep.subr.mxu0 0.0
    %783 = vmatpush1.msra.mxu0 0.0
    %784 = vmatprep.subr.mxu0 0.0
    %785 = vmatpush1.msra.mxu0 0.0
    %786 = vmatprep.subr.mxu0 0.0
    %787 = vmatpush1.msra.mxu0 0.0
    %788 = vmatprep.subr.mxu0 0.0
    %789 = vmatpush1.msra.mxu0 0.0
    %790 = vmatprep.subr.mxu0 0.0
    %791 = vmatpush1.msra.mxu0 0.0
    %792 = vmatprep.subr.mxu0 0.0
    %v793 = vand.u32 %v221, 4294901760
    %v794 = vsub.f32 %v221, %v793
    %v795 = vand.u32 %v794, 4294901760
    %v796 = vsub.f32 %v794, %v795
    %v797 = vand.u32 %v796, 4294901760
    %798 = vmatpush1.msra.mxu0 %v797
    %799 = vmatprep.subr.mxu0 0.0
    %v800 = vand.u32 %v220, 4294901760
    %v801 = vsub.f32 %v220, %v800
    %v802 = vand.u32 %v801, 4294901760
    %v803 = vsub.f32 %v801, %v802
    %v804 = vand.u32 %v803, 4294901760
    %805 = vmatpush1.msra.mxu0 %v804
    %806 = vmatprep.subr.mxu0 0.0
    %807 = vmatpush2.msra.mxu0 0.0
    %808 = vmatprep.subr.mxu0 0.0
    %809 = vmatpush2.msra.mxu0 0.0
    %810 = vmatprep.subr.mxu0 0.0
    %811 = vmatpush2.msra.mxu0 0.0
    %812 = vmatprep.subr.mxu0 0.0
    %813 = vmatpush2.msra.mxu0 0.0
    %814 = vmatprep.subr.mxu0 0.0
    %815 = vmatpush2.msra.mxu0 0.0
    %816 = vmatprep.subr.mxu0 0.0
    %817 = vmatpush2.msra.mxu0 0.0
    %818 = vmatprep.subr.mxu0 0.0
    %819 = vmatpush2.msra.mxu0 0.0
    %820 = vmatprep.subr.mxu0 0.0
    %821 = vmatpush2.msra.mxu0 0.0
    %822 = vmatprep.subr.mxu0 0.0
    %823 = vmatpush2.msra.mxu0 0.0
    %824 = vmatprep.subr.mxu0 0.0
    %825 = vmatpush2.msra.mxu0 0.0
    %826 = vmatprep.subr.mxu0 0.0
    %827 = vmatpush2.msra.mxu0 0.0
    %828 = vmatprep.subr.mxu0 0.0
    %829 = vmatpush2.msra.mxu0 0.0
    %830 = vmatprep.subr.mxu0 0.0
    %831 = vmatpush2.msra.mxu0 0.0
    %832 = vmatprep.subr.mxu0 0.0
    %833 = vmatpush2.msra.mxu0 0.0
    %834 = vmatprep.subr.mxu0 0.0
    %835 = vmatpush2.msra.mxu0 0.0
    %836 = vmatprep.subr.mxu0 0.0
    %837 = vmatpush2.msra.mxu0 0.0
    %838 = vmatprep.mubr.f32.mxu0 0.0
    %v839 = vand.u32 %v685, 4294901760
    %840 = vmatmul.mubr.f32.gmra.mxu0 %v839
    %v841 = vpop.f32.mrf.mxu0
    %v842 = vadd.f32 %v761, %v841
    %v843 = vpop.f32.mrf.mxu0
    %844 = vdwg.mxu0
    %845 = vmatprep.subr.mxu0 0.0
    %846 = vmatpush1.msra.mxu0 0.0
    %847 = vmatprep.subr.mxu0 0.0
    %848 = vmatpush1.msra.mxu0 0.0
    %849 = vmatprep.subr.mxu0 0.0
    %850 = vmatpush1.msra.mxu0 0.0
    %851 = vmatprep.subr.mxu0 0.0
    %852 = vmatpush1.msra.mxu0 0.0
    %853 = vmatprep.subr.mxu0 0.0
    %854 = vmatpush1.msra.mxu0 0.0
    %855 = vmatprep.subr.mxu0 0.0
    %856 = vmatpush1.msra.mxu0 0.0
    %857 = vmatprep.subr.mxu0 0.0
    %858 = vmatpush1.msra.mxu0 0.0
    %859 = vmatprep.subr.mxu0 0.0
    %860 = vmatpush1.msra.mxu0 0.0
    %861 = vmatprep.subr.mxu0 0.0
    %862 = vmatpush1.msra.mxu0 0.0
    %863 = vmatprep.subr.mxu0 0.0
    %864 = vmatpush1.msra.mxu0 0.0
    %865 = vmatprep.subr.mxu0 0.0
    %866 = vmatpush1.msra.mxu0 0.0
    %867 = vmatprep.subr.mxu0 0.0
    %868 = vmatpush1.msra.mxu0 0.0
    %869 = vmatprep.subr.mxu0 0.0
    %870 = vmatpush1.msra.mxu0 0.0
    %871 = vmatprep.subr.mxu0 0.0
    %872 = vmatpush1.msra.mxu0 0.0
    %873 = vmatprep.subr.mxu0 0.0
    %v874 = vand.u32 %v221, 4294901760
    %v875 = vsub.f32 %v221, %v874
    %876 = vmatpush1.msra.mxu0 %v875
    %877 = vmatprep.subr.mxu0 0.0
    %v878 = vand.u32 %v220, 4294901760
    %v879 = vsub.f32 %v220, %v878
    %880 = vmatpush1.msra.mxu0 %v879
    %881 = vmatprep.subr.mxu0 0.0
    %882 = vmatpush2.msra.mxu0 0.0
    %883 = vmatprep.subr.mxu0 0.0
    %884 = vmatpush2.msra.mxu0 0.0
    %885 = vmatprep.subr.mxu0 0.0
    %886 = vmatpush2.msra.mxu0 0.0
    %887 = vmatprep.subr.mxu0 0.0
    %888 = vmatpush2.msra.mxu0 0.0
    %889 = vmatprep.subr.mxu0 0.0
    %890 = vmatpush2.msra.mxu0 0.0
    %891 = vmatprep.subr.mxu0 0.0
    %892 = vmatpush2.msra.mxu0 0.0
    %893 = vmatprep.subr.mxu0 0.0
    %894 = vmatpush2.msra.mxu0 0.0
    %895 = vmatprep.subr.mxu0 0.0
    %896 = vmatpush2.msra.mxu0 0.0
    %897 = vmatprep.subr.mxu0 0.0
    %898 = vmatpush2.msra.mxu0 0.0
    %899 = vmatprep.subr.mxu0 0.0
    %900 = vmatpush2.msra.mxu0 0.0
    %901 = vmatprep.subr.mxu0 0.0
    %902 = vmatpush2.msra.mxu0 0.0
    %903 = vmatprep.subr.mxu0 0.0
    %904 = vmatpush2.msra.mxu0 0.0
    %905 = vmatprep.subr.mxu0 0.0
    %906 = vmatpush2.msra.mxu0 0.0
    %907 = vmatprep.subr.mxu0 0.0
    %908 = vmatpush2.msra.mxu0 0.0
    %909 = vmatprep.subr.mxu0 0.0
    %910 = vmatpush2.msra.mxu0 0.0
    %911 = vmatprep.subr.mxu0 0.0
    %912 = vmatpush2.msra.mxu0 0.0
    %913 = vmatprep.mubr.f32.mxu0 0.0
    %v914 = vand.u32 %v685, 4294901760
    %v915 = vsub.f32 %v685, %v914
    %916 = vmatmul.mubr.f32.gmra.mxu0 %v915
    %v917 = vpop.f32.mrf.mxu0
    %v918 = vadd.f32 %v842, %v917
    %v919 = vpop.f32.mrf.mxu0
    %920 = vdwg.mxu0
    %921 = vmatprep.subr.mxu0 0.0
    %922 = vmatpush1.msra.mxu0 0.0
    %923 = vmatprep.subr.mxu0 0.0
    %924 = vmatpush1.msra.mxu0 0.0
    %925 = vmatprep.subr.mxu0 0.0
    %926 = vmatpush1.msra.mxu0 0.0
    %927 = vmatprep.subr.mxu0 0.0
    %928 = vmatpush1.msra.mxu0 0.0
    %929 = vmatprep.subr.mxu0 0.0
    %930 = vmatpush1.msra.mxu0 0.0
    %931 = vmatprep.subr.mxu0 0.0
    %932 = vmatpush1.msra.mxu0 0.0
    %933 = vmatprep.subr.mxu0 0.0
    %934 = vmatpush1.msra.mxu0 0.0
    %935 = vmatprep.subr.mxu0 0.0
    %936 = vmatpush1.msra.mxu0 0.0
    %937 = vmatprep.subr.mxu0 0.0
    %938 = vmatpush1.msra.mxu0 0.0
    %939 = vmatprep.subr.mxu0 0.0
    %940 = vmatpush1.msra.mxu0 0.0
    %941 = vmatprep.subr.mxu0 0.0
    %942 = vmatpush1.msra.mxu0 0.0
    %943 = vmatprep.subr.mxu0 0.0
    %944 = vmatpush1.msra.mxu0 0.0
    %945 = vmatprep.subr.mxu0 0.0
    %946 = vmatpush1.msra.mxu0 0.0
    %947 = vmatprep.subr.mxu0 0.0
    %948 = vmatpush1.msra.mxu0 0.0
    %949 = vmatprep.subr.mxu0 0.0
    %v950 = vand.u32 %v221, 4294901760
    %951 = vmatpush1.msra.mxu0 %v950
    %952 = vmatprep.subr.mxu0 0.0
    %v953 = vand.u32 %v220, 4294901760
    %954 = vmatpush1.msra.mxu0 %v953
    %955 = vmatprep.subr.mxu0 0.0
    %956 = vmatpush2.msra.mxu0 0.0
    %957 = vmatprep.subr.mxu0 0.0
    %958 = vmatpush2.msra.mxu0 0.0
    %959 = vmatprep.subr.mxu0 0.0
    %960 = vmatpush2.msra.mxu0 0.0
    %961 = vmatprep.subr.mxu0 0.0
    %962 = vmatpush2.msra.mxu0 0.0
    %963 = vmatprep.subr.mxu0 0.0
    %964 = vmatpush2.msra.mxu0 0.0
    %965 = vmatprep.subr.mxu0 0.0
    %966 = vmatpush2.msra.mxu0 0.0
    %967 = vmatprep.subr.mxu0 0.0
    %968 = vmatpush2.msra.mxu0 0.0
    %969 = vmatprep.subr.mxu0 0.0
    %970 = vmatpush2.msra.mxu0 0.0
    %971 = vmatprep.subr.mxu0 0.0
    %972 = vmatpush2.msra.mxu0 0.0
    %973 = vmatprep.subr.mxu0 0.0
    %974 = vmatpush2.msra.mxu0 0.0
    %975 = vmatprep.subr.mxu0 0.0
    %976 = vmatpush2.msra.mxu0 0.0
    %977 = vmatprep.subr.mxu0 0.0
    %978 = vmatpush2.msra.mxu0 0.0
    %979 = vmatprep.subr.mxu0 0.0
    %980 = vmatpush2.msra.mxu0 0.0
    %981 = vmatprep.subr.mxu0 0.0
    %982 = vmatpush2.msra.mxu0 0.0
    %983 = vmatprep.subr.mxu0 0.0
    %984 = vmatpush2.msra.mxu0 0.0
    %985 = vmatprep.subr.mxu0 0.0
    %986 = vmatpush2.msra.mxu0 0.0
    %987 = vmatprep.mubr.f32.mxu0 0.0
    %v988 = vand.u32 %v685, 4294901760
    %v989 = vsub.f32 %v685, %v988
    %v990 = vand.u32 %v989, 4294901760
    %991 = vmatmul.mubr.f32.gmra.mxu0 %v990
    %v992 = vpop.f32.mrf.mxu0
    %v993 = vadd.f32 %v918, %v992
    %v994 = vpop.f32.mrf.mxu0
    %995 = vdwg.mxu0
    %996 = vmatprep.subr.mxu0 0.0
    %997 = vmatpush1.msra.mxu0 0.0
    %998 = vmatprep.subr.mxu0 0.0
    %999 = vmatpush1.msra.mxu0 0.0
    %1000 = vmatprep.subr.mxu0 0.0
    %1001 = vmatpush1.msra.mxu0 0.0
    %1002 = vmatprep.subr.mxu0 0.0
    %1003 = vmatpush1.msra.mxu0 0.0
    %1004 = vmatprep.subr.mxu0 0.0
    %1005 = vmatpush1.msra.mxu0 0.0
    %1006 = vmatprep.subr.mxu0 0.0
    %1007 = vmatpush1.msra.mxu0 0.0
    %1008 = vmatprep.subr.mxu0 0.0
    %1009 = vmatpush1.msra.mxu0 0.0
    %1010 = vmatprep.subr.mxu0 0.0
    %1011 = vmatpush1.msra.mxu0 0.0
    %1012 = vmatprep.subr.mxu0 0.0
    %1013 = vmatpush1.msra.mxu0 0.0
    %1014 = vmatprep.subr.mxu0 0.0
    %1015 = vmatpush1.msra.mxu0 0.0
    %1016 = vmatprep.subr.mxu0 0.0
    %1017 = vmatpush1.msra.mxu0 0.0
    %1018 = vmatprep.subr.mxu0 0.0
    %1019 = vmatpush1.msra.mxu0 0.0
    %1020 = vmatprep.subr.mxu0 0.0
    %1021 = vmatpush1.msra.mxu0 0.0
    %1022 = vmatprep.subr.mxu0 0.0
    %1023 = vmatpush1.msra.mxu0 0.0
    %1024 = vmatprep.subr.mxu0 0.0
    %v1025 = vand.u32 %v221, 4294901760
    %v1026 = vsub.f32 %v221, %v1025
    %v1027 = vand.u32 %v1026, 4294901760
    %1028 = vmatpush1.msra.mxu0 %v1027
    %1029 = vmatprep.subr.mxu0 0.0
    %v1030 = vand.u32 %v220, 4294901760
    %v1031 = vsub.f32 %v220, %v1030
    %v1032 = vand.u32 %v1031, 4294901760
    %1033 = vmatpush1.msra.mxu0 %v1032
    %1034 = vmatprep.subr.mxu0 0.0
    %1035 = vmatpush2.msra.mxu0 0.0
    %1036 = vmatprep.subr.mxu0 0.0
    %1037 = vmatpush2.msra.mxu0 0.0
    %1038 = vmatprep.subr.mxu0 0.0
    %1039 = vmatpush2.msra.mxu0 0.0
    %1040 = vmatprep.subr.mxu0 0.0
    %1041 = vmatpush2.msra.mxu0 0.0
    %1042 = vmatprep.subr.mxu0 0.0
    %1043 = vmatpush2.msra.mxu0 0.0
    %1044 = vmatprep.subr.mxu0 0.0
    %1045 = vmatpush2.msra.mxu0 0.0
    %1046 = vmatprep.subr.mxu0 0.0
    %1047 = vmatpush2.msra.mxu0 0.0
    %1048 = vmatprep.subr.mxu0 0.0
    %1049 = vmatpush2.msra.mxu0 0.0
    %1050 = vmatprep.subr.mxu0 0.0
    %1051 = vmatpush2.msra.mxu0 0.0
    %1052 = vmatprep.subr.mxu0 0.0
    %1053 = vmatpush2.msra.mxu0 0.0
    %1054 = vmatprep.subr.mxu0 0.0
    %1055 = vmatpush2.msra.mxu0 0.0
    %1056 = vmatprep.subr.mxu0 0.0
    %1057 = vmatpush2.msra.mxu0 0.0
    %1058 = vmatprep.subr.mxu0 0.0
    %1059 = vmatpush2.msra.mxu0 0.0
    %1060 = vmatprep.subr.mxu0 0.0
    %1061 = vmatpush2.msra.mxu0 0.0
    %1062 = vmatprep.subr.mxu0 0.0
    %1063 = vmatpush2.msra.mxu0 0.0
    %1064 = vmatprep.subr.mxu0 0.0
    %1065 = vmatpush2.msra.mxu0 0.0
    %1066 = vmatprep.mubr.f32.mxu0 0.0
    %v1067 = vand.u32 %v685, 4294901760
    %1068 = vmatmul.mubr.f32.gmra.mxu0 %v1067
    %v1069 = vpop.f32.mrf.mxu0
    %v1070 = vadd.f32 %v993, %v1069
    %v1071 = vpop.f32.mrf.mxu0
    %1072 = vdwg.mxu0
    %1073 = vmatprep.subr.mxu0 0.0
    %1074 = vmatpush1.msra.mxu0 0.0
    %1075 = vmatprep.subr.mxu0 0.0
    %1076 = vmatpush1.msra.mxu0 0.0
    %1077 = vmatprep.subr.mxu0 0.0
    %1078 = vmatpush1.msra.mxu0 0.0
    %1079 = vmatprep.subr.mxu0 0.0
    %1080 = vmatpush1.msra.mxu0 0.0
    %1081 = vmatprep.subr.mxu0 0.0
    %1082 = vmatpush1.msra.mxu0 0.0
    %1083 = vmatprep.subr.mxu0 0.0
    %1084 = vmatpush1.msra.mxu0 0.0
    %1085 = vmatprep.subr.mxu0 0.0
    %1086 = vmatpush1.msra.mxu0 0.0
    %1087 = vmatprep.subr.mxu0 0.0
    %1088 = vmatpush1.msra.mxu0 0.0
    %1089 = vmatprep.subr.mxu0 0.0
    %1090 = vmatpush1.msra.mxu0 0.0
    %1091 = vmatprep.subr.mxu0 0.0
    %1092 = vmatpush1.msra.mxu0 0.0
    %1093 = vmatprep.subr.mxu0 0.0
    %1094 = vmatpush1.msra.mxu0 0.0
    %1095 = vmatprep.subr.mxu0 0.0
    %1096 = vmatpush1.msra.mxu0 0.0
    %1097 = vmatprep.subr.mxu0 0.0
    %1098 = vmatpush1.msra.mxu0 0.0
    %1099 = vmatprep.subr.mxu0 0.0
    %1100 = vmatpush1.msra.mxu0 0.0
    %1101 = vmatprep.subr.mxu0 0.0
    %v1102 = vand.u32 %v221, 4294901760
    %1103 = vmatpush1.msra.mxu0 %v1102
    %1104 = vmatprep.subr.mxu0 0.0
    %v1105 = vand.u32 %v220, 4294901760
    %1106 = vmatpush1.msra.mxu0 %v1105
    %1107 = vmatprep.subr.mxu0 0.0
    %1108 = vmatpush2.msra.mxu0 0.0
    %1109 = vmatprep.subr.mxu0 0.0
    %1110 = vmatpush2.msra.mxu0 0.0
    %1111 = vmatprep.subr.mxu0 0.0
    %1112 = vmatpush2.msra.mxu0 0.0
    %1113 = vmatprep.subr.mxu0 0.0
    %1114 = vmatpush2.msra.mxu0 0.0
    %1115 = vmatprep.subr.mxu0 0.0
    %1116 = vmatpush2.msra.mxu0 0.0
    %1117 = vmatprep.subr.mxu0 0.0
    %1118 = vmatpush2.msra.mxu0 0.0
    %1119 = vmatprep.subr.mxu0 0.0
    %1120 = vmatpush2.msra.mxu0 0.0
    %1121 = vmatprep.subr.mxu0 0.0
    %1122 = vmatpush2.msra.mxu0 0.0
    %1123 = vmatprep.subr.mxu0 0.0
    %1124 = vmatpush2.msra.mxu0 0.0
    %1125 = vmatprep.subr.mxu0 0.0
    %1126 = vmatpush2.msra.mxu0 0.0
    %1127 = vmatprep.subr.mxu0 0.0
    %1128 = vmatpush2.msra.mxu0 0.0
    %1129 = vmatprep.subr.mxu0 0.0
    %1130 = vmatpush2.msra.mxu0 0.0
    %1131 = vmatprep.subr.mxu0 0.0
    %1132 = vmatpush2.msra.mxu0 0.0
    %1133 = vmatprep.subr.mxu0 0.0
    %1134 = vmatpush2.msra.mxu0 0.0
    %1135 = vmatprep.subr.mxu0 0.0
    %1136 = vmatpush2.msra.mxu0 0.0
    %1137 = vmatprep.subr.mxu0 0.0
    %1138 = vmatpush2.msra.mxu0 0.0
    %1139 = vmatprep.mubr.f32.mxu0 0.0
    %v1140 = vand.u32 %v685, 4294901760
    %1141 = vmatmul.mubr.f32.gmra.mxu0 %v1140
    %v1142 = vpop.f32.mrf.mxu0
    %v1143 = vadd.f32 %v1070, %v1142
    %v1144 = vpop.f32.mrf.mxu0
    %1145 = vdwg.mxu0
    %v1146 = vlog2.pop %v681
    %v1147 = vmul.f32 %v1146, 0.6931472
    %v1148 = vsub.f32 %v1147, %v1143
    %v1149 = vadd.f32 %v1148, 0.0
    %v1150 = vld [vmem:[%s9] sm:$0xff]
    %vm1151 = vcmask 261120
    %v1152 = vsel %vm1151, %v1150, -inf
    %1153 = vmax.xlane.f32.xlu0 %v1152
    %v1154 = vpop.xlane.xlu0 %1153
    %v1155 = vsub.f32 %v1150, %v1154
    %v1156 = vmul.f32 %v1155, 1.442695
    %v1157 = vpow.pop %v1156
    %1158 = vset.pattern.permute.xlu0 1
    %1159 = vperm.xlu0 %1158, %v204
    %v1160 = vpop.permute.xlu0 %1159
    %vm1161 = vcmp.eq.s32.totalorder %v214, %v1160
    %v1162 = vsel %vm1161, %v1155, 0.0
    %v1163 = vld [vmem:[#allocation7] sm:$0xff]
    %v1164 = vld [vmem:[#allocation7 + $0x8] sm:$0xff]
    %v1165 = vld [vmem:[#allocation7 + $0x10] sm:$0xff]
    %v1166 = vld [vmem:[#allocation7 + $0x18] sm:$0xff]
    %v1168 = vsel %vm1151, %v1157, 0
    %1170 = vmatprep.subr.mxu0 0.0
    %1171 = vmatpush1.msra.mxu0 0.0
    %1172 = vmatprep.subr.mxu0 0.0
    %1173 = vmatpush1.msra.mxu0 0.0
    %1174 = vmatprep.subr.mxu0 0.0
    %1175 = vmatpush1.msra.mxu0 0.0
    %1176 = vmatprep.subr.mxu0 0.0
    %1177 = vmatpush1.msra.mxu0 0.0
    %1178 = vmatprep.subr.mxu0 0.0
    %1179 = vmatpush1.msra.mxu0 0.0
    %1180 = vmatprep.subr.mxu0 0.0
    %1181 = vmatpush1.msra.mxu0 0.0
    %1182 = vmatprep.subr.mxu0 0.0
    %1183 = vmatpush1.msra.mxu0 0.0
    %1184 = vmatprep.subr.mxu0 0.0
    %1185 = vmatpush1.msra.mxu0 0.0
    %1186 = vmatprep.subr.mxu0 0.0
    %1187 = vmatpush1.msra.mxu0 0.0
    %1188 = vmatprep.subr.mxu0 0.0
    %1189 = vmatpush1.msra.mxu0 0.0
    %1190 = vmatprep.subr.mxu0 0.0
    %1191 = vmatpush1.msra.mxu0 0.0
    %1192 = vmatprep.subr.mxu0 0.0
    %1193 = vmatpush1.msra.mxu0 0.0
    %1194 = vmatprep.subr.mxu0 0.0
    %v1195 = vand.u32 %v1166, 4294901760
    %1196 = vmatpush1.msra.mxu0 %v1195
    %1197 = vmatprep.subr.mxu0 0.0
    %v1198 = vand.u32 %v1165, 4294901760
    %1199 = vmatpush1.msra.mxu0 %v1198
    %1200 = vmatprep.subr.mxu0 0.0
    %v1201 = vand.u32 %v1164, 4294901760
    %1202 = vmatpush1.msra.mxu0 %v1201
    %1203 = vmatprep.subr.mxu0 0.0
    %v1204 = vand.u32 %v1163, 4294901760
    %1205 = vmatpush1.msra.mxu0 %v1204
    %1206 = vmatprep.subr.mxu0 0.0
    %1207 = vmatpush2.msra.mxu0 0.0
    %1208 = vmatprep.subr.mxu0 0.0
    %1209 = vmatpush2.msra.mxu0 0.0
    %1210 = vmatprep.subr.mxu0 0.0
    %1211 = vmatpush2.msra.mxu0 0.0
    %1212 = vmatprep.subr.mxu0 0.0
    %1213 = vmatpush2.msra.mxu0 0.0
    %1214 = vmatprep.subr.mxu0 0.0
    %1215 = vmatpush2.msra.mxu0 0.0
    %1216 = vmatprep.subr.mxu0 0.0
    %1217 = vmatpush2.msra.mxu0 0.0
    %1218 = vmatprep.subr.mxu0 0.0
    %1219 = vmatpush2.msra.mxu0 0.0
    %1220 = vmatprep.subr.mxu0 0.0
    %1221 = vmatpush2.msra.mxu0 0.0
    %1222 = vmatprep.subr.mxu0 0.0
    %1223 = vmatpush2.msra.mxu0 0.0
    %1224 = vmatprep.subr.mxu0 0.0
    %1225 = vmatpush2.msra.mxu0 0.0
    %1226 = vmatprep.subr.mxu0 0.0
    %1227 = vmatpush2.msra.mxu0 0.0
    %1228 = vmatprep.subr.mxu0 0.0
    %1229 = vmatpush2.msra.mxu0 0.0
    %1230 = vmatprep.subr.mxu0 0.0
    %1231 = vmatpush2.msra.mxu0 0.0
    %1232 = vmatprep.subr.mxu0 0.0
    %1233 = vmatpush2.msra.mxu0 0.0
    %1234 = vmatprep.subr.mxu0 0.0
    %1235 = vmatpush2.msra.mxu0 0.0
    %1236 = vmatprep.subr.mxu0 0.0
    %1237 = vmatpush2.msra.mxu0 0.0
    %1238 = vmatprep.mubr.f32.mxu0 0.0
    %v1239 = vand.u32 %v1168, 4294901760
    %v1240 = vsub.f32 %v1168, %v1239
    %v1241 = vand.u32 %v1240, 4294901760
    %v1242 = vsub.f32 %v1240, %v1241
    %v1243 = vand.u32 %v1242, 4294901760
    %1244 = vmatmul.mubr.f32.gmra.mxu0 %v1243
    %v1245 = vpop.f32.mrf.mxu0
    %v1246 = vadd.f32 0.0, %v1245
    %v1247 = vpop.f32.mrf.mxu0
    %1248 = vdwg.mxu0
    %1249 = vmatprep.subr.mxu0 0.0
    %1250 = vmatpush1.msra.mxu0 0.0
    %1251 = vmatprep.subr.mxu0 0.0
    %1252 = vmatpush1.msra.mxu0 0.0
    %1253 = vmatprep.subr.mxu0 0.0
    %1254 = vmatpush1.msra.mxu0 0.0
    %1255 = vmatprep.subr.mxu0 0.0
    %1256 = vmatpush1.msra.mxu0 0.0
    %1257 = vmatprep.subr.mxu0 0.0
    %1258 = vmatpush1.msra.mxu0 0.0
    %1259 = vmatprep.subr.mxu0 0.0
    %1260 = vmatpush1.msra.mxu0 0.0
    %1261 = vmatprep.subr.mxu0 0.0
    %1262 = vmatpush1.msra.mxu0 0.0
    %1263 = vmatprep.subr.mxu0 0.0
    %1264 = vmatpush1.msra.mxu0 0.0
    %1265 = vmatprep.subr.mxu0 0.0
    %1266 = vmatpush1.msra.mxu0 0.0
    %1267 = vmatprep.subr.mxu0 0.0
    %1268 = vmatpush1.msra.mxu0 0.0
    %1269 = vmatprep.subr.mxu0 0.0
    %1270 = vmatpush1.msra.mxu0 0.0
    %1271 = vmatprep.subr.mxu0 0.0
    %1272 = vmatpush1.msra.mxu0 0.0
    %1273 = vmatprep.subr.mxu0 0.0
    %v1274 = vand.u32 %v1166, 4294901760
    %v1275 = vsub.f32 %v1166, %v1274
    %v1276 = vand.u32 %v1275, 4294901760
    %v1277 = vsub.f32 %v1275, %v1276
    %v1278 = vand.u32 %v1277, 4294901760
    %1279 = vmatpush1.msra.mxu0 %v1278
    %1280 = vmatprep.subr.mxu0 0.0
    %v1281 = vand.u32 %v1165, 4294901760
    %v1282 = vsub.f32 %v1165, %v1281
    %v1283 = vand.u32 %v1282, 4294901760
    %v1284 = vsub.f32 %v1282, %v1283
    %v1285 = vand.u32 %v1284, 4294901760
    %1286 = vmatpush1.msra.mxu0 %v1285
    %1287 = vmatprep.subr.mxu0 0.0
    %v1288 = vand.u32 %v1164, 4294901760
    %v1289 = vsub.f32 %v1164, %v1288
    %v1290 = vand.u32 %v1289, 4294901760
    %v1291 = vsub.f32 %v1289, %v1290
    %v1292 = vand.u32 %v1291, 4294901760
    %1293 = vmatpush1.msra.mxu0 %v1292
    %1294 = vmatprep.subr.mxu0 0.0
    %v1295 = vand.u32 %v1163, 4294901760
    %v1296 = vsub.f32 %v1163, %v1295
    %v1297 = vand.u32 %v1296, 4294901760
    %v1298 = vsub.f32 %v1296, %v1297
    %v1299 = vand.u32 %v1298, 4294901760
    %1300 = vmatpush1.msra.mxu0 %v1299
    %1301 = vmatprep.subr.mxu0 0.0
    %1302 = vmatpush2.msra.mxu0 0.0
    %1303 = vmatprep.subr.mxu0 0.0
    %1304 = vmatpush2.msra.mxu0 0.0
    %1305 = vmatprep.subr.mxu0 0.0
    %1306 = vmatpush2.msra.mxu0 0.0
    %1307 = vmatprep.subr.mxu0 0.0
    %1308 = vmatpush2.msra.mxu0 0.0
    %1309 = vmatprep.subr.mxu0 0.0
    %1310 = vmatpush2.msra.mxu0 0.0
    %1311 = vmatprep.subr.mxu0 0.0
    %1312 = vmatpush2.msra.mxu0 0.0
    %1313 = vmatprep.subr.mxu0 0.0
    %1314 = vmatpush2.msra.mxu0 0.0
    %1315 = vmatprep.subr.mxu0 0.0
    %1316 = vmatpush2.msra.mxu0 0.0
    %1317 = vmatprep.subr.mxu0 0.0
    %1318 = vmatpush2.msra.mxu0 0.0
    %1319 = vmatprep.subr.mxu0 0.0
    %1320 = vmatpush2.msra.mxu0 0.0
    %1321 = vmatprep.subr.mxu0 0.0
    %1322 = vmatpush2.msra.mxu0 0.0
    %1323 = vmatprep.subr.mxu0 0.0
    %1324 = vmatpush2.msra.mxu0 0.0
    %1325 = vmatprep.subr.mxu0 0.0
    %1326 = vmatpush2.msra.mxu0 0.0
    %1327 = vmatprep.subr.mxu0 0.0
    %1328 = vmatpush2.msra.mxu0 0.0
    %1329 = vmatprep.subr.mxu0 0.0
    %1330 = vmatpush2.msra.mxu0 0.0
    %1331 = vmatprep.subr.mxu0 0.0
    %1332 = vmatpush2.msra.mxu0 0.0
    %1333 = vmatprep.mubr.f32.mxu0 0.0
    %v1334 = vand.u32 %v1168, 4294901760
    %1335 = vmatmul.mubr.f32.gmra.mxu0 %v1334
    %v1336 = vpop.f32.mrf.mxu0
    %v1337 = vadd.f32 %v1246, %v1336
    %v1338 = vpop.f32.mrf.mxu0
    %1339 = vdwg.mxu0
    %1340 = vmatprep.subr.mxu0 0.0
    %1341 = vmatpush1.msra.mxu0 0.0
    %1342 = vmatprep.subr.mxu0 0.0
    %1343 = vmatpush1.msra.mxu0 0.0
    %1344 = vmatprep.subr.mxu0 0.0
    %1345 = vmatpush1.msra.mxu0 0.0
    %1346 = vmatprep.subr.mxu0 0.0
    %1347 = vmatpush1.msra.mxu0 0.0
    %1348 = vmatprep.subr.mxu0 0.0
    %1349 = vmatpush1.msra.mxu0 0.0
    %1350 = vmatprep.subr.mxu0 0.0
    %1351 = vmatpush1.msra.mxu0 0.0
    %1352 = vmatprep.subr.mxu0 0.0
    %1353 = vmatpush1.msra.mxu0 0.0
    %1354 = vmatprep.subr.mxu0 0.0
    %1355 = vmatpush1.msra.mxu0 0.0
    %1356 = vmatprep.subr.mxu0 0.0
    %1357 = vmatpush1.msra.mxu0 0.0
    %1358 = vmatprep.subr.mxu0 0.0
    %1359 = vmatpush1.msra.mxu0 0.0
    %1360 = vmatprep.subr.mxu0 0.0
    %1361 = vmatpush1.msra.mxu0 0.0
    %1362 = vmatprep.subr.mxu0 0.0
    %1363 = vmatpush1.msra.mxu0 0.0
    %1364 = vmatprep.subr.mxu0 0.0
    %v1365 = vand.u32 %v1166, 4294901760
    %v1366 = vsub.f32 %v1166, %v1365
    %1367 = vmatpush1.msra.mxu0 %v1366
    %1368 = vmatprep.subr.mxu0 0.0
    %v1369 = vand.u32 %v1165, 4294901760
    %v1370 = vsub.f32 %v1165, %v1369
    %1371 = vmatpush1.msra.mxu0 %v1370
    %1372 = vmatprep.subr.mxu0 0.0
    %v1373 = vand.u32 %v1164, 4294901760
    %v1374 = vsub.f32 %v1164, %v1373
    %1375 = vmatpush1.msra.mxu0 %v1374
    %1376 = vmatprep.subr.mxu0 0.0
    %v1377 = vand.u32 %v1163, 4294901760
    %v1378 = vsub.f32 %v1163, %v1377
    %1379 = vmatpush1.msra.mxu0 %v1378
    %1380 = vmatprep.subr.mxu0 0.0
    %1381 = vmatpush2.msra.mxu0 0.0
    %1382 = vmatprep.subr.mxu0 0.0
    %1383 = vmatpush2.msra.mxu0 0.0
    %1384 = vmatprep.subr.mxu0 0.0
    %1385 = vmatpush2.msra.mxu0 0.0
    %1386 = vmatprep.subr.mxu0 0.0
    %1387 = vmatpush2.msra.mxu0 0.0
    %1388 = vmatprep.subr.mxu0 0.0
    %1389 = vmatpush2.msra.mxu0 0.0
    %1390 = vmatprep.subr.mxu0 0.0
    %1391 = vmatpush2.msra.mxu0 0.0
    %1392 = vmatprep.subr.mxu0 0.0
    %1393 = vmatpush2.msra.mxu0 0.0
    %1394 = vmatprep.subr.mxu0 0.0
    %1395 = vmatpush2.msra.mxu0 0.0
    %1396 = vmatprep.subr.mxu0 0.0
    %1397 = vmatpush2.msra.mxu0 0.0
    %1398 = vmatprep.subr.mxu0 0.0
    %1399 = vmatpush2.msra.mxu0 0.0
    %1400 = vmatprep.subr.mxu0 0.0
    %1401 = vmatpush2.msra.mxu0 0.0
    %1402 = vmatprep.subr.mxu0 0.0
    %1403 = vmatpush2.msra.mxu0 0.0
    %1404 = vmatprep.subr.mxu0 0.0
    %1405 = vmatpush2.msra.mxu0 0.0
    %1406 = vmatprep.subr.mxu0 0.0
    %1407 = vmatpush2.msra.mxu0 0.0
    %1408 = vmatprep.subr.mxu0 0.0
    %1409 = vmatpush2.msra.mxu0 0.0
    %1410 = vmatprep.subr.mxu0 0.0
    %1411 = vmatpush2.msra.mxu0 0.0
    %1412 = vmatprep.mubr.f32.mxu0 0.0
    %v1413 = vand.u32 %v1168, 4294901760
    %v1414 = vsub.f32 %v1168, %v1413
    %1415 = vmatmul.mubr.f32.gmra.mxu0 %v1414
    %v1416 = vpop.f32.mrf.mxu0
    %v1417 = vadd.f32 %v1337, %v1416
    %v1418 = vpop.f32.mrf.mxu0
    %1419 = vdwg.mxu0
    %1420 = vmatprep.subr.mxu0 0.0
    %1421 = vmatpush1.msra.mxu0 0.0
    %1422 = vmatprep.subr.mxu0 0.0
    %1423 = vmatpush1.msra.mxu0 0.0
    %1424 = vmatprep.subr.mxu0 0.0
    %1425 = vmatpush1.msra.mxu0 0.0
    %1426 = vmatprep.subr.mxu0 0.0
    %1427 = vmatpush1.msra.mxu0 0.0
    %1428 = vmatprep.subr.mxu0 0.0
    %1429 = vmatpush1.msra.mxu0 0.0
    %1430 = vmatprep.subr.mxu0 0.0
    %1431 = vmatpush1.msra.mxu0 0.0
    %1432 = vmatprep.subr.mxu0 0.0
    %1433 = vmatpush1.msra.mxu0 0.0
    %1434 = vmatprep.subr.mxu0 0.0
    %1435 = vmatpush1.msra.mxu0 0.0
    %1436 = vmatprep.subr.mxu0 0.0
    %1437 = vmatpush1.msra.mxu0 0.0
    %1438 = vmatprep.subr.mxu0 0.0
    %1439 = vmatpush1.msra.mxu0 0.0
    %1440 = vmatprep.subr.mxu0 0.0
    %1441 = vmatpush1.msra.mxu0 0.0
    %1442 = vmatprep.subr.mxu0 0.0
    %1443 = vmatpush1.msra.mxu0 0.0
    %1444 = vmatprep.subr.mxu0 0.0
    %v1445 = vand.u32 %v1166, 4294901760
    %1446 = vmatpush1.msra.mxu0 %v1445
    %1447 = vmatprep.subr.mxu0 0.0
    %v1448 = vand.u32 %v1165, 4294901760
    %1449 = vmatpush1.msra.mxu0 %v1448
    %1450 = vmatprep.subr.mxu0 0.0
    %v1451 = vand.u32 %v1164, 4294901760
    %1452 = vmatpush1.msra.mxu0 %v1451
    %1453 = vmatprep.subr.mxu0 0.0
    %v1454 = vand.u32 %v1163, 4294901760
    %1455 = vmatpush1.msra.mxu0 %v1454
    %1456 = vmatprep.subr.mxu0 0.0
    %1457 = vmatpush2.msra.mxu0 0.0
    %1458 = vmatprep.subr.mxu0 0.0
    %1459 = vmatpush2.msra.mxu0 0.0
    %1460 = vmatprep.subr.mxu0 0.0
    %1461 = vmatpush2.msra.mxu0 0.0
    %1462 = vmatprep.subr.mxu0 0.0
    %1463 = vmatpush2.msra.mxu0 0.0
    %1464 = vmatprep.subr.mxu0 0.0
    %1465 = vmatpush2.msra.mxu0 0.0
    %1466 = vmatprep.subr.mxu0 0.0
    %1467 = vmatpush2.msra.mxu0 0.0
    %1468 = vmatprep.subr.mxu0 0.0
    %1469 = vmatpush2.msra.mxu0 0.0
    %1470 = vmatprep.subr.mxu0 0.0
    %1471 = vmatpush2.msra.mxu0 0.0
    %1472 = vmatprep.subr.mxu0 0.0
    %1473 = vmatpush2.msra.mxu0 0.0
    %1474 = vmatprep.subr.mxu0 0.0
    %1475 = vmatpush2.msra.mxu0 0.0
    %1476 = vmatprep.subr.mxu0 0.0
    %1477 = vmatpush2.msra.mxu0 0.0
    %1478 = vmatprep.subr.mxu0 0.0
    %1479 = vmatpush2.msra.mxu0 0.0
    %1480 = vmatprep.subr.mxu0 0.0
    %1481 = vmatpush2.msra.mxu0 0.0
    %1482 = vmatprep.subr.mxu0 0.0
    %1483 = vmatpush2.msra.mxu0 0.0
    %1484 = vmatprep.subr.mxu0 0.0
    %1485 = vmatpush2.msra.mxu0 0.0
    %1486 = vmatprep.subr.mxu0 0.0
    %1487 = vmatpush2.msra.mxu0 0.0
    %1488 = vmatprep.mubr.f32.mxu0 0.0
    %v1489 = vand.u32 %v1168, 4294901760
    %v1490 = vsub.f32 %v1168, %v1489
    %v1491 = vand.u32 %v1490, 4294901760
    %1492 = vmatmul.mubr.f32.gmra.mxu0 %v1491
    %v1493 = vpop.f32.mrf.mxu0
    %v1494 = vadd.f32 %v1417, %v1493
    %v1495 = vpop.f32.mrf.mxu0
    %1496 = vdwg.mxu0
    %1497 = vmatprep.subr.mxu0 0.0
    %1498 = vmatpush1.msra.mxu0 0.0
    %1499 = vmatprep.subr.mxu0 0.0
    %1500 = vmatpush1.msra.mxu0 0.0
    %1501 = vmatprep.subr.mxu0 0.0
    %1502 = vmatpush1.msra.mxu0 0.0
    %1503 = vmatprep.subr.mxu0 0.0
    %1504 = vmatpush1.msra.mxu0 0.0
    %1505 = vmatprep.subr.mxu0 0.0
    %1506 = vmatpush1.msra.mxu0 0.0
    %1507 = vmatprep.subr.mxu0 0.0
    %1508 = vmatpush1.msra.mxu0 0.0
    %1509 = vmatprep.subr.mxu0 0.0
    %1510 = vmatpush1.msra.mxu0 0.0
    %1511 = vmatprep.subr.mxu0 0.0
    %1512 = vmatpush1.msra.mxu0 0.0
    %1513 = vmatprep.subr.mxu0 0.0
    %1514 = vmatpush1.msra.mxu0 0.0
    %1515 = vmatprep.subr.mxu0 0.0
    %1516 = vmatpush1.msra.mxu0 0.0
    %1517 = vmatprep.subr.mxu0 0.0
    %1518 = vmatpush1.msra.mxu0 0.0
    %1519 = vmatprep.subr.mxu0 0.0
    %1520 = vmatpush1.msra.mxu0 0.0
    %1521 = vmatprep.subr.mxu0 0.0
    %v1522 = vand.u32 %v1166, 4294901760
    %v1523 = vsub.f32 %v1166, %v1522
    %v1524 = vand.u32 %v1523, 4294901760
    %1525 = vmatpush1.msra.mxu0 %v1524
    %1526 = vmatprep.subr.mxu0 0.0
    %v1527 = vand.u32 %v1165, 4294901760
    %v1528 = vsub.f32 %v1165, %v1527
    %v1529 = vand.u32 %v1528, 4294901760
    %1530 = vmatpush1.msra.mxu0 %v1529
    %1531 = vmatprep.subr.mxu0 0.0
    %v1532 = vand.u32 %v1164, 4294901760
    %v1533 = vsub.f32 %v1164, %v1532
    %v1534 = vand.u32 %v1533, 4294901760
    %1535 = vmatpush1.msra.mxu0 %v1534
    %1536 = vmatprep.subr.mxu0 0.0
    %v1537 = vand.u32 %v1163, 4294901760
    %v1538 = vsub.f32 %v1163, %v1537
    %v1539 = vand.u32 %v1538, 4294901760
    %1540 = vmatpush1.msra.mxu0 %v1539
    %1541 = vmatprep.subr.mxu0 0.0
    %1542 = vmatpush2.msra.mxu0 0.0
    %1543 = vmatprep.subr.mxu0 0.0
    %1544 = vmatpush2.msra.mxu0 0.0
    %1545 = vmatprep.subr.mxu0 0.0
    %1546 = vmatpush2.msra.mxu0 0.0
    %1547 = vmatprep.subr.mxu0 0.0
    %1548 = vmatpush2.msra.mxu0 0.0
    %1549 = vmatprep.subr.mxu0 0.0
    %1550 = vmatpush2.msra.mxu0 0.0
    %1551 = vmatprep.subr.mxu0 0.0
    %1552 = vmatpush2.msra.mxu0 0.0
    %1553 = vmatprep.subr.mxu0 0.0
    %1554 = vmatpush2.msra.mxu0 0.0
    %1555 = vmatprep.subr.mxu0 0.0
    %1556 = vmatpush2.msra.mxu0 0.0
    %1557 = vmatprep.subr.mxu0 0.0
    %1558 = vmatpush2.msra.mxu0 0.0
    %1559 = vmatprep.subr.mxu0 0.0
    %1560 = vmatpush2.msra.mxu0 0.0
    %1561 = vmatprep.subr.mxu0 0.0
    %1562 = vmatpush2.msra.mxu0 0.0
    %1563 = vmatprep.subr.mxu0 0.0
    %1564 = vmatpush2.msra.mxu0 0.0
    %1565 = vmatprep.subr.mxu0 0.0
    %1566 = vmatpush2.msra.mxu0 0.0
    %1567 = vmatprep.subr.mxu0 0.0
    %1568 = vmatpush2.msra.mxu0 0.0
    %1569 = vmatprep.subr.mxu0 0.0
    %1570 = vmatpush2.msra.mxu0 0.0
    %1571 = vmatprep.subr.mxu0 0.0
    %1572 = vmatpush2.msra.mxu0 0.0
    %1573 = vmatprep.mubr.f32.mxu0 0.0
    %v1574 = vand.u32 %v1168, 4294901760
    %1575 = vmatmul.mubr.f32.gmra.mxu0 %v1574
    %v1576 = vpop.f32.mrf.mxu0
    %v1577 = vadd.f32 %v1494, %v1576
    %v1578 = vpop.f32.mrf.mxu0
    %1579 = vdwg.mxu0
    %1580 = vmatprep.subr.mxu0 0.0
    %1581 = vmatpush1.msra.mxu0 0.0
    %1582 = vmatprep.subr.mxu0 0.0
    %1583 = vmatpush1.msra.mxu0 0.0
    %1584 = vmatprep.subr.mxu0 0.0
    %1585 = vmatpush1.msra.mxu0 0.0
    %1586 = vmatprep.subr.mxu0 0.0
    %1587 = vmatpush1.msra.mxu0 0.0
    %1588 = vmatprep.subr.mxu0 0.0
    %1589 = vmatpush1.msra.mxu0 0.0
    %1590 = vmatprep.subr.mxu0 0.0
    %1591 = vmatpush1.msra.mxu0 0.0
    %1592 = vmatprep.subr.mxu0 0.0
    %1593 = vmatpush1.msra.mxu0 0.0
    %1594 = vmatprep.subr.mxu0 0.0
    %1595 = vmatpush1.msra.mxu0 0.0
    %1596 = vmatprep.subr.mxu0 0.0
    %1597 = vmatpush1.msra.mxu0 0.0
    %1598 = vmatprep.subr.mxu0 0.0
    %1599 = vmatpush1.msra.mxu0 0.0
    %1600 = vmatprep.subr.mxu0 0.0
    %1601 = vmatpush1.msra.mxu0 0.0
    %1602 = vmatprep.subr.mxu0 0.0
    %1603 = vmatpush1.msra.mxu0 0.0
    %1604 = vmatprep.subr.mxu0 0.0
    %v1605 = vand.u32 %v1166, 4294901760
    %1606 = vmatpush1.msra.mxu0 %v1605
    %1607 = vmatprep.subr.mxu0 0.0
    %v1608 = vand.u32 %v1165, 4294901760
    %1609 = vmatpush1.msra.mxu0 %v1608
    %1610 = vmatprep.subr.mxu0 0.0
    %v1611 = vand.u32 %v1164, 4294901760
    %1612 = vmatpush1.msra.mxu0 %v1611
    %1613 = vmatprep.subr.mxu0 0.0
    %v1614 = vand.u32 %v1163, 4294901760
    %1615 = vmatpush1.msra.mxu0 %v1614
    %1616 = vmatprep.subr.mxu0 0.0
    %1617 = vmatpush2.msra.mxu0 0.0
    %1618 = vmatprep.subr.mxu0 0.0
    %1619 = vmatpush2.msra.mxu0 0.0
    %1620 = vmatprep.subr.mxu0 0.0
    %1621 = vmatpush2.msra.mxu0 0.0
    %1622 = vmatprep.subr.mxu0 0.0
    %1623 = vmatpush2.msra.mxu0 0.0
    %1624 = vmatprep.subr.mxu0 0.0
    %1625 = vmatpush2.msra.mxu0 0.0
    %1626 = vmatprep.subr.mxu0 0.0
    %1627 = vmatpush2.msra.mxu0 0.0
    %1628 = vmatprep.subr.mxu0 0.0
    %1629 = vmatpush2.msra.mxu0 0.0
    %1630 = vmatprep.subr.mxu0 0.0
    %1631 = vmatpush2.msra.mxu0 0.0
    %1632 = vmatprep.subr.mxu0 0.0
    %1633 = vmatpush2.msra.mxu0 0.0
    %1634 = vmatprep.subr.mxu0 0.0
    %1635 = vmatpush2.msra.mxu0 0.0
    %1636 = vmatprep.subr.mxu0 0.0
    %1637 = vmatpush2.msra.mxu0 0.0
    %1638 = vmatprep.subr.mxu0 0.0
    %1639 = vmatpush2.msra.mxu0 0.0
    %1640 = vmatprep.subr.mxu0 0.0
    %1641 = vmatpush2.msra.mxu0 0.0
    %1642 = vmatprep.subr.mxu0 0.0
    %1643 = vmatpush2.msra.mxu0 0.0
    %1644 = vmatprep.subr.mxu0 0.0
    %1645 = vmatpush2.msra.mxu0 0.0
    %1646 = vmatprep.subr.mxu0 0.0
    %1647 = vmatpush2.msra.mxu0 0.0
    %1648 = vmatprep.mubr.f32.mxu0 0.0
    %v1649 = vand.u32 %v1168, 4294901760
    %1650 = vmatmul.mubr.f32.gmra.mxu0 %v1649
    %v1651 = vpop.f32.mrf.mxu0
    %v1652 = vadd.f32 %v1577, %v1651
    %v1653 = vpop.f32.mrf.mxu0
    %1654 = vdwg.mxu0
    %v1656 = vsel %vm1151, %v1162, 0
    %1658 = vmatprep.subr.mxu0 0.0
    %1659 = vmatpush1.msra.mxu0 0.0
    %1660 = vmatprep.subr.mxu0 0.0
    %1661 = vmatpush1.msra.mxu0 0.0
    %1662 = vmatprep.subr.mxu0 0.0
    %1663 = vmatpush1.msra.mxu0 0.0
    %1664 = vmatprep.subr.mxu0 0.0
    %1665 = vmatpush1.msra.mxu0 0.0
    %1666 = vmatprep.subr.mxu0 0.0
    %1667 = vmatpush1.msra.mxu0 0.0
    %1668 = vmatprep.subr.mxu0 0.0
    %1669 = vmatpush1.msra.mxu0 0.0
    %1670 = vmatprep.subr.mxu0 0.0
    %1671 = vmatpush1.msra.mxu0 0.0
    %1672 = vmatprep.subr.mxu0 0.0
    %1673 = vmatpush1.msra.mxu0 0.0
    %1674 = vmatprep.subr.mxu0 0.0
    %1675 = vmatpush1.msra.mxu0 0.0
    %1676 = vmatprep.subr.mxu0 0.0
    %1677 = vmatpush1.msra.mxu0 0.0
    %1678 = vmatprep.subr.mxu0 0.0
    %1679 = vmatpush1.msra.mxu0 0.0
    %1680 = vmatprep.subr.mxu0 0.0
    %1681 = vmatpush1.msra.mxu0 0.0
    %1682 = vmatprep.subr.mxu0 0.0
    %v1683 = vand.u32 %v1166, 4294901760
    %1684 = vmatpush1.msra.mxu0 %v1683
    %1685 = vmatprep.subr.mxu0 0.0
    %v1686 = vand.u32 %v1165, 4294901760
    %1687 = vmatpush1.msra.mxu0 %v1686
    %1688 = vmatprep.subr.mxu0 0.0
    %v1689 = vand.u32 %v1164, 4294901760
    %1690 = vmatpush1.msra.mxu0 %v1689
    %1691 = vmatprep.subr.mxu0 0.0
    %v1692 = vand.u32 %v1163, 4294901760
    %1693 = vmatpush1.msra.mxu0 %v1692
    %1694 = vmatprep.subr.mxu0 0.0
    %1695 = vmatpush2.msra.mxu0 0.0
    %1696 = vmatprep.subr.mxu0 0.0
    %1697 = vmatpush2.msra.mxu0 0.0
    %1698 = vmatprep.subr.mxu0 0.0
    %1699 = vmatpush2.msra.mxu0 0.0
    %1700 = vmatprep.subr.mxu0 0.0
    %1701 = vmatpush2.msra.mxu0 0.0
    %1702 = vmatprep.subr.mxu0 0.0
    %1703 = vmatpush2.msra.mxu0 0.0
    %1704 = vmatprep.subr.mxu0 0.0
    %1705 = vmatpush2.msra.mxu0 0.0
    %1706 = vmatprep.subr.mxu0 0.0
    %1707 = vmatpush2.msra.mxu0 0.0
    %1708 = vmatprep.subr.mxu0 0.0
    %1709 = vmatpush2.msra.mxu0 0.0
    %1710 = vmatprep.subr.mxu0 0.0
    %1711 = vmatpush2.msra.mxu0 0.0
    %1712 = vmatprep.subr.mxu0 0.0
    %1713 = vmatpush2.msra.mxu0 0.0
    %1714 = vmatprep.subr.mxu0 0.0
    %1715 = vmatpush2.msra.mxu0 0.0
    %1716 = vmatprep.subr.mxu0 0.0
    %1717 = vmatpush2.msra.mxu0 0.0
    %1718 = vmatprep.subr.mxu0 0.0
    %1719 = vmatpush2.msra.mxu0 0.0
    %1720 = vmatprep.subr.mxu0 0.0
    %1721 = vmatpush2.msra.mxu0 0.0
    %1722 = vmatprep.subr.mxu0 0.0
    %1723 = vmatpush2.msra.mxu0 0.0
    %1724 = vmatprep.subr.mxu0 0.0
    %1725 = vmatpush2.msra.mxu0 0.0
    %1726 = vmatprep.mubr.f32.mxu0 0.0
    %v1727 = vand.u32 %v1656, 4294901760
    %v1728 = vsub.f32 %v1656, %v1727
    %v1729 = vand.u32 %v1728, 4294901760
    %v1730 = vsub.f32 %v1728, %v1729
    %v1731 = vand.u32 %v1730, 4294901760
    %1732 = vmatmul.mubr.f32.gmra.mxu0 %v1731
    %v1733 = vpop.f32.mrf.mxu0
    %v1734 = vadd.f32 0.0, %v1733
    %v1735 = vpop.f32.mrf.mxu0
    %1736 = vdwg.mxu0
    %1737 = vmatprep.subr.mxu0 0.0
    %1738 = vmatpush1.msra.mxu0 0.0
    %1739 = vmatprep.subr.mxu0 0.0
    %1740 = vmatpush1.msra.mxu0 0.0
    %1741 = vmatprep.subr.mxu0 0.0
    %1742 = vmatpush1.msra.mxu0 0.0
    %1743 = vmatprep.subr.mxu0 0.0
    %1744 = vmatpush1.msra.mxu0 0.0
    %1745 = vmatprep.subr.mxu0 0.0
    %1746 = vmatpush1.msra.mxu0 0.0
    %1747 = vmatprep.subr.mxu0 0.0
    %1748 = vmatpush1.msra.mxu0 0.0
    %1749 = vmatprep.subr.mxu0 0.0
    %1750 = vmatpush1.msra.mxu0 0.0
    %1751 = vmatprep.subr.mxu0 0.0
    %1752 = vmatpush1.msra.mxu0 0.0
    %1753 = vmatprep.subr.mxu0 0.0
    %1754 = vmatpush1.msra.mxu0 0.0
    %1755 = vmatprep.subr.mxu0 0.0
    %1756 = vmatpush1.msra.mxu0 0.0
    %1757 = vmatprep.subr.mxu0 0.0
    %1758 = vmatpush1.msra.mxu0 0.0
    %1759 = vmatprep.subr.mxu0 0.0
    %1760 = vmatpush1.msra.mxu0 0.0
    %1761 = vmatprep.subr.mxu0 0.0
    %v1762 = vand.u32 %v1166, 4294901760
    %v1763 = vsub.f32 %v1166, %v1762
    %v1764 = vand.u32 %v1763, 4294901760
    %v1765 = vsub.f32 %v1763, %v1764
    %v1766 = vand.u32 %v1765, 4294901760
    %1767 = vmatpush1.msra.mxu0 %v1766
    %1768 = vmatprep.subr.mxu0 0.0
    %v1769 = vand.u32 %v1165, 4294901760
    %v1770 = vsub.f32 %v1165, %v1769
    %v1771 = vand.u32 %v1770, 4294901760
    %v1772 = vsub.f32 %v1770, %v1771
    %v1773 = vand.u32 %v1772, 4294901760
    %1774 = vmatpush1.msra.mxu0 %v1773
    %1775 = vmatprep.subr.mxu0 0.0
    %v1776 = vand.u32 %v1164, 4294901760
    %v1777 = vsub.f32 %v1164, %v1776
    %v1778 = vand.u32 %v1777, 4294901760
    %v1779 = vsub.f32 %v1777, %v1778
    %v1780 = vand.u32 %v1779, 4294901760
    %1781 = vmatpush1.msra.mxu0 %v1780
    %1782 = vmatprep.subr.mxu0 0.0
    %v1783 = vand.u32 %v1163, 4294901760
    %v1784 = vsub.f32 %v1163, %v1783
    %v1785 = vand.u32 %v1784, 4294901760
    %v1786 = vsub.f32 %v1784, %v1785
    %v1787 = vand.u32 %v1786, 4294901760
    %1788 = vmatpush1.msra.mxu0 %v1787
    %1789 = vmatprep.subr.mxu0 0.0
    %1790 = vmatpush2.msra.mxu0 0.0
    %1791 = vmatprep.subr.mxu0 0.0
    %1792 = vmatpush2.msra.mxu0 0.0
    %1793 = vmatprep.subr.mxu0 0.0
    %1794 = vmatpush2.msra.mxu0 0.0
    %1795 = vmatprep.subr.mxu0 0.0
    %1796 = vmatpush2.msra.mxu0 0.0
    %1797 = vmatprep.subr.mxu0 0.0
    %1798 = vmatpush2.msra.mxu0 0.0
    %1799 = vmatprep.subr.mxu0 0.0
    %1800 = vmatpush2.msra.mxu0 0.0
    %1801 = vmatprep.subr.mxu0 0.0
    %1802 = vmatpush2.msra.mxu0 0.0
    %1803 = vmatprep.subr.mxu0 0.0
    %1804 = vmatpush2.msra.mxu0 0.0
    %1805 = vmatprep.subr.mxu0 0.0
    %1806 = vmatpush2.msra.mxu0 0.0
    %1807 = vmatprep.subr.mxu0 0.0
    %1808 = vmatpush2.msra.mxu0 0.0
    %1809 = vmatprep.subr.mxu0 0.0
    %1810 = vmatpush2.msra.mxu0 0.0
    %1811 = vmatprep.subr.mxu0 0.0
    %1812 = vmatpush2.msra.mxu0 0.0
    %1813 = vmatprep.subr.mxu0 0.0
    %1814 = vmatpush2.msra.mxu0 0.0
    %1815 = vmatprep.subr.mxu0 0.0
    %1816 = vmatpush2.msra.mxu0 0.0
    %1817 = vmatprep.subr.mxu0 0.0
    %1818 = vmatpush2.msra.mxu0 0.0
    %1819 = vmatprep.subr.mxu0 0.0
    %1820 = vmatpush2.msra.mxu0 0.0
    %1821 = vmatprep.mubr.f32.mxu0 0.0
    %v1822 = vand.u32 %v1656, 4294901760
    %1823 = vmatmul.mubr.f32.gmra.mxu0 %v1822
    %v1824 = vpop.f32.mrf.mxu0
    %v1825 = vadd.f32 %v1734, %v1824
    %v1826 = vpop.f32.mrf.mxu0
    %1827 = vdwg.mxu0
    %1828 = vmatprep.subr.mxu0 0.0
    %1829 = vmatpush1.msra.mxu0 0.0
    %1830 = vmatprep.subr.mxu0 0.0
    %1831 = vmatpush1.msra.mxu0 0.0
    %1832 = vmatprep.subr.mxu0 0.0
    %1833 = vmatpush1.msra.mxu0 0.0
    %1834 = vmatprep.subr.mxu0 0.0
    %1835 = vmatpush1.msra.mxu0 0.0
    %1836 = vmatprep.subr.mxu0 0.0
    %1837 = vmatpush1.msra.mxu0 0.0
    %1838 = vmatprep.subr.mxu0 0.0
    %1839 = vmatpush1.msra.mxu0 0.0
    %1840 = vmatprep.subr.mxu0 0.0
    %1841 = vmatpush1.msra.mxu0 0.0
    %1842 = vmatprep.subr.mxu0 0.0
    %1843 = vmatpush1.msra.mxu0 0.0
    %1844 = vmatprep.subr.mxu0 0.0
    %1845 = vmatpush1.msra.mxu0 0.0
    %1846 = vmatprep.subr.mxu0 0.0
    %1847 = vmatpush1.msra.mxu0 0.0
    %1848 = vmatprep.subr.mxu0 0.0
    %1849 = vmatpush1.msra.mxu0 0.0
    %1850 = vmatprep.subr.mxu0 0.0
    %1851 = vmatpush1.msra.mxu0 0.0
    %1852 = vmatprep.subr.mxu0 0.0
    %v1853 = vand.u32 %v1166, 4294901760
    %v1854 = vsub.f32 %v1166, %v1853
    %1855 = vmatpush1.msra.mxu0 %v1854
    %1856 = vmatprep.subr.mxu0 0.0
    %v1857 = vand.u32 %v1165, 4294901760
    %v1858 = vsub.f32 %v1165, %v1857
    %1859 = vmatpush1.msra.mxu0 %v1858
    %1860 = vmatprep.subr.mxu0 0.0
    %v1861 = vand.u32 %v1164, 4294901760
    %v1862 = vsub.f32 %v1164, %v1861
    %1863 = vmatpush1.msra.mxu0 %v1862
    %1864 = vmatprep.subr.mxu0 0.0
    %v1865 = vand.u32 %v1163, 4294901760
    %v1866 = vsub.f32 %v1163, %v1865
    %1867 = vmatpush1.msra.mxu0 %v1866
    %1868 = vmatprep.subr.mxu0 0.0
    %1869 = vmatpush2.msra.mxu0 0.0
    %1870 = vmatprep.subr.mxu0 0.0
    %1871 = vmatpush2.msra.mxu0 0.0
    %1872 = vmatprep.subr.mxu0 0.0
    %1873 = vmatpush2.msra.mxu0 0.0
    %1874 = vmatprep.subr.mxu0 0.0
    %1875 = vmatpush2.msra.mxu0 0.0
    %1876 = vmatprep.subr.mxu0 0.0
    %1877 = vmatpush2.msra.mxu0 0.0
    %1878 = vmatprep.subr.mxu0 0.0
    %1879 = vmatpush2.msra.mxu0 0.0
    %1880 = vmatprep.subr.mxu0 0.0
    %1881 = vmatpush2.msra.mxu0 0.0
    %1882 = vmatprep.subr.mxu0 0.0
    %1883 = vmatpush2.msra.mxu0 0.0
    %1884 = vmatprep.subr.mxu0 0.0
    %1885 = vmatpush2.msra.mxu0 0.0
    %1886 = vmatprep.subr.mxu0 0.0
    %1887 = vmatpush2.msra.mxu0 0.0
    %1888 = vmatprep.subr.mxu0 0.0
    %1889 = vmatpush2.msra.mxu0 0.0
    %1890 = vmatprep.subr.mxu0 0.0
    %1891 = vmatpush2.msra.mxu0 0.0
    %1892 = vmatprep.subr.mxu0 0.0
    %1893 = vmatpush2.msra.mxu0 0.0
    %1894 = vmatprep.subr.mxu0 0.0
    %1895 = vmatpush2.msra.mxu0 0.0
    %1896 = vmatprep.subr.mxu0 0.0
    %1897 = vmatpush2.msra.mxu0 0.0
    %1898 = vmatprep.subr.mxu0 0.0
    %1899 = vmatpush2.msra.mxu0 0.0
    %1900 = vmatprep.mubr.f32.mxu0 0.0
    %v1901 = vand.u32 %v1656, 4294901760
    %v1902 = vsub.f32 %v1656, %v1901
    %1903 = vmatmul.mubr.f32.gmra.mxu0 %v1902
    %v1904 = vpop.f32.mrf.mxu0
    %v1905 = vadd.f32 %v1825, %v1904
    %v1906 = vpop.f32.mrf.mxu0
    %1907 = vdwg.mxu0
    %1908 = vmatprep.subr.mxu0 0.0
    %1909 = vmatpush1.msra.mxu0 0.0
    %1910 = vmatprep.subr.mxu0 0.0
    %1911 = vmatpush1.msra.mxu0 0.0
    %1912 = vmatprep.subr.mxu0 0.0
    %1913 = vmatpush1.msra.mxu0 0.0
    %1914 = vmatprep.subr.mxu0 0.0
    %1915 = vmatpush1.msra.mxu0 0.0
    %1916 = vmatprep.subr.mxu0 0.0
    %1917 = vmatpush1.msra.mxu0 0.0
    %1918 = vmatprep.subr.mxu0 0.0
    %1919 = vmatpush1.msra.mxu0 0.0
    %1920 = vmatprep.subr.mxu0 0.0
    %1921 = vmatpush1.msra.mxu0 0.0
    %1922 = vmatprep.subr.mxu0 0.0
    %1923 = vmatpush1.msra.mxu0 0.0
    %1924 = vmatprep.subr.mxu0 0.0
    %1925 = vmatpush1.msra.mxu0 0.0
    %1926 = vmatprep.subr.mxu0 0.0
    %1927 = vmatpush1.msra.mxu0 0.0
    %1928 = vmatprep.subr.mxu0 0.0
    %1929 = vmatpush1.msra.mxu0 0.0
    %1930 = vmatprep.subr.mxu0 0.0
    %1931 = vmatpush1.msra.mxu0 0.0
    %1932 = vmatprep.subr.mxu0 0.0
    %v1933 = vand.u32 %v1166, 4294901760
    %1934 = vmatpush1.msra.mxu0 %v1933
    %1935 = vmatprep.subr.mxu0 0.0
    %v1936 = vand.u32 %v1165, 4294901760
    %1937 = vmatpush1.msra.mxu0 %v1936
    %1938 = vmatprep.subr.mxu0 0.0
    %v1939 = vand.u32 %v1164, 4294901760
    %1940 = vmatpush1.msra.mxu0 %v1939
    %1941 = vmatprep.subr.mxu0 0.0
    %v1942 = vand.u32 %v1163, 4294901760
    %1943 = vmatpush1.msra.mxu0 %v1942
    %1944 = vmatprep.subr.mxu0 0.0
    %1945 = vmatpush2.msra.mxu0 0.0
    %1946 = vmatprep.subr.mxu0 0.0
    %1947 = vmatpush2.msra.mxu0 0.0
    %1948 = vmatprep.subr.mxu0 0.0
    %1949 = vmatpush2.msra.mxu0 0.0
    %1950 = vmatprep.subr.mxu0 0.0
    %1951 = vmatpush2.msra.mxu0 0.0
    %1952 = vmatprep.subr.mxu0 0.0
    %1953 = vmatpush2.msra.mxu0 0.0
    %1954 = vmatprep.subr.mxu0 0.0
    %1955 = vmatpush2.msra.mxu0 0.0
    %1956 = vmatprep.subr.mxu0 0.0
    %1957 = vmatpush2.msra.mxu0 0.0
    %1958 = vmatprep.subr.mxu0 0.0
    %1959 = vmatpush2.msra.mxu0 0.0
    %1960 = vmatprep.subr.mxu0 0.0
    %1961 = vmatpush2.msra.mxu0 0.0
    %1962 = vmatprep.subr.mxu0 0.0
    %1963 = vmatpush2.msra.mxu0 0.0
    %1964 = vmatprep.subr.mxu0 0.0
    %1965 = vmatpush2.msra.mxu0 0.0
    %1966 = vmatprep.subr.mxu0 0.0
    %1967 = vmatpush2.msra.mxu0 0.0
    %1968 = vmatprep.subr.mxu0 0.0
    %1969 = vmatpush2.msra.mxu0 0.0
    %1970 = vmatprep.subr.mxu0 0.0
    %1971 = vmatpush2.msra.mxu0 0.0
    %1972 = vmatprep.subr.mxu0 0.0
    %1973 = vmatpush2.msra.mxu0 0.0
    %1974 = vmatprep.subr.mxu0 0.0
    %1975 = vmatpush2.msra.mxu0 0.0
    %1976 = vmatprep.mubr.f32.mxu0 0.0
    %v1977 = vand.u32 %v1656, 4294901760
    %v1978 = vsub.f32 %v1656, %v1977
    %v1979 = vand.u32 %v1978, 4294901760
    %1980 = vmatmul.mubr.f32.gmra.mxu0 %v1979
    %v1981 = vpop.f32.mrf.mxu0
    %v1982 = vadd.f32 %v1905, %v1981
    %v1983 = vpop.f32.mrf.mxu0
    %1984 = vdwg.mxu0
    %1985 = vmatprep.subr.mxu0 0.0
    %1986 = vmatpush1.msra.mxu0 0.0
    %1987 = vmatprep.subr.mxu0 0.0
    %1988 = vmatpush1.msra.mxu0 0.0
    %1989 = vmatprep.subr.mxu0 0.0
    %1990 = vmatpush1.msra.mxu0 0.0
    %1991 = vmatprep.subr.mxu0 0.0
    %1992 = vmatpush1.msra.mxu0 0.0
    %1993 = vmatprep.subr.mxu0 0.0
    %1994 = vmatpush1.msra.mxu0 0.0
    %1995 = vmatprep.subr.mxu0 0.0
    %1996 = vmatpush1.msra.mxu0 0.0
    %1997 = vmatprep.subr.mxu0 0.0
    %1998 = vmatpush1.msra.mxu0 0.0
    %1999 = vmatprep.subr.mxu0 0.0
    %2000 = vmatpush1.msra.mxu0 0.0
    %2001 = vmatprep.subr.mxu0 0.0
    %2002 = vmatpush1.msra.mxu0 0.0
    %2003 = vmatprep.subr.mxu0 0.0
    %2004 = vmatpush1.msra.mxu0 0.0
    %2005 = vmatprep.subr.mxu0 0.0
    %2006 = vmatpush1.msra.mxu0 0.0
    %2007 = vmatprep.subr.mxu0 0.0
    %2008 = vmatpush1.msra.mxu0 0.0
    %2009 = vmatprep.subr.mxu0 0.0
    %v2010 = vand.u32 %v1166, 4294901760
    %v2011 = vsub.f32 %v1166, %v2010
    %v2012 = vand.u32 %v2011, 4294901760
    %2013 = vmatpush1.msra.mxu0 %v2012
    %2014 = vmatprep.subr.mxu0 0.0
    %v2015 = vand.u32 %v1165, 4294901760
    %v2016 = vsub.f32 %v1165, %v2015
    %v2017 = vand.u32 %v2016, 4294901760
    %2018 = vmatpush1.msra.mxu0 %v2017
    %2019 = vmatprep.subr.mxu0 0.0
    %v2020 = vand.u32 %v1164, 4294901760
    %v2021 = vsub.f32 %v1164, %v2020
    %v2022 = vand.u32 %v2021, 4294901760
    %2023 = vmatpush1.msra.mxu0 %v2022
    %2024 = vmatprep.subr.mxu0 0.0
    %v2025 = vand.u32 %v1163, 4294901760
    %v2026 = vsub.f32 %v1163, %v2025
    %v2027 = vand.u32 %v2026, 4294901760
    %2028 = vmatpush1.msra.mxu0 %v2027
    %2029 = vmatprep.subr.mxu0 0.0
    %2030 = vmatpush2.msra.mxu0 0.0
    %2031 = vmatprep.subr.mxu0 0.0
    %2032 = vmatpush2.msra.mxu0 0.0
    %2033 = vmatprep.subr.mxu0 0.0
    %2034 = vmatpush2.msra.mxu0 0.0
    %2035 = vmatprep.subr.mxu0 0.0
    %2036 = vmatpush2.msra.mxu0 0.0
    %2037 = vmatprep.subr.mxu0 0.0
    %2038 = vmatpush2.msra.mxu0 0.0
    %2039 = vmatprep.subr.mxu0 0.0
    %2040 = vmatpush2.msra.mxu0 0.0
    %2041 = vmatprep.subr.mxu0 0.0
    %2042 = vmatpush2.msra.mxu0 0.0
    %2043 = vmatprep.subr.mxu0 0.0
    %2044 = vmatpush2.msra.mxu0 0.0
    %2045 = vmatprep.subr.mxu0 0.0
    %2046 = vmatpush2.msra.mxu0 0.0
    %2047 = vmatprep.subr.mxu0 0.0
    %2048 = vmatpush2.msra.mxu0 0.0
    %2049 = vmatprep.subr.mxu0 0.0
    %2050 = vmatpush2.msra.mxu0 0.0
    %2051 = vmatprep.subr.mxu0 0.0
    %2052 = vmatpush2.msra.mxu0 0.0
    %2053 = vmatprep.subr.mxu0 0.0
    %2054 = vmatpush2.msra.mxu0 0.0
    %2055 = vmatprep.subr.mxu0 0.0
    %2056 = vmatpush2.msra.mxu0 0.0
    %2057 = vmatprep.subr.mxu0 0.0
    %2058 = vmatpush2.msra.mxu0 0.0
    %2059 = vmatprep.subr.mxu0 0.0
    %2060 = vmatpush2.msra.mxu0 0.0
    %2061 = vmatprep.mubr.f32.mxu0 0.0
    %v2062 = vand.u32 %v1656, 4294901760
    %2063 = vmatmul.mubr.f32.gmra.mxu0 %v2062
    %v2064 = vpop.f32.mrf.mxu0
    %v2065 = vadd.f32 %v1982, %v2064
    %v2066 = vpop.f32.mrf.mxu0
    %2067 = vdwg.mxu0
    %2068 = vmatprep.subr.mxu0 0.0
    %2069 = vmatpush1.msra.mxu0 0.0
    %2070 = vmatprep.subr.mxu0 0.0
    %2071 = vmatpush1.msra.mxu0 0.0
    %2072 = vmatprep.subr.mxu0 0.0
    %2073 = vmatpush1.msra.mxu0 0.0
    %2074 = vmatprep.subr.mxu0 0.0
    %2075 = vmatpush1.msra.mxu0 0.0
    %2076 = vmatprep.subr.mxu0 0.0
    %2077 = vmatpush1.msra.mxu0 0.0
    %2078 = vmatprep.subr.mxu0 0.0
    %2079 = vmatpush1.msra.mxu0 0.0
    %2080 = vmatprep.subr.mxu0 0.0
    %2081 = vmatpush1.msra.mxu0 0.0
    %2082 = vmatprep.subr.mxu0 0.0
    %2083 = vmatpush1.msra.mxu0 0.0
    %2084 = vmatprep.subr.mxu0 0.0
    %2085 = vmatpush1.msra.mxu0 0.0
    %2086 = vmatprep.subr.mxu0 0.0
    %2087 = vmatpush1.msra.mxu0 0.0
    %2088 = vmatprep.subr.mxu0 0.0
    %2089 = vmatpush1.msra.mxu0 0.0
    %2090 = vmatprep.subr.mxu0 0.0
    %2091 = vmatpush1.msra.mxu0 0.0
    %2092 = vmatprep.subr.mxu0 0.0
    %v2093 = vand.u32 %v1166, 4294901760
    %2094 = vmatpush1.msra.mxu0 %v2093
    %2095 = vmatprep.subr.mxu0 0.0
    %v2096 = vand.u32 %v1165, 4294901760
    %2097 = vmatpush1.msra.mxu0 %v2096
    %2098 = vmatprep.subr.mxu0 0.0
    %v2099 = vand.u32 %v1164, 4294901760
    %2100 = vmatpush1.msra.mxu0 %v2099
    %2101 = vmatprep.subr.mxu0 0.0
    %v2102 = vand.u32 %v1163, 4294901760
    %2103 = vmatpush1.msra.mxu0 %v2102
    %2104 = vmatprep.subr.mxu0 0.0
    %2105 = vmatpush2.msra.mxu0 0.0
    %2106 = vmatprep.subr.mxu0 0.0
    %2107 = vmatpush2.msra.mxu0 0.0
    %2108 = vmatprep.subr.mxu0 0.0
    %2109 = vmatpush2.msra.mxu0 0.0
    %2110 = vmatprep.subr.mxu0 0.0
    %2111 = vmatpush2.msra.mxu0 0.0
    %2112 = vmatprep.subr.mxu0 0.0
    %2113 = vmatpush2.msra.mxu0 0.0
    %2114 = vmatprep.subr.mxu0 0.0
    %2115 = vmatpush2.msra.mxu0 0.0
    %2116 = vmatprep.subr.mxu0 0.0
    %2117 = vmatpush2.msra.mxu0 0.0
    %2118 = vmatprep.subr.mxu0 0.0
    %2119 = vmatpush2.msra.mxu0 0.0
    %2120 = vmatprep.subr.mxu0 0.0
    %2121 = vmatpush2.msra.mxu0 0.0
    %2122 = vmatprep.subr.mxu0 0.0
    %2123 = vmatpush2.msra.mxu0 0.0
    %2124 = vmatprep.subr.mxu0 0.0
    %2125 = vmatpush2.msra.mxu0 0.0
    %2126 = vmatprep.subr.mxu0 0.0
    %2127 = vmatpush2.msra.mxu0 0.0
    %2128 = vmatprep.subr.mxu0 0.0
    %2129 = vmatpush2.msra.mxu0 0.0
    %2130 = vmatprep.subr.mxu0 0.0
    %2131 = vmatpush2.msra.mxu0 0.0
    %2132 = vmatprep.subr.mxu0 0.0
    %2133 = vmatpush2.msra.mxu0 0.0
    %2134 = vmatprep.subr.mxu0 0.0
    %2135 = vmatpush2.msra.mxu0 0.0
    %2136 = vmatprep.mubr.f32.mxu0 0.0
    %v2137 = vand.u32 %v1656, 4294901760
    %2138 = vmatmul.mubr.f32.gmra.mxu0 %v2137
    %v2139 = vpop.f32.mrf.mxu0
    %v2140 = vadd.f32 %v2065, %v2139
    %v2141 = vpop.f32.mrf.mxu0
    %2142 = vdwg.mxu0
    %v2143 = vlog2.pop %v1652
    %v2144 = vmul.f32 %v2143, 0.6931472
    %v2145 = vsub.f32 %v2144, %v2140
    %v2146 = vadd.f32 %v1149, %v2145
    %v2147 = vld [vmem:[#allocation16] sm:$0xff]
    %vm2148 = vcmask 392192
    %v2149 = vsel %vm2148, %v2147, -inf
    %2150 = vmax.xlane.f32.xlu0 %v2149
    %v2151 = vpop.xlane.xlu0 %2150
    %v2152 = vsub.f32 %v2147, %v2151
    %v2153 = vmul.f32 %v2152, 1.442695
    %v2154 = vpow.pop %v2153
    %2155 = vset.pattern.permute.xlu0 2
    %2156 = vperm.xlu0 %2155, %v204
    %v2157 = vpop.permute.xlu0 %2156
    %vm2158 = vcmp.eq.s32.totalorder %v214, %v2157
    %v2159 = vsel %vm2158, %v2152, 0.0
    %v2160 = vld [vmem:[#allocation8] sm:$0xff]
    %v2161 = vld [vmem:[#allocation8 + $0x8] sm:$0xff]
    %v2162 = vld [vmem:[#allocation8 + $0x10] sm:$0xff]
    %v2163 = vld [vmem:[#allocation8 + $0x18] sm:$0xff]
    %v2164 = vld [vmem:[#allocation8 + $0x20] sm:$0xff]
    %v2165 = vld [vmem:[#allocation8 + $0x28] sm:$0xff]
    %v2167 = vsel %vm2148, %v2154, 0
    %2169 = vmatprep.subr.mxu0 0.0
    %2170 = vmatpush1.msra.mxu0 0.0
    %2171 = vmatprep.subr.mxu0 0.0
    %2172 = vmatpush1.msra.mxu0 0.0
    %2173 = vmatprep.subr.mxu0 0.0
    %2174 = vmatpush1.msra.mxu0 0.0
    %2175 = vmatprep.subr.mxu0 0.0
    %2176 = vmatpush1.msra.mxu0 0.0
    %2177 = vmatprep.subr.mxu0 0.0
    %2178 = vmatpush1.msra.mxu0 0.0
    %2179 = vmatprep.subr.mxu0 0.0
    %2180 = vmatpush1.msra.mxu0 0.0
    %2181 = vmatprep.subr.mxu0 0.0
    %2182 = vmatpush1.msra.mxu0 0.0
    %2183 = vmatprep.subr.mxu0 0.0
    %2184 = vmatpush1.msra.mxu0 0.0
    %2185 = vmatprep.subr.mxu0 0.0
    %2186 = vmatpush1.msra.mxu0 0.0
    %2187 = vmatprep.subr.mxu0 0.0
    %2188 = vmatpush1.msra.mxu0 0.0
    %2189 = vmatprep.subr.mxu0 0.0
    %v2190 = vand.u32 %v2165, 4294901760
    %2191 = vmatpush1.msra.mxu0 %v2190
    %2192 = vmatprep.subr.mxu0 0.0
    %v2193 = vand.u32 %v2164, 4294901760
    %2194 = vmatpush1.msra.mxu0 %v2193
    %2195 = vmatprep.subr.mxu0 0.0
    %v2196 = vand.u32 %v2163, 4294901760
    %2197 = vmatpush1.msra.mxu0 %v2196
    %2198 = vmatprep.subr.mxu0 0.0
    %v2199 = vand.u32 %v2162, 4294901760
    %2200 = vmatpush1.msra.mxu0 %v2199
    %2201 = vmatprep.subr.mxu0 0.0
    %v2202 = vand.u32 %v2161, 4294901760
    %2203 = vmatpush1.msra.mxu0 %v2202
    %2204 = vmatprep.subr.mxu0 0.0
    %v2205 = vand.u32 %v2160, 4294901760
    %2206 = vmatpush1.msra.mxu0 %v2205
    %2207 = vmatprep.subr.mxu0 0.0
    %2208 = vmatpush2.msra.mxu0 0.0
    %2209 = vmatprep.subr.mxu0 0.0
    %2210 = vmatpush2.msra.mxu0 0.0
    %2211 = vmatprep.subr.mxu0 0.0
    %2212 = vmatpush2.msra.mxu0 0.0
    %2213 = vmatprep.subr.mxu0 0.0
    %2214 = vmatpush2.msra.mxu0 0.0
    %2215 = vmatprep.subr.mxu0 0.0
    %2216 = vmatpush2.msra.mxu0 0.0
    %2217 = vmatprep.subr.mxu0 0.0
    %2218 = vmatpush2.msra.mxu0 0.0
    %2219 = vmatprep.subr.mxu0 0.0
    %2220 = vmatpush2.msra.mxu0 0.0
    %2221 = vmatprep.subr.mxu0 0.0
    %2222 = vmatpush2.msra.mxu0 0.0
    %2223 = vmatprep.subr.mxu0 0.0
    %2224 = vmatpush2.msra.mxu0 0.0
    %2225 = vmatprep.subr.mxu0 0.0
    %2226 = vmatpush2.msra.mxu0 0.0
    %2227 = vmatprep.subr.mxu0 0.0
    %2228 = vmatpush2.msra.mxu0 0.0
    %2229 = vmatprep.subr.mxu0 0.0
    %2230 = vmatpush2.msra.mxu0 0.0
    %2231 = vmatprep.subr.mxu0 0.0
    %2232 = vmatpush2.msra.mxu0 0.0
    %2233 = vmatprep.subr.mxu0 0.0
    %2234 = vmatpush2.msra.mxu0 0.0
    %2235 = vmatprep.subr.mxu0 0.0
    %2236 = vmatpush2.msra.mxu0 0.0
    %2237 = vmatprep.subr.mxu0 0.0
    %2238 = vmatpush2.msra.mxu0 0.0
    %2239 = vmatprep.mubr.f32.mxu0 0.0
    %v2240 = vand.u32 %v2167, 4294901760
    %v2241 = vsub.f32 %v2167, %v2240
    %v2242 = vand.u32 %v2241, 4294901760
    %v2243 = vsub.f32 %v2241, %v2242
    %v2244 = vand.u32 %v2243, 4294901760
    %2245 = vmatmul.mubr.f32.gmra.mxu0 %v2244
    %v2246 = vpop.f32.mrf.mxu0
    %v2247 = vadd.f32 0.0, %v2246
    %v2248 = vpop.f32.mrf.mxu0
    %2249 = vdwg.mxu0
    %2250 = vmatprep.subr.mxu0 0.0
    %2251 = vmatpush1.msra.mxu0 0.0
    %2252 = vmatprep.subr.mxu0 0.0
    %2253 = vmatpush1.msra.mxu0 0.0
    %2254 = vmatprep.subr.mxu0 0.0
    %2255 = vmatpush1.msra.mxu0 0.0
    %2256 = vmatprep.subr.mxu0 0.0
    %2257 = vmatpush1.msra.mxu0 0.0
    %2258 = vmatprep.subr.mxu0 0.0
    %2259 = vmatpush1.msra.mxu0 0.0
    %2260 = vmatprep.subr.mxu0 0.0
    %2261 = vmatpush1.msra.mxu0 0.0
    %2262 = vmatprep.subr.mxu0 0.0
    %2263 = vmatpush1.msra.mxu0 0.0
    %2264 = vmatprep.subr.mxu0 0.0
    %2265 = vmatpush1.msra.mxu0 0.0
    %2266 = vmatprep.subr.mxu0 0.0
    %2267 = vmatpush1.msra.mxu0 0.0
    %2268 = vmatprep.subr.mxu0 0.0
    %2269 = vmatpush1.msra.mxu0 0.0
    %2270 = vmatprep.subr.mxu0 0.0
    %v2271 = vand.u32 %v2165, 4294901760
    %v2272 = vsub.f32 %v2165, %v2271
    %v2273 = vand.u32 %v2272, 4294901760
    %v2274 = vsub.f32 %v2272, %v2273
    %v2275 = vand.u32 %v2274, 4294901760
    %2276 = vmatpush1.msra.mxu0 %v2275
    %2277 = vmatprep.subr.mxu0 0.0
    %v2278 = vand.u32 %v2164, 4294901760
    %v2279 = vsub.f32 %v2164, %v2278
    %v2280 = vand.u32 %v2279, 4294901760
    %v2281 = vsub.f32 %v2279, %v2280
    %v2282 = vand.u32 %v2281, 4294901760
    %2283 = vmatpush1.msra.mxu0 %v2282
    %2284 = vmatprep.subr.mxu0 0.0
    %v2285 = vand.u32 %v2163, 4294901760
    %v2286 = vsub.f32 %v2163, %v2285
    %v2287 = vand.u32 %v2286, 4294901760
    %v2288 = vsub.f32 %v2286, %v2287
    %v2289 = vand.u32 %v2288, 4294901760
    %2290 = vmatpush1.msra.mxu0 %v2289
    %2291 = vmatprep.subr.mxu0 0.0
    %v2292 = vand.u32 %v2162, 4294901760
    %v2293 = vsub.f32 %v2162, %v2292
    %v2294 = vand.u32 %v2293, 4294901760
    %v2295 = vsub.f32 %v2293, %v2294
    %v2296 = vand.u32 %v2295, 4294901760
    %2297 = vmatpush1.msra.mxu0 %v2296
    %2298 = vmatprep.subr.mxu0 0.0
    %v2299 = vand.u32 %v2161, 4294901760
    %v2300 = vsub.f32 %v2161, %v2299
    %v2301 = vand.u32 %v2300, 4294901760
    %v2302 = vsub.f32 %v2300, %v2301
    %v2303 = vand.u32 %v2302, 4294901760
    %2304 = vmatpush1.msra.mxu0 %v2303
    %2305 = vmatprep.subr.mxu0 0.0
    %v2306 = vand.u32 %v2160, 4294901760
    %v2307 = vsub.f32 %v2160, %v2306
    %v2308 = vand.u32 %v2307, 4294901760
    %v2309 = vsub.f32 %v2307, %v2308
    %v2310 = vand.u32 %v2309, 4294901760
    %2311 = vmatpush1.msra.mxu0 %v2310
    %2312 = vmatprep.subr.mxu0 0.0
    %2313 = vmatpush2.msra.mxu0 0.0
    %2314 = vmatprep.subr.mxu0 0.0
    %2315 = vmatpush2.msra.mxu0 0.0
    %2316 = vmatprep.subr.mxu0 0.0
    %2317 = vmatpush2.msra.mxu0 0.0
    %2318 = vmatprep.subr.mxu0 0.0
    %2319 = vmatpush2.msra.mxu0 0.0
    %2320 = vmatprep.subr.mxu0 0.0
    %2321 = vmatpush2.msra.mxu0 0.0
    %2322 = vmatprep.subr.mxu0 0.0
    %2323 = vmatpush2.msra.mxu0 0.0
    %2324 = vmatprep.subr.mxu0 0.0
    %2325 = vmatpush2.msra.mxu0 0.0
    %2326 = vmatprep.subr.mxu0 0.0
    %2327 = vmatpush2.msra.mxu0 0.0
    %2328 = vmatprep.subr.mxu0 0.0
    %2329 = vmatpush2.msra.mxu0 0.0
    %2330 = vmatprep.subr.mxu0 0.0
    %2331 = vmatpush2.msra.mxu0 0.0
    %2332 = vmatprep.subr.mxu0 0.0
    %2333 = vmatpush2.msra.mxu0 0.0
    %2334 = vmatprep.subr.mxu0 0.0
    %2335 = vmatpush2.msra.mxu0 0.0
    %2336 = vmatprep.subr.mxu0 0.0
    %2337 = vmatpush2.msra.mxu0 0.0
    %2338 = vmatprep.subr.mxu0 0.0
    %2339 = vmatpush2.msra.mxu0 0.0
    %2340 = vmatprep.subr.mxu0 0.0
    %2341 = vmatpush2.msra.mxu0 0.0
    %2342 = vmatprep.subr.mxu0 0.0
    %2343 = vmatpush2.msra.mxu0 0.0
    %2344 = vmatprep.mubr.f32.mxu0 0.0
    %v2345 = vand.u32 %v2167, 4294901760
    %2346 = vmatmul.mubr.f32.gmra.mxu0 %v2345
    %v2347 = vpop.f32.mrf.mxu0
    %v2348 = vadd.f32 %v2247, %v2347
    %v2349 = vpop.f32.mrf.mxu0
    %2350 = vdwg.mxu0
    %2351 = vmatprep.subr.mxu0 0.0
    %2352 = vmatpush1.msra.mxu0 0.0
    %2353 = vmatprep.subr.mxu0 0.0
    %2354 = vmatpush1.msra.mxu0 0.0
    %2355 = vmatprep.subr.mxu0 0.0
    %2356 = vmatpush1.msra.mxu0 0.0
    %2357 = vmatprep.subr.mxu0 0.0
    %2358 = vmatpush1.msra.mxu0 0.0
    %2359 = vmatprep.subr.mxu0 0.0
    %2360 = vmatpush1.msra.mxu0 0.0
    %2361 = vmatprep.subr.mxu0 0.0
    %2362 = vmatpush1.msra.mxu0 0.0
    %2363 = vmatprep.subr.mxu0 0.0
    %2364 = vmatpush1.msra.mxu0 0.0
    %2365 = vmatprep.subr.mxu0 0.0
    %2366 = vmatpush1.msra.mxu0 0.0
    %2367 = vmatprep.subr.mxu0 0.0
    %2368 = vmatpush1.msra.mxu0 0.0
    %2369 = vmatprep.subr.mxu0 0.0
    %2370 = vmatpush1.msra.mxu0 0.0
    %2371 = vmatprep.subr.mxu0 0.0
    %v2372 = vand.u32 %v2165, 4294901760
    %v2373 = vsub.f32 %v2165, %v2372
    %2374 = vmatpush1.msra.mxu0 %v2373
    %2375 = vmatprep.subr.mxu0 0.0
    %v2376 = vand.u32 %v2164, 4294901760
    %v2377 = vsub.f32 %v2164, %v2376
    %2378 = vmatpush1.msra.mxu0 %v2377
    %2379 = vmatprep.subr.mxu0 0.0
    %v2380 = vand.u32 %v2163, 4294901760
    %v2381 = vsub.f32 %v2163, %v2380
    %2382 = vmatpush1.msra.mxu0 %v2381
    %2383 = vmatprep.subr.mxu0 0.0
    %v2384 = vand.u32 %v2162, 4294901760
    %v2385 = vsub.f32 %v2162, %v2384
    %2386 = vmatpush1.msra.mxu0 %v2385
    %2387 = vmatprep.subr.mxu0 0.0
    %v2388 = vand.u32 %v2161, 4294901760
    %v2389 = vsub.f32 %v2161, %v2388
    %2390 = vmatpush1.msra.mxu0 %v2389
    %2391 = vmatprep.subr.mxu0 0.0
    %v2392 = vand.u32 %v2160, 4294901760
    %v2393 = vsub.f32 %v2160, %v2392
    %2394 = vmatpush1.msra.mxu0 %v2393
    %2395 = vmatprep.subr.mxu0 0.0
    %2396 = vmatpush2.msra.mxu0 0.0
    %2397 = vmatprep.subr.mxu0 0.0
    %2398 = vmatpush2.msra.mxu0 0.0
    %2399 = vmatprep.subr.mxu0 0.0
    %2400 = vmatpush2.msra.mxu0 0.0
    %2401 = vmatprep.subr.mxu0 0.0
    %2402 = vmatpush2.msra.mxu0 0.0
    %2403 = vmatprep.subr.mxu0 0.0
    %2404 = vmatpush2.msra.mxu0 0.0
    %2405 = vmatprep.subr.mxu0 0.0
    %2406 = vmatpush2.msra.mxu0 0.0
    %2407 = vmatprep.subr.mxu0 0.0
    %2408 = vmatpush2.msra.mxu0 0.0
    %2409 = vmatprep.subr.mxu0 0.0
    %2410 = vmatpush2.msra.mxu0 0.0
    %2411 = vmatprep.subr.mxu0 0.0
    %2412 = vmatpush2.msra.mxu0 0.0
    %2413 = vmatprep.subr.mxu0 0.0
    %2414 = vmatpush2.msra.mxu0 0.0
    %2415 = vmatprep.subr.mxu0 0.0
    %2416 = vmatpush2.msra.mxu0 0.0
    %2417 = vmatprep.subr.mxu0 0.0
    %2418 = vmatpush2.msra.mxu0 0.0
    %2419 = vmatprep.subr.mxu0 0.0
    %2420 = vmatpush2.msra.mxu0 0.0
    %2421 = vmatprep.subr.mxu0 0.0
    %2422 = vmatpush2.msra.mxu0 0.0
    %2423 = vmatprep.subr.mxu0 0.0
    %2424 = vmatpush2.msra.mxu0 0.0
    %2425 = vmatprep.subr.mxu0 0.0
    %2426 = vmatpush2.msra.mxu0 0.0
    %2427 = vmatprep.mubr.f32.mxu0 0.0
    %v2428 = vand.u32 %v2167, 4294901760
    %v2429 = vsub.f32 %v2167, %v2428
    %2430 = vmatmul.mubr.f32.gmra.mxu0 %v2429
    %v2431 = vpop.f32.mrf.mxu0
    %v2432 = vadd.f32 %v2348, %v2431
    %v2433 = vpop.f32.mrf.mxu0
    %2434 = vdwg.mxu0
    %2435 = vmatprep.subr.mxu0 0.0
    %2436 = vmatpush1.msra.mxu0 0.0
    %2437 = vmatprep.subr.mxu0 0.0
    %2438 = vmatpush1.msra.mxu0 0.0
    %2439 = vmatprep.subr.mxu0 0.0
    %2440 = vmatpush1.msra.mxu0 0.0
    %2441 = vmatprep.subr.mxu0 0.0
    %2442 = vmatpush1.msra.mxu0 0.0
    %2443 = vmatprep.subr.mxu0 0.0
    %2444 = vmatpush1.msra.mxu0 0.0
    %2445 = vmatprep.subr.mxu0 0.0
    %2446 = vmatpush1.msra.mxu0 0.0
    %2447 = vmatprep.subr.mxu0 0.0
    %2448 = vmatpush1.msra.mxu0 0.0
    %2449 = vmatprep.subr.mxu0 0.0
    %2450 = vmatpush1.msra.mxu0 0.0
    %2451 = vmatprep.subr.mxu0 0.0
    %2452 = vmatpush1.msra.mxu0 0.0
    %2453 = vmatprep.subr.mxu0 0.0
    %2454 = vmatpush1.msra.mxu0 0.0
    %2455 = vmatprep.subr.mxu0 0.0
    %v2456 = vand.u32 %v2165, 4294901760
    %2457 = vmatpush1.msra.mxu0 %v2456
    %2458 = vmatprep.subr.mxu0 0.0
    %v2459 = vand.u32 %v2164, 4294901760
    %2460 = vmatpush1.msra.mxu0 %v2459
    %2461 = vmatprep.subr.mxu0 0.0
    %v2462 = vand.u32 %v2163, 4294901760
    %2463 = vmatpush1.msra.mxu0 %v2462
    %2464 = vmatprep.subr.mxu0 0.0
    %v2465 = vand.u32 %v2162, 4294901760
    %2466 = vmatpush1.msra.mxu0 %v2465
    %2467 = vmatprep.subr.mxu0 0.0
    %v2468 = vand.u32 %v2161, 4294901760
    %2469 = vmatpush1.msra.mxu0 %v2468
    %2470 = vmatprep.subr.mxu0 0.0
    %v2471 = vand.u32 %v2160, 4294901760
    %2472 = vmatpush1.msra.mxu0 %v2471
    %2473 = vmatprep.subr.mxu0 0.0
    %2474 = vmatpush2.msra.mxu0 0.0
    %2475 = vmatprep.subr.mxu0 0.0
    %2476 = vmatpush2.msra.mxu0 0.0
    %2477 = vmatprep.subr.mxu0 0.0
    %2478 = vmatpush2.msra.mxu0 0.0
    %2479 = vmatprep.subr.mxu0 0.0
    %2480 = vmatpush2.msra.mxu0 0.0
    %2481 = vmatprep.subr.mxu0 0.0
    %2482 = vmatpush2.msra.mxu0 0.0
    %2483 = vmatprep.subr.mxu0 0.0
    %2484 = vmatpush2.msra.mxu0 0.0
    %2485 = vmatprep.subr.mxu0 0.0
    %2486 = vmatpush2.msra.mxu0 0.0
    %2487 = vmatprep.subr.mxu0 0.0
    %2488 = vmatpush2.msra.mxu0 0.0
    %2489 = vmatprep.subr.mxu0 0.0
    %2490 = vmatpush2.msra.mxu0 0.0
    %2491 = vmatprep.subr.mxu0 0.0
    %2492 = vmatpush2.msra.mxu0 0.0
    %2493 = vmatprep.subr.mxu0 0.0
    %2494 = vmatpush2.msra.mxu0 0.0
    %2495 = vmatprep.subr.mxu0 0.0
    %2496 = vmatpush2.msra.mxu0 0.0
    %2497 = vmatprep.subr.mxu0 0.0
    %2498 = vmatpush2.msra.mxu0 0.0
    %2499 = vmatprep.subr.mxu0 0.0
    %2500 = vmatpush2.msra.mxu0 0.0
    %2501 = vmatprep.subr.mxu0 0.0
    %2502 = vmatpush2.msra.mxu0 0.0
    %2503 = vmatprep.subr.mxu0 0.0
    %2504 = vmatpush2.msra.mxu0 0.0
    %2505 = vmatprep.mubr.f32.mxu0 0.0
    %v2506 = vand.u32 %v2167, 4294901760
    %v2507 = vsub.f32 %v2167, %v2506
    %v2508 = vand.u32 %v2507, 4294901760
    %2509 = vmatmul.mubr.f32.gmra.mxu0 %v2508
    %v2510 = vpop.f32.mrf.mxu0
    %v2511 = vadd.f32 %v2432, %v2510
    %v2512 = vpop.f32.mrf.mxu0
    %2513 = vdwg.mxu0
    %2514 = vmatprep.subr.mxu0 0.0
    %2515 = vmatpush1.msra.mxu0 0.0
    %2516 = vmatprep.subr.mxu0 0.0
    %2517 = vmatpush1.msra.mxu0 0.0
    %2518 = vmatprep.subr.mxu0 0.0
    %2519 = vmatpush1.msra.mxu0 0.0
    %2520 = vmatprep.subr.mxu0 0.0
    %2521 = vmatpush1.msra.mxu0 0.0
    %2522 = vmatprep.subr.mxu0 0.0
    %2523 = vmatpush1.msra.mxu0 0.0
    %2524 = vmatprep.subr.mxu0 0.0
    %2525 = vmatpush1.msra.mxu0 0.0
    %2526 = vmatprep.subr.mxu0 0.0
    %2527 = vmatpush1.msra.mxu0 0.0
    %2528 = vmatprep.subr.mxu0 0.0
    %2529 = vmatpush1.msra.mxu0 0.0
    %2530 = vmatprep.subr.mxu0 0.0
    %2531 = vmatpush1.msra.mxu0 0.0
    %2532 = vmatprep.subr.mxu0 0.0
    %2533 = vmatpush1.msra.mxu0 0.0
    %2534 = vmatprep.subr.mxu0 0.0
    %v2535 = vand.u32 %v2165, 4294901760
    %v2536 = vsub.f32 %v2165, %v2535
    %v2537 = vand.u32 %v2536, 4294901760
    %2538 = vmatpush1.msra.mxu0 %v2537
    %2539 = vmatprep.subr.mxu0 0.0
    %v2540 = vand.u32 %v2164, 4294901760
    %v2541 = vsub.f32 %v2164, %v2540
    %v2542 = vand.u32 %v2541, 4294901760
    %2543 = vmatpush1.msra.mxu0 %v2542
    %2544 = vmatprep.subr.mxu0 0.0
    %v2545 = vand.u32 %v2163, 4294901760
    %v2546 = vsub.f32 %v2163, %v2545
    %v2547 = vand.u32 %v2546, 4294901760
    %2548 = vmatpush1.msra.mxu0 %v2547
    %2549 = vmatprep.subr.mxu0 0.0
    %v2550 = vand.u32 %v2162, 4294901760
    %v2551 = vsub.f32 %v2162, %v2550
    %v2552 = vand.u32 %v2551, 4294901760
    %2553 = vmatpush1.msra.mxu0 %v2552
    %2554 = vmatprep.subr.mxu0 0.0
    %v2555 = vand.u32 %v2161, 4294901760
    %v2556 = vsub.f32 %v2161, %v2555
    %v2557 = vand.u32 %v2556, 4294901760
    %2558 = vmatpush1.msra.mxu0 %v2557
    %2559 = vmatprep.subr.mxu0 0.0
    %v2560 = vand.u32 %v2160, 4294901760
    %v2561 = vsub.f32 %v2160, %v2560
    %v2562 = vand.u32 %v2561, 4294901760
    %2563 = vmatpush1.msra.mxu0 %v2562
    %2564 = vmatprep.subr.mxu0 0.0
    %2565 = vmatpush2.msra.mxu0 0.0
    %2566 = vmatprep.subr.mxu0 0.0
    %2567 = vmatpush2.msra.mxu0 0.0
    %2568 = vmatprep.subr.mxu0 0.0
    %2569 = vmatpush2.msra.mxu0 0.0
    %2570 = vmatprep.subr.mxu0 0.0
    %2571 = vmatpush2.msra.mxu0 0.0
    %2572 = vmatprep.subr.mxu0 0.0
    %2573 = vmatpush2.msra.mxu0 0.0
    %2574 = vmatprep.subr.mxu0 0.0
    %2575 = vmatpush2.msra.mxu0 0.0
    %2576 = vmatprep.subr.mxu0 0.0
    %2577 = vmatpush2.msra.mxu0 0.0
    %2578 = vmatprep.subr.mxu0 0.0
    %2579 = vmatpush2.msra.mxu0 0.0
    %2580 = vmatprep.subr.mxu0 0.0
    %2581 = vmatpush2.msra.mxu0 0.0
    %2582 = vmatprep.subr.mxu0 0.0
    %2583 = vmatpush2.msra.mxu0 0.0
    %2584 = vmatprep.subr.mxu0 0.0
    %2585 = vmatpush2.msra.mxu0 0.0
    %2586 = vmatprep.subr.mxu0 0.0
    %2587 = vmatpush2.msra.mxu0 0.0
    %2588 = vmatprep.subr.mxu0 0.0
    %2589 = vmatpush2.msra.mxu0 0.0
    %2590 = vmatprep.subr.mxu0 0.0
    %2591 = vmatpush2.msra.mxu0 0.0
    %2592 = vmatprep.subr.mxu0 0.0
    %2593 = vmatpush2.msra.mxu0 0.0
    %2594 = vmatprep.subr.mxu0 0.0
    %2595 = vmatpush2.msra.mxu0 0.0
    %2596 = vmatprep.mubr.f32.mxu0 0.0
    %v2597 = vand.u32 %v2167, 4294901760
    %2598 = vmatmul.mubr.f32.gmra.mxu0 %v2597
    %v2599 = vpop.f32.mrf.mxu0
    %v2600 = vadd.f32 %v2511, %v2599
    %v2601 = vpop.f32.mrf.mxu0
    %2602 = vdwg.mxu0
    %2603 = vmatprep.subr.mxu0 0.0
    %2604 = vmatpush1.msra.mxu0 0.0
    %2605 = vmatprep.subr.mxu0 0.0
    %2606 = vmatpush1.msra.mxu0 0.0
    %2607 = vmatprep.subr.mxu0 0.0
    %2608 = vmatpush1.msra.mxu0 0.0
    %2609 = vmatprep.subr.mxu0 0.0
    %2610 = vmatpush1.msra.mxu0 0.0
    %2611 = vmatprep.subr.mxu0 0.0
    %2612 = vmatpush1.msra.mxu0 0.0
    %2613 = vmatprep.subr.mxu0 0.0
    %2614 = vmatpush1.msra.mxu0 0.0
    %2615 = vmatprep.subr.mxu0 0.0
    %2616 = vmatpush1.msra.mxu0 0.0
    %2617 = vmatprep.subr.mxu0 0.0
    %2618 = vmatpush1.msra.mxu0 0.0
    %2619 = vmatprep.subr.mxu0 0.0
    %2620 = vmatpush1.msra.mxu0 0.0
    %2621 = vmatprep.subr.mxu0 0.0
    %2622 = vmatpush1.msra.mxu0 0.0
    %2623 = vmatprep.subr.mxu0 0.0
    %v2624 = vand.u32 %v2165, 4294901760
    %2625 = vmatpush1.msra.mxu0 %v2624
    %2626 = vmatprep.subr.mxu0 0.0
    %v2627 = vand.u32 %v2164, 4294901760
    %2628 = vmatpush1.msra.mxu0 %v2627
    %2629 = vmatprep.subr.mxu0 0.0
    %v2630 = vand.u32 %v2163, 4294901760
    %2631 = vmatpush1.msra.mxu0 %v2630
    %2632 = vmatprep.subr.mxu0 0.0
    %v2633 = vand.u32 %v2162, 4294901760
    %2634 = vmatpush1.msra.mxu0 %v2633
    %2635 = vmatprep.subr.mxu0 0.0
    %v2636 = vand.u32 %v2161, 4294901760
    %2637 = vmatpush1.msra.mxu0 %v2636
    %2638 = vmatprep.subr.mxu0 0.0
    %v2639 = vand.u32 %v2160, 4294901760
    %2640 = vmatpush1.msra.mxu0 %v2639
    %2641 = vmatprep.subr.mxu0 0.0
    %2642 = vmatpush2.msra.mxu0 0.0
    %2643 = vmatprep.subr.mxu0 0.0
    %2644 = vmatpush2.msra.mxu0 0.0
    %2645 = vmatprep.subr.mxu0 0.0
    %2646 = vmatpush2.msra.mxu0 0.0
    %2647 = vmatprep.subr.mxu0 0.0
    %2648 = vmatpush2.msra.mxu0 0.0
    %2649 = vmatprep.subr.mxu0 0.0
    %2650 = vmatpush2.msra.mxu0 0.0
    %2651 = vmatprep.subr.mxu0 0.0
    %2652 = vmatpush2.msra.mxu0 0.0
    %2653 = vmatprep.subr.mxu0 0.0
    %2654 = vmatpush2.msra.mxu0 0.0
    %2655 = vmatprep.subr.mxu0 0.0
    %2656 = vmatpush2.msra.mxu0 0.0
    %2657 = vmatprep.subr.mxu0 0.0
    %2658 = vmatpush2.msra.mxu0 0.0
    %2659 = vmatprep.subr.mxu0 0.0
    %2660 = vmatpush2.msra.mxu0 0.0
    %2661 = vmatprep.subr.mxu0 0.0
    %2662 = vmatpush2.msra.mxu0 0.0
    %2663 = vmatprep.subr.mxu0 0.0
    %2664 = vmatpush2.msra.mxu0 0.0
    %2665 = vmatprep.subr.mxu0 0.0
    %2666 = vmatpush2.msra.mxu0 0.0
    %2667 = vmatprep.subr.mxu0 0.0
    %2668 = vmatpush2.msra.mxu0 0.0
    %2669 = vmatprep.subr.mxu0 0.0
    %2670 = vmatpush2.msra.mxu0 0.0
    %2671 = vmatprep.subr.mxu0 0.0
    %2672 = vmatpush2.msra.mxu0 0.0
    %2673 = vmatprep.mubr.f32.mxu0 0.0
    %v2674 = vand.u32 %v2167, 4294901760
    %2675 = vmatmul.mubr.f32.gmra.mxu0 %v2674
    %v2676 = vpop.f32.mrf.mxu0
    %v2677 = vadd.f32 %v2600, %v2676
    %v2678 = vpop.f32.mrf.mxu0
    %2679 = vdwg.mxu0
    %v2681 = vsel %vm2148, %v2159, 0
    %2683 = vmatprep.subr.mxu0 0.0
    %2684 = vmatpush1.msra.mxu0 0.0
    %2685 = vmatprep.subr.mxu0 0.0
    %2686 = vmatpush1.msra.mxu0 0.0
    %2687 = vmatprep.subr.mxu0 0.0
    %2688 = vmatpush1.msra.mxu0 0.0
    %2689 = vmatprep.subr.mxu0 0.0
    %2690 = vmatpush1.msra.mxu0 0.0
    %2691 = vmatprep.subr.mxu0 0.0
    %2692 = vmatpush1.msra.mxu0 0.0
    %2693 = vmatprep.subr.mxu0 0.0
    %2694 = vmatpush1.msra.mxu0 0.0
    %2695 = vmatprep.subr.mxu0 0.0
    %2696 = vmatpush1.msra.mxu0 0.0
    %2697 = vmatprep.subr.mxu0 0.0
    %2698 = vmatpush1.msra.mxu0 0.0
    %2699 = vmatprep.subr.mxu0 0.0
    %2700 = vmatpush1.msra.mxu0 0.0
    %2701 = vmatprep.subr.mxu0 0.0
    %2702 = vmatpush1.msra.mxu0 0.0
    %2703 = vmatprep.subr.mxu0 0.0
    %v2704 = vand.u32 %v2165, 4294901760
    %2705 = vmatpush1.msra.mxu0 %v2704
    %2706 = vmatprep.subr.mxu0 0.0
    %v2707 = vand.u32 %v2164, 4294901760
    %2708 = vmatpush1.msra.mxu0 %v2707
    %2709 = vmatprep.subr.mxu0 0.0
    %v2710 = vand.u32 %v2163, 4294901760
    %2711 = vmatpush1.msra.mxu0 %v2710
    %2712 = vmatprep.subr.mxu0 0.0
    %v2713 = vand.u32 %v2162, 4294901760
    %2714 = vmatpush1.msra.mxu0 %v2713
    %2715 = vmatprep.subr.mxu0 0.0
    %v2716 = vand.u32 %v2161, 4294901760
    %2717 = vmatpush1.msra.mxu0 %v2716
    %2718 = vmatprep.subr.mxu0 0.0
    %v2719 = vand.u32 %v2160, 4294901760
    %2720 = vmatpush1.msra.mxu0 %v2719
    %2721 = vmatprep.subr.mxu0 0.0
    %2722 = vmatpush2.msra.mxu0 0.0
    %2723 = vmatprep.subr.mxu0 0.0
    %2724 = vmatpush2.msra.mxu0 0.0
    %2725 = vmatprep.subr.mxu0 0.0
    %2726 = vmatpush2.msra.mxu0 0.0
    %2727 = vmatprep.subr.mxu0 0.0
    %2728 = vmatpush2.msra.mxu0 0.0
    %2729 = vmatprep.subr.mxu0 0.0
    %2730 = vmatpush2.msra.mxu0 0.0
    %2731 = vmatprep.subr.mxu0 0.0
    %2732 = vmatpush2.msra.mxu0 0.0
    %2733 = vmatprep.subr.mxu0 0.0
    %2734 = vmatpush2.msra.mxu0 0.0
    %2735 = vmatprep.subr.mxu0 0.0
    %2736 = vmatpush2.msra.mxu0 0.0
    %2737 = vmatprep.subr.mxu0 0.0
    %2738 = vmatpush2.msra.mxu0 0.0
    %2739 = vmatprep.subr.mxu0 0.0
    %2740 = vmatpush2.msra.mxu0 0.0
    %2741 = vmatprep.subr.mxu0 0.0
    %2742 = vmatpush2.msra.mxu0 0.0
    %2743 = vmatprep.subr.mxu0 0.0
    %2744 = vmatpush2.msra.mxu0 0.0
    %2745 = vmatprep.subr.mxu0 0.0
    %2746 = vmatpush2.msra.mxu0 0.0
    %2747 = vmatprep.subr.mxu0 0.0
    %2748 = vmatpush2.msra.mxu0 0.0
    %2749 = vmatprep.subr.mxu0 0.0
    %2750 = vmatpush2.msra.mxu0 0.0
    %2751 = vmatprep.subr.mxu0 0.0
    %2752 = vmatpush2.msra.mxu0 0.0
    %2753 = vmatprep.mubr.f32.mxu0 0.0
    %v2754 = vand.u32 %v2681, 4294901760
    %v2755 = vsub.f32 %v2681, %v2754
    %v2756 = vand.u32 %v2755, 4294901760
    %v2757 = vsub.f32 %v2755, %v2756
    %v2758 = vand.u32 %v2757, 4294901760
    %2759 = vmatmul.mubr.f32.gmra.mxu0 %v2758
    %v2760 = vpop.f32.mrf.mxu0
    %v2761 = vadd.f32 0.0, %v2760
    %v2762 = vpop.f32.mrf.mxu0
    %2763 = vdwg.mxu0
    %2764 = vmatprep.subr.mxu0 0.0
    %2765 = vmatpush1.msra.mxu0 0.0
    %2766 = vmatprep.subr.mxu0 0.0
    %2767 = vmatpush1.msra.mxu0 0.0
    %2768 = vmatprep.subr.mxu0 0.0
    %2769 = vmatpush1.msra.mxu0 0.0
    %2770 = vmatprep.subr.mxu0 0.0
    %2771 = vmatpush1.msra.mxu0 0.0
    %2772 = vmatprep.subr.mxu0 0.0
    %2773 = vmatpush1.msra.mxu0 0.0
    %2774 = vmatprep.subr.mxu0 0.0
    %2775 = vmatpush1.msra.mxu0 0.0
    %2776 = vmatprep.subr.mxu0 0.0
    %2777 = vmatpush1.msra.mxu0 0.0
    %2778 = vmatprep.subr.mxu0 0.0
    %2779 = vmatpush1.msra.mxu0 0.0
    %2780 = vmatprep.subr.mxu0 0.0
    %2781 = vmatpush1.msra.mxu0 0.0
    %2782 = vmatprep.subr.mxu0 0.0
    %2783 = vmatpush1.msra.mxu0 0.0
    %2784 = vmatprep.subr.mxu0 0.0
    %v2785 = vand.u32 %v2165, 4294901760
    %v2786 = vsub.f32 %v2165, %v2785
    %v2787 = vand.u32 %v2786, 4294901760
    %v2788 = vsub.f32 %v2786, %v2787
    %v2789 = vand.u32 %v2788, 4294901760
    %2790 = vmatpush1.msra.mxu0 %v2789
    %2791 = vmatprep.subr.mxu0 0.0
    %v2792 = vand.u32 %v2164, 4294901760
    %v2793 = vsub.f32 %v2164, %v2792
    %v2794 = vand.u32 %v2793, 4294901760
    %v2795 = vsub.f32 %v2793, %v2794
    %v2796 = vand.u32 %v2795, 4294901760
    %2797 = vmatpush1.msra.mxu0 %v2796
    %2798 = vmatprep.subr.mxu0 0.0
    %v2799 = vand.u32 %v2163, 4294901760
    %v2800 = vsub.f32 %v2163, %v2799
    %v2801 = vand.u32 %v2800, 4294901760
    %v2802 = vsub.f32 %v2800, %v2801
    %v2803 = vand.u32 %v2802, 4294901760
    %2804 = vmatpush1.msra.mxu0 %v2803
    %2805 = vmatprep.subr.mxu0 0.0
    %v2806 = vand.u32 %v2162, 4294901760
    %v2807 = vsub.f32 %v2162, %v2806
    %v2808 = vand.u32 %v2807, 4294901760
    %v2809 = vsub.f32 %v2807, %v2808
    %v2810 = vand.u32 %v2809, 4294901760
    %2811 = vmatpush1.msra.mxu0 %v2810
    %2812 = vmatprep.subr.mxu0 0.0
    %v2813 = vand.u32 %v2161, 4294901760
    %v2814 = vsub.f32 %v2161, %v2813
    %v2815 = vand.u32 %v2814, 4294901760
    %v2816 = vsub.f32 %v2814, %v2815
    %v2817 = vand.u32 %v2816, 4294901760
    %2818 = vmatpush1.msra.mxu0 %v2817
    %2819 = vmatprep.subr.mxu0 0.0
    %v2820 = vand.u32 %v2160, 4294901760
    %v2821 = vsub.f32 %v2160, %v2820
    %v2822 = vand.u32 %v2821, 4294901760
    %v2823 = vsub.f32 %v2821, %v2822
    %v2824 = vand.u32 %v2823, 4294901760
    %2825 = vmatpush1.msra.mxu0 %v2824
    %2826 = vmatprep.subr.mxu0 0.0
    %2827 = vmatpush2.msra.mxu0 0.0
    %2828 = vmatprep.subr.mxu0 0.0
    %2829 = vmatpush2.msra.mxu0 0.0
    %2830 = vmatprep.subr.mxu0 0.0
    %2831 = vmatpush2.msra.mxu0 0.0
    %2832 = vmatprep.subr.mxu0 0.0
    %2833 = vmatpush2.msra.mxu0 0.0
    %2834 = vmatprep.subr.mxu0 0.0
    %2835 = vmatpush2.msra.mxu0 0.0
    %2836 = vmatprep.subr.mxu0 0.0
    %2837 = vmatpush2.msra.mxu0 0.0
    %2838 = vmatprep.subr.mxu0 0.0
    %2839 = vmatpush2.msra.mxu0 0.0
    %2840 = vmatprep.subr.mxu0 0.0
    %2841 = vmatpush2.msra.mxu0 0.0
    %2842 = vmatprep.subr.mxu0 0.0
    %2843 = vmatpush2.msra.mxu0 0.0
    %2844 = vmatprep.subr.mxu0 0.0
    %2845 = vmatpush2.msra.mxu0 0.0
    %2846 = vmatprep.subr.mxu0 0.0
    %2847 = vmatpush2.msra.mxu0 0.0
    %2848 = vmatprep.subr.mxu0 0.0
    %2849 = vmatpush2.msra.mxu0 0.0
    %2850 = vmatprep.subr.mxu0 0.0
    %2851 = vmatpush2.msra.mxu0 0.0
    %2852 = vmatprep.subr.mxu0 0.0
    %2853 = vmatpush2.msra.mxu0 0.0
    %2854 = vmatprep.subr.mxu0 0.0
    %2855 = vmatpush2.msra.mxu0 0.0
    %2856 = vmatprep.subr.mxu0 0.0
    %2857 = vmatpush2.msra.mxu0 0.0
    %2858 = vmatprep.mubr.f32.mxu0 0.0
    %v2859 = vand.u32 %v2681, 4294901760
    %2860 = vmatmul.mubr.f32.gmra.mxu0 %v2859
    %v2861 = vpop.f32.mrf.mxu0
    %v2862 = vadd.f32 %v2761, %v2861
    %v2863 = vpop.f32.mrf.mxu0
    %2864 = vdwg.mxu0
    %2865 = vmatprep.subr.mxu0 0.0
    %2866 = vmatpush1.msra.mxu0 0.0
    %2867 = vmatprep.subr.mxu0 0.0
    %2868 = vmatpush1.msra.mxu0 0.0
    %2869 = vmatprep.subr.mxu0 0.0
    %2870 = vmatpush1.msra.mxu0 0.0
    %2871 = vmatprep.subr.mxu0 0.0
    %2872 = vmatpush1.msra.mxu0 0.0
    %2873 = vmatprep.subr.mxu0 0.0
    %2874 = vmatpush1.msra.mxu0 0.0
    %2875 = vmatprep.subr.mxu0 0.0
    %2876 = vmatpush1.msra.mxu0 0.0
    %2877 = vmatprep.subr.mxu0 0.0
    %2878 = vmatpush1.msra.mxu0 0.0
    %2879 = vmatprep.subr.mxu0 0.0
    %2880 = vmatpush1.msra.mxu0 0.0
    %2881 = vmatprep.subr.mxu0 0.0
    %2882 = vmatpush1.msra.mxu0 0.0
    %2883 = vmatprep.subr.mxu0 0.0
    %2884 = vmatpush1.msra.mxu0 0.0
    %2885 = vmatprep.subr.mxu0 0.0
    %v2886 = vand.u32 %v2165, 4294901760
    %v2887 = vsub.f32 %v2165, %v2886
    %2888 = vmatpush1.msra.mxu0 %v2887
    %2889 = vmatprep.subr.mxu0 0.0
    %v2890 = vand.u32 %v2164, 4294901760
    %v2891 = vsub.f32 %v2164, %v2890
    %2892 = vmatpush1.msra.mxu0 %v2891
    %2893 = vmatprep.subr.mxu0 0.0
    %v2894 = vand.u32 %v2163, 4294901760
    %v2895 = vsub.f32 %v2163, %v2894
    %2896 = vmatpush1.msra.mxu0 %v2895
    %2897 = vmatprep.subr.mxu0 0.0
    %v2898 = vand.u32 %v2162, 4294901760
    %v2899 = vsub.f32 %v2162, %v2898
    %2900 = vmatpush1.msra.mxu0 %v2899
    %2901 = vmatprep.subr.mxu0 0.0
    %v2902 = vand.u32 %v2161, 4294901760
    %v2903 = vsub.f32 %v2161, %v2902
    %2904 = vmatpush1.msra.mxu0 %v2903
    %2905 = vmatprep.subr.mxu0 0.0
    %v2906 = vand.u32 %v2160, 4294901760
    %v2907 = vsub.f32 %v2160, %v2906
    %2908 = vmatpush1.msra.mxu0 %v2907
    %2909 = vmatprep.subr.mxu0 0.0
    %2910 = vmatpush2.msra.mxu0 0.0
    %2911 = vmatprep.subr.mxu0 0.0
    %2912 = vmatpush2.msra.mxu0 0.0
    %2913 = vmatprep.subr.mxu0 0.0
    %2914 = vmatpush2.msra.mxu0 0.0
    %2915 = vmatprep.subr.mxu0 0.0
    %2916 = vmatpush2.msra.mxu0 0.0
    %2917 = vmatprep.subr.mxu0 0.0
    %2918 = vmatpush2.msra.mxu0 0.0
    %2919 = vmatprep.subr.mxu0 0.0
    %2920 = vmatpush2.msra.mxu0 0.0
    %2921 = vmatprep.subr.mxu0 0.0
    %2922 = vmatpush2.msra.mxu0 0.0
    %2923 = vmatprep.subr.mxu0 0.0
    %2924 = vmatpush2.msra.mxu0 0.0
    %2925 = vmatprep.subr.mxu0 0.0
    %2926 = vmatpush2.msra.mxu0 0.0
    %2927 = vmatprep.subr.mxu0 0.0
    %2928 = vmatpush2.msra.mxu0 0.0
    %2929 = vmatprep.subr.mxu0 0.0
    %2930 = vmatpush2.msra.mxu0 0.0
    %2931 = vmatprep.subr.mxu0 0.0
    %2932 = vmatpush2.msra.mxu0 0.0
    %2933 = vmatprep.subr.mxu0 0.0
    %2934 = vmatpush2.msra.mxu0 0.0
    %2935 = vmatprep.subr.mxu0 0.0
    %2936 = vmatpush2.msra.mxu0 0.0
    %2937 = vmatprep.subr.mxu0 0.0
    %2938 = vmatpush2.msra.mxu0 0.0
    %2939 = vmatprep.subr.mxu0 0.0
    %2940 = vmatpush2.msra.mxu0 0.0
    %2941 = vmatprep.mubr.f32.mxu0 0.0
    %v2942 = vand.u32 %v2681, 4294901760
    %v2943 = vsub.f32 %v2681, %v2942
    %2944 = vmatmul.mubr.f32.gmra.mxu0 %v2943
    %v2945 = vpop.f32.mrf.mxu0
    %v2946 = vadd.f32 %v2862, %v2945
    %v2947 = vpop.f32.mrf.mxu0
    %2948 = vdwg.mxu0
    %2949 = vmatprep.subr.mxu0 0.0
    %2950 = vmatpush1.msra.mxu0 0.0
    %2951 = vmatprep.subr.mxu0 0.0
    %2952 = vmatpush1.msra.mxu0 0.0
    %2953 = vmatprep.subr.mxu0 0.0
    %2954 = vmatpush1.msra.mxu0 0.0
    %2955 = vmatprep.subr.mxu0 0.0
    %2956 = vmatpush1.msra.mxu0 0.0
    %2957 = vmatprep.subr.mxu0 0.0
    %2958 = vmatpush1.msra.mxu0 0.0
    %2959 = vmatprep.subr.mxu0 0.0
    %2960 = vmatpush1.msra.mxu0 0.0
    %2961 = vmatprep.subr.mxu0 0.0
    %2962 = vmatpush1.msra.mxu0 0.0
    %2963 = vmatprep.subr.mxu0 0.0
    %2964 = vmatpush1.msra.mxu0 0.0
    %2965 = vmatprep.subr.mxu0 0.0
    %2966 = vmatpush1.msra.mxu0 0.0
    %2967 = vmatprep.subr.mxu0 0.0
    %2968 = vmatpush1.msra.mxu0 0.0
    %2969 = vmatprep.subr.mxu0 0.0
    %v2970 = vand.u32 %v2165, 4294901760
    %2971 = vmatpush1.msra.mxu0 %v2970
    %2972 = vmatprep.subr.mxu0 0.0
    %v2973 = vand.u32 %v2164, 4294901760
    %2974 = vmatpush1.msra.mxu0 %v2973
    %2975 = vmatprep.subr.mxu0 0.0
    %v2976 = vand.u32 %v2163, 4294901760
    %2977 = vmatpush1.msra.mxu0 %v2976
    %2978 = vmatprep.subr.mxu0 0.0
    %v2979 = vand.u32 %v2162, 4294901760
    %2980 = vmatpush1.msra.mxu0 %v2979
    %2981 = vmatprep.subr.mxu0 0.0
    %v2982 = vand.u32 %v2161, 4294901760
    %2983 = vmatpush1.msra.mxu0 %v2982
    %2984 = vmatprep.subr.mxu0 0.0
    %v2985 = vand.u32 %v2160, 4294901760
    %2986 = vmatpush1.msra.mxu0 %v2985
    %2987 = vmatprep.subr.mxu0 0.0
    %2988 = vmatpush2.msra.mxu0 0.0
    %2989 = vmatprep.subr.mxu0 0.0
    %2990 = vmatpush2.msra.mxu0 0.0
    %2991 = vmatprep.subr.mxu0 0.0
    %2992 = vmatpush2.msra.mxu0 0.0
    %2993 = vmatprep.subr.mxu0 0.0
    %2994 = vmatpush2.msra.mxu0 0.0
    %2995 = vmatprep.subr.mxu0 0.0
    %2996 = vmatpush2.msra.mxu0 0.0
    %2997 = vmatprep.subr.mxu0 0.0
    %2998 = vmatpush2.msra.mxu0 0.0
    %2999 = vmatprep.subr.mxu0 0.0
    %3000 = vmatpush2.msra.mxu0 0.0
    %3001 = vmatprep.subr.mxu0 0.0
    %3002 = vmatpush2.msra.mxu0 0.0
    %3003 = vmatprep.subr.mxu0 0.0
    %3004 = vmatpush2.msra.mxu0 0.0
    %3005 = vmatprep.subr.mxu0 0.0
    %3006 = vmatpush2.msra.mxu0 0.0
    %3007 = vmatprep.subr.mxu0 0.0
    %3008 = vmatpush2.msra.mxu0 0.0
    %3009 = vmatprep.subr.mxu0 0.0
    %3010 = vmatpush2.msra.mxu0 0.0
    %3011 = vmatprep.subr.mxu0 0.0
    %3012 = vmatpush2.msra.mxu0 0.0
    %3013 = vmatprep.subr.mxu0 0.0
    %3014 = vmatpush2.msra.mxu0 0.0
    %3015 = vmatprep.subr.mxu0 0.0
    %3016 = vmatpush2.msra.mxu0 0.0
    %3017 = vmatprep.subr.mxu0 0.0
    %3018 = vmatpush2.msra.mxu0 0.0
    %3019 = vmatprep.mubr.f32.mxu0 0.0
    %v3020 = vand.u32 %v2681, 4294901760
    %v3021 = vsub.f32 %v2681, %v3020
    %v3022 = vand.u32 %v3021, 4294901760
    %3023 = vmatmul.mubr.f32.gmra.mxu0 %v3022
    %v3024 = vpop.f32.mrf.mxu0
    %v3025 = vadd.f32 %v2946, %v3024
    %v3026 = vpop.f32.mrf.mxu0
    %3027 = vdwg.mxu0
    %3028 = vmatprep.subr.mxu0 0.0
    %3029 = vmatpush1.msra.mxu0 0.0
    %3030 = vmatprep.subr.mxu0 0.0
    %3031 = vmatpush1.msra.mxu0 0.0
    %3032 = vmatprep.subr.mxu0 0.0
    %3033 = vmatpush1.msra.mxu0 0.0
    %3034 = vmatprep.subr.mxu0 0.0
    %3035 = vmatpush1.msra.mxu0 0.0
    %3036 = vmatprep.subr.mxu0 0.0
    %3037 = vmatpush1.msra.mxu0 0.0
    %3038 = vmatprep.subr.mxu0 0.0
    %3039 = vmatpush1.msra.mxu0 0.0
    %3040 = vmatprep.subr.mxu0 0.0
    %3041 = vmatpush1.msra.mxu0 0.0
    %3042 = vmatprep.subr.mxu0 0.0
    %3043 = vmatpush1.msra.mxu0 0.0
    %3044 = vmatprep.subr.mxu0 0.0
    %3045 = vmatpush1.msra.mxu0 0.0
    %3046 = vmatprep.subr.mxu0 0.0
    %3047 = vmatpush1.msra.mxu0 0.0
    %3048 = vmatprep.subr.mxu0 0.0
    %v3049 = vand.u32 %v2165, 4294901760
    %v3050 = vsub.f32 %v2165, %v3049
    %v3051 = vand.u32 %v3050, 4294901760
    %3052 = vmatpush1.msra.mxu0 %v3051
    %3053 = vmatprep.subr.mxu0 0.0
    %v3054 = vand.u32 %v2164, 4294901760
    %v3055 = vsub.f32 %v2164, %v3054
    %v3056 = vand.u32 %v3055, 4294901760
    %3057 = vmatpush1.msra.mxu0 %v3056
    %3058 = vmatprep.subr.mxu0 0.0
    %v3059 = vand.u32 %v2163, 4294901760
    %v3060 = vsub.f32 %v2163, %v3059
    %v3061 = vand.u32 %v3060, 4294901760
    %3062 = vmatpush1.msra.mxu0 %v3061
    %3063 = vmatprep.subr.mxu0 0.0
    %v3064 = vand.u32 %v2162, 4294901760
    %v3065 = vsub.f32 %v2162, %v3064
    %v3066 = vand.u32 %v3065, 4294901760
    %3067 = vmatpush1.msra.mxu0 %v3066
    %3068 = vmatprep.subr.mxu0 0.0
    %v3069 = vand.u32 %v2161, 4294901760
    %v3070 = vsub.f32 %v2161, %v3069
    %v3071 = vand.u32 %v3070, 4294901760
    %3072 = vmatpush1.msra.mxu0 %v3071
    %3073 = vmatprep.subr.mxu0 0.0
    %v3074 = vand.u32 %v2160, 4294901760
    %v3075 = vsub.f32 %v2160, %v3074
    %v3076 = vand.u32 %v3075, 4294901760
    %3077 = vmatpush1.msra.mxu0 %v3076
    %3078 = vmatprep.subr.mxu0 0.0
    %3079 = vmatpush2.msra.mxu0 0.0
    %3080 = vmatprep.subr.mxu0 0.0
    %3081 = vmatpush2.msra.mxu0 0.0
    %3082 = vmatprep.subr.mxu0 0.0
    %3083 = vmatpush2.msra.mxu0 0.0
    %3084 = vmatprep.subr.mxu0 0.0
    %3085 = vmatpush2.msra.mxu0 0.0
    %3086 = vmatprep.subr.mxu0 0.0
    %3087 = vmatpush2.msra.mxu0 0.0
    %3088 = vmatprep.subr.mxu0 0.0
    %3089 = vmatpush2.msra.mxu0 0.0
    %3090 = vmatprep.subr.mxu0 0.0
    %3091 = vmatpush2.msra.mxu0 0.0
    %3092 = vmatprep.subr.mxu0 0.0
    %3093 = vmatpush2.msra.mxu0 0.0
    %3094 = vmatprep.subr.mxu0 0.0
    %3095 = vmatpush2.msra.mxu0 0.0
    %3096 = vmatprep.subr.mxu0 0.0
    %3097 = vmatpush2.msra.mxu0 0.0
    %3098 = vmatprep.subr.mxu0 0.0
    %3099 = vmatpush2.msra.mxu0 0.0
    %3100 = vmatprep.subr.mxu0 0.0
    %3101 = vmatpush2.msra.mxu0 0.0
    %3102 = vmatprep.subr.mxu0 0.0
    %3103 = vmatpush2.msra.mxu0 0.0
    %3104 = vmatprep.subr.mxu0 0.0
    %3105 = vmatpush2.msra.mxu0 0.0
    %3106 = vmatprep.subr.mxu0 0.0
    %3107 = vmatpush2.msra.mxu0 0.0
    %3108 = vmatprep.subr.mxu0 0.0
    %3109 = vmatpush2.msra.mxu0 0.0
    %3110 = vmatprep.mubr.f32.mxu0 0.0
    %v3111 = vand.u32 %v2681, 4294901760
    %3112 = vmatmul.mubr.f32.gmra.mxu0 %v3111
    %v3113 = vpop.f32.mrf.mxu0
    %v3114 = vadd.f32 %v3025, %v3113
    %v3115 = vpop.f32.mrf.mxu0
    %3116 = vdwg.mxu0
    %3117 = vmatprep.subr.mxu0 0.0
    %3118 = vmatpush1.msra.mxu0 0.0
    %3119 = vmatprep.subr.mxu0 0.0
    %3120 = vmatpush1.msra.mxu0 0.0
    %3121 = vmatprep.subr.mxu0 0.0
    %3122 = vmatpush1.msra.mxu0 0.0
    %3123 = vmatprep.subr.mxu0 0.0
    %3124 = vmatpush1.msra.mxu0 0.0
    %3125 = vmatprep.subr.mxu0 0.0
    %3126 = vmatpush1.msra.mxu0 0.0
    %3127 = vmatprep.subr.mxu0 0.0
    %3128 = vmatpush1.msra.mxu0 0.0
    %3129 = vmatprep.subr.mxu0 0.0
    %3130 = vmatpush1.msra.mxu0 0.0
    %3131 = vmatprep.subr.mxu0 0.0
    %3132 = vmatpush1.msra.mxu0 0.0
    %3133 = vmatprep.subr.mxu0 0.0
    %3134 = vmatpush1.msra.mxu0 0.0
    %3135 = vmatprep.subr.mxu0 0.0
    %3136 = vmatpush1.msra.mxu0 0.0
    %3137 = vmatprep.subr.mxu0 0.0
    %v3138 = vand.u32 %v2165, 4294901760
    %3139 = vmatpush1.msra.mxu0 %v3138
    %3140 = vmatprep.subr.mxu0 0.0
    %v3141 = vand.u32 %v2164, 4294901760
    %3142 = vmatpush1.msra.mxu0 %v3141
    %3143 = vmatprep.subr.mxu0 0.0
    %v3144 = vand.u32 %v2163, 4294901760
    %3145 = vmatpush1.msra.mxu0 %v3144
    %3146 = vmatprep.subr.mxu0 0.0
    %v3147 = vand.u32 %v2162, 4294901760
    %3148 = vmatpush1.msra.mxu0 %v3147
    %3149 = vmatprep.subr.mxu0 0.0
    %v3150 = vand.u32 %v2161, 4294901760
    %3151 = vmatpush1.msra.mxu0 %v3150
    %3152 = vmatprep.subr.mxu0 0.0
    %v3153 = vand.u32 %v2160, 4294901760
    %3154 = vmatpush1.msra.mxu0 %v3153
    %3155 = vmatprep.subr.mxu0 0.0
    %3156 = vmatpush2.msra.mxu0 0.0
    %3157 = vmatprep.subr.mxu0 0.0
    %3158 = vmatpush2.msra.mxu0 0.0
    %3159 = vmatprep.subr.mxu0 0.0
    %3160 = vmatpush2.msra.mxu0 0.0
    %3161 = vmatprep.subr.mxu0 0.0
    %3162 = vmatpush2.msra.mxu0 0.0
    %3163 = vmatprep.subr.mxu0 0.0
    %3164 = vmatpush2.msra.mxu0 0.0
    %3165 = vmatprep.subr.mxu0 0.0
    %3166 = vmatpush2.msra.mxu0 0.0
    %3167 = vmatprep.subr.mxu0 0.0
    %3168 = vmatpush2.msra.mxu0 0.0
    %3169 = vmatprep.subr.mxu0 0.0
    %3170 = vmatpush2.msra.mxu0 0.0
    %3171 = vmatprep.subr.mxu0 0.0
    %3172 = vmatpush2.msra.mxu0 0.0
    %3173 = vmatprep.subr.mxu0 0.0
    %3174 = vmatpush2.msra.mxu0 0.0
    %3175 = vmatprep.subr.mxu0 0.0
    %3176 = vmatpush2.msra.mxu0 0.0
    %3177 = vmatprep.subr.mxu0 0.0
    %3178 = vmatpush2.msra.mxu0 0.0
    %3179 = vmatprep.subr.mxu0 0.0
    %3180 = vmatpush2.msra.mxu0 0.0
    %3181 = vmatprep.subr.mxu0 0.0
    %3182 = vmatpush2.msra.mxu0 0.0
    %3183 = vmatprep.subr.mxu0 0.0
    %3184 = vmatpush2.msra.mxu0 0.0
    %3185 = vmatprep.subr.mxu0 0.0
    %3186 = vmatpush2.msra.mxu0 0.0
    %3187 = vmatprep.mubr.f32.mxu0 0.0
    %v3188 = vand.u32 %v2681, 4294901760
    %3189 = vmatmul.mubr.f32.gmra.mxu0 %v3188
    %v3190 = vpop.f32.mrf.mxu0
    %v3191 = vadd.f32 %v3114, %v3190
    %v3192 = vpop.f32.mrf.mxu0
    %3193 = vdwg.mxu0
    %v3194 = vlog2.pop %v2677
    %v3195 = vmul.f32 %v3194, 0.6931472
    %v3196 = vsub.f32 %v3195, %v3191
    %v3197 = vadd.f32 %v2146, %v3196
    %v3198 = vld [vmem:[#allocation17] sm:$0xff]
    %vm3199 = vcmask 523264
    %v3200 = vsel %vm3199, %v3198, -inf
    %3201 = vmax.xlane.f32.xlu0 %v3200
    %v3202 = vpop.xlane.xlu0 %3201
    %v3203 = vsub.f32 %v3198, %v3202
    %v3204 = vmul.f32 %v3203, 1.442695
    %v3205 = vpow.pop %v3204
    %3206 = vset.pattern.permute.xlu0 3
    %3207 = vperm.xlu0 %3206, %v204
    %v3208 = vpop.permute.xlu0 %3207
    %vm3209 = vcmp.eq.s32.totalorder %v214, %v3208
    %v3210 = vsel %vm3209, %v3203, 0.0
    %v3211 = vld [vmem:[#allocation10] sm:$0xff]
    %v3212 = vld [vmem:[#allocation10 + $0x8] sm:$0xff]
    %v3213 = vld [vmem:[#allocation10 + $0x10] sm:$0xff]
    %v3214 = vld [vmem:[#allocation10 + $0x18] sm:$0xff]
    %v3215 = vld [vmem:[#allocation10 + $0x20] sm:$0xff]
    %v3216 = vld [vmem:[#allocation10 + $0x28] sm:$0xff]
    %v3217 = vld [vmem:[#allocation10 + $0x30] sm:$0xff]
    %v3218 = vld [vmem:[#allocation10 + $0x38] sm:$0xff]
    %v3220 = vsel %vm3199, %v3205, 0
    %3222 = vmatprep.subr.mxu0 0.0
    %3223 = vmatpush1.msra.mxu0 0.0
    %3224 = vmatprep.subr.mxu0 0.0
    %3225 = vmatpush1.msra.mxu0 0.0
    %3226 = vmatprep.subr.mxu0 0.0
    %3227 = vmatpush1.msra.mxu0 0.0
    %3228 = vmatprep.subr.mxu0 0.0
    %3229 = vmatpush1.msra.mxu0 0.0
    %3230 = vmatprep.subr.mxu0 0.0
    %3231 = vmatpush1.msra.mxu0 0.0
    %3232 = vmatprep.subr.mxu0 0.0
    %3233 = vmatpush1.msra.mxu0 0.0
    %3234 = vmatprep.subr.mxu0 0.0
    %3235 = vmatpush1.msra.mxu0 0.0
    %3236 = vmatprep.subr.mxu0 0.0
    %3237 = vmatpush1.msra.mxu0 0.0
    %3238 = vmatprep.subr.mxu0 0.0
    %v3239 = vand.u32 %v3218, 4294901760
    %3240 = vmatpush1.msra.mxu0 %v3239
    %3241 = vmatprep.subr.mxu0 0.0
    %v3242 = vand.u32 %v3217, 4294901760
    %3243 = vmatpush1.msra.mxu0 %v3242
    %3244 = vmatprep.subr.mxu0 0.0
    %v3245 = vand.u32 %v3216, 4294901760
    %3246 = vmatpush1.msra.mxu0 %v3245
    %3247 = vmatprep.subr.mxu0 0.0
    %v3248 = vand.u32 %v3215, 4294901760
    %3249 = vmatpush1.msra.mxu0 %v3248
    %3250 = vmatprep.subr.mxu0 0.0
    %v3251 = vand.u32 %v3214, 4294901760
    %3252 = vmatpush1.msra.mxu0 %v3251
    %3253 = vmatprep.subr.mxu0 0.0
    %v3254 = vand.u32 %v3213, 4294901760
    %3255 = vmatpush1.msra.mxu0 %v3254
    %3256 = vmatprep.subr.mxu0 0.0
    %v3257 = vand.u32 %v3212, 4294901760
    %3258 = vmatpush1.msra.mxu0 %v3257
    %3259 = vmatprep.subr.mxu0 0.0
    %v3260 = vand.u32 %v3211, 4294901760
    %3261 = vmatpush1.msra.mxu0 %v3260
    %3262 = vmatprep.subr.mxu0 0.0
    %3263 = vmatpush2.msra.mxu0 0.0
    %3264 = vmatprep.subr.mxu0 0.0
    %3265 = vmatpush2.msra.mxu0 0.0
    %3266 = vmatprep.subr.mxu0 0.0
    %3267 = vmatpush2.msra.mxu0 0.0
    %3268 = vmatprep.subr.mxu0 0.0
    %3269 = vmatpush2.msra.mxu0 0.0
    %3270 = vmatprep.subr.mxu0 0.0
    %3271 = vmatpush2.msra.mxu0 0.0
    %3272 = vmatprep.subr.mxu0 0.0
    %3273 = vmatpush2.msra.mxu0 0.0
    %3274 = vmatprep.subr.mxu0 0.0
    %3275 = vmatpush2.msra.mxu0 0.0
    %3276 = vmatprep.subr.mxu0 0.0
    %3277 = vmatpush2.msra.mxu0 0.0
    %3278 = vmatprep.subr.mxu0 0.0
    %3279 = vmatpush2.msra.mxu0 0.0
    %3280 = vmatprep.subr.mxu0 0.0
    %3281 = vmatpush2.msra.mxu0 0.0
    %3282 = vmatprep.subr.mxu0 0.0
    %3283 = vmatpush2.msra.mxu0 0.0
    %3284 = vmatprep.subr.mxu0 0.0
    %3285 = vmatpush2.msra.mxu0 0.0
    %3286 = vmatprep.subr.mxu0 0.0
    %3287 = vmatpush2.msra.mxu0 0.0
    %3288 = vmatprep.subr.mxu0 0.0
    %3289 = vmatpush2.msra.mxu0 0.0
    %3290 = vmatprep.subr.mxu0 0.0
    %3291 = vmatpush2.msra.mxu0 0.0
    %3292 = vmatprep.subr.mxu0 0.0
    %3293 = vmatpush2.msra.mxu0 0.0
    %3294 = vmatprep.mubr.f32.mxu0 0.0
    %v3295 = vand.u32 %v3220, 4294901760
    %v3296 = vsub.f32 %v3220, %v3295
    %v3297 = vand.u32 %v3296, 4294901760
    %v3298 = vsub.f32 %v3296, %v3297
    %v3299 = vand.u32 %v3298, 4294901760
    %3300 = vmatmul.mubr.f32.gmra.mxu0 %v3299
    %v3301 = vpop.f32.mrf.mxu0
    %v3302 = vadd.f32 0.0, %v3301
    %v3303 = vpop.f32.mrf.mxu0
    %3304 = vdwg.mxu0
    %3305 = vmatprep.subr.mxu0 0.0
    %3306 = vmatpush1.msra.mxu0 0.0
    %3307 = vmatprep.subr.mxu0 0.0
    %3308 = vmatpush1.msra.mxu0 0.0
    %3309 = vmatprep.subr.mxu0 0.0
    %3310 = vmatpush1.msra.mxu0 0.0
    %3311 = vmatprep.subr.mxu0 0.0
    %3312 = vmatpush1.msra.mxu0 0.0
    %3313 = vmatprep.subr.mxu0 0.0
    %3314 = vmatpush1.msra.mxu0 0.0
    %3315 = vmatprep.subr.mxu0 0.0
    %3316 = vmatpush1.msra.mxu0 0.0
    %3317 = vmatprep.subr.mxu0 0.0
    %3318 = vmatpush1.msra.mxu0 0.0
    %3319 = vmatprep.subr.mxu0 0.0
    %3320 = vmatpush1.msra.mxu0 0.0
    %3321 = vmatprep.subr.mxu0 0.0
    %v3322 = vand.u32 %v3218, 4294901760
    %v3323 = vsub.f32 %v3218, %v3322
    %v3324 = vand.u32 %v3323, 4294901760
    %v3325 = vsub.f32 %v3323, %v3324
    %v3326 = vand.u32 %v3325, 4294901760
    %3327 = vmatpush1.msra.mxu0 %v3326
    %3328 = vmatprep.subr.mxu0 0.0
    %v3329 = vand.u32 %v3217, 4294901760
    %v3330 = vsub.f32 %v3217, %v3329
    %v3331 = vand.u32 %v3330, 4294901760
    %v3332 = vsub.f32 %v3330, %v3331
    %v3333 = vand.u32 %v3332, 4294901760
    %3334 = vmatpush1.msra.mxu0 %v3333
    %3335 = vmatprep.subr.mxu0 0.0
    %v3336 = vand.u32 %v3216, 4294901760
    %v3337 = vsub.f32 %v3216, %v3336
    %v3338 = vand.u32 %v3337, 4294901760
    %v3339 = vsub.f32 %v3337, %v3338
    %v3340 = vand.u32 %v3339, 4294901760
    %3341 = vmatpush1.msra.mxu0 %v3340
    %3342 = vmatprep.subr.mxu0 0.0
    %v3343 = vand.u32 %v3215, 4294901760
    %v3344 = vsub.f32 %v3215, %v3343
    %v3345 = vand.u32 %v3344, 4294901760
    %v3346 = vsub.f32 %v3344, %v3345
    %v3347 = vand.u32 %v3346, 4294901760
    %3348 = vmatpush1.msra.mxu0 %v3347
    %3349 = vmatprep.subr.mxu0 0.0
    %v3350 = vand.u32 %v3214, 4294901760
    %v3351 = vsub.f32 %v3214, %v3350
    %v3352 = vand.u32 %v3351, 4294901760
    %v3353 = vsub.f32 %v3351, %v3352
    %v3354 = vand.u32 %v3353, 4294901760
    %3355 = vmatpush1.msra.mxu0 %v3354
    %3356 = vmatprep.subr.mxu0 0.0
    %v3357 = vand.u32 %v3213, 4294901760
    %v3358 = vsub.f32 %v3213, %v3357
    %v3359 = vand.u32 %v3358, 4294901760
    %v3360 = vsub.f32 %v3358, %v3359
    %v3361 = vand.u32 %v3360, 4294901760
    %3362 = vmatpush1.msra.mxu0 %v3361
    %3363 = vmatprep.subr.mxu0 0.0
    %v3364 = vand.u32 %v3212, 4294901760
    %v3365 = vsub.f32 %v3212, %v3364
    %v3366 = vand.u32 %v3365, 4294901760
    %v3367 = vsub.f32 %v3365, %v3366
    %v3368 = vand.u32 %v3367, 4294901760
    %3369 = vmatpush1.msra.mxu0 %v3368
    %3370 = vmatprep.subr.mxu0 0.0
    %v3371 = vand.u32 %v3211, 4294901760
    %v3372 = vsub.f32 %v3211, %v3371
    %v3373 = vand.u32 %v3372, 4294901760
    %v3374 = vsub.f32 %v3372, %v3373
    %v3375 = vand.u32 %v3374, 4294901760
    %3376 = vmatpush1.msra.mxu0 %v3375
    %3377 = vmatprep.subr.mxu0 0.0
    %3378 = vmatpush2.msra.mxu0 0.0
    %3379 = vmatprep.subr.mxu0 0.0
    %3380 = vmatpush2.msra.mxu0 0.0
    %3381 = vmatprep.subr.mxu0 0.0
    %3382 = vmatpush2.msra.mxu0 0.0
    %3383 = vmatprep.subr.mxu0 0.0
    %3384 = vmatpush2.msra.mxu0 0.0
    %3385 = vmatprep.subr.mxu0 0.0
    %3386 = vmatpush2.msra.mxu0 0.0
    %3387 = vmatprep.subr.mxu0 0.0
    %3388 = vmatpush2.msra.mxu0 0.0
    %3389 = vmatprep.subr.mxu0 0.0
    %3390 = vmatpush2.msra.mxu0 0.0
    %3391 = vmatprep.subr.mxu0 0.0
    %3392 = vmatpush2.msra.mxu0 0.0
    %3393 = vmatprep.subr.mxu0 0.0
    %3394 = vmatpush2.msra.mxu0 0.0
    %3395 = vmatprep.subr.mxu0 0.0
    %3396 = vmatpush2.msra.mxu0 0.0
    %3397 = vmatprep.subr.mxu0 0.0
    %3398 = vmatpush2.msra.mxu0 0.0
    %3399 = vmatprep.subr.mxu0 0.0
    %3400 = vmatpush2.msra.mxu0 0.0
    %3401 = vmatprep.subr.mxu0 0.0
    %3402 = vmatpush2.msra.mxu0 0.0
    %3403 = vmatprep.subr.mxu0 0.0
    %3404 = vmatpush2.msra.mxu0 0.0
    %3405 = vmatprep.subr.mxu0 0.0
    %3406 = vmatpush2.msra.mxu0 0.0
    %3407 = vmatprep.subr.mxu0 0.0
    %3408 = vmatpush2.msra.mxu0 0.0
    %3409 = vmatprep.mubr.f32.mxu0 0.0
    %v3410 = vand.u32 %v3220, 4294901760
    %3411 = vmatmul.mubr.f32.gmra.mxu0 %v3410
    %v3412 = vpop.f32.mrf.mxu0
    %v3413 = vadd.f32 %v3302, %v3412
    %v3414 = vpop.f32.mrf.mxu0
    %3415 = vdwg.mxu0
    %3416 = vmatprep.subr.mxu0 0.0
    %3417 = vmatpush1.msra.mxu0 0.0
    %3418 = vmatprep.subr.mxu0 0.0
    %3419 = vmatpush1.msra.mxu0 0.0
    %3420 = vmatprep.subr.mxu0 0.0
    %3421 = vmatpush1.msra.mxu0 0.0
    %3422 = vmatprep.subr.mxu0 0.0
    %3423 = vmatpush1.msra.mxu0 0.0
    %3424 = vmatprep.subr.mxu0 0.0
    %3425 = vmatpush1.msra.mxu0 0.0
    %3426 = vmatprep.subr.mxu0 0.0
    %3427 = vmatpush1.msra.mxu0 0.0
    %3428 = vmatprep.subr.mxu0 0.0
    %3429 = vmatpush1.msra.mxu0 0.0
    %3430 = vmatprep.subr.mxu0 0.0
    %3431 = vmatpush1.msra.mxu0 0.0
    %3432 = vmatprep.subr.mxu0 0.0
    %v3433 = vand.u32 %v3218, 4294901760
    %v3434 = vsub.f32 %v3218, %v3433
    %3435 = vmatpush1.msra.mxu0 %v3434
    %3436 = vmatprep.subr.mxu0 0.0
    %v3437 = vand.u32 %v3217, 4294901760
    %v3438 = vsub.f32 %v3217, %v3437
    %3439 = vmatpush1.msra.mxu0 %v3438
    %3440 = vmatprep.subr.mxu0 0.0
    %v3441 = vand.u32 %v3216, 4294901760
    %v3442 = vsub.f32 %v3216, %v3441
    %3443 = vmatpush1.msra.mxu0 %v3442
    %3444 = vmatprep.subr.mxu0 0.0
    %v3445 = vand.u32 %v3215, 4294901760
    %v3446 = vsub.f32 %v3215, %v3445
    %3447 = vmatpush1.msra.mxu0 %v3446
    %3448 = vmatprep.subr.mxu0 0.0
    %v3449 = vand.u32 %v3214, 4294901760
    %v3450 = vsub.f32 %v3214, %v3449
    %3451 = vmatpush1.msra.mxu0 %v3450
    %3452 = vmatprep.subr.mxu0 0.0
    %v3453 = vand.u32 %v3213, 4294901760
    %v3454 = vsub.f32 %v3213, %v3453
    %3455 = vmatpush1.msra.mxu0 %v3454
    %3456 = vmatprep.subr.mxu0 0.0
    %v3457 = vand.u32 %v3212, 4294901760
    %v3458 = vsub.f32 %v3212, %v3457
    %3459 = vmatpush1.msra.mxu0 %v3458
    %3460 = vmatprep.subr.mxu0 0.0
    %v3461 = vand.u32 %v3211, 4294901760
    %v3462 = vsub.f32 %v3211, %v3461
    %3463 = vmatpush1.msra.mxu0 %v3462
    %3464 = vmatprep.subr.mxu0 0.0
    %3465 = vmatpush2.msra.mxu0 0.0
    %3466 = vmatprep.subr.mxu0 0.0
    %3467 = vmatpush2.msra.mxu0 0.0
    %3468 = vmatprep.subr.mxu0 0.0
    %3469 = vmatpush2.msra.mxu0 0.0
    %3470 = vmatprep.subr.mxu0 0.0
    %3471 = vmatpush2.msra.mxu0 0.0
    %3472 = vmatprep.subr.mxu0 0.0
    %3473 = vmatpush2.msra.mxu0 0.0
    %3474 = vmatprep.subr.mxu0 0.0
    %3475 = vmatpush2.msra.mxu0 0.0
    %3476 = vmatprep.subr.mxu0 0.0
    %3477 = vmatpush2.msra.mxu0 0.0
    %3478 = vmatprep.subr.mxu0 0.0
    %3479 = vmatpush2.msra.mxu0 0.0
    %3480 = vmatprep.subr.mxu0 0.0
    %3481 = vmatpush2.msra.mxu0 0.0
    %3482 = vmatprep.subr.mxu0 0.0
    %3483 = vmatpush2.msra.mxu0 0.0
    %3484 = vmatprep.subr.mxu0 0.0
    %3485 = vmatpush2.msra.mxu0 0.0
    %3486 = vmatprep.subr.mxu0 0.0
    %3487 = vmatpush2.msra.mxu0 0.0
    %3488 = vmatprep.subr.mxu0 0.0
    %3489 = vmatpush2.msra.mxu0 0.0
    %3490 = vmatprep.subr.mxu0 0.0
    %3491 = vmatpush2.msra.mxu0 0.0
    %3492 = vmatprep.subr.mxu0 0.0
    %3493 = vmatpush2.msra.mxu0 0.0
    %3494 = vmatprep.subr.mxu0 0.0
    %3495 = vmatpush2.msra.mxu0 0.0
    %3496 = vmatprep.mubr.f32.mxu0 0.0
    %v3497 = vand.u32 %v3220, 4294901760
    %v3498 = vsub.f32 %v3220, %v3497
    %3499 = vmatmul.mubr.f32.gmra.mxu0 %v3498
    %v3500 = vpop.f32.mrf.mxu0
    %v3501 = vadd.f32 %v3413, %v3500
    %v3502 = vpop.f32.mrf.mxu0
    %3503 = vdwg.mxu0
    %3504 = vmatprep.subr.mxu0 0.0
    %3505 = vmatpush1.msra.mxu0 0.0
    %3506 = vmatprep.subr.mxu0 0.0
    %3507 = vmatpush1.msra.mxu0 0.0
    %3508 = vmatprep.subr.mxu0 0.0
    %3509 = vmatpush1.msra.mxu0 0.0
    %3510 = vmatprep.subr.mxu0 0.0
    %3511 = vmatpush1.msra.mxu0 0.0
    %3512 = vmatprep.subr.mxu0 0.0
    %3513 = vmatpush1.msra.mxu0 0.0
    %3514 = vmatprep.subr.mxu0 0.0
    %3515 = vmatpush1.msra.mxu0 0.0
    %3516 = vmatprep.subr.mxu0 0.0
    %3517 = vmatpush1.msra.mxu0 0.0
    %3518 = vmatprep.subr.mxu0 0.0
    %3519 = vmatpush1.msra.mxu0 0.0
    %3520 = vmatprep.subr.mxu0 0.0
    %v3521 = vand.u32 %v3218, 4294901760
    %3522 = vmatpush1.msra.mxu0 %v3521
    %3523 = vmatprep.subr.mxu0 0.0
    %v3524 = vand.u32 %v3217, 4294901760
    %3525 = vmatpush1.msra.mxu0 %v3524
    %3526 = vmatprep.subr.mxu0 0.0
    %v3527 = vand.u32 %v3216, 4294901760
    %3528 = vmatpush1.msra.mxu0 %v3527
    %3529 = vmatprep.subr.mxu0 0.0
    %v3530 = vand.u32 %v3215, 4294901760
    %3531 = vmatpush1.msra.mxu0 %v3530
    %3532 = vmatprep.subr.mxu0 0.0
    %v3533 = vand.u32 %v3214, 4294901760
    %3534 = vmatpush1.msra.mxu0 %v3533
    %3535 = vmatprep.subr.mxu0 0.0
    %v3536 = vand.u32 %v3213, 4294901760
    %3537 = vmatpush1.msra.mxu0 %v3536
    %3538 = vmatprep.subr.mxu0 0.0
    %v3539 = vand.u32 %v3212, 4294901760
    %3540 = vmatpush1.msra.mxu0 %v3539
    %3541 = vmatprep.subr.mxu0 0.0
    %v3542 = vand.u32 %v3211, 4294901760
    %3543 = vmatpush1.msra.mxu0 %v3542
    %3544 = vmatprep.subr.mxu0 0.0
    %3545 = vmatpush2.msra.mxu0 0.0
    %3546 = vmatprep.subr.mxu0 0.0
    %3547 = vmatpush2.msra.mxu0 0.0
    %3548 = vmatprep.subr.mxu0 0.0
    %3549 = vmatpush2.msra.mxu0 0.0
    %3550 = vmatprep.subr.mxu0 0.0
    %3551 = vmatpush2.msra.mxu0 0.0
    %3552 = vmatprep.subr.mxu0 0.0
    %3553 = vmatpush2.msra.mxu0 0.0
    %3554 = vmatprep.subr.mxu0 0.0
    %3555 = vmatpush2.msra.mxu0 0.0
    %3556 = vmatprep.subr.mxu0 0.0
    %3557 = vmatpush2.msra.mxu0 0.0
    %3558 = vmatprep.subr.mxu0 0.0
    %3559 = vmatpush2.msra.mxu0 0.0
    %3560 = vmatprep.subr.mxu0 0.0
    %3561 = vmatpush2.msra.mxu0 0.0
    %3562 = vmatprep.subr.mxu0 0.0
    %3563 = vmatpush2.msra.mxu0 0.0
    %3564 = vmatprep.subr.mxu0 0.0
    %3565 = vmatpush2.msra.mxu0 0.0
    %3566 = vmatprep.subr.mxu0 0.0
    %3567 = vmatpush2.msra.mxu0 0.0
    %3568 = vmatprep.subr.mxu0 0.0
    %3569 = vmatpush2.msra.mxu0 0.0
    %3570 = vmatprep.subr.mxu0 0.0
    %3571 = vmatpush2.msra.mxu0 0.0
    %3572 = vmatprep.subr.mxu0 0.0
    %3573 = vmatpush2.msra.mxu0 0.0
    %3574 = vmatprep.subr.mxu0 0.0
    %3575 = vmatpush2.msra.mxu0 0.0
    %3576 = vmatprep.mubr.f32.mxu0 0.0
    %v3577 = vand.u32 %v3220, 4294901760
    %v3578 = vsub.f32 %v3220, %v3577
    %v3579 = vand.u32 %v3578, 4294901760
    %3580 = vmatmul.mubr.f32.gmra.mxu0 %v3579
    %v3581 = vpop.f32.mrf.mxu0
    %v3582 = vadd.f32 %v3501, %v3581
    %v3583 = vpop.f32.mrf.mxu0
    %3584 = vdwg.mxu0
    %3585 = vmatprep.subr.mxu0 0.0
    %3586 = vmatpush1.msra.mxu0 0.0
    %3587 = vmatprep.subr.mxu0 0.0
    %3588 = vmatpush1.msra.mxu0 0.0
    %3589 = vmatprep.subr.mxu0 0.0
    %3590 = vmatpush1.msra.mxu0 0.0
    %3591 = vmatprep.subr.mxu0 0.0
    %3592 = vmatpush1.msra.mxu0 0.0
    %3593 = vmatprep.subr.mxu0 0.0
    %3594 = vmatpush1.msra.mxu0 0.0
    %3595 = vmatprep.subr.mxu0 0.0
    %3596 = vmatpush1.msra.mxu0 0.0
    %3597 = vmatprep.subr.mxu0 0.0
    %3598 = vmatpush1.msra.mxu0 0.0
    %3599 = vmatprep.subr.mxu0 0.0
    %3600 = vmatpush1.msra.mxu0 0.0
    %3601 = vmatprep.subr.mxu0 0.0
    %v3602 = vand.u32 %v3218, 4294901760
    %v3603 = vsub.f32 %v3218, %v3602
    %v3604 = vand.u32 %v3603, 4294901760
    %3605 = vmatpush1.msra.mxu0 %v3604
    %3606 = vmatprep.subr.mxu0 0.0
    %v3607 = vand.u32 %v3217, 4294901760
    %v3608 = vsub.f32 %v3217, %v3607
    %v3609 = vand.u32 %v3608, 4294901760
    %3610 = vmatpush1.msra.mxu0 %v3609
    %3611 = vmatprep.subr.mxu0 0.0
    %v3612 = vand.u32 %v3216, 4294901760
    %v3613 = vsub.f32 %v3216, %v3612
    %v3614 = vand.u32 %v3613, 4294901760
    %3615 = vmatpush1.msra.mxu0 %v3614
    %3616 = vmatprep.subr.mxu0 0.0
    %v3617 = vand.u32 %v3215, 4294901760
    %v3618 = vsub.f32 %v3215, %v3617
    %v3619 = vand.u32 %v3618, 4294901760
    %3620 = vmatpush1.msra.mxu0 %v3619
    %3621 = vmatprep.subr.mxu0 0.0
    %v3622 = vand.u32 %v3214, 4294901760
    %v3623 = vsub.f32 %v3214, %v3622
    %v3624 = vand.u32 %v3623, 4294901760
    %3625 = vmatpush1.msra.mxu0 %v3624
    %3626 = vmatprep.subr.mxu0 0.0
    %v3627 = vand.u32 %v3213, 4294901760
    %v3628 = vsub.f32 %v3213, %v3627
    %v3629 = vand.u32 %v3628, 4294901760
    %3630 = vmatpush1.msra.mxu0 %v3629
    %3631 = vmatprep.subr.mxu0 0.0
    %v3632 = vand.u32 %v3212, 4294901760
    %v3633 = vsub.f32 %v3212, %v3632
    %v3634 = vand.u32 %v3633, 4294901760
    %3635 = vmatpush1.msra.mxu0 %v3634
    %3636 = vmatprep.subr.mxu0 0.0
    %v3637 = vand.u32 %v3211, 4294901760
    %v3638 = vsub.f32 %v3211, %v3637
    %v3639 = vand.u32 %v3638, 4294901760
    %3640 = vmatpush1.msra.mxu0 %v3639
    %3641 = vmatprep.subr.mxu0 0.0
    %3642 = vmatpush2.msra.mxu0 0.0
    %3643 = vmatprep.subr.mxu0 0.0
    %3644 = vmatpush2.msra.mxu0 0.0
    %3645 = vmatprep.subr.mxu0 0.0
    %3646 = vmatpush2.msra.mxu0 0.0
    %3647 = vmatprep.subr.mxu0 0.0
    %3648 = vmatpush2.msra.mxu0 0.0
    %3649 = vmatprep.subr.mxu0 0.0
    %3650 = vmatpush2.msra.mxu0 0.0
    %3651 = vmatprep.subr.mxu0 0.0
    %3652 = vmatpush2.msra.mxu0 0.0
    %3653 = vmatprep.subr.mxu0 0.0
    %3654 = vmatpush2.msra.mxu0 0.0
    %3655 = vmatprep.subr.mxu0 0.0
    %3656 = vmatpush2.msra.mxu0 0.0
    %3657 = vmatprep.subr.mxu0 0.0
    %3658 = vmatpush2.msra.mxu0 0.0
    %3659 = vmatprep.subr.mxu0 0.0
    %3660 = vmatpush2.msra.mxu0 0.0
    %3661 = vmatprep.subr.mxu0 0.0
    %3662 = vmatpush2.msra.mxu0 0.0
    %3663 = vmatprep.subr.mxu0 0.0
    %3664 = vmatpush2.msra.mxu0 0.0
    %3665 = vmatprep.subr.mxu0 0.0
    %3666 = vmatpush2.msra.mxu0 0.0
    %3667 = vmatprep.subr.mxu0 0.0
    %3668 = vmatpush2.msra.mxu0 0.0
    %3669 = vmatprep.subr.mxu0 0.0
    %3670 = vmatpush2.msra.mxu0 0.0
    %3671 = vmatprep.subr.mxu0 0.0
    %3672 = vmatpush2.msra.mxu0 0.0
    %3673 = vmatprep.mubr.f32.mxu0 0.0
    %v3674 = vand.u32 %v3220, 4294901760
    %3675 = vmatmul.mubr.f32.gmra.mxu0 %v3674
    %v3676 = vpop.f32.mrf.mxu0
    %v3677 = vadd.f32 %v3582, %v3676
    %v3678 = vpop.f32.mrf.mxu0
    %3679 = vdwg.mxu0
    %3680 = vmatprep.subr.mxu0 0.0
    %3681 = vmatpush1.msra.mxu0 0.0
    %3682 = vmatprep.subr.mxu0 0.0
    %3683 = vmatpush1.msra.mxu0 0.0
    %3684 = vmatprep.subr.mxu0 0.0
    %3685 = vmatpush1.msra.mxu0 0.0
    %3686 = vmatprep.subr.mxu0 0.0
    %3687 = vmatpush1.msra.mxu0 0.0
    %3688 = vmatprep.subr.mxu0 0.0
    %3689 = vmatpush1.msra.mxu0 0.0
    %3690 = vmatprep.subr.mxu0 0.0
    %3691 = vmatpush1.msra.mxu0 0.0
    %3692 = vmatprep.subr.mxu0 0.0
    %3693 = vmatpush1.msra.mxu0 0.0
    %3694 = vmatprep.subr.mxu0 0.0
    %3695 = vmatpush1.msra.mxu0 0.0
    %3696 = vmatprep.subr.mxu0 0.0
    %v3697 = vand.u32 %v3218, 4294901760
    %3698 = vmatpush1.msra.mxu0 %v3697
    %3699 = vmatprep.subr.mxu0 0.0
    %v3700 = vand.u32 %v3217, 4294901760
    %3701 = vmatpush1.msra.mxu0 %v3700
    %3702 = vmatprep.subr.mxu0 0.0
    %v3703 = vand.u32 %v3216, 4294901760
    %3704 = vmatpush1.msra.mxu0 %v3703
    %3705 = vmatprep.subr.mxu0 0.0
    %v3706 = vand.u32 %v3215, 4294901760
    %3707 = vmatpush1.msra.mxu0 %v3706
    %3708 = vmatprep.subr.mxu0 0.0
    %v3709 = vand.u32 %v3214, 4294901760
    %3710 = vmatpush1.msra.mxu0 %v3709
    %3711 = vmatprep.subr.mxu0 0.0
    %v3712 = vand.u32 %v3213, 4294901760
    %3713 = vmatpush1.msra.mxu0 %v3712
    %3714 = vmatprep.subr.mxu0 0.0
    %v3715 = vand.u32 %v3212, 4294901760
    %3716 = vmatpush1.msra.mxu0 %v3715
    %3717 = vmatprep.subr.mxu0 0.0
    %v3718 = vand.u32 %v3211, 4294901760
    %3719 = vmatpush1.msra.mxu0 %v3718
    %3720 = vmatprep.subr.mxu0 0.0
    %3721 = vmatpush2.msra.mxu0 0.0
    %3722 = vmatprep.subr.mxu0 0.0
    %3723 = vmatpush2.msra.mxu0 0.0
    %3724 = vmatprep.subr.mxu0 0.0
    %3725 = vmatpush2.msra.mxu0 0.0
    %3726 = vmatprep.subr.mxu0 0.0
    %3727 = vmatpush2.msra.mxu0 0.0
    %3728 = vmatprep.subr.mxu0 0.0
    %3729 = vmatpush2.msra.mxu0 0.0
    %3730 = vmatprep.subr.mxu0 0.0
    %3731 = vmatpush2.msra.mxu0 0.0
    %3732 = vmatprep.subr.mxu0 0.0
    %3733 = vmatpush2.msra.mxu0 0.0
    %3734 = vmatprep.subr.mxu0 0.0
    %3735 = vmatpush2.msra.mxu0 0.0
    %3736 = vmatprep.subr.mxu0 0.0
    %3737 = vmatpush2.msra.mxu0 0.0
    %3738 = vmatprep.subr.mxu0 0.0
    %3739 = vmatpush2.msra.mxu0 0.0
    %3740 = vmatprep.subr.mxu0 0.0
    %3741 = vmatpush2.msra.mxu0 0.0
    %3742 = vmatprep.subr.mxu0 0.0
    %3743 = vmatpush2.msra.mxu0 0.0
    %3744 = vmatprep.subr.mxu0 0.0
    %3745 = vmatpush2.msra.mxu0 0.0
    %3746 = vmatprep.subr.mxu0 0.0
    %3747 = vmatpush2.msra.mxu0 0.0
    %3748 = vmatprep.subr.mxu0 0.0
    %3749 = vmatpush2.msra.mxu0 0.0
    %3750 = vmatprep.subr.mxu0 0.0
    %3751 = vmatpush2.msra.mxu0 0.0
    %3752 = vmatprep.mubr.f32.mxu0 0.0
    %v3753 = vand.u32 %v3220, 4294901760
    %3754 = vmatmul.mubr.f32.gmra.mxu0 %v3753
    %v3755 = vpop.f32.mrf.mxu0
    %v3756 = vadd.f32 %v3677, %v3755
    %v3757 = vpop.f32.mrf.mxu0
    %3758 = vdwg.mxu0
    %v3760 = vsel %vm3199, %v3210, 0
    %3762 = vmatprep.subr.mxu0 0.0
    %3763 = vmatpush1.msra.mxu0 0.0
    %3764 = vmatprep.subr.mxu0 0.0
    %3765 = vmatpush1.msra.mxu0 0.0
    %3766 = vmatprep.subr.mxu0 0.0
    %3767 = vmatpush1.msra.mxu0 0.0
    %3768 = vmatprep.subr.mxu0 0.0
    %3769 = vmatpush1.msra.mxu0 0.0
    %3770 = vmatprep.subr.mxu0 0.0
    %3771 = vmatpush1.msra.mxu0 0.0
    %3772 = vmatprep.subr.mxu0 0.0
    %3773 = vmatpush1.msra.mxu0 0.0
    %3774 = vmatprep.subr.mxu0 0.0
    %3775 = vmatpush1.msra.mxu0 0.0
    %3776 = vmatprep.subr.mxu0 0.0
    %3777 = vmatpush1.msra.mxu0 0.0
    %3778 = vmatprep.subr.mxu0 0.0
    %v3779 = vand.u32 %v3218, 4294901760
    %3780 = vmatpush1.msra.mxu0 %v3779
    %3781 = vmatprep.subr.mxu0 0.0
    %v3782 = vand.u32 %v3217, 4294901760
    %3783 = vmatpush1.msra.mxu0 %v3782
    %3784 = vmatprep.subr.mxu0 0.0
    %v3785 = vand.u32 %v3216, 4294901760
    %3786 = vmatpush1.msra.mxu0 %v3785
    %3787 = vmatprep.subr.mxu0 0.0
    %v3788 = vand.u32 %v3215, 4294901760
    %3789 = vmatpush1.msra.mxu0 %v3788
    %3790 = vmatprep.subr.mxu0 0.0
    %v3791 = vand.u32 %v3214, 4294901760
    %3792 = vmatpush1.msra.mxu0 %v3791
    %3793 = vmatprep.subr.mxu0 0.0
    %v3794 = vand.u32 %v3213, 4294901760
    %3795 = vmatpush1.msra.mxu0 %v3794
    %3796 = vmatprep.subr.mxu0 0.0
    %v3797 = vand.u32 %v3212, 4294901760
    %3798 = vmatpush1.msra.mxu0 %v3797
    %3799 = vmatprep.subr.mxu0 0.0
    %v3800 = vand.u32 %v3211, 4294901760
    %3801 = vmatpush1.msra.mxu0 %v3800
    %3802 = vmatprep.subr.mxu0 0.0
    %3803 = vmatpush2.msra.mxu0 0.0
    %3804 = vmatprep.subr.mxu0 0.0
    %3805 = vmatpush2.msra.mxu0 0.0
    %3806 = vmatprep.subr.mxu0 0.0
    %3807 = vmatpush2.msra.mxu0 0.0
    %3808 = vmatprep.subr.mxu0 0.0
    %3809 = vmatpush2.msra.mxu0 0.0
    %3810 = vmatprep.subr.mxu0 0.0
    %3811 = vmatpush2.msra.mxu0 0.0
    %3812 = vmatprep.subr.mxu0 0.0
    %3813 = vmatpush2.msra.mxu0 0.0
    %3814 = vmatprep.subr.mxu0 0.0
    %3815 = vmatpush2.msra.mxu0 0.0
    %3816 = vmatprep.subr.mxu0 0.0
    %3817 = vmatpush2.msra.mxu0 0.0
    %3818 = vmatprep.subr.mxu0 0.0
    %3819 = vmatpush2.msra.mxu0 0.0
    %3820 = vmatprep.subr.mxu0 0.0
    %3821 = vmatpush2.msra.mxu0 0.0
    %3822 = vmatprep.subr.mxu0 0.0
    %3823 = vmatpush2.msra.mxu0 0.0
    %3824 = vmatprep.subr.mxu0 0.0
    %3825 = vmatpush2.msra.mxu0 0.0
    %3826 = vmatprep.subr.mxu0 0.0
    %3827 = vmatpush2.msra.mxu0 0.0
    %3828 = vmatprep.subr.mxu0 0.0
    %3829 = vmatpush2.msra.mxu0 0.0
    %3830 = vmatprep.subr.mxu0 0.0
    %3831 = vmatpush2.msra.mxu0 0.0
    %3832 = vmatprep.subr.mxu0 0.0
    %3833 = vmatpush2.msra.mxu0 0.0
    %3834 = vmatprep.mubr.f32.mxu0 0.0
    %v3835 = vand.u32 %v3760, 4294901760
    %v3836 = vsub.f32 %v3760, %v3835
    %v3837 = vand.u32 %v3836, 4294901760
    %v3838 = vsub.f32 %v3836, %v3837
    %v3839 = vand.u32 %v3838, 4294901760
    %3840 = vmatmul.mubr.f32.gmra.mxu0 %v3839
    %v3841 = vpop.f32.mrf.mxu0
    %v3842 = vadd.f32 0.0, %v3841
    %v3843 = vpop.f32.mrf.mxu0
    %3844 = vdwg.mxu0
    %3845 = vmatprep.subr.mxu0 0.0
    %3846 = vmatpush1.msra.mxu0 0.0
    %3847 = vmatprep.subr.mxu0 0.0
    %3848 = vmatpush1.msra.mxu0 0.0
    %3849 = vmatprep.subr.mxu0 0.0
    %3850 = vmatpush1.msra.mxu0 0.0
    %3851 = vmatprep.subr.mxu0 0.0
    %3852 = vmatpush1.msra.mxu0 0.0
    %3853 = vmatprep.subr.mxu0 0.0
    %3854 = vmatpush1.msra.mxu0 0.0
    %3855 = vmatprep.subr.mxu0 0.0
    %3856 = vmatpush1.msra.mxu0 0.0
    %3857 = vmatprep.subr.mxu0 0.0
    %3858 = vmatpush1.msra.mxu0 0.0
    %3859 = vmatprep.subr.mxu0 0.0
    %3860 = vmatpush1.msra.mxu0 0.0
    %3861 = vmatprep.subr.mxu0 0.0
    %v3862 = vand.u32 %v3218, 4294901760
    %v3863 = vsub.f32 %v3218, %v3862
    %v3864 = vand.u32 %v3863, 4294901760
    %v3865 = vsub.f32 %v3863, %v3864
    %v3866 = vand.u32 %v3865, 4294901760
    %3867 = vmatpush1.msra.mxu0 %v3866
    %3868 = vmatprep.subr.mxu0 0.0
    %v3869 = vand.u32 %v3217, 4294901760
    %v3870 = vsub.f32 %v3217, %v3869
    %v3871 = vand.u32 %v3870, 4294901760
    %v3872 = vsub.f32 %v3870, %v3871
    %v3873 = vand.u32 %v3872, 4294901760
    %3874 = vmatpush1.msra.mxu0 %v3873
    %3875 = vmatprep.subr.mxu0 0.0
    %v3876 = vand.u32 %v3216, 4294901760
    %v3877 = vsub.f32 %v3216, %v3876
    %v3878 = vand.u32 %v3877, 4294901760
    %v3879 = vsub.f32 %v3877, %v3878
    %v3880 = vand.u32 %v3879, 4294901760
    %3881 = vmatpush1.msra.mxu0 %v3880
    %3882 = vmatprep.subr.mxu0 0.0
    %v3883 = vand.u32 %v3215, 4294901760
    %v3884 = vsub.f32 %v3215, %v3883
    %v3885 = vand.u32 %v3884, 4294901760
    %v3886 = vsub.f32 %v3884, %v3885
    %v3887 = vand.u32 %v3886, 4294901760
    %3888 = vmatpush1.msra.mxu0 %v3887
    %3889 = vmatprep.subr.mxu0 0.0
    %v3890 = vand.u32 %v3214, 4294901760
    %v3891 = vsub.f32 %v3214, %v3890
    %v3892 = vand.u32 %v3891, 4294901760
    %v3893 = vsub.f32 %v3891, %v3892
    %v3894 = vand.u32 %v3893, 4294901760
    %3895 = vmatpush1.msra.mxu0 %v3894
    %3896 = vmatprep.subr.mxu0 0.0
    %v3897 = vand.u32 %v3213, 4294901760
    %v3898 = vsub.f32 %v3213, %v3897
    %v3899 = vand.u32 %v3898, 4294901760
    %v3900 = vsub.f32 %v3898, %v3899
    %v3901 = vand.u32 %v3900, 4294901760
    %3902 = vmatpush1.msra.mxu0 %v3901
    %3903 = vmatprep.subr.mxu0 0.0
    %v3904 = vand.u32 %v3212, 4294901760
    %v3905 = vsub.f32 %v3212, %v3904
    %v3906 = vand.u32 %v3905, 4294901760
    %v3907 = vsub.f32 %v3905, %v3906
    %v3908 = vand.u32 %v3907, 4294901760
    %3909 = vmatpush1.msra.mxu0 %v3908
    %3910 = vmatprep.subr.mxu0 0.0
    %v3911 = vand.u32 %v3211, 4294901760
    %v3912 = vsub.f32 %v3211, %v3911
    %v3913 = vand.u32 %v3912, 4294901760
    %v3914 = vsub.f32 %v3912, %v3913
    %v3915 = vand.u32 %v3914, 4294901760
    %3916 = vmatpush1.msra.mxu0 %v3915
    %3917 = vmatprep.subr.mxu0 0.0
    %3918 = vmatpush2.msra.mxu0 0.0
    %3919 = vmatprep.subr.mxu0 0.0
    %3920 = vmatpush2.msra.mxu0 0.0
    %3921 = vmatprep.subr.mxu0 0.0
    %3922 = vmatpush2.msra.mxu0 0.0
    %3923 = vmatprep.subr.mxu0 0.0
    %3924 = vmatpush2.msra.mxu0 0.0
    %3925 = vmatprep.subr.mxu0 0.0
    %3926 = vmatpush2.msra.mxu0 0.0
    %3927 = vmatprep.subr.mxu0 0.0
    %3928 = vmatpush2.msra.mxu0 0.0
    %3929 = vmatprep.subr.mxu0 0.0
    %3930 = vmatpush2.msra.mxu0 0.0
    %3931 = vmatprep.subr.mxu0 0.0
    %3932 = vmatpush2.msra.mxu0 0.0
    %3933 = vmatprep.subr.mxu0 0.0
    %3934 = vmatpush2.msra.mxu0 0.0
    %3935 = vmatprep.subr.mxu0 0.0
    %3936 = vmatpush2.msra.mxu0 0.0
    %3937 = vmatprep.subr.mxu0 0.0
    %3938 = vmatpush2.msra.mxu0 0.0
    %3939 = vmatprep.subr.mxu0 0.0
    %3940 = vmatpush2.msra.mxu0 0.0
    %3941 = vmatprep.subr.mxu0 0.0
    %3942 = vmatpush2.msra.mxu0 0.0
    %3943 = vmatprep.subr.mxu0 0.0
    %3944 = vmatpush2.msra.mxu0 0.0
    %3945 = vmatprep.subr.mxu0 0.0
    %3946 = vmatpush2.msra.mxu0 0.0
    %3947 = vmatprep.subr.mxu0 0.0
    %3948 = vmatpush2.msra.mxu0 0.0
    %3949 = vmatprep.mubr.f32.mxu0 0.0
    %v3950 = vand.u32 %v3760, 4294901760
    %3951 = vmatmul.mubr.f32.gmra.mxu0 %v3950
    %v3952 = vpop.f32.mrf.mxu0
    %v3953 = vadd.f32 %v3842, %v3952
    %v3954 = vpop.f32.mrf.mxu0
    %3955 = vdwg.mxu0
    %3956 = vmatprep.subr.mxu0 0.0
    %3957 = vmatpush1.msra.mxu0 0.0
    %3958 = vmatprep.subr.mxu0 0.0
    %3959 = vmatpush1.msra.mxu0 0.0
    %3960 = vmatprep.subr.mxu0 0.0
    %3961 = vmatpush1.msra.mxu0 0.0
    %3962 = vmatprep.subr.mxu0 0.0
    %3963 = vmatpush1.msra.mxu0 0.0
    %3964 = vmatprep.subr.mxu0 0.0
    %3965 = vmatpush1.msra.mxu0 0.0
    %3966 = vmatprep.subr.mxu0 0.0
    %3967 = vmatpush1.msra.mxu0 0.0
    %3968 = vmatprep.subr.mxu0 0.0
    %3969 = vmatpush1.msra.mxu0 0.0
    %3970 = vmatprep.subr.mxu0 0.0
    %3971 = vmatpush1.msra.mxu0 0.0
    %3972 = vmatprep.subr.mxu0 0.0
    %v3973 = vand.u32 %v3218, 4294901760
    %v3974 = vsub.f32 %v3218, %v3973
    %3975 = vmatpush1.msra.mxu0 %v3974
    %3976 = vmatprep.subr.mxu0 0.0
    %v3977 = vand.u32 %v3217, 4294901760
    %v3978 = vsub.f32 %v3217, %v3977
    %3979 = vmatpush1.msra.mxu0 %v3978
    %3980 = vmatprep.subr.mxu0 0.0
    %v3981 = vand.u32 %v3216, 4294901760
    %v3982 = vsub.f32 %v3216, %v3981
    %3983 = vmatpush1.msra.mxu0 %v3982
    %3984 = vmatprep.subr.mxu0 0.0
    %v3985 = vand.u32 %v3215, 4294901760
    %v3986 = vsub.f32 %v3215, %v3985
    %3987 = vmatpush1.msra.mxu0 %v3986
    %3988 = vmatprep.subr.mxu0 0.0
    %v3989 = vand.u32 %v3214, 4294901760
    %v3990 = vsub.f32 %v3214, %v3989
    %3991 = vmatpush1.msra.mxu0 %v3990
    %3992 = vmatprep.subr.mxu0 0.0
    %v3993 = vand.u32 %v3213, 4294901760
    %v3994 = vsub.f32 %v3213, %v3993
    %3995 = vmatpush1.msra.mxu0 %v3994
    %3996 = vmatprep.subr.mxu0 0.0
    %v3997 = vand.u32 %v3212, 4294901760
    %v3998 = vsub.f32 %v3212, %v3997
    %3999 = vmatpush1.msra.mxu0 %v3998
    %4000 = vmatprep.subr.mxu0 0.0
    %v4001 = vand.u32 %v3211, 4294901760
    %v4002 = vsub.f32 %v3211, %v4001
    %4003 = vmatpush1.msra.mxu0 %v4002
    %4004 = vmatprep.subr.mxu0 0.0
    %4005 = vmatpush2.msra.mxu0 0.0
    %4006 = vmatprep.subr.mxu0 0.0
    %4007 = vmatpush2.msra.mxu0 0.0
    %4008 = vmatprep.subr.mxu0 0.0
    %4009 = vmatpush2.msra.mxu0 0.0
    %4010 = vmatprep.subr.mxu0 0.0
    %4011 = vmatpush2.msra.mxu0 0.0
    %4012 = vmatprep.subr.mxu0 0.0
    %4013 = vmatpush2.msra.mxu0 0.0
    %4014 = vmatprep.subr.mxu0 0.0
    %4015 = vmatpush2.msra.mxu0 0.0
    %4016 = vmatprep.subr.mxu0 0.0
    %4017 = vmatpush2.msra.mxu0 0.0
    %4018 = vmatprep.subr.mxu0 0.0
    %4019 = vmatpush2.msra.mxu0 0.0
    %4020 = vmatprep.subr.mxu0 0.0
    %4021 = vmatpush2.msra.mxu0 0.0
    %4022 = vmatprep.subr.mxu0 0.0
    %4023 = vmatpush2.msra.mxu0 0.0
    %4024 = vmatprep.subr.mxu0 0.0
    %4025 = vmatpush2.msra.mxu0 0.0
    %4026 = vmatprep.subr.mxu0 0.0
    %4027 = vmatpush2.msra.mxu0 0.0
    %4028 = vmatprep.subr.mxu0 0.0
    %4029 = vmatpush2.msra.mxu0 0.0
    %4030 = vmatprep.subr.mxu0 0.0
    %4031 = vmatpush2.msra.mxu0 0.0
    %4032 = vmatprep.subr.mxu0 0.0
    %4033 = vmatpush2.msra.mxu0 0.0
    %4034 = vmatprep.subr.mxu0 0.0
    %4035 = vmatpush2.msra.mxu0 0.0
    %4036 = vmatprep.mubr.f32.mxu0 0.0
    %v4037 = vand.u32 %v3760, 4294901760
    %v4038 = vsub.f32 %v3760, %v4037
    %4039 = vmatmul.mubr.f32.gmra.mxu0 %v4038
    %v4040 = vpop.f32.mrf.mxu0
    %v4041 = vadd.f32 %v3953, %v4040
    %v4042 = vpop.f32.mrf.mxu0
    %4043 = vdwg.mxu0
    %4044 = vmatprep.subr.mxu0 0.0
    %4045 = vmatpush1.msra.mxu0 0.0
    %4046 = vmatprep.subr.mxu0 0.0
    %4047 = vmatpush1.msra.mxu0 0.0
    %4048 = vmatprep.subr.mxu0 0.0
    %4049 = vmatpush1.msra.mxu0 0.0
    %4050 = vmatprep.subr.mxu0 0.0
    %4051 = vmatpush1.msra.mxu0 0.0
    %4052 = vmatprep.subr.mxu0 0.0
    %4053 = vmatpush1.msra.mxu0 0.0
    %4054 = vmatprep.subr.mxu0 0.0
    %4055 = vmatpush1.msra.mxu0 0.0
    %4056 = vmatprep.subr.mxu0 0.0
    %4057 = vmatpush1.msra.mxu0 0.0
    %4058 = vmatprep.subr.mxu0 0.0
    %4059 = vmatpush1.msra.mxu0 0.0
    %4060 = vmatprep.subr.mxu0 0.0
    %v4061 = vand.u32 %v3218, 4294901760
    %4062 = vmatpush1.msra.mxu0 %v4061
    %4063 = vmatprep.subr.mxu0 0.0
    %v4064 = vand.u32 %v3217, 4294901760
    %4065 = vmatpush1.msra.mxu0 %v4064
    %4066 = vmatprep.subr.mxu0 0.0
    %v4067 = vand.u32 %v3216, 4294901760
    %4068 = vmatpush1.msra.mxu0 %v4067
    %4069 = vmatprep.subr.mxu0 0.0
    %v4070 = vand.u32 %v3215, 4294901760
    %4071 = vmatpush1.msra.mxu0 %v4070
    %4072 = vmatprep.subr.mxu0 0.0
    %v4073 = vand.u32 %v3214, 4294901760
    %4074 = vmatpush1.msra.mxu0 %v4073
    %4075 = vmatprep.subr.mxu0 0.0
    %v4076 = vand.u32 %v3213, 4294901760
    %4077 = vmatpush1.msra.mxu0 %v4076
    %4078 = vmatprep.subr.mxu0 0.0
    %v4079 = vand.u32 %v3212, 4294901760
    %4080 = vmatpush1.msra.mxu0 %v4079
    %4081 = vmatprep.subr.mxu0 0.0
    %v4082 = vand.u32 %v3211, 4294901760
    %4083 = vmatpush1.msra.mxu0 %v4082
    %4084 = vmatprep.subr.mxu0 0.0
    %4085 = vmatpush2.msra.mxu0 0.0
    %4086 = vmatprep.subr.mxu0 0.0
    %4087 = vmatpush2.msra.mxu0 0.0
    %4088 = vmatprep.subr.mxu0 0.0
    %4089 = vmatpush2.msra.mxu0 0.0
    %4090 = vmatprep.subr.mxu0 0.0
    %4091 = vmatpush2.msra.mxu0 0.0
    %4092 = vmatprep.subr.mxu0 0.0
    %4093 = vmatpush2.msra.mxu0 0.0
    %4094 = vmatprep.subr.mxu0 0.0
    %4095 = vmatpush2.msra.mxu0 0.0
    %4096 = vmatprep.subr.mxu0 0.0
    %4097 = vmatpush2.msra.mxu0 0.0
    %4098 = vmatprep.subr.mxu0 0.0
    %4099 = vmatpush2.msra.mxu0 0.0
    %4100 = vmatprep.subr.mxu0 0.0
    %4101 = vmatpush2.msra.mxu0 0.0
    %4102 = vmatprep.subr.mxu0 0.0
    %4103 = vmatpush2.msra.mxu0 0.0
    %4104 = vmatprep.subr.mxu0 0.0
    %4105 = vmatpush2.msra.mxu0 0.0
    %4106 = vmatprep.subr.mxu0 0.0
    %4107 = vmatpush2.msra.mxu0 0.0
    %4108 = vmatprep.subr.mxu0 0.0
    %4109 = vmatpush2.msra.mxu0 0.0
    %4110 = vmatprep.subr.mxu0 0.0
    %4111 = vmatpush2.msra.mxu0 0.0
    %4112 = vmatprep.subr.mxu0 0.0
    %4113 = vmatpush2.msra.mxu0 0.0
    %4114 = vmatprep.subr.mxu0 0.0
    %4115 = vmatpush2.msra.mxu0 0.0
    %4116 = vmatprep.mubr.f32.mxu0 0.0
    %v4117 = vand.u32 %v3760, 4294901760
    %v4118 = vsub.f32 %v3760, %v4117
    %v4119 = vand.u32 %v4118, 4294901760
    %4120 = vmatmul.mubr.f32.gmra.mxu0 %v4119
    %v4121 = vpop.f32.mrf.mxu0
    %v4122 = vadd.f32 %v4041, %v4121
    %v4123 = vpop.f32.mrf.mxu0
    %4124 = vdwg.mxu0
    %4125 = vmatprep.subr.mxu0 0.0
    %4126 = vmatpush1.msra.mxu0 0.0
    %4127 = vmatprep.subr.mxu0 0.0
    %4128 = vmatpush1.msra.mxu0 0.0
    %4129 = vmatprep.subr.mxu0 0.0
    %4130 = vmatpush1.msra.mxu0 0.0
    %4131 = vmatprep.subr.mxu0 0.0
    %4132 = vmatpush1.msra.mxu0 0.0
    %4133 = vmatprep.subr.mxu0 0.0
    %4134 = vmatpush1.msra.mxu0 0.0
    %4135 = vmatprep.subr.mxu0 0.0
    %4136 = vmatpush1.msra.mxu0 0.0
    %4137 = vmatprep.subr.mxu0 0.0
    %4138 = vmatpush1.msra.mxu0 0.0
    %4139 = vmatprep.subr.mxu0 0.0
    %4140 = vmatpush1.msra.mxu0 0.0
    %4141 = vmatprep.subr.mxu0 0.0
    %v4142 = vand.u32 %v3218, 4294901760
    %v4143 = vsub.f32 %v3218, %v4142
    %v4144 = vand.u32 %v4143, 4294901760
    %4145 = vmatpush1.msra.mxu0 %v4144
    %4146 = vmatprep.subr.mxu0 0.0
    %v4147 = vand.u32 %v3217, 4294901760
    %v4148 = vsub.f32 %v3217, %v4147
    %v4149 = vand.u32 %v4148, 4294901760
    %4150 = vmatpush1.msra.mxu0 %v4149
    %4151 = vmatprep.subr.mxu0 0.0
    %v4152 = vand.u32 %v3216, 4294901760
    %v4153 = vsub.f32 %v3216, %v4152
    %v4154 = vand.u32 %v4153, 4294901760
    %4155 = vmatpush1.msra.mxu0 %v4154
    %4156 = vmatprep.subr.mxu0 0.0
    %v4157 = vand.u32 %v3215, 4294901760
    %v4158 = vsub.f32 %v3215, %v4157
    %v4159 = vand.u32 %v4158, 4294901760
    %4160 = vmatpush1.msra.mxu0 %v4159
    %4161 = vmatprep.subr.mxu0 0.0
    %v4162 = vand.u32 %v3214, 4294901760
    %v4163 = vsub.f32 %v3214, %v4162
    %v4164 = vand.u32 %v4163, 4294901760
    %4165 = vmatpush1.msra.mxu0 %v4164
    %4166 = vmatprep.subr.mxu0 0.0
    %v4167 = vand.u32 %v3213, 4294901760
    %v4168 = vsub.f32 %v3213, %v4167
    %v4169 = vand.u32 %v4168, 4294901760
    %4170 = vmatpush1.msra.mxu0 %v4169
    %4171 = vmatprep.subr.mxu0 0.0
    %v4172 = vand.u32 %v3212, 4294901760
    %v4173 = vsub.f32 %v3212, %v4172
    %v4174 = vand.u32 %v4173, 4294901760
    %4175 = vmatpush1.msra.mxu0 %v4174
    %4176 = vmatprep.subr.mxu0 0.0
    %v4177 = vand.u32 %v3211, 4294901760
    %v4178 = vsub.f32 %v3211, %v4177
    %v4179 = vand.u32 %v4178, 4294901760
    %4180 = vmatpush1.msra.mxu0 %v4179
    %4181 = vmatprep.subr.mxu0 0.0
    %4182 = vmatpush2.msra.mxu0 0.0
    %4183 = vmatprep.subr.mxu0 0.0
    %4184 = vmatpush2.msra.mxu0 0.0
    %4185 = vmatprep.subr.mxu0 0.0
    %4186 = vmatpush2.msra.mxu0 0.0
    %4187 = vmatprep.subr.mxu0 0.0
    %4188 = vmatpush2.msra.mxu0 0.0
    %4189 = vmatprep.subr.mxu0 0.0
    %4190 = vmatpush2.msra.mxu0 0.0
    %4191 = vmatprep.subr.mxu0 0.0
    %4192 = vmatpush2.msra.mxu0 0.0
    %4193 = vmatprep.subr.mxu0 0.0
    %4194 = vmatpush2.msra.mxu0 0.0
    %4195 = vmatprep.subr.mxu0 0.0
    %4196 = vmatpush2.msra.mxu0 0.0
    %4197 = vmatprep.subr.mxu0 0.0
    %4198 = vmatpush2.msra.mxu0 0.0
    %4199 = vmatprep.subr.mxu0 0.0
    %4200 = vmatpush2.msra.mxu0 0.0
    %4201 = vmatprep.subr.mxu0 0.0
    %4202 = vmatpush2.msra.mxu0 0.0
    %4203 = vmatprep.subr.mxu0 0.0
    %4204 = vmatpush2.msra.mxu0 0.0
    %4205 = vmatprep.subr.mxu0 0.0
    %4206 = vmatpush2.msra.mxu0 0.0
    %4207 = vmatprep.subr.mxu0 0.0
    %4208 = vmatpush2.msra.mxu0 0.0
    %4209 = vmatprep.subr.mxu0 0.0
    %4210 = vmatpush2.msra.mxu0 0.0
    %4211 = vmatprep.subr.mxu0 0.0
    %4212 = vmatpush2.msra.mxu0 0.0
    %4213 = vmatprep.mubr.f32.mxu0 0.0
    %v4214 = vand.u32 %v3760, 4294901760
    %4215 = vmatmul.mubr.f32.gmra.mxu0 %v4214
    %v4216 = vpop.f32.mrf.mxu0
    %v4217 = vadd.f32 %v4122, %v4216
    %v4218 = vpop.f32.mrf.mxu0
    %4219 = vdwg.mxu0
    %4220 = vmatprep.subr.mxu0 0.0
    %4221 = vmatpush1.msra.mxu0 0.0
    %4222 = vmatprep.subr.mxu0 0.0
    %4223 = vmatpush1.msra.mxu0 0.0
    %4224 = vmatprep.subr.mxu0 0.0
    %4225 = vmatpush1.msra.mxu0 0.0
    %4226 = vmatprep.subr.mxu0 0.0
    %4227 = vmatpush1.msra.mxu0 0.0
    %4228 = vmatprep.subr.mxu0 0.0
    %4229 = vmatpush1.msra.mxu0 0.0
    %4230 = vmatprep.subr.mxu0 0.0
    %4231 = vmatpush1.msra.mxu0 0.0
    %4232 = vmatprep.subr.mxu0 0.0
    %4233 = vmatpush1.msra.mxu0 0.0
    %4234 = vmatprep.subr.mxu0 0.0
    %4235 = vmatpush1.msra.mxu0 0.0
    %4236 = vmatprep.subr.mxu0 0.0
    %v4237 = vand.u32 %v3218, 4294901760
    %4238 = vmatpush1.msra.mxu0 %v4237
    %4239 = vmatprep.subr.mxu0 0.0
    %v4240 = vand.u32 %v3217, 4294901760
    %4241 = vmatpush1.msra.mxu0 %v4240
    %4242 = vmatprep.subr.mxu0 0.0
    %v4243 = vand.u32 %v3216, 4294901760
    %4244 = vmatpush1.msra.mxu0 %v4243
    %4245 = vmatprep.subr.mxu0 0.0
    %v4246 = vand.u32 %v3215, 4294901760
    %4247 = vmatpush1.msra.mxu0 %v4246
    %4248 = vmatprep.subr.mxu0 0.0
    %v4249 = vand.u32 %v3214, 4294901760
    %4250 = vmatpush1.msra.mxu0 %v4249
    %4251 = vmatprep.subr.mxu0 0.0
    %v4252 = vand.u32 %v3213, 4294901760
    %4253 = vmatpush1.msra.mxu0 %v4252
    %4254 = vmatprep.subr.mxu0 0.0
    %v4255 = vand.u32 %v3212, 4294901760
    %4256 = vmatpush1.msra.mxu0 %v4255
    %4257 = vmatprep.subr.mxu0 0.0
    %v4258 = vand.u32 %v3211, 4294901760
    %4259 = vmatpush1.msra.mxu0 %v4258
    %4260 = vmatprep.subr.mxu0 0.0
    %4261 = vmatpush2.msra.mxu0 0.0
    %4262 = vmatprep.subr.mxu0 0.0
    %4263 = vmatpush2.msra.mxu0 0.0
    %4264 = vmatprep.subr.mxu0 0.0
    %4265 = vmatpush2.msra.mxu0 0.0
    %4266 = vmatprep.subr.mxu0 0.0
    %4267 = vmatpush2.msra.mxu0 0.0
    %4268 = vmatprep.subr.mxu0 0.0
    %4269 = vmatpush2.msra.mxu0 0.0
    %4270 = vmatprep.subr.mxu0 0.0
    %4271 = vmatpush2.msra.mxu0 0.0
    %4272 = vmatprep.subr.mxu0 0.0
    %4273 = vmatpush2.msra.mxu0 0.0
    %4274 = vmatprep.subr.mxu0 0.0
    %4275 = vmatpush2.msra.mxu0 0.0
    %4276 = vmatprep.subr.mxu0 0.0
    %4277 = vmatpush2.msra.mxu0 0.0
    %4278 = vmatprep.subr.mxu0 0.0
    %4279 = vmatpush2.msra.mxu0 0.0
    %4280 = vmatprep.subr.mxu0 0.0
    %4281 = vmatpush2.msra.mxu0 0.0
    %4282 = vmatprep.subr.mxu0 0.0
    %4283 = vmatpush2.msra.mxu0 0.0
    %4284 = vmatprep.subr.mxu0 0.0
    %4285 = vmatpush2.msra.mxu0 0.0
    %4286 = vmatprep.subr.mxu0 0.0
    %4287 = vmatpush2.msra.mxu0 0.0
    %4288 = vmatprep.subr.mxu0 0.0
    %4289 = vmatpush2.msra.mxu0 0.0
    %4290 = vmatprep.subr.mxu0 0.0
    %4291 = vmatpush2.msra.mxu0 0.0
    %4292 = vmatprep.mubr.f32.mxu0 0.0
    %v4293 = vand.u32 %v3760, 4294901760
    %4294 = vmatmul.mubr.f32.gmra.mxu0 %v4293
    %v4295 = vpop.f32.mrf.mxu0
    %v4296 = vadd.f32 %v4217, %v4295
    %v4297 = vpop.f32.mrf.mxu0
    %4298 = vdwg.mxu0
    %v4299 = vlog2.pop %v3756
    %v4300 = vmul.f32 %v4299, 0.6931472
    %v4301 = vsub.f32 %v4300, %v4296
    %v4302 = vadd.f32 %v3197, %v4301
    %v4303 = vld [vmem:[#allocation19] sm:$0xff]
    %vm4304 = vcmask 785408
    %v4305 = vsel %vm4304, %v4303, -inf
    %4306 = vmax.xlane.f32.xlu0 %v4305
    %v4307 = vpop.xlane.xlu0 %4306
    %v4308 = vsub.f32 %v4303, %v4307
    %v4309 = vmul.f32 %v4308, 1.442695
    %v4310 = vpow.pop %v4309
    %4311 = vset.pattern.permute.xlu0 4
    %4312 = vperm.xlu0 %4311, %v204
    %v4313 = vpop.permute.xlu0 %4312
    %vm4314 = vcmp.eq.s32.totalorder %v214, %v4313
    %v4315 = vsel %vm4314, %v4308, 0.0
    %v4316 = vld [vmem:[#allocation11] sm:$0xff]
    %v4317 = vld [vmem:[#allocation11 + $0x8] sm:$0xff]
    %v4318 = vld [vmem:[#allocation11 + $0x10] sm:$0xff]
    %v4319 = vld [vmem:[#allocation11 + $0x18] sm:$0xff]
    %v4320 = vld [vmem:[#allocation11 + $0x20] sm:$0xff]
    %v4321 = vld [vmem:[#allocation11 + $0x28] sm:$0xff]
    %v4322 = vld [vmem:[#allocation11 + $0x30] sm:$0xff]
    %v4323 = vld [vmem:[#allocation11 + $0x38] sm:$0xff]
    %v4324 = vld [vmem:[#allocation11 + $0x40] sm:$0xff]
    %v4325 = vld [vmem:[#allocation11 + $0x48] sm:$0xff]
    %v4326 = vld [vmem:[#allocation11 + $0x50] sm:$0xff]
    %v4327 = vld [vmem:[#allocation11 + $0x58] sm:$0xff]
    %v4329 = vsel %vm4304, %v4310, 0
    %4331 = vmatprep.subr.mxu0 0.0
    %4332 = vmatpush1.msra.mxu0 0.0
    %4333 = vmatprep.subr.mxu0 0.0
    %4334 = vmatpush1.msra.mxu0 0.0
    %4335 = vmatprep.subr.mxu0 0.0
    %4336 = vmatpush1.msra.mxu0 0.0
    %4337 = vmatprep.subr.mxu0 0.0
    %4338 = vmatpush1.msra.mxu0 0.0
    %4339 = vmatprep.subr.mxu0 0.0
    %v4340 = vand.u32 %v4327, 4294901760
    %4341 = vmatpush1.msra.mxu0 %v4340
    %4342 = vmatprep.subr.mxu0 0.0
    %v4343 = vand.u32 %v4326, 4294901760
    %4344 = vmatpush1.msra.mxu0 %v4343
    %4345 = vmatprep.subr.mxu0 0.0
    %v4346 = vand.u32 %v4325, 4294901760
    %4347 = vmatpush1.msra.mxu0 %v4346
    %4348 = vmatprep.subr.mxu0 0.0
    %v4349 = vand.u32 %v4324, 4294901760
    %4350 = vmatpush1.msra.mxu0 %v4349
    %4351 = vmatprep.subr.mxu0 0.0
    %v4352 = vand.u32 %v4323, 4294901760
    %4353 = vmatpush1.msra.mxu0 %v4352
    %4354 = vmatprep.subr.mxu0 0.0
    %v4355 = vand.u32 %v4322, 4294901760
    %4356 = vmatpush1.msra.mxu0 %v4355
    %4357 = vmatprep.subr.mxu0 0.0
    %v4358 = vand.u32 %v4321, 4294901760
    %4359 = vmatpush1.msra.mxu0 %v4358
    %4360 = vmatprep.subr.mxu0 0.0
    %v4361 = vand.u32 %v4320, 4294901760
    %4362 = vmatpush1.msra.mxu0 %v4361
    %4363 = vmatprep.subr.mxu0 0.0
    %v4364 = vand.u32 %v4319, 4294901760
    %4365 = vmatpush1.msra.mxu0 %v4364
    %4366 = vmatprep.subr.mxu0 0.0
    %v4367 = vand.u32 %v4318, 4294901760
    %4368 = vmatpush1.msra.mxu0 %v4367
    %4369 = vmatprep.subr.mxu0 0.0
    %v4370 = vand.u32 %v4317, 4294901760
    %4371 = vmatpush1.msra.mxu0 %v4370
    %4372 = vmatprep.subr.mxu0 0.0
    %v4373 = vand.u32 %v4316, 4294901760
    %4374 = vmatpush1.msra.mxu0 %v4373
    %4375 = vmatprep.subr.mxu0 0.0
    %4376 = vmatpush2.msra.mxu0 0.0
    %4377 = vmatprep.subr.mxu0 0.0
    %4378 = vmatpush2.msra.mxu0 0.0
    %4379 = vmatprep.subr.mxu0 0.0
    %4380 = vmatpush2.msra.mxu0 0.0
    %4381 = vmatprep.subr.mxu0 0.0
    %4382 = vmatpush2.msra.mxu0 0.0
    %4383 = vmatprep.subr.mxu0 0.0
    %4384 = vmatpush2.msra.mxu0 0.0
    %4385 = vmatprep.subr.mxu0 0.0
    %4386 = vmatpush2.msra.mxu0 0.0
    %4387 = vmatprep.subr.mxu0 0.0
    %4388 = vmatpush2.msra.mxu0 0.0
    %4389 = vmatprep.subr.mxu0 0.0
    %4390 = vmatpush2.msra.mxu0 0.0
    %4391 = vmatprep.subr.mxu0 0.0
    %4392 = vmatpush2.msra.mxu0 0.0
    %4393 = vmatprep.subr.mxu0 0.0
    %4394 = vmatpush2.msra.mxu0 0.0
    %4395 = vmatprep.subr.mxu0 0.0
    %4396 = vmatpush2.msra.mxu0 0.0
    %4397 = vmatprep.subr.mxu0 0.0
    %4398 = vmatpush2.msra.mxu0 0.0
    %4399 = vmatprep.subr.mxu0 0.0
    %4400 = vmatpush2.msra.mxu0 0.0
    %4401 = vmatprep.subr.mxu0 0.0
    %4402 = vmatpush2.msra.mxu0 0.0
    %4403 = vmatprep.subr.mxu0 0.0
    %4404 = vmatpush2.msra.mxu0 0.0
    %4405 = vmatprep.subr.mxu0 0.0
    %4406 = vmatpush2.msra.mxu0 0.0
    %4407 = vmatprep.mubr.f32.mxu0 0.0
    %v4408 = vand.u32 %v4329, 4294901760
    %v4409 = vsub.f32 %v4329, %v4408
    %v4410 = vand.u32 %v4409, 4294901760
    %v4411 = vsub.f32 %v4409, %v4410
    %v4412 = vand.u32 %v4411, 4294901760
    %4413 = vmatmul.mubr.f32.gmra.mxu0 %v4412
    %v4414 = vpop.f32.mrf.mxu0
    %v4415 = vadd.f32 0.0, %v4414
    %v4416 = vpop.f32.mrf.mxu0
    %4417 = vdwg.mxu0
    %4418 = vmatprep.subr.mxu0 0.0
    %4419 = vmatpush1.msra.mxu0 0.0
    %4420 = vmatprep.subr.mxu0 0.0
    %4421 = vmatpush1.msra.mxu0 0.0
    %4422 = vmatprep.subr.mxu0 0.0
    %4423 = vmatpush1.msra.mxu0 0.0
    %4424 = vmatprep.subr.mxu0 0.0
    %4425 = vmatpush1.msra.mxu0 0.0
    %4426 = vmatprep.subr.mxu0 0.0
    %v4427 = vand.u32 %v4327, 4294901760
    %v4428 = vsub.f32 %v4327, %v4427
    %v4429 = vand.u32 %v4428, 4294901760
    %v4430 = vsub.f32 %v4428, %v4429
    %v4431 = vand.u32 %v4430, 4294901760
    %4432 = vmatpush1.msra.mxu0 %v4431
    %4433 = vmatprep.subr.mxu0 0.0
    %v4434 = vand.u32 %v4326, 4294901760
    %v4435 = vsub.f32 %v4326, %v4434
    %v4436 = vand.u32 %v4435, 4294901760
    %v4437 = vsub.f32 %v4435, %v4436
    %v4438 = vand.u32 %v4437, 4294901760
    %4439 = vmatpush1.msra.mxu0 %v4438
    %4440 = vmatprep.subr.mxu0 0.0
    %v4441 = vand.u32 %v4325, 4294901760
    %v4442 = vsub.f32 %v4325, %v4441
    %v4443 = vand.u32 %v4442, 4294901760
    %v4444 = vsub.f32 %v4442, %v4443
    %v4445 = vand.u32 %v4444, 4294901760
    %4446 = vmatpush1.msra.mxu0 %v4445
    %4447 = vmatprep.subr.mxu0 0.0
    %v4448 = vand.u32 %v4324, 4294901760
    %v4449 = vsub.f32 %v4324, %v4448
    %v4450 = vand.u32 %v4449, 4294901760
    %v4451 = vsub.f32 %v4449, %v4450
    %v4452 = vand.u32 %v4451, 4294901760
    %4453 = vmatpush1.msra.mxu0 %v4452
    %4454 = vmatprep.subr.mxu0 0.0
    %v4455 = vand.u32 %v4323, 4294901760
    %v4456 = vsub.f32 %v4323, %v4455
    %v4457 = vand.u32 %v4456, 4294901760
    %v4458 = vsub.f32 %v4456, %v4457
    %v4459 = vand.u32 %v4458, 4294901760
    %4460 = vmatpush1.msra.mxu0 %v4459
    %4461 = vmatprep.subr.mxu0 0.0
    %v4462 = vand.u32 %v4322, 4294901760
    %v4463 = vsub.f32 %v4322, %v4462
    %v4464 = vand.u32 %v4463, 4294901760
    %v4465 = vsub.f32 %v4463, %v4464
    %v4466 = vand.u32 %v4465, 4294901760
    %4467 = vmatpush1.msra.mxu0 %v4466
    %4468 = vmatprep.subr.mxu0 0.0
    %v4469 = vand.u32 %v4321, 4294901760
    %v4470 = vsub.f32 %v4321, %v4469
    %v4471 = vand.u32 %v4470, 4294901760
    %v4472 = vsub.f32 %v4470, %v4471
    %v4473 = vand.u32 %v4472, 4294901760
    %4474 = vmatpush1.msra.mxu0 %v4473
    %4475 = vmatprep.subr.mxu0 0.0
    %v4476 = vand.u32 %v4320, 4294901760
    %v4477 = vsub.f32 %v4320, %v4476
    %v4478 = vand.u32 %v4477, 4294901760
    %v4479 = vsub.f32 %v4477, %v4478
    %v4480 = vand.u32 %v4479, 4294901760
    %4481 = vmatpush1.msra.mxu0 %v4480
    %4482 = vmatprep.subr.mxu0 0.0
    %v4483 = vand.u32 %v4319, 4294901760
    %v4484 = vsub.f32 %v4319, %v4483
    %v4485 = vand.u32 %v4484, 4294901760
    %v4486 = vsub.f32 %v4484, %v4485
    %v4487 = vand.u32 %v4486, 4294901760
    %4488 = vmatpush1.msra.mxu0 %v4487
    %4489 = vmatprep.subr.mxu0 0.0
    %v4490 = vand.u32 %v4318, 4294901760
    %v4491 = vsub.f32 %v4318, %v4490
    %v4492 = vand.u32 %v4491, 4294901760
    %v4493 = vsub.f32 %v4491, %v4492
    %v4494 = vand.u32 %v4493, 4294901760
    %4495 = vmatpush1.msra.mxu0 %v4494
    %4496 = vmatprep.subr.mxu0 0.0
    %v4497 = vand.u32 %v4317, 4294901760
    %v4498 = vsub.f32 %v4317, %v4497
    %v4499 = vand.u32 %v4498, 4294901760
    %v4500 = vsub.f32 %v4498, %v4499
    %v4501 = vand.u32 %v4500, 4294901760
    %4502 = vmatpush1.msra.mxu0 %v4501
    %4503 = vmatprep.subr.mxu0 0.0
    %v4504 = vand.u32 %v4316, 4294901760
    %v4505 = vsub.f32 %v4316, %v4504
    %v4506 = vand.u32 %v4505, 4294901760
    %v4507 = vsub.f32 %v4505, %v4506
    %v4508 = vand.u32 %v4507, 4294901760
    %4509 = vmatpush1.msra.mxu0 %v4508
    %4510 = vmatprep.subr.mxu0 0.0
    %4511 = vmatpush2.msra.mxu0 0.0
    %4512 = vmatprep.subr.mxu0 0.0
    %4513 = vmatpush2.msra.mxu0 0.0
    %4514 = vmatprep.subr.mxu0 0.0
    %4515 = vmatpush2.msra.mxu0 0.0
    %4516 = vmatprep.subr.mxu0 0.0
    %4517 = vmatpush2.msra.mxu0 0.0
    %4518 = vmatprep.subr.mxu0 0.0
    %4519 = vmatpush2.msra.mxu0 0.0
    %4520 = vmatprep.subr.mxu0 0.0
    %4521 = vmatpush2.msra.mxu0 0.0
    %4522 = vmatprep.subr.mxu0 0.0
    %4523 = vmatpush2.msra.mxu0 0.0
    %4524 = vmatprep.subr.mxu0 0.0
    %4525 = vmatpush2.msra.mxu0 0.0
    %4526 = vmatprep.subr.mxu0 0.0
    %4527 = vmatpush2.msra.mxu0 0.0
    %4528 = vmatprep.subr.mxu0 0.0
    %4529 = vmatpush2.msra.mxu0 0.0
    %4530 = vmatprep.subr.mxu0 0.0
    %4531 = vmatpush2.msra.mxu0 0.0
    %4532 = vmatprep.subr.mxu0 0.0
    %4533 = vmatpush2.msra.mxu0 0.0
    %4534 = vmatprep.subr.mxu0 0.0
    %4535 = vmatpush2.msra.mxu0 0.0
    %4536 = vmatprep.subr.mxu0 0.0
    %4537 = vmatpush2.msra.mxu0 0.0
    %4538 = vmatprep.subr.mxu0 0.0
    %4539 = vmatpush2.msra.mxu0 0.0
    %4540 = vmatprep.subr.mxu0 0.0
    %4541 = vmatpush2.msra.mxu0 0.0
    %4542 = vmatprep.mubr.f32.mxu0 0.0
    %v4543 = vand.u32 %v4329, 4294901760
    %4544 = vmatmul.mubr.f32.gmra.mxu0 %v4543
    %v4545 = vpop.f32.mrf.mxu0
    %v4546 = vadd.f32 %v4415, %v4545
    %v4547 = vpop.f32.mrf.mxu0
    %4548 = vdwg.mxu0
    %4549 = vmatprep.subr.mxu0 0.0
    %4550 = vmatpush1.msra.mxu0 0.0
    %4551 = vmatprep.subr.mxu0 0.0
    %4552 = vmatpush1.msra.mxu0 0.0
    %4553 = vmatprep.subr.mxu0 0.0
    %4554 = vmatpush1.msra.mxu0 0.0
    %4555 = vmatprep.subr.mxu0 0.0
    %4556 = vmatpush1.msra.mxu0 0.0
    %4557 = vmatprep.subr.mxu0 0.0
    %v4558 = vand.u32 %v4327, 4294901760
    %v4559 = vsub.f32 %v4327, %v4558
    %4560 = vmatpush1.msra.mxu0 %v4559
    %4561 = vmatprep.subr.mxu0 0.0
    %v4562 = vand.u32 %v4326, 4294901760
    %v4563 = vsub.f32 %v4326, %v4562
    %4564 = vmatpush1.msra.mxu0 %v4563
    %4565 = vmatprep.subr.mxu0 0.0
    %v4566 = vand.u32 %v4325, 4294901760
    %v4567 = vsub.f32 %v4325, %v4566
    %4568 = vmatpush1.msra.mxu0 %v4567
    %4569 = vmatprep.subr.mxu0 0.0
    %v4570 = vand.u32 %v4324, 4294901760
    %v4571 = vsub.f32 %v4324, %v4570
    %4572 = vmatpush1.msra.mxu0 %v4571
    %4573 = vmatprep.subr.mxu0 0.0
    %v4574 = vand.u32 %v4323, 4294901760
    %v4575 = vsub.f32 %v4323, %v4574
    %4576 = vmatpush1.msra.mxu0 %v4575
    %4577 = vmatprep.subr.mxu0 0.0
    %v4578 = vand.u32 %v4322, 4294901760
    %v4579 = vsub.f32 %v4322, %v4578
    %4580 = vmatpush1.msra.mxu0 %v4579
    %4581 = vmatprep.subr.mxu0 0.0
    %v4582 = vand.u32 %v4321, 4294901760
    %v4583 = vsub.f32 %v4321, %v4582
    %4584 = vmatpush1.msra.mxu0 %v4583
    %4585 = vmatprep.subr.mxu0 0.0
    %v4586 = vand.u32 %v4320, 4294901760
    %v4587 = vsub.f32 %v4320, %v4586
    %4588 = vmatpush1.msra.mxu0 %v4587
    %4589 = vmatprep.subr.mxu0 0.0
    %v4590 = vand.u32 %v4319, 4294901760
    %v4591 = vsub.f32 %v4319, %v4590
    %4592 = vmatpush1.msra.mxu0 %v4591
    %4593 = vmatprep.subr.mxu0 0.0
    %v4594 = vand.u32 %v4318, 4294901760
    %v4595 = vsub.f32 %v4318, %v4594
    %4596 = vmatpush1.msra.mxu0 %v4595
    %4597 = vmatprep.subr.mxu0 0.0
    %v4598 = vand.u32 %v4317, 4294901760
    %v4599 = vsub.f32 %v4317, %v4598
    %4600 = vmatpush1.msra.mxu0 %v4599
    %4601 = vmatprep.subr.mxu0 0.0
    %v4602 = vand.u32 %v4316, 4294901760
    %v4603 = vsub.f32 %v4316, %v4602
    %4604 = vmatpush1.msra.mxu0 %v4603
    %4605 = vmatprep.subr.mxu0 0.0
    %4606 = vmatpush2.msra.mxu0 0.0
    %4607 = vmatprep.subr.mxu0 0.0
    %4608 = vmatpush2.msra.mxu0 0.0
    %4609 = vmatprep.subr.mxu0 0.0
    %4610 = vmatpush2.msra.mxu0 0.0
    %4611 = vmatprep.subr.mxu0 0.0
    %4612 = vmatpush2.msra.mxu0 0.0
    %4613 = vmatprep.subr.mxu0 0.0
    %4614 = vmatpush2.msra.mxu0 0.0
    %4615 = vmatprep.subr.mxu0 0.0
    %4616 = vmatpush2.msra.mxu0 0.0
    %4617 = vmatprep.subr.mxu0 0.0
    %4618 = vmatpush2.msra.mxu0 0.0
    %4619 = vmatprep.subr.mxu0 0.0
    %4620 = vmatpush2.msra.mxu0 0.0
    %4621 = vmatprep.subr.mxu0 0.0
    %4622 = vmatpush2.msra.mxu0 0.0
    %4623 = vmatprep.subr.mxu0 0.0
    %4624 = vmatpush2.msra.mxu0 0.0
    %4625 = vmatprep.subr.mxu0 0.0
    %4626 = vmatpush2.msra.mxu0 0.0
    %4627 = vmatprep.subr.mxu0 0.0
    %4628 = vmatpush2.msra.mxu0 0.0
    %4629 = vmatprep.subr.mxu0 0.0
    %4630 = vmatpush2.msra.mxu0 0.0
    %4631 = vmatprep.subr.mxu0 0.0
    %4632 = vmatpush2.msra.mxu0 0.0
    %4633 = vmatprep.subr.mxu0 0.0
    %4634 = vmatpush2.msra.mxu0 0.0
    %4635 = vmatprep.subr.mxu0 0.0
    %4636 = vmatpush2.msra.mxu0 0.0
    %4637 = vmatprep.mubr.f32.mxu0 0.0
    %v4638 = vand.u32 %v4329, 4294901760
    %v4639 = vsub.f32 %v4329, %v4638
    %4640 = vmatmul.mubr.f32.gmra.mxu0 %v4639
    %v4641 = vpop.f32.mrf.mxu0
    %v4642 = vadd.f32 %v4546, %v4641
    %v4643 = vpop.f32.mrf.mxu0
    %4644 = vdwg.mxu0
    %4645 = vmatprep.subr.mxu0 0.0
    %4646 = vmatpush1.msra.mxu0 0.0
    %4647 = vmatprep.subr.mxu0 0.0
    %4648 = vmatpush1.msra.mxu0 0.0
    %4649 = vmatprep.subr.mxu0 0.0
    %4650 = vmatpush1.msra.mxu0 0.0
    %4651 = vmatprep.subr.mxu0 0.0
    %4652 = vmatpush1.msra.mxu0 0.0
    %4653 = vmatprep.subr.mxu0 0.0
    %v4654 = vand.u32 %v4327, 4294901760
    %4655 = vmatpush1.msra.mxu0 %v4654
    %4656 = vmatprep.subr.mxu0 0.0
    %v4657 = vand.u32 %v4326, 4294901760
    %4658 = vmatpush1.msra.mxu0 %v4657
    %4659 = vmatprep.subr.mxu0 0.0
    %v4660 = vand.u32 %v4325, 4294901760
    %4661 = vmatpush1.msra.mxu0 %v4660
    %4662 = vmatprep.subr.mxu0 0.0
    %v4663 = vand.u32 %v4324, 4294901760
    %4664 = vmatpush1.msra.mxu0 %v4663
    %4665 = vmatprep.subr.mxu0 0.0
    %v4666 = vand.u32 %v4323, 4294901760
    %4667 = vmatpush1.msra.mxu0 %v4666
    %4668 = vmatprep.subr.mxu0 0.0
    %v4669 = vand.u32 %v4322, 4294901760
    %4670 = vmatpush1.msra.mxu0 %v4669
    %4671 = vmatprep.subr.mxu0 0.0
    %v4672 = vand.u32 %v4321, 4294901760
    %4673 = vmatpush1.msra.mxu0 %v4672
    %4674 = vmatprep.subr.mxu0 0.0
    %v4675 = vand.u32 %v4320, 4294901760
    %4676 = vmatpush1.msra.mxu0 %v4675
    %4677 = vmatprep.subr.mxu0 0.0
    %v4678 = vand.u32 %v4319, 4294901760
    %4679 = vmatpush1.msra.mxu0 %v4678
    %4680 = vmatprep.subr.mxu0 0.0
    %v4681 = vand.u32 %v4318, 4294901760
    %4682 = vmatpush1.msra.mxu0 %v4681
    %4683 = vmatprep.subr.mxu0 0.0
    %v4684 = vand.u32 %v4317, 4294901760
    %4685 = vmatpush1.msra.mxu0 %v4684
    %4686 = vmatprep.subr.mxu0 0.0
    %v4687 = vand.u32 %v4316, 4294901760
    %4688 = vmatpush1.msra.mxu0 %v4687
    %4689 = vmatprep.subr.mxu0 0.0
    %4690 = vmatpush2.msra.mxu0 0.0
    %4691 = vmatprep.subr.mxu0 0.0
    %4692 = vmatpush2.msra.mxu0 0.0
    %4693 = vmatprep.subr.mxu0 0.0
    %4694 = vmatpush2.msra.mxu0 0.0
    %4695 = vmatprep.subr.mxu0 0.0
    %4696 = vmatpush2.msra.mxu0 0.0
    %4697 = vmatprep.subr.mxu0 0.0
    %4698 = vmatpush2.msra.mxu0 0.0
    %4699 = vmatprep.subr.mxu0 0.0
    %4700 = vmatpush2.msra.mxu0 0.0
    %4701 = vmatprep.subr.mxu0 0.0
    %4702 = vmatpush2.msra.mxu0 0.0
    %4703 = vmatprep.subr.mxu0 0.0
    %4704 = vmatpush2.msra.mxu0 0.0
    %4705 = vmatprep.subr.mxu0 0.0
    %4706 = vmatpush2.msra.mxu0 0.0
    %4707 = vmatprep.subr.mxu0 0.0
    %4708 = vmatpush2.msra.mxu0 0.0
    %4709 = vmatprep.subr.mxu0 0.0
    %4710 = vmatpush2.msra.mxu0 0.0
    %4711 = vmatprep.subr.mxu0 0.0
    %4712 = vmatpush2.msra.mxu0 0.0
    %4713 = vmatprep.subr.mxu0 0.0
    %4714 = vmatpush2.msra.mxu0 0.0
    %4715 = vmatprep.subr.mxu0 0.0
    %4716 = vmatpush2.msra.mxu0 0.0
    %4717 = vmatprep.subr.mxu0 0.0
    %4718 = vmatpush2.msra.mxu0 0.0
    %4719 = vmatprep.subr.mxu0 0.0
    %4720 = vmatpush2.msra.mxu0 0.0
    %4721 = vmatprep.mubr.f32.mxu0 0.0
    %v4722 = vand.u32 %v4329, 4294901760
    %v4723 = vsub.f32 %v4329, %v4722
    %v4724 = vand.u32 %v4723, 4294901760
    %4725 = vmatmul.mubr.f32.gmra.mxu0 %v4724
    %v4726 = vpop.f32.mrf.mxu0
    %v4727 = vadd.f32 %v4642, %v4726
    %v4728 = vpop.f32.mrf.mxu0
    %4729 = vdwg.mxu0
    %4730 = vmatprep.subr.mxu0 0.0
    %4731 = vmatpush1.msra.mxu0 0.0
    %4732 = vmatprep.subr.mxu0 0.0
    %4733 = vmatpush1.msra.mxu0 0.0
    %4734 = vmatprep.subr.mxu0 0.0
    %4735 = vmatpush1.msra.mxu0 0.0
    %4736 = vmatprep.subr.mxu0 0.0
    %4737 = vmatpush1.msra.mxu0 0.0
    %4738 = vmatprep.subr.mxu0 0.0
    %v4739 = vand.u32 %v4327, 4294901760
    %v4740 = vsub.f32 %v4327, %v4739
    %v4741 = vand.u32 %v4740, 4294901760
    %4742 = vmatpush1.msra.mxu0 %v4741
    %4743 = vmatprep.subr.mxu0 0.0
    %v4744 = vand.u32 %v4326, 4294901760
    %v4745 = vsub.f32 %v4326, %v4744
    %v4746 = vand.u32 %v4745, 4294901760
    %4747 = vmatpush1.msra.mxu0 %v4746
    %4748 = vmatprep.subr.mxu0 0.0
    %v4749 = vand.u32 %v4325, 4294901760
    %v4750 = vsub.f32 %v4325, %v4749
    %v4751 = vand.u32 %v4750, 4294901760
    %4752 = vmatpush1.msra.mxu0 %v4751
    %4753 = vmatprep.subr.mxu0 0.0
    %v4754 = vand.u32 %v4324, 4294901760
    %v4755 = vsub.f32 %v4324, %v4754
    %v4756 = vand.u32 %v4755, 4294901760
    %4757 = vmatpush1.msra.mxu0 %v4756
    %4758 = vmatprep.subr.mxu0 0.0
    %v4759 = vand.u32 %v4323, 4294901760
    %v4760 = vsub.f32 %v4323, %v4759
    %v4761 = vand.u32 %v4760, 4294901760
    %4762 = vmatpush1.msra.mxu0 %v4761
    %4763 = vmatprep.subr.mxu0 0.0
    %v4764 = vand.u32 %v4322, 4294901760
    %v4765 = vsub.f32 %v4322, %v4764
    %v4766 = vand.u32 %v4765, 4294901760
    %4767 = vmatpush1.msra.mxu0 %v4766
    %4768 = vmatprep.subr.mxu0 0.0
    %v4769 = vand.u32 %v4321, 4294901760
    %v4770 = vsub.f32 %v4321, %v4769
    %v4771 = vand.u32 %v4770, 4294901760
    %4772 = vmatpush1.msra.mxu0 %v4771
    %4773 = vmatprep.subr.mxu0 0.0
    %v4774 = vand.u32 %v4320, 4294901760
    %v4775 = vsub.f32 %v4320, %v4774
    %v4776 = vand.u32 %v4775, 4294901760
    %4777 = vmatpush1.msra.mxu0 %v4776
    %4778 = vmatprep.subr.mxu0 0.0
    %v4779 = vand.u32 %v4319, 4294901760
    %v4780 = vsub.f32 %v4319, %v4779
    %v4781 = vand.u32 %v4780, 4294901760
    %4782 = vmatpush1.msra.mxu0 %v4781
    %4783 = vmatprep.subr.mxu0 0.0
    %v4784 = vand.u32 %v4318, 4294901760
    %v4785 = vsub.f32 %v4318, %v4784
    %v4786 = vand.u32 %v4785, 4294901760
    %4787 = vmatpush1.msra.mxu0 %v4786
    %4788 = vmatprep.subr.mxu0 0.0
    %v4789 = vand.u32 %v4317, 4294901760
    %v4790 = vsub.f32 %v4317, %v4789
    %v4791 = vand.u32 %v4790, 4294901760
    %4792 = vmatpush1.msra.mxu0 %v4791
    %4793 = vmatprep.subr.mxu0 0.0
    %v4794 = vand.u32 %v4316, 4294901760
    %v4795 = vsub.f32 %v4316, %v4794
    %v4796 = vand.u32 %v4795, 4294901760
    %4797 = vmatpush1.msra.mxu0 %v4796
    %4798 = vmatprep.subr.mxu0 0.0
    %4799 = vmatpush2.msra.mxu0 0.0
    %4800 = vmatprep.subr.mxu0 0.0
    %4801 = vmatpush2.msra.mxu0 0.0
    %4802 = vmatprep.subr.mxu0 0.0
    %4803 = vmatpush2.msra.mxu0 0.0
    %4804 = vmatprep.subr.mxu0 0.0
    %4805 = vmatpush2.msra.mxu0 0.0
    %4806 = vmatprep.subr.mxu0 0.0
    %4807 = vmatpush2.msra.mxu0 0.0
    %4808 = vmatprep.subr.mxu0 0.0
    %4809 = vmatpush2.msra.mxu0 0.0
    %4810 = vmatprep.subr.mxu0 0.0
    %4811 = vmatpush2.msra.mxu0 0.0
    %4812 = vmatprep.subr.mxu0 0.0
    %4813 = vmatpush2.msra.mxu0 0.0
    %4814 = vmatprep.subr.mxu0 0.0
    %4815 = vmatpush2.msra.mxu0 0.0
    %4816 = vmatprep.subr.mxu0 0.0
    %4817 = vmatpush2.msra.mxu0 0.0
    %4818 = vmatprep.subr.mxu0 0.0
    %4819 = vmatpush2.msra.mxu0 0.0
    %4820 = vmatprep.subr.mxu0 0.0
    %4821 = vmatpush2.msra.mxu0 0.0
    %4822 = vmatprep.subr.mxu0 0.0
    %4823 = vmatpush2.msra.mxu0 0.0
    %4824 = vmatprep.subr.mxu0 0.0
    %4825 = vmatpush2.msra.mxu0 0.0
    %4826 = vmatprep.subr.mxu0 0.0
    %4827 = vmatpush2.msra.mxu0 0.0
    %4828 = vmatprep.subr.mxu0 0.0
    %4829 = vmatpush2.msra.mxu0 0.0
    %4830 = vmatprep.mubr.f32.mxu0 0.0
    %v4831 = vand.u32 %v4329, 4294901760
    %4832 = vmatmul.mubr.f32.gmra.mxu0 %v4831
    %v4833 = vpop.f32.mrf.mxu0
    %v4834 = vadd.f32 %v4727, %v4833
    %v4835 = vpop.f32.mrf.mxu0
    %4836 = vdwg.mxu0
    %4837 = vmatprep.subr.mxu0 0.0
    %4838 = vmatpush1.msra.mxu0 0.0
    %4839 = vmatprep.subr.mxu0 0.0
    %4840 = vmatpush1.msra.mxu0 0.0
    %4841 = vmatprep.subr.mxu0 0.0
    %4842 = vmatpush1.msra.mxu0 0.0
    %4843 = vmatprep.subr.mxu0 0.0
    %4844 = vmatpush1.msra.mxu0 0.0
    %4845 = vmatprep.subr.mxu0 0.0
    %v4846 = vand.u32 %v4327, 4294901760
    %4847 = vmatpush1.msra.mxu0 %v4846
    %4848 = vmatprep.subr.mxu0 0.0
    %v4849 = vand.u32 %v4326, 4294901760
    %4850 = vmatpush1.msra.mxu0 %v4849
    %4851 = vmatprep.subr.mxu0 0.0
    %v4852 = vand.u32 %v4325, 4294901760
    %4853 = vmatpush1.msra.mxu0 %v4852
    %4854 = vmatprep.subr.mxu0 0.0
    %v4855 = vand.u32 %v4324, 4294901760
    %4856 = vmatpush1.msra.mxu0 %v4855
    %4857 = vmatprep.subr.mxu0 0.0
    %v4858 = vand.u32 %v4323, 4294901760
    %4859 = vmatpush1.msra.mxu0 %v4858
    %4860 = vmatprep.subr.mxu0 0.0
    %v4861 = vand.u32 %v4322, 4294901760
    %4862 = vmatpush1.msra.mxu0 %v4861
    %4863 = vmatprep.subr.mxu0 0.0
    %v4864 = vand.u32 %v4321, 4294901760
    %4865 = vmatpush1.msra.mxu0 %v4864
    %4866 = vmatprep.subr.mxu0 0.0
    %v4867 = vand.u32 %v4320, 4294901760
    %4868 = vmatpush1.msra.mxu0 %v4867
    %4869 = vmatprep.subr.mxu0 0.0
    %v4870 = vand.u32 %v4319, 4294901760
    %4871 = vmatpush1.msra.mxu0 %v4870
    %4872 = vmatprep.subr.mxu0 0.0
    %v4873 = vand.u32 %v4318, 4294901760
    %4874 = vmatpush1.msra.mxu0 %v4873
    %4875 = vmatprep.subr.mxu0 0.0
    %v4876 = vand.u32 %v4317, 4294901760
    %4877 = vmatpush1.msra.mxu0 %v4876
    %4878 = vmatprep.subr.mxu0 0.0
    %v4879 = vand.u32 %v4316, 4294901760
    %4880 = vmatpush1.msra.mxu0 %v4879
    %4881 = vmatprep.subr.mxu0 0.0
    %4882 = vmatpush2.msra.mxu0 0.0
    %4883 = vmatprep.subr.mxu0 0.0
    %4884 = vmatpush2.msra.mxu0 0.0
    %4885 = vmatprep.subr.mxu0 0.0
    %4886 = vmatpush2.msra.mxu0 0.0
    %4887 = vmatprep.subr.mxu0 0.0
    %4888 = vmatpush2.msra.mxu0 0.0
    %4889 = vmatprep.subr.mxu0 0.0
    %4890 = vmatpush2.msra.mxu0 0.0
    %4891 = vmatprep.subr.mxu0 0.0
    %4892 = vmatpush2.msra.mxu0 0.0
    %4893 = vmatprep.subr.mxu0 0.0
    %4894 = vmatpush2.msra.mxu0 0.0
    %4895 = vmatprep.subr.mxu0 0.0
    %4896 = vmatpush2.msra.mxu0 0.0
    %4897 = vmatprep.subr.mxu0 0.0
    %4898 = vmatpush2.msra.mxu0 0.0
    %4899 = vmatprep.subr.mxu0 0.0
    %4900 = vmatpush2.msra.mxu0 0.0
    %4901 = vmatprep.subr.mxu0 0.0
    %4902 = vmatpush2.msra.mxu0 0.0
    %4903 = vmatprep.subr.mxu0 0.0
    %4904 = vmatpush2.msra.mxu0 0.0
    %4905 = vmatprep.subr.mxu0 0.0
    %4906 = vmatpush2.msra.mxu0 0.0
    %4907 = vmatprep.subr.mxu0 0.0
    %4908 = vmatpush2.msra.mxu0 0.0
    %4909 = vmatprep.subr.mxu0 0.0
    %4910 = vmatpush2.msra.mxu0 0.0
    %4911 = vmatprep.subr.mxu0 0.0
    %4912 = vmatpush2.msra.mxu0 0.0
    %4913 = vmatprep.mubr.f32.mxu0 0.0
    %v4914 = vand.u32 %v4329, 4294901760
    %4915 = vmatmul.mubr.f32.gmra.mxu0 %v4914
    %v4916 = vpop.f32.mrf.mxu0
    %v4917 = vadd.f32 %v4834, %v4916
    %v4918 = vpop.f32.mrf.mxu0
    %4919 = vdwg.mxu0
    %v4921 = vsel %vm4304, %v4315, 0
    %4923 = vmatprep.subr.mxu0 0.0
    %4924 = vmatpush1.msra.mxu0 0.0
    %4925 = vmatprep.subr.mxu0 0.0
    %4926 = vmatpush1.msra.mxu0 0.0
    %4927 = vmatprep.subr.mxu0 0.0
    %4928 = vmatpush1.msra.mxu0 0.0
    %4929 = vmatprep.subr.mxu0 0.0
    %4930 = vmatpush1.msra.mxu0 0.0
    %4931 = vmatprep.subr.mxu0 0.0
    %v4932 = vand.u32 %v4327, 4294901760
    %4933 = vmatpush1.msra.mxu0 %v4932
    %4934 = vmatprep.subr.mxu0 0.0
    %v4935 = vand.u32 %v4326, 4294901760
    %4936 = vmatpush1.msra.mxu0 %v4935
    %4937 = vmatprep.subr.mxu0 0.0
    %v4938 = vand.u32 %v4325, 4294901760
    %4939 = vmatpush1.msra.mxu0 %v4938
    %4940 = vmatprep.subr.mxu0 0.0
    %v4941 = vand.u32 %v4324, 4294901760
    %4942 = vmatpush1.msra.mxu0 %v4941
    %4943 = vmatprep.subr.mxu0 0.0
    %v4944 = vand.u32 %v4323, 4294901760
    %4945 = vmatpush1.msra.mxu0 %v4944
    %4946 = vmatprep.subr.mxu0 0.0
    %v4947 = vand.u32 %v4322, 4294901760
    %4948 = vmatpush1.msra.mxu0 %v4947
    %4949 = vmatprep.subr.mxu0 0.0
    %v4950 = vand.u32 %v4321, 4294901760
    %4951 = vmatpush1.msra.mxu0 %v4950
    %4952 = vmatprep.subr.mxu0 0.0
    %v4953 = vand.u32 %v4320, 4294901760
    %4954 = vmatpush1.msra.mxu0 %v4953
    %4955 = vmatprep.subr.mxu0 0.0
    %v4956 = vand.u32 %v4319, 4294901760
    %4957 = vmatpush1.msra.mxu0 %v4956
    %4958 = vmatprep.subr.mxu0 0.0
    %v4959 = vand.u32 %v4318, 4294901760
    %4960 = vmatpush1.msra.mxu0 %v4959
    %4961 = vmatprep.subr.mxu0 0.0
    %v4962 = vand.u32 %v4317, 4294901760
    %4963 = vmatpush1.msra.mxu0 %v4962
    %4964 = vmatprep.subr.mxu0 0.0
    %v4965 = vand.u32 %v4316, 4294901760
    %4966 = vmatpush1.msra.mxu0 %v4965
    %4967 = vmatprep.subr.mxu0 0.0
    %4968 = vmatpush2.msra.mxu0 0.0
    %4969 = vmatprep.subr.mxu0 0.0
    %4970 = vmatpush2.msra.mxu0 0.0
    %4971 = vmatprep.subr.mxu0 0.0
    %4972 = vmatpush2.msra.mxu0 0.0
    %4973 = vmatprep.subr.mxu0 0.0
    %4974 = vmatpush2.msra.mxu0 0.0
    %4975 = vmatprep.subr.mxu0 0.0
    %4976 = vmatpush2.msra.mxu0 0.0
    %4977 = vmatprep.subr.mxu0 0.0
    %4978 = vmatpush2.msra.mxu0 0.0
    %4979 = vmatprep.subr.mxu0 0.0
    %4980 = vmatpush2.msra.mxu0 0.0
    %4981 = vmatprep.subr.mxu0 0.0
    %4982 = vmatpush2.msra.mxu0 0.0
    %4983 = vmatprep.subr.mxu0 0.0
    %4984 = vmatpush2.msra.mxu0 0.0
    %4985 = vmatprep.subr.mxu0 0.0
    %4986 = vmatpush2.msra.mxu0 0.0
    %4987 = vmatprep.subr.mxu0 0.0
    %4988 = vmatpush2.msra.mxu0 0.0
    %4989 = vmatprep.subr.mxu0 0.0
    %4990 = vmatpush2.msra.mxu0 0.0
    %4991 = vmatprep.subr.mxu0 0.0
    %4992 = vmatpush2.msra.mxu0 0.0
    %4993 = vmatprep.subr.mxu0 0.0
    %4994 = vmatpush2.msra.mxu0 0.0
    %4995 = vmatprep.subr.mxu0 0.0
    %4996 = vmatpush2.msra.mxu0 0.0
    %4997 = vmatprep.subr.mxu0 0.0
    %4998 = vmatpush2.msra.mxu0 0.0
    %4999 = vmatprep.mubr.f32.mxu0 0.0
    %v5000 = vand.u32 %v4921, 4294901760
    %v5001 = vsub.f32 %v4921, %v5000
    %v5002 = vand.u32 %v5001, 4294901760
    %v5003 = vsub.f32 %v5001, %v5002
    %v5004 = vand.u32 %v5003, 4294901760
    %5005 = vmatmul.mubr.f32.gmra.mxu0 %v5004
    %v5006 = vpop.f32.mrf.mxu0
    %v5007 = vadd.f32 0.0, %v5006
    %v5008 = vpop.f32.mrf.mxu0
    %5009 = vdwg.mxu0
    %5010 = vmatprep.subr.mxu0 0.0
    %5011 = vmatpush1.msra.mxu0 0.0
    %5012 = vmatprep.subr.mxu0 0.0
    %5013 = vmatpush1.msra.mxu0 0.0
    %5014 = vmatprep.subr.mxu0 0.0
    %5015 = vmatpush1.msra.mxu0 0.0
    %5016 = vmatprep.subr.mxu0 0.0
    %5017 = vmatpush1.msra.mxu0 0.0
    %5018 = vmatprep.subr.mxu0 0.0
    %v5019 = vand.u32 %v4327, 4294901760
    %v5020 = vsub.f32 %v4327, %v5019
    %v5021 = vand.u32 %v5020, 4294901760
    %v5022 = vsub.f32 %v5020, %v5021
    %v5023 = vand.u32 %v5022, 4294901760
    %5024 = vmatpush1.msra.mxu0 %v5023
    %5025 = vmatprep.subr.mxu0 0.0
    %v5026 = vand.u32 %v4326, 4294901760
    %v5027 = vsub.f32 %v4326, %v5026
    %v5028 = vand.u32 %v5027, 4294901760
    %v5029 = vsub.f32 %v5027, %v5028
    %v5030 = vand.u32 %v5029, 4294901760
    %5031 = vmatpush1.msra.mxu0 %v5030
    %5032 = vmatprep.subr.mxu0 0.0
    %v5033 = vand.u32 %v4325, 4294901760
    %v5034 = vsub.f32 %v4325, %v5033
    %v5035 = vand.u32 %v5034, 4294901760
    %v5036 = vsub.f32 %v5034, %v5035
    %v5037 = vand.u32 %v5036, 4294901760
    %5038 = vmatpush1.msra.mxu0 %v5037
    %5039 = vmatprep.subr.mxu0 0.0
    %v5040 = vand.u32 %v4324, 4294901760
    %v5041 = vsub.f32 %v4324, %v5040
    %v5042 = vand.u32 %v5041, 4294901760
    %v5043 = vsub.f32 %v5041, %v5042
    %v5044 = vand.u32 %v5043, 4294901760
    %5045 = vmatpush1.msra.mxu0 %v5044
    %5046 = vmatprep.subr.mxu0 0.0
    %v5047 = vand.u32 %v4323, 4294901760
    %v5048 = vsub.f32 %v4323, %v5047
    %v5049 = vand.u32 %v5048, 4294901760
    %v5050 = vsub.f32 %v5048, %v5049
    %v5051 = vand.u32 %v5050, 4294901760
    %5052 = vmatpush1.msra.mxu0 %v5051
    %5053 = vmatprep.subr.mxu0 0.0
    %v5054 = vand.u32 %v4322, 4294901760
    %v5055 = vsub.f32 %v4322, %v5054
    %v5056 = vand.u32 %v5055, 4294901760
    %v5057 = vsub.f32 %v5055, %v5056
    %v5058 = vand.u32 %v5057, 4294901760
    %5059 = vmatpush1.msra.mxu0 %v5058
    %5060 = vmatprep.subr.mxu0 0.0
    %v5061 = vand.u32 %v4321, 4294901760
    %v5062 = vsub.f32 %v4321, %v5061
    %v5063 = vand.u32 %v5062, 4294901760
    %v5064 = vsub.f32 %v5062, %v5063
    %v5065 = vand.u32 %v5064, 4294901760
    %5066 = vmatpush1.msra.mxu0 %v5065
    %5067 = vmatprep.subr.mxu0 0.0
    %v5068 = vand.u32 %v4320, 4294901760
    %v5069 = vsub.f32 %v4320, %v5068
    %v5070 = vand.u32 %v5069, 4294901760
    %v5071 = vsub.f32 %v5069, %v5070
    %v5072 = vand.u32 %v5071, 4294901760
    %5073 = vmatpush1.msra.mxu0 %v5072
    %5074 = vmatprep.subr.mxu0 0.0
    %v5075 = vand.u32 %v4319, 4294901760
    %v5076 = vsub.f32 %v4319, %v5075
    %v5077 = vand.u32 %v5076, 4294901760
    %v5078 = vsub.f32 %v5076, %v5077
    %v5079 = vand.u32 %v5078, 4294901760
    %5080 = vmatpush1.msra.mxu0 %v5079
    %5081 = vmatprep.subr.mxu0 0.0
    %v5082 = vand.u32 %v4318, 4294901760
    %v5083 = vsub.f32 %v4318, %v5082
    %v5084 = vand.u32 %v5083, 4294901760
    %v5085 = vsub.f32 %v5083, %v5084
    %v5086 = vand.u32 %v5085, 4294901760
    %5087 = vmatpush1.msra.mxu0 %v5086
    %5088 = vmatprep.subr.mxu0 0.0
    %v5089 = vand.u32 %v4317, 4294901760
    %v5090 = vsub.f32 %v4317, %v5089
    %v5091 = vand.u32 %v5090, 4294901760
    %v5092 = vsub.f32 %v5090, %v5091
    %v5093 = vand.u32 %v5092, 4294901760
    %5094 = vmatpush1.msra.mxu0 %v5093
    %5095 = vmatprep.subr.mxu0 0.0
    %v5096 = vand.u32 %v4316, 4294901760
    %v5097 = vsub.f32 %v4316, %v5096
    %v5098 = vand.u32 %v5097, 4294901760
    %v5099 = vsub.f32 %v5097, %v5098
    %v5100 = vand.u32 %v5099, 4294901760
    %5101 = vmatpush1.msra.mxu0 %v5100
    %5102 = vmatprep.subr.mxu0 0.0
    %5103 = vmatpush2.msra.mxu0 0.0
    %5104 = vmatprep.subr.mxu0 0.0
    %5105 = vmatpush2.msra.mxu0 0.0
    %5106 = vmatprep.subr.mxu0 0.0
    %5107 = vmatpush2.msra.mxu0 0.0
    %5108 = vmatprep.subr.mxu0 0.0
    %5109 = vmatpush2.msra.mxu0 0.0
    %5110 = vmatprep.subr.mxu0 0.0
    %5111 = vmatpush2.msra.mxu0 0.0
    %5112 = vmatprep.subr.mxu0 0.0
    %5113 = vmatpush2.msra.mxu0 0.0
    %5114 = vmatprep.subr.mxu0 0.0
    %5115 = vmatpush2.msra.mxu0 0.0
    %5116 = vmatprep.subr.mxu0 0.0
    %5117 = vmatpush2.msra.mxu0 0.0
    %5118 = vmatprep.subr.mxu0 0.0
    %5119 = vmatpush2.msra.mxu0 0.0
    %5120 = vmatprep.subr.mxu0 0.0
    %5121 = vmatpush2.msra.mxu0 0.0
    %5122 = vmatprep.subr.mxu0 0.0
    %5123 = vmatpush2.msra.mxu0 0.0
    %5124 = vmatprep.subr.mxu0 0.0
    %5125 = vmatpush2.msra.mxu0 0.0
    %5126 = vmatprep.subr.mxu0 0.0
    %5127 = vmatpush2.msra.mxu0 0.0
    %5128 = vmatprep.subr.mxu0 0.0
    %5129 = vmatpush2.msra.mxu0 0.0
    %5130 = vmatprep.subr.mxu0 0.0
    %5131 = vmatpush2.msra.mxu0 0.0
    %5132 = vmatprep.subr.mxu0 0.0
    %5133 = vmatpush2.msra.mxu0 0.0
    %5134 = vmatprep.mubr.f32.mxu0 0.0
    %v5135 = vand.u32 %v4921, 4294901760
    %5136 = vmatmul.mubr.f32.gmra.mxu0 %v5135
    %v5137 = vpop.f32.mrf.mxu0
    %v5138 = vadd.f32 %v5007, %v5137
    %v5139 = vpop.f32.mrf.mxu0
    %5140 = vdwg.mxu0
    %5141 = vmatprep.subr.mxu0 0.0
    %5142 = vmatpush1.msra.mxu0 0.0
    %5143 = vmatprep.subr.mxu0 0.0
    %5144 = vmatpush1.msra.mxu0 0.0
    %5145 = vmatprep.subr.mxu0 0.0
    %5146 = vmatpush1.msra.mxu0 0.0
    %5147 = vmatprep.subr.mxu0 0.0
    %5148 = vmatpush1.msra.mxu0 0.0
    %5149 = vmatprep.subr.mxu0 0.0
    %v5150 = vand.u32 %v4327, 4294901760
    %v5151 = vsub.f32 %v4327, %v5150
    %5152 = vmatpush1.msra.mxu0 %v5151
    %5153 = vmatprep.subr.mxu0 0.0
    %v5154 = vand.u32 %v4326, 4294901760
    %v5155 = vsub.f32 %v4326, %v5154
    %5156 = vmatpush1.msra.mxu0 %v5155
    %5157 = vmatprep.subr.mxu0 0.0
    %v5158 = vand.u32 %v4325, 4294901760
    %v5159 = vsub.f32 %v4325, %v5158
    %5160 = vmatpush1.msra.mxu0 %v5159
    %5161 = vmatprep.subr.mxu0 0.0
    %v5162 = vand.u32 %v4324, 4294901760
    %v5163 = vsub.f32 %v4324, %v5162
    %5164 = vmatpush1.msra.mxu0 %v5163
    %5165 = vmatprep.subr.mxu0 0.0
    %v5166 = vand.u32 %v4323, 4294901760
    %v5167 = vsub.f32 %v4323, %v5166
    %5168 = vmatpush1.msra.mxu0 %v5167
    %5169 = vmatprep.subr.mxu0 0.0
    %v5170 = vand.u32 %v4322, 4294901760
    %v5171 = vsub.f32 %v4322, %v5170
    %5172 = vmatpush1.msra.mxu0 %v5171
    %5173 = vmatprep.subr.mxu0 0.0
    %v5174 = vand.u32 %v4321, 4294901760
    %v5175 = vsub.f32 %v4321, %v5174
    %5176 = vmatpush1.msra.mxu0 %v5175
    %5177 = vmatprep.subr.mxu0 0.0
    %v5178 = vand.u32 %v4320, 4294901760
    %v5179 = vsub.f32 %v4320, %v5178
    %5180 = vmatpush1.msra.mxu0 %v5179
    %5181 = vmatprep.subr.mxu0 0.0
    %v5182 = vand.u32 %v4319, 4294901760
    %v5183 = vsub.f32 %v4319, %v5182
    %5184 = vmatpush1.msra.mxu0 %v5183
    %5185 = vmatprep.subr.mxu0 0.0
    %v5186 = vand.u32 %v4318, 4294901760
    %v5187 = vsub.f32 %v4318, %v5186
    %5188 = vmatpush1.msra.mxu0 %v5187
    %5189 = vmatprep.subr.mxu0 0.0
    %v5190 = vand.u32 %v4317, 4294901760
    %v5191 = vsub.f32 %v4317, %v5190
    %5192 = vmatpush1.msra.mxu0 %v5191
    %5193 = vmatprep.subr.mxu0 0.0
    %v5194 = vand.u32 %v4316, 4294901760
    %v5195 = vsub.f32 %v4316, %v5194
    %5196 = vmatpush1.msra.mxu0 %v5195
    %5197 = vmatprep.subr.mxu0 0.0
    %5198 = vmatpush2.msra.mxu0 0.0
    %5199 = vmatprep.subr.mxu0 0.0
    %5200 = vmatpush2.msra.mxu0 0.0
    %5201 = vmatprep.subr.mxu0 0.0
    %5202 = vmatpush2.msra.mxu0 0.0
    %5203 = vmatprep.subr.mxu0 0.0
    %5204 = vmatpush2.msra.mxu0 0.0
    %5205 = vmatprep.subr.mxu0 0.0
    %5206 = vmatpush2.msra.mxu0 0.0
    %5207 = vmatprep.subr.mxu0 0.0
    %5208 = vmatpush2.msra.mxu0 0.0
    %5209 = vmatprep.subr.mxu0 0.0
    %5210 = vmatpush2.msra.mxu0 0.0
    %5211 = vmatprep.subr.mxu0 0.0
    %5212 = vmatpush2.msra.mxu0 0.0
    %5213 = vmatprep.subr.mxu0 0.0
    %5214 = vmatpush2.msra.mxu0 0.0
    %5215 = vmatprep.subr.mxu0 0.0
    %5216 = vmatpush2.msra.mxu0 0.0
    %5217 = vmatprep.subr.mxu0 0.0
    %5218 = vmatpush2.msra.mxu0 0.0
    %5219 = vmatprep.subr.mxu0 0.0
    %5220 = vmatpush2.msra.mxu0 0.0
    %5221 = vmatprep.subr.mxu0 0.0
    %5222 = vmatpush2.msra.mxu0 0.0
    %5223 = vmatprep.subr.mxu0 0.0
    %5224 = vmatpush2.msra.mxu0 0.0
    %5225 = vmatprep.subr.mxu0 0.0
    %5226 = vmatpush2.msra.mxu0 0.0
    %5227 = vmatprep.subr.mxu0 0.0
    %5228 = vmatpush2.msra.mxu0 0.0
    %5229 = vmatprep.mubr.f32.mxu0 0.0
    %v5230 = vand.u32 %v4921, 4294901760
    %v5231 = vsub.f32 %v4921, %v5230
    %5232 = vmatmul.mubr.f32.gmra.mxu0 %v5231
    %v5233 = vpop.f32.mrf.mxu0
    %v5234 = vadd.f32 %v5138, %v5233
    %v5235 = vpop.f32.mrf.mxu0
    %5236 = vdwg.mxu0
    %5237 = vmatprep.subr.mxu0 0.0
    %5238 = vmatpush1.msra.mxu0 0.0
    %5239 = vmatprep.subr.mxu0 0.0
    %5240 = vmatpush1.msra.mxu0 0.0
    %5241 = vmatprep.subr.mxu0 0.0
    %5242 = vmatpush1.msra.mxu0 0.0
    %5243 = vmatprep.subr.mxu0 0.0
    %5244 = vmatpush1.msra.mxu0 0.0
    %5245 = vmatprep.subr.mxu0 0.0
    %v5246 = vand.u32 %v4327, 4294901760
    %5247 = vmatpush1.msra.mxu0 %v5246
    %5248 = vmatprep.subr.mxu0 0.0
    %v5249 = vand.u32 %v4326, 4294901760
    %5250 = vmatpush1.msra.mxu0 %v5249
    %5251 = vmatprep.subr.mxu0 0.0
    %v5252 = vand.u32 %v4325, 4294901760
    %5253 = vmatpush1.msra.mxu0 %v5252
    %5254 = vmatprep.subr.mxu0 0.0
    %v5255 = vand.u32 %v4324, 4294901760
    %5256 = vmatpush1.msra.mxu0 %v5255
    %5257 = vmatprep.subr.mxu0 0.0
    %v5258 = vand.u32 %v4323, 4294901760
    %5259 = vmatpush1.msra.mxu0 %v5258
    %5260 = vmatprep.subr.mxu0 0.0
    %v5261 = vand.u32 %v4322, 4294901760
    %5262 = vmatpush1.msra.mxu0 %v5261
    %5263 = vmatprep.subr.mxu0 0.0
    %v5264 = vand.u32 %v4321, 4294901760
    %5265 = vmatpush1.msra.mxu0 %v5264
    %5266 = vmatprep.subr.mxu0 0.0
    %v5267 = vand.u32 %v4320, 4294901760
    %5268 = vmatpush1.msra.mxu0 %v5267
    %5269 = vmatprep.subr.mxu0 0.0
    %v5270 = vand.u32 %v4319, 4294901760
    %5271 = vmatpush1.msra.mxu0 %v5270
    %5272 = vmatprep.subr.mxu0 0.0
    %v5273 = vand.u32 %v4318, 4294901760
    %5274 = vmatpush1.msra.mxu0 %v5273
    %5275 = vmatprep.subr.mxu0 0.0
    %v5276 = vand.u32 %v4317, 4294901760
    %5277 = vmatpush1.msra.mxu0 %v5276
    %5278 = vmatprep.subr.mxu0 0.0
    %v5279 = vand.u32 %v4316, 4294901760
    %5280 = vmatpush1.msra.mxu0 %v5279
    %5281 = vmatprep.subr.mxu0 0.0
    %5282 = vmatpush2.msra.mxu0 0.0
    %5283 = vmatprep.subr.mxu0 0.0
    %5284 = vmatpush2.msra.mxu0 0.0
    %5285 = vmatprep.subr.mxu0 0.0
    %5286 = vmatpush2.msra.mxu0 0.0
    %5287 = vmatprep.subr.mxu0 0.0
    %5288 = vmatpush2.msra.mxu0 0.0
    %5289 = vmatprep.subr.mxu0 0.0
    %5290 = vmatpush2.msra.mxu0 0.0
    %5291 = vmatprep.subr.mxu0 0.0
    %5292 = vmatpush2.msra.mxu0 0.0
    %5293 = vmatprep.subr.mxu0 0.0
    %5294 = vmatpush2.msra.mxu0 0.0
    %5295 = vmatprep.subr.mxu0 0.0
    %5296 = vmatpush2.msra.mxu0 0.0
    %5297 = vmatprep.subr.mxu0 0.0
    %5298 = vmatpush2.msra.mxu0 0.0
    %5299 = vmatprep.subr.mxu0 0.0
    %5300 = vmatpush2.msra.mxu0 0.0
    %5301 = vmatprep.subr.mxu0 0.0
    %5302 = vmatpush2.msra.mxu0 0.0
    %5303 = vmatprep.subr.mxu0 0.0
    %5304 = vmatpush2.msra.mxu0 0.0
    %5305 = vmatprep.subr.mxu0 0.0
    %5306 = vmatpush2.msra.mxu0 0.0
    %5307 = vmatprep.subr.mxu0 0.0
    %5308 = vmatpush2.msra.mxu0 0.0
    %5309 = vmatprep.subr.mxu0 0.0
    %5310 = vmatpush2.msra.mxu0 0.0
    %5311 = vmatprep.subr.mxu0 0.0
    %5312 = vmatpush2.msra.mxu0 0.0
    %5313 = vmatprep.mubr.f32.mxu0 0.0
    %v5314 = vand.u32 %v4921, 4294901760
    %v5315 = vsub.f32 %v4921, %v5314
    %v5316 = vand.u32 %v5315, 4294901760
    %5317 = vmatmul.mubr.f32.gmra.mxu0 %v5316
    %v5318 = vpop.f32.mrf.mxu0
    %v5319 = vadd.f32 %v5234, %v5318
    %v5320 = vpop.f32.mrf.mxu0
    %5321 = vdwg.mxu0
    %5322 = vmatprep.subr.mxu0 0.0
    %5323 = vmatpush1.msra.mxu0 0.0
    %5324 = vmatprep.subr.mxu0 0.0
    %5325 = vmatpush1.msra.mxu0 0.0
    %5326 = vmatprep.subr.mxu0 0.0
    %5327 = vmatpush1.msra.mxu0 0.0
    %5328 = vmatprep.subr.mxu0 0.0
    %5329 = vmatpush1.msra.mxu0 0.0
    %5330 = vmatprep.subr.mxu0 0.0
    %v5331 = vand.u32 %v4327, 4294901760
    %v5332 = vsub.f32 %v4327, %v5331
    %v5333 = vand.u32 %v5332, 4294901760
    %5334 = vmatpush1.msra.mxu0 %v5333
    %5335 = vmatprep.subr.mxu0 0.0
    %v5336 = vand.u32 %v4326, 4294901760
    %v5337 = vsub.f32 %v4326, %v5336
    %v5338 = vand.u32 %v5337, 4294901760
    %5339 = vmatpush1.msra.mxu0 %v5338
    %5340 = vmatprep.subr.mxu0 0.0
    %v5341 = vand.u32 %v4325, 4294901760
    %v5342 = vsub.f32 %v4325, %v5341
    %v5343 = vand.u32 %v5342, 4294901760
    %5344 = vmatpush1.msra.mxu0 %v5343
    %5345 = vmatprep.subr.mxu0 0.0
    %v5346 = vand.u32 %v4324, 4294901760
    %v5347 = vsub.f32 %v4324, %v5346
    %v5348 = vand.u32 %v5347, 4294901760
    %5349 = vmatpush1.msra.mxu0 %v5348
    %5350 = vmatprep.subr.mxu0 0.0
    %v5351 = vand.u32 %v4323, 4294901760
    %v5352 = vsub.f32 %v4323, %v5351
    %v5353 = vand.u32 %v5352, 4294901760
    %5354 = vmatpush1.msra.mxu0 %v5353
    %5355 = vmatprep.subr.mxu0 0.0
    %v5356 = vand.u32 %v4322, 4294901760
    %v5357 = vsub.f32 %v4322, %v5356
    %v5358 = vand.u32 %v5357, 4294901760
    %5359 = vmatpush1.msra.mxu0 %v5358
    %5360 = vmatprep.subr.mxu0 0.0
    %v5361 = vand.u32 %v4321, 4294901760
    %v5362 = vsub.f32 %v4321, %v5361
    %v5363 = vand.u32 %v5362, 4294901760
    %5364 = vmatpush1.msra.mxu0 %v5363
    %5365 = vmatprep.subr.mxu0 0.0
    %v5366 = vand.u32 %v4320, 4294901760
    %v5367 = vsub.f32 %v4320, %v5366
    %v5368 = vand.u32 %v5367, 4294901760
    %5369 = vmatpush1.msra.mxu0 %v5368
    %5370 = vmatprep.subr.mxu0 0.0
    %v5371 = vand.u32 %v4319, 4294901760
    %v5372 = vsub.f32 %v4319, %v5371
    %v5373 = vand.u32 %v5372, 4294901760
    %5374 = vmatpush1.msra.mxu0 %v5373
    %5375 = vmatprep.subr.mxu0 0.0
    %v5376 = vand.u32 %v4318, 4294901760
    %v5377 = vsub.f32 %v4318, %v5376
    %v5378 = vand.u32 %v5377, 4294901760
    %5379 = vmatpush1.msra.mxu0 %v5378
    %5380 = vmatprep.subr.mxu0 0.0
    %v5381 = vand.u32 %v4317, 4294901760
    %v5382 = vsub.f32 %v4317, %v5381
    %v5383 = vand.u32 %v5382, 4294901760
    %5384 = vmatpush1.msra.mxu0 %v5383
    %5385 = vmatprep.subr.mxu0 0.0
    %v5386 = vand.u32 %v4316, 4294901760
    %v5387 = vsub.f32 %v4316, %v5386
    %v5388 = vand.u32 %v5387, 4294901760
    %5389 = vmatpush1.msra.mxu0 %v5388
    %5390 = vmatprep.subr.mxu0 0.0
    %5391 = vmatpush2.msra.mxu0 0.0
    %5392 = vmatprep.subr.mxu0 0.0
    %5393 = vmatpush2.msra.mxu0 0.0
    %5394 = vmatprep.subr.mxu0 0.0
    %5395 = vmatpush2.msra.mxu0 0.0
    %5396 = vmatprep.subr.mxu0 0.0
    %5397 = vmatpush2.msra.mxu0 0.0
    %5398 = vmatprep.subr.mxu0 0.0
    %5399 = vmatpush2.msra.mxu0 0.0
    %5400 = vmatprep.subr.mxu0 0.0
    %5401 = vmatpush2.msra.mxu0 0.0
    %5402 = vmatprep.subr.mxu0 0.0
    %5403 = vmatpush2.msra.mxu0 0.0
    %5404 = vmatprep.subr.mxu0 0.0
    %5405 = vmatpush2.msra.mxu0 0.0
    %5406 = vmatprep.subr.mxu0 0.0
    %5407 = vmatpush2.msra.mxu0 0.0
    %5408 = vmatprep.subr.mxu0 0.0
    %5409 = vmatpush2.msra.mxu0 0.0
    %5410 = vmatprep.subr.mxu0 0.0
    %5411 = vmatpush2.msra.mxu0 0.0
    %5412 = vmatprep.subr.mxu0 0.0
    %5413 = vmatpush2.msra.mxu0 0.0
    %5414 = vmatprep.subr.mxu0 0.0
    %5415 = vmatpush2.msra.mxu0 0.0
    %5416 = vmatprep.subr.mxu0 0.0
    %5417 = vmatpush2.msra.mxu0 0.0
    %5418 = vmatprep.subr.mxu0 0.0
    %5419 = vmatpush2.msra.mxu0 0.0
    %5420 = vmatprep.subr.mxu0 0.0
    %5421 = vmatpush2.msra.mxu0 0.0
    %5422 = vmatprep.mubr.f32.mxu0 0.0
    %v5423 = vand.u32 %v4921, 4294901760
    %5424 = vmatmul.mubr.f32.gmra.mxu0 %v5423
    %v5425 = vpop.f32.mrf.mxu0
    %v5426 = vadd.f32 %v5319, %v5425
    %v5427 = vpop.f32.mrf.mxu0
    %5428 = vdwg.mxu0
    %5429 = vmatprep.subr.mxu0 0.0
    %5430 = vmatpush1.msra.mxu0 0.0
    %5431 = vmatprep.subr.mxu0 0.0
    %5432 = vmatpush1.msra.mxu0 0.0
    %5433 = vmatprep.subr.mxu0 0.0
    %5434 = vmatpush1.msra.mxu0 0.0
    %5435 = vmatprep.subr.mxu0 0.0
    %5436 = vmatpush1.msra.mxu0 0.0
    %5437 = vmatprep.subr.mxu0 0.0
    %v5438 = vand.u32 %v4327, 4294901760
    %5439 = vmatpush1.msra.mxu0 %v5438
    %5440 = vmatprep.subr.mxu0 0.0
    %v5441 = vand.u32 %v4326, 4294901760
    %5442 = vmatpush1.msra.mxu0 %v5441
    %5443 = vmatprep.subr.mxu0 0.0
    %v5444 = vand.u32 %v4325, 4294901760
    %5445 = vmatpush1.msra.mxu0 %v5444
    %5446 = vmatprep.subr.mxu0 0.0
    %v5447 = vand.u32 %v4324, 4294901760
    %5448 = vmatpush1.msra.mxu0 %v5447
    %5449 = vmatprep.subr.mxu0 0.0
    %v5450 = vand.u32 %v4323, 4294901760
    %5451 = vmatpush1.msra.mxu0 %v5450
    %5452 = vmatprep.subr.mxu0 0.0
    %v5453 = vand.u32 %v4322, 4294901760
    %5454 = vmatpush1.msra.mxu0 %v5453
    %5455 = vmatprep.subr.mxu0 0.0
    %v5456 = vand.u32 %v4321, 4294901760
    %5457 = vmatpush1.msra.mxu0 %v5456
    %5458 = vmatprep.subr.mxu0 0.0
    %v5459 = vand.u32 %v4320, 4294901760
    %5460 = vmatpush1.msra.mxu0 %v5459
    %5461 = vmatprep.subr.mxu0 0.0
    %v5462 = vand.u32 %v4319, 4294901760
    %5463 = vmatpush1.msra.mxu0 %v5462
    %5464 = vmatprep.subr.mxu0 0.0
    %v5465 = vand.u32 %v4318, 4294901760
    %5466 = vmatpush1.msra.mxu0 %v5465
    %5467 = vmatprep.subr.mxu0 0.0
    %v5468 = vand.u32 %v4317, 4294901760
    %5469 = vmatpush1.msra.mxu0 %v5468
    %5470 = vmatprep.subr.mxu0 0.0
    %v5471 = vand.u32 %v4316, 4294901760
    %5472 = vmatpush1.msra.mxu0 %v5471
    %5473 = vmatprep.subr.mxu0 0.0
    %5474 = vmatpush2.msra.mxu0 0.0
    %5475 = vmatprep.subr.mxu0 0.0
    %5476 = vmatpush2.msra.mxu0 0.0
    %5477 = vmatprep.subr.mxu0 0.0
    %5478 = vmatpush2.msra.mxu0 0.0
    %5479 = vmatprep.subr.mxu0 0.0
    %5480 = vmatpush2.msra.mxu0 0.0
    %5481 = vmatprep.subr.mxu0 0.0
    %5482 = vmatpush2.msra.mxu0 0.0
    %5483 = vmatprep.subr.mxu0 0.0
    %5484 = vmatpush2.msra.mxu0 0.0
    %5485 = vmatprep.subr.mxu0 0.0
    %5486 = vmatpush2.msra.mxu0 0.0
    %5487 = vmatprep.subr.mxu0 0.0
    %5488 = vmatpush2.msra.mxu0 0.0
    %5489 = vmatprep.subr.mxu0 0.0
    %5490 = vmatpush2.msra.mxu0 0.0
    %5491 = vmatprep.subr.mxu0 0.0
    %5492 = vmatpush2.msra.mxu0 0.0
    %5493 = vmatprep.subr.mxu0 0.0
    %5494 = vmatpush2.msra.mxu0 0.0
    %5495 = vmatprep.subr.mxu0 0.0
    %5496 = vmatpush2.msra.mxu0 0.0
    %5497 = vmatprep.subr.mxu0 0.0
    %5498 = vmatpush2.msra.mxu0 0.0
    %5499 = vmatprep.subr.mxu0 0.0
    %5500 = vmatpush2.msra.mxu0 0.0
    %5501 = vmatprep.subr.mxu0 0.0
    %5502 = vmatpush2.msra.mxu0 0.0
    %5503 = vmatprep.subr.mxu0 0.0
    %5504 = vmatpush2.msra.mxu0 0.0
    %5505 = vmatprep.mubr.f32.mxu0 0.0
    %v5506 = vand.u32 %v4921, 4294901760
    %5507 = vmatmul.mubr.f32.gmra.mxu0 %v5506
    %v5508 = vpop.f32.mrf.mxu0
    %v5509 = vadd.f32 %v5426, %v5508
    %v5510 = vpop.f32.mrf.mxu0
    %5511 = vdwg.mxu0
    %v5512 = vlog2.pop %v4917
    %v5513 = vmul.f32 %v5512, 0.6931472
    %v5514 = vsub.f32 %v5513, %v5509
    %v5515 = vadd.f32 %v4302, %v5514
    %v5516 = vld [vmem:[#allocation20] sm:$0xff]
    %vm5517 = vcmask 916480
    %v5518 = vsel %vm5517, %v5516, -inf
    %5519 = vmax.xlane.f32.xlu0 %v5518
    %v5520 = vpop.xlane.xlu0 %5519
    %v5521 = vsub.f32 %v5516, %v5520
    %v5522 = vmul.f32 %v5521, 1.442695
    %v5523 = vpow.pop %v5522
    %5524 = vset.pattern.permute.xlu0 5
    %5525 = vperm.xlu0 %5524, %v204
    %v5526 = vpop.permute.xlu0 %5525
    %vm5527 = vcmp.eq.s32.totalorder %v214, %v5526
    %v5528 = vsel %vm5527, %v5521, 0.0
    %v5529 = vld [vmem:[#allocation13] sm:$0xff]
    %v5530 = vld [vmem:[#allocation13 + $0x8] sm:$0xff]
    %v5531 = vld [vmem:[#allocation13 + $0x10] sm:$0xff]
    %v5532 = vld [vmem:[#allocation13 + $0x18] sm:$0xff]
    %v5533 = vld [vmem:[#allocation13 + $0x20] sm:$0xff]
    %v5534 = vld [vmem:[#allocation13 + $0x28] sm:$0xff]
    %v5535 = vld [vmem:[#allocation13 + $0x30] sm:$0xff]
    %v5536 = vld [vmem:[#allocation13 + $0x38] sm:$0xff]
    %v5537 = vld [vmem:[#allocation13 + $0x40] sm:$0xff]
    %v5538 = vld [vmem:[#allocation13 + $0x48] sm:$0xff]
    %v5539 = vld [vmem:[#allocation13 + $0x50] sm:$0xff]
    %v5540 = vld [vmem:[#allocation13 + $0x58] sm:$0xff]
    %v5541 = vld [vmem:[#allocation13 + $0x60] sm:$0xff]
    %v5542 = vld [vmem:[#allocation13 + $0x68] sm:$0xff]
    %v5544 = vsel %vm5517, %v5523, 0
    %5546 = vmatprep.subr.mxu0 0.0
    %5547 = vmatpush1.msra.mxu0 0.0
    %5548 = vmatprep.subr.mxu0 0.0
    %5549 = vmatpush1.msra.mxu0 0.0
    %5550 = vmatprep.subr.mxu0 0.0
    %v5551 = vand.u32 %v5542, 4294901760
    %5552 = vmatpush1.msra.mxu0 %v5551
    %5553 = vmatprep.subr.mxu0 0.0
    %v5554 = vand.u32 %v5541, 4294901760
    %5555 = vmatpush1.msra.mxu0 %v5554
    %5556 = vmatprep.subr.mxu0 0.0
    %v5557 = vand.u32 %v5540, 4294901760
    %5558 = vmatpush1.msra.mxu0 %v5557
    %5559 = vmatprep.subr.mxu0 0.0
    %v5560 = vand.u32 %v5539, 4294901760
    %5561 = vmatpush1.msra.mxu0 %v5560
    %5562 = vmatprep.subr.mxu0 0.0
    %v5563 = vand.u32 %v5538, 4294901760
    %5564 = vmatpush1.msra.mxu0 %v5563
    %5565 = vmatprep.subr.mxu0 0.0
    %v5566 = vand.u32 %v5537, 4294901760
    %5567 = vmatpush1.msra.mxu0 %v5566
    %5568 = vmatprep.subr.mxu0 0.0
    %v5569 = vand.u32 %v5536, 4294901760
    %5570 = vmatpush1.msra.mxu0 %v5569
    %5571 = vmatprep.subr.mxu0 0.0
    %v5572 = vand.u32 %v5535, 4294901760
    %5573 = vmatpush1.msra.mxu0 %v5572
    %5574 = vmatprep.subr.mxu0 0.0
    %v5575 = vand.u32 %v5534, 4294901760
    %5576 = vmatpush1.msra.mxu0 %v5575
    %5577 = vmatprep.subr.mxu0 0.0
    %v5578 = vand.u32 %v5533, 4294901760
    %5579 = vmatpush1.msra.mxu0 %v5578
    %5580 = vmatprep.subr.mxu0 0.0
    %v5581 = vand.u32 %v5532, 4294901760
    %5582 = vmatpush1.msra.mxu0 %v5581
    %5583 = vmatprep.subr.mxu0 0.0
    %v5584 = vand.u32 %v5531, 4294901760
    %5585 = vmatpush1.msra.mxu0 %v5584
    %5586 = vmatprep.subr.mxu0 0.0
    %v5587 = vand.u32 %v5530, 4294901760
    %5588 = vmatpush1.msra.mxu0 %v5587
    %5589 = vmatprep.subr.mxu0 0.0
    %v5590 = vand.u32 %v5529, 4294901760
    %5591 = vmatpush1.msra.mxu0 %v5590
    %5592 = vmatprep.subr.mxu0 0.0
    %5593 = vmatpush2.msra.mxu0 0.0
    %5594 = vmatprep.subr.mxu0 0.0
    %5595 = vmatpush2.msra.mxu0 0.0
    %5596 = vmatprep.subr.mxu0 0.0
    %5597 = vmatpush2.msra.mxu0 0.0
    %5598 = vmatprep.subr.mxu0 0.0
    %5599 = vmatpush2.msra.mxu0 0.0
    %5600 = vmatprep.subr.mxu0 0.0
    %5601 = vmatpush2.msra.mxu0 0.0
    %5602 = vmatprep.subr.mxu0 0.0
    %5603 = vmatpush2.msra.mxu0 0.0
    %5604 = vmatprep.subr.mxu0 0.0
    %5605 = vmatpush2.msra.mxu0 0.0
    %5606 = vmatprep.subr.mxu0 0.0
    %5607 = vmatpush2.msra.mxu0 0.0
    %5608 = vmatprep.subr.mxu0 0.0
    %5609 = vmatpush2.msra.mxu0 0.0
    %5610 = vmatprep.subr.mxu0 0.0
    %5611 = vmatpush2.msra.mxu0 0.0
    %5612 = vmatprep.subr.mxu0 0.0
    %5613 = vmatpush2.msra.mxu0 0.0
    %5614 = vmatprep.subr.mxu0 0.0
    %5615 = vmatpush2.msra.mxu0 0.0
    %5616 = vmatprep.subr.mxu0 0.0
    %5617 = vmatpush2.msra.mxu0 0.0
    %5618 = vmatprep.subr.mxu0 0.0
    %5619 = vmatpush2.msra.mxu0 0.0
    %5620 = vmatprep.subr.mxu0 0.0
    %5621 = vmatpush2.msra.mxu0 0.0
    %5622 = vmatprep.subr.mxu0 0.0
    %5623 = vmatpush2.msra.mxu0 0.0
    %5624 = vmatprep.mubr.f32.mxu0 0.0
    %v5625 = vand.u32 %v5544, 4294901760
    %v5626 = vsub.f32 %v5544, %v5625
    %v5627 = vand.u32 %v5626, 4294901760
    %v5628 = vsub.f32 %v5626, %v5627
    %v5629 = vand.u32 %v5628, 4294901760
    %5630 = vmatmul.mubr.f32.gmra.mxu0 %v5629
    %v5631 = vpop.f32.mrf.mxu0
    %v5632 = vadd.f32 0.0, %v5631
    %v5633 = vpop.f32.mrf.mxu0
    %5634 = vdwg.mxu0
    %5635 = vmatprep.subr.mxu0 0.0
    %5636 = vmatpush1.msra.mxu0 0.0
    %5637 = vmatprep.subr.mxu0 0.0
    %5638 = vmatpush1.msra.mxu0 0.0
    %5639 = vmatprep.subr.mxu0 0.0
    %v5640 = vand.u32 %v5542, 4294901760
    %v5641 = vsub.f32 %v5542, %v5640
    %v5642 = vand.u32 %v5641, 4294901760
    %v5643 = vsub.f32 %v5641, %v5642
    %v5644 = vand.u32 %v5643, 4294901760
    %5645 = vmatpush1.msra.mxu0 %v5644
    %5646 = vmatprep.subr.mxu0 0.0
    %v5647 = vand.u32 %v5541, 4294901760
    %v5648 = vsub.f32 %v5541, %v5647
    %v5649 = vand.u32 %v5648, 4294901760
    %v5650 = vsub.f32 %v5648, %v5649
    %v5651 = vand.u32 %v5650, 4294901760
    %5652 = vmatpush1.msra.mxu0 %v5651
    %5653 = vmatprep.subr.mxu0 0.0
    %v5654 = vand.u32 %v5540, 4294901760
    %v5655 = vsub.f32 %v5540, %v5654
    %v5656 = vand.u32 %v5655, 4294901760
    %v5657 = vsub.f32 %v5655, %v5656
    %v5658 = vand.u32 %v5657, 4294901760
    %5659 = vmatpush1.msra.mxu0 %v5658
    %5660 = vmatprep.subr.mxu0 0.0
    %v5661 = vand.u32 %v5539, 4294901760
    %v5662 = vsub.f32 %v5539, %v5661
    %v5663 = vand.u32 %v5662, 4294901760
    %v5664 = vsub.f32 %v5662, %v5663
    %v5665 = vand.u32 %v5664, 4294901760
    %5666 = vmatpush1.msra.mxu0 %v5665
    %5667 = vmatprep.subr.mxu0 0.0
    %v5668 = vand.u32 %v5538, 4294901760
    %v5669 = vsub.f32 %v5538, %v5668
    %v5670 = vand.u32 %v5669, 4294901760
    %v5671 = vsub.f32 %v5669, %v5670
    %v5672 = vand.u32 %v5671, 4294901760
    %5673 = vmatpush1.msra.mxu0 %v5672
    %5674 = vmatprep.subr.mxu0 0.0
    %v5675 = vand.u32 %v5537, 4294901760
    %v5676 = vsub.f32 %v5537, %v5675
    %v5677 = vand.u32 %v5676, 4294901760
    %v5678 = vsub.f32 %v5676, %v5677
    %v5679 = vand.u32 %v5678, 4294901760
    %5680 = vmatpush1.msra.mxu0 %v5679
    %5681 = vmatprep.subr.mxu0 0.0
    %v5682 = vand.u32 %v5536, 4294901760
    %v5683 = vsub.f32 %v5536, %v5682
    %v5684 = vand.u32 %v5683, 4294901760
    %v5685 = vsub.f32 %v5683, %v5684
    %v5686 = vand.u32 %v5685, 4294901760
    %5687 = vmatpush1.msra.mxu0 %v5686
    %5688 = vmatprep.subr.mxu0 0.0
    %v5689 = vand.u32 %v5535, 4294901760
    %v5690 = vsub.f32 %v5535, %v5689
    %v5691 = vand.u32 %v5690, 4294901760
    %v5692 = vsub.f32 %v5690, %v5691
    %v5693 = vand.u32 %v5692, 4294901760
    %5694 = vmatpush1.msra.mxu0 %v5693
    %5695 = vmatprep.subr.mxu0 0.0
    %v5696 = vand.u32 %v5534, 4294901760
    %v5697 = vsub.f32 %v5534, %v5696
    %v5698 = vand.u32 %v5697, 4294901760
    %v5699 = vsub.f32 %v5697, %v5698
    %v5700 = vand.u32 %v5699, 4294901760
    %5701 = vmatpush1.msra.mxu0 %v5700
    %5702 = vmatprep.subr.mxu0 0.0
    %v5703 = vand.u32 %v5533, 4294901760
    %v5704 = vsub.f32 %v5533, %v5703
    %v5705 = vand.u32 %v5704, 4294901760
    %v5706 = vsub.f32 %v5704, %v5705
    %v5707 = vand.u32 %v5706, 4294901760
    %5708 = vmatpush1.msra.mxu0 %v5707
    %5709 = vmatprep.subr.mxu0 0.0
    %v5710 = vand.u32 %v5532, 4294901760
    %v5711 = vsub.f32 %v5532, %v5710
    %v5712 = vand.u32 %v5711, 4294901760
    %v5713 = vsub.f32 %v5711, %v5712
    %v5714 = vand.u32 %v5713, 4294901760
    %5715 = vmatpush1.msra.mxu0 %v5714
    %5716 = vmatprep.subr.mxu0 0.0
    %v5717 = vand.u32 %v5531, 4294901760
    %v5718 = vsub.f32 %v5531, %v5717
    %v5719 = vand.u32 %v5718, 4294901760
    %v5720 = vsub.f32 %v5718, %v5719
    %v5721 = vand.u32 %v5720, 4294901760
    %5722 = vmatpush1.msra.mxu0 %v5721
    %5723 = vmatprep.subr.mxu0 0.0
    %v5724 = vand.u32 %v5530, 4294901760
    %v5725 = vsub.f32 %v5530, %v5724
    %v5726 = vand.u32 %v5725, 4294901760
    %v5727 = vsub.f32 %v5725, %v5726
    %v5728 = vand.u32 %v5727, 4294901760
    %5729 = vmatpush1.msra.mxu0 %v5728
    %5730 = vmatprep.subr.mxu0 0.0
    %v5731 = vand.u32 %v5529, 4294901760
    %v5732 = vsub.f32 %v5529, %v5731
    %v5733 = vand.u32 %v5732, 4294901760
    %v5734 = vsub.f32 %v5732, %v5733
    %v5735 = vand.u32 %v5734, 4294901760
    %5736 = vmatpush1.msra.mxu0 %v5735
    %5737 = vmatprep.subr.mxu0 0.0
    %5738 = vmatpush2.msra.mxu0 0.0
    %5739 = vmatprep.subr.mxu0 0.0
    %5740 = vmatpush2.msra.mxu0 0.0
    %5741 = vmatprep.subr.mxu0 0.0
    %5742 = vmatpush2.msra.mxu0 0.0
    %5743 = vmatprep.subr.mxu0 0.0
    %5744 = vmatpush2.msra.mxu0 0.0
    %5745 = vmatprep.subr.mxu0 0.0
    %5746 = vmatpush2.msra.mxu0 0.0
    %5747 = vmatprep.subr.mxu0 0.0
    %5748 = vmatpush2.msra.mxu0 0.0
    %5749 = vmatprep.subr.mxu0 0.0
    %5750 = vmatpush2.msra.mxu0 0.0
    %5751 = vmatprep.subr.mxu0 0.0
    %5752 = vmatpush2.msra.mxu0 0.0
    %5753 = vmatprep.subr.mxu0 0.0
    %5754 = vmatpush2.msra.mxu0 0.0
    %5755 = vmatprep.subr.mxu0 0.0
    %5756 = vmatpush2.msra.mxu0 0.0
    %5757 = vmatprep.subr.mxu0 0.0
    %5758 = vmatpush2.msra.mxu0 0.0
    %5759 = vmatprep.subr.mxu0 0.0
    %5760 = vmatpush2.msra.mxu0 0.0
    %5761 = vmatprep.subr.mxu0 0.0
    %5762 = vmatpush2.msra.mxu0 0.0
    %5763 = vmatprep.subr.mxu0 0.0
    %5764 = vmatpush2.msra.mxu0 0.0
    %5765 = vmatprep.subr.mxu0 0.0
    %5766 = vmatpush2.msra.mxu0 0.0
    %5767 = vmatprep.subr.mxu0 0.0
    %5768 = vmatpush2.msra.mxu0 0.0
    %5769 = vmatprep.mubr.f32.mxu0 0.0
    %v5770 = vand.u32 %v5544, 4294901760
    %5771 = vmatmul.mubr.f32.gmra.mxu0 %v5770
    %v5772 = vpop.f32.mrf.mxu0
    %v5773 = vadd.f32 %v5632, %v5772
    %v5774 = vpop.f32.mrf.mxu0
    %5775 = vdwg.mxu0
    %5776 = vmatprep.subr.mxu0 0.0
    %5777 = vmatpush1.msra.mxu0 0.0
    %5778 = vmatprep.subr.mxu0 0.0
    %5779 = vmatpush1.msra.mxu0 0.0
    %5780 = vmatprep.subr.mxu0 0.0
    %v5781 = vand.u32 %v5542, 4294901760
    %v5782 = vsub.f32 %v5542, %v5781
    %5783 = vmatpush1.msra.mxu0 %v5782
    %5784 = vmatprep.subr.mxu0 0.0
    %v5785 = vand.u32 %v5541, 4294901760
    %v5786 = vsub.f32 %v5541, %v5785
    %5787 = vmatpush1.msra.mxu0 %v5786
    %5788 = vmatprep.subr.mxu0 0.0
    %v5789 = vand.u32 %v5540, 4294901760
    %v5790 = vsub.f32 %v5540, %v5789
    %5791 = vmatpush1.msra.mxu0 %v5790
    %5792 = vmatprep.subr.mxu0 0.0
    %v5793 = vand.u32 %v5539, 4294901760
    %v5794 = vsub.f32 %v5539, %v5793
    %5795 = vmatpush1.msra.mxu0 %v5794
    %5796 = vmatprep.subr.mxu0 0.0
    %v5797 = vand.u32 %v5538, 4294901760
    %v5798 = vsub.f32 %v5538, %v5797
    %5799 = vmatpush1.msra.mxu0 %v5798
    %5800 = vmatprep.subr.mxu0 0.0
    %v5801 = vand.u32 %v5537, 4294901760
    %v5802 = vsub.f32 %v5537, %v5801
    %5803 = vmatpush1.msra.mxu0 %v5802
    %5804 = vmatprep.subr.mxu0 0.0
    %v5805 = vand.u32 %v5536, 4294901760
    %v5806 = vsub.f32 %v5536, %v5805
    %5807 = vmatpush1.msra.mxu0 %v5806
    %5808 = vmatprep.subr.mxu0 0.0
    %v5809 = vand.u32 %v5535, 4294901760
    %v5810 = vsub.f32 %v5535, %v5809
    %5811 = vmatpush1.msra.mxu0 %v5810
    %5812 = vmatprep.subr.mxu0 0.0
    %v5813 = vand.u32 %v5534, 4294901760
    %v5814 = vsub.f32 %v5534, %v5813
    %5815 = vmatpush1.msra.mxu0 %v5814
    %5816 = vmatprep.subr.mxu0 0.0
    %v5817 = vand.u32 %v5533, 4294901760
    %v5818 = vsub.f32 %v5533, %v5817
    %5819 = vmatpush1.msra.mxu0 %v5818
    %5820 = vmatprep.subr.mxu0 0.0
    %v5821 = vand.u32 %v5532, 4294901760
    %v5822 = vsub.f32 %v5532, %v5821
    %5823 = vmatpush1.msra.mxu0 %v5822
    %5824 = vmatprep.subr.mxu0 0.0
    %v5825 = vand.u32 %v5531, 4294901760
    %v5826 = vsub.f32 %v5531, %v5825
    %5827 = vmatpush1.msra.mxu0 %v5826
    %5828 = vmatprep.subr.mxu0 0.0
    %v5829 = vand.u32 %v5530, 4294901760
    %v5830 = vsub.f32 %v5530, %v5829
    %5831 = vmatpush1.msra.mxu0 %v5830
    %5832 = vmatprep.subr.mxu0 0.0
    %v5833 = vand.u32 %v5529, 4294901760
    %v5834 = vsub.f32 %v5529, %v5833
    %5835 = vmatpush1.msra.mxu0 %v5834
    %5836 = vmatprep.subr.mxu0 0.0
    %5837 = vmatpush2.msra.mxu0 0.0
    %5838 = vmatprep.subr.mxu0 0.0
    %5839 = vmatpush2.msra.mxu0 0.0
    %5840 = vmatprep.subr.mxu0 0.0
    %5841 = vmatpush2.msra.mxu0 0.0
    %5842 = vmatprep.subr.mxu0 0.0
    %5843 = vmatpush2.msra.mxu0 0.0
    %5844 = vmatprep.subr.mxu0 0.0
    %5845 = vmatpush2.msra.mxu0 0.0
    %5846 = vmatprep.subr.mxu0 0.0
    %5847 = vmatpush2.msra.mxu0 0.0
    %5848 = vmatprep.subr.mxu0 0.0
    %5849 = vmatpush2.msra.mxu0 0.0
    %5850 = vmatprep.subr.mxu0 0.0
    %5851 = vmatpush2.msra.mxu0 0.0
    %5852 = vmatprep.subr.mxu0 0.0
    %5853 = vmatpush2.msra.mxu0 0.0
    %5854 = vmatprep.subr.mxu0 0.0
    %5855 = vmatpush2.msra.mxu0 0.0
    %5856 = vmatprep.subr.mxu0 0.0
    %5857 = vmatpush2.msra.mxu0 0.0
    %5858 = vmatprep.subr.mxu0 0.0
    %5859 = vmatpush2.msra.mxu0 0.0
    %5860 = vmatprep.subr.mxu0 0.0
    %5861 = vmatpush2.msra.mxu0 0.0
    %5862 = vmatprep.subr.mxu0 0.0
    %5863 = vmatpush2.msra.mxu0 0.0
    %5864 = vmatprep.subr.mxu0 0.0
    %5865 = vmatpush2.msra.mxu0 0.0
    %5866 = vmatprep.subr.mxu0 0.0
    %5867 = vmatpush2.msra.mxu0 0.0
    %5868 = vmatprep.mubr.f32.mxu0 0.0
    %v5869 = vand.u32 %v5544, 4294901760
    %v5870 = vsub.f32 %v5544, %v5869
    %5871 = vmatmul.mubr.f32.gmra.mxu0 %v5870
    %v5872 = vpop.f32.mrf.mxu0
    %v5873 = vadd.f32 %v5773, %v5872
    %v5874 = vpop.f32.mrf.mxu0
    %5875 = vdwg.mxu0
    %5876 = vmatprep.subr.mxu0 0.0
    %5877 = vmatpush1.msra.mxu0 0.0
    %5878 = vmatprep.subr.mxu0 0.0
    %5879 = vmatpush1.msra.mxu0 0.0
    %5880 = vmatprep.subr.mxu0 0.0
    %v5881 = vand.u32 %v5542, 4294901760
    %5882 = vmatpush1.msra.mxu0 %v5881
    %5883 = vmatprep.subr.mxu0 0.0
    %v5884 = vand.u32 %v5541, 4294901760
    %5885 = vmatpush1.msra.mxu0 %v5884
    %5886 = vmatprep.subr.mxu0 0.0
    %v5887 = vand.u32 %v5540, 4294901760
    %5888 = vmatpush1.msra.mxu0 %v5887
    %5889 = vmatprep.subr.mxu0 0.0
    %v5890 = vand.u32 %v5539, 4294901760
    %5891 = vmatpush1.msra.mxu0 %v5890
    %5892 = vmatprep.subr.mxu0 0.0
    %v5893 = vand.u32 %v5538, 4294901760
    %5894 = vmatpush1.msra.mxu0 %v5893
    %5895 = vmatprep.subr.mxu0 0.0
    %v5896 = vand.u32 %v5537, 4294901760
    %5897 = vmatpush1.msra.mxu0 %v5896
    %5898 = vmatprep.subr.mxu0 0.0
    %v5899 = vand.u32 %v5536, 4294901760
    %5900 = vmatpush1.msra.mxu0 %v5899
    %5901 = vmatprep.subr.mxu0 0.0
    %v5902 = vand.u32 %v5535, 4294901760
    %5903 = vmatpush1.msra.mxu0 %v5902
    %5904 = vmatprep.subr.mxu0 0.0
    %v5905 = vand.u32 %v5534, 4294901760
    %5906 = vmatpush1.msra.mxu0 %v5905
    %5907 = vmatprep.subr.mxu0 0.0
    %v5908 = vand.u32 %v5533, 4294901760
    %5909 = vmatpush1.msra.mxu0 %v5908
    %5910 = vmatprep.subr.mxu0 0.0
    %v5911 = vand.u32 %v5532, 4294901760
    %5912 = vmatpush1.msra.mxu0 %v5911
    %5913 = vmatprep.subr.mxu0 0.0
    %v5914 = vand.u32 %v5531, 4294901760
    %5915 = vmatpush1.msra.mxu0 %v5914
    %5916 = vmatprep.subr.mxu0 0.0
    %v5917 = vand.u32 %v5530, 4294901760
    %5918 = vmatpush1.msra.mxu0 %v5917
    %5919 = vmatprep.subr.mxu0 0.0
    %v5920 = vand.u32 %v5529, 4294901760
    %5921 = vmatpush1.msra.mxu0 %v5920
    %5922 = vmatprep.subr.mxu0 0.0
    %5923 = vmatpush2.msra.mxu0 0.0
    %5924 = vmatprep.subr.mxu0 0.0
    %5925 = vmatpush2.msra.mxu0 0.0
    %5926 = vmatprep.subr.mxu0 0.0
    %5927 = vmatpush2.msra.mxu0 0.0
    %5928 = vmatprep.subr.mxu0 0.0
    %5929 = vmatpush2.msra.mxu0 0.0
    %5930 = vmatprep.subr.mxu0 0.0
    %5931 = vmatpush2.msra.mxu0 0.0
    %5932 = vmatprep.subr.mxu0 0.0
    %5933 = vmatpush2.msra.mxu0 0.0
    %5934 = vmatprep.subr.mxu0 0.0
    %5935 = vmatpush2.msra.mxu0 0.0
    %5936 = vmatprep.subr.mxu0 0.0
    %5937 = vmatpush2.msra.mxu0 0.0
    %5938 = vmatprep.subr.mxu0 0.0
    %5939 = vmatpush2.msra.mxu0 0.0
    %5940 = vmatprep.subr.mxu0 0.0
    %5941 = vmatpush2.msra.mxu0 0.0
    %5942 = vmatprep.subr.mxu0 0.0
    %5943 = vmatpush2.msra.mxu0 0.0
    %5944 = vmatprep.subr.mxu0 0.0
    %5945 = vmatpush2.msra.mxu0 0.0
    %5946 = vmatprep.subr.mxu0 0.0
    %5947 = vmatpush2.msra.mxu0 0.0
    %5948 = vmatprep.subr.mxu0 0.0
    %5949 = vmatpush2.msra.mxu0 0.0
    %5950 = vmatprep.subr.mxu0 0.0
    %5951 = vmatpush2.msra.mxu0 0.0
    %5952 = vmatprep.subr.mxu0 0.0
    %5953 = vmatpush2.msra.mxu0 0.0
    %5954 = vmatprep.mubr.f32.mxu0 0.0
    %v5955 = vand.u32 %v5544, 4294901760
    %v5956 = vsub.f32 %v5544, %v5955
    %v5957 = vand.u32 %v5956, 4294901760
    %5958 = vmatmul.mubr.f32.gmra.mxu0 %v5957
    %v5959 = vpop.f32.mrf.mxu0
    %v5960 = vadd.f32 %v5873, %v5959
    %v5961 = vpop.f32.mrf.mxu0
    %5962 = vdwg.mxu0
    %5963 = vmatprep.subr.mxu0 0.0
    %5964 = vmatpush1.msra.mxu0 0.0
    %5965 = vmatprep.subr.mxu0 0.0
    %5966 = vmatpush1.msra.mxu0 0.0
    %5967 = vmatprep.subr.mxu0 0.0
    %v5968 = vand.u32 %v5542, 4294901760
    %v5969 = vsub.f32 %v5542, %v5968
    %v5970 = vand.u32 %v5969, 4294901760
    %5971 = vmatpush1.msra.mxu0 %v5970
    %5972 = vmatprep.subr.mxu0 0.0
    %v5973 = vand.u32 %v5541, 4294901760
    %v5974 = vsub.f32 %v5541, %v5973
    %v5975 = vand.u32 %v5974, 4294901760
    %5976 = vmatpush1.msra.mxu0 %v5975
    %5977 = vmatprep.subr.mxu0 0.0
    %v5978 = vand.u32 %v5540, 4294901760
    %v5979 = vsub.f32 %v5540, %v5978
    %v5980 = vand.u32 %v5979, 4294901760
    %5981 = vmatpush1.msra.mxu0 %v5980
    %5982 = vmatprep.subr.mxu0 0.0
    %v5983 = vand.u32 %v5539, 4294901760
    %v5984 = vsub.f32 %v5539, %v5983
    %v5985 = vand.u32 %v5984, 4294901760
    %5986 = vmatpush1.msra.mxu0 %v5985
    %5987 = vmatprep.subr.mxu0 0.0
    %v5988 = vand.u32 %v5538, 4294901760
    %v5989 = vsub.f32 %v5538, %v5988
    %v5990 = vand.u32 %v5989, 4294901760
    %5991 = vmatpush1.msra.mxu0 %v5990
    %5992 = vmatprep.subr.mxu0 0.0
    %v5993 = vand.u32 %v5537, 4294901760
    %v5994 = vsub.f32 %v5537, %v5993
    %v5995 = vand.u32 %v5994, 4294901760
    %5996 = vmatpush1.msra.mxu0 %v5995
    %5997 = vmatprep.subr.mxu0 0.0
    %v5998 = vand.u32 %v5536, 4294901760
    %v5999 = vsub.f32 %v5536, %v5998
    %v6000 = vand.u32 %v5999, 4294901760
    %6001 = vmatpush1.msra.mxu0 %v6000
    %6002 = vmatprep.subr.mxu0 0.0
    %v6003 = vand.u32 %v5535, 4294901760
    %v6004 = vsub.f32 %v5535, %v6003
    %v6005 = vand.u32 %v6004, 4294901760
    %6006 = vmatpush1.msra.mxu0 %v6005
    %6007 = vmatprep.subr.mxu0 0.0
    %v6008 = vand.u32 %v5534, 4294901760
    %v6009 = vsub.f32 %v5534, %v6008
    %v6010 = vand.u32 %v6009, 4294901760
    %6011 = vmatpush1.msra.mxu0 %v6010
    %6012 = vmatprep.subr.mxu0 0.0
    %v6013 = vand.u32 %v5533, 4294901760
    %v6014 = vsub.f32 %v5533, %v6013
    %v6015 = vand.u32 %v6014, 4294901760
    %6016 = vmatpush1.msra.mxu0 %v6015
    %6017 = vmatprep.subr.mxu0 0.0
    %v6018 = vand.u32 %v5532, 4294901760
    %v6019 = vsub.f32 %v5532, %v6018
    %v6020 = vand.u32 %v6019, 4294901760
    %6021 = vmatpush1.msra.mxu0 %v6020
    %6022 = vmatprep.subr.mxu0 0.0
    %v6023 = vand.u32 %v5531, 4294901760
    %v6024 = vsub.f32 %v5531, %v6023
    %v6025 = vand.u32 %v6024, 4294901760
    %6026 = vmatpush1.msra.mxu0 %v6025
    %6027 = vmatprep.subr.mxu0 0.0
    %v6028 = vand.u32 %v5530, 4294901760
    %v6029 = vsub.f32 %v5530, %v6028
    %v6030 = vand.u32 %v6029, 4294901760
    %6031 = vmatpush1.msra.mxu0 %v6030
    %6032 = vmatprep.subr.mxu0 0.0
    %v6033 = vand.u32 %v5529, 4294901760
    %v6034 = vsub.f32 %v5529, %v6033
    %v6035 = vand.u32 %v6034, 4294901760
    %6036 = vmatpush1.msra.mxu0 %v6035
    %6037 = vmatprep.subr.mxu0 0.0
    %6038 = vmatpush2.msra.mxu0 0.0
    %6039 = vmatprep.subr.mxu0 0.0
    %6040 = vmatpush2.msra.mxu0 0.0
    %6041 = vmatprep.subr.mxu0 0.0
    %6042 = vmatpush2.msra.mxu0 0.0
    %6043 = vmatprep.subr.mxu0 0.0
    %6044 = vmatpush2.msra.mxu0 0.0
    %6045 = vmatprep.subr.mxu0 0.0
    %6046 = vmatpush2.msra.mxu0 0.0
    %6047 = vmatprep.subr.mxu0 0.0
    %6048 = vmatpush2.msra.mxu0 0.0
    %6049 = vmatprep.subr.mxu0 0.0
    %6050 = vmatpush2.msra.mxu0 0.0
    %6051 = vmatprep.subr.mxu0 0.0
    %6052 = vmatpush2.msra.mxu0 0.0
    %6053 = vmatprep.subr.mxu0 0.0
    %6054 = vmatpush2.msra.mxu0 0.0
    %6055 = vmatprep.subr.mxu0 0.0
    %6056 = vmatpush2.msra.mxu0 0.0
    %6057 = vmatprep.subr.mxu0 0.0
    %6058 = vmatpush2.msra.mxu0 0.0
    %6059 = vmatprep.subr.mxu0 0.0
    %6060 = vmatpush2.msra.mxu0 0.0
    %6061 = vmatprep.subr.mxu0 0.0
    %6062 = vmatpush2.msra.mxu0 0.0
    %6063 = vmatprep.subr.mxu0 0.0
    %6064 = vmatpush2.msra.mxu0 0.0
    %6065 = vmatprep.subr.mxu0 0.0
    %6066 = vmatpush2.msra.mxu0 0.0
    %6067 = vmatprep.subr.mxu0 0.0
    %6068 = vmatpush2.msra.mxu0 0.0
    %6069 = vmatprep.mubr.f32.mxu0 0.0
    %v6070 = vand.u32 %v5544, 4294901760
    %6071 = vmatmul.mubr.f32.gmra.mxu0 %v6070
    %v6072 = vpop.f32.mrf.mxu0
    %v6073 = vadd.f32 %v5960, %v6072
    %v6074 = vpop.f32.mrf.mxu0
    %6075 = vdwg.mxu0
    %6076 = vmatprep.subr.mxu0 0.0
    %6077 = vmatpush1.msra.mxu0 0.0
    %6078 = vmatprep.subr.mxu0 0.0
    %6079 = vmatpush1.msra.mxu0 0.0
    %6080 = vmatprep.subr.mxu0 0.0
    %v6081 = vand.u32 %v5542, 4294901760
    %6082 = vmatpush1.msra.mxu0 %v6081
    %6083 = vmatprep.subr.mxu0 0.0
    %v6084 = vand.u32 %v5541, 4294901760
    %6085 = vmatpush1.msra.mxu0 %v6084
    %6086 = vmatprep.subr.mxu0 0.0
    %v6087 = vand.u32 %v5540, 4294901760
    %6088 = vmatpush1.msra.mxu0 %v6087
    %6089 = vmatprep.subr.mxu0 0.0
    %v6090 = vand.u32 %v5539, 4294901760
    %6091 = vmatpush1.msra.mxu0 %v6090
    %6092 = vmatprep.subr.mxu0 0.0
    %v6093 = vand.u32 %v5538, 4294901760
    %6094 = vmatpush1.msra.mxu0 %v6093
    %6095 = vmatprep.subr.mxu0 0.0
    %v6096 = vand.u32 %v5537, 4294901760
    %6097 = vmatpush1.msra.mxu0 %v6096
    %6098 = vmatprep.subr.mxu0 0.0
    %v6099 = vand.u32 %v5536, 4294901760
    %6100 = vmatpush1.msra.mxu0 %v6099
    %6101 = vmatprep.subr.mxu0 0.0
    %v6102 = vand.u32 %v5535, 4294901760
    %6103 = vmatpush1.msra.mxu0 %v6102
    %6104 = vmatprep.subr.mxu0 0.0
    %v6105 = vand.u32 %v5534, 4294901760
    %6106 = vmatpush1.msra.mxu0 %v6105
    %6107 = vmatprep.subr.mxu0 0.0
    %v6108 = vand.u32 %v5533, 4294901760
    %6109 = vmatpush1.msra.mxu0 %v6108
    %6110 = vmatprep.subr.mxu0 0.0
    %v6111 = vand.u32 %v5532, 4294901760
    %6112 = vmatpush1.msra.mxu0 %v6111
    %6113 = vmatprep.subr.mxu0 0.0
    %v6114 = vand.u32 %v5531, 4294901760
    %6115 = vmatpush1.msra.mxu0 %v6114
    %6116 = vmatprep.subr.mxu0 0.0
    %v6117 = vand.u32 %v5530, 4294901760
    %6118 = vmatpush1.msra.mxu0 %v6117
    %6119 = vmatprep.subr.mxu0 0.0
    %v6120 = vand.u32 %v5529, 4294901760
    %6121 = vmatpush1.msra.mxu0 %v6120
    %6122 = vmatprep.subr.mxu0 0.0
    %6123 = vmatpush2.msra.mxu0 0.0
    %6124 = vmatprep.subr.mxu0 0.0
    %6125 = vmatpush2.msra.mxu0 0.0
    %6126 = vmatprep.subr.mxu0 0.0
    %6127 = vmatpush2.msra.mxu0 0.0
    %6128 = vmatprep.subr.mxu0 0.0
    %6129 = vmatpush2.msra.mxu0 0.0
    %6130 = vmatprep.subr.mxu0 0.0
    %6131 = vmatpush2.msra.mxu0 0.0
    %6132 = vmatprep.subr.mxu0 0.0
    %6133 = vmatpush2.msra.mxu0 0.0
    %6134 = vmatprep.subr.mxu0 0.0
    %6135 = vmatpush2.msra.mxu0 0.0
    %6136 = vmatprep.subr.mxu0 0.0
    %6137 = vmatpush2.msra.mxu0 0.0
    %6138 = vmatprep.subr.mxu0 0.0
    %6139 = vmatpush2.msra.mxu0 0.0
    %6140 = vmatprep.subr.mxu0 0.0
    %6141 = vmatpush2.msra.mxu0 0.0
    %6142 = vmatprep.subr.mxu0 0.0
    %6143 = vmatpush2.msra.mxu0 0.0
    %6144 = vmatprep.subr.mxu0 0.0
    %6145 = vmatpush2.msra.mxu0 0.0
    %6146 = vmatprep.subr.mxu0 0.0
    %6147 = vmatpush2.msra.mxu0 0.0
    %6148 = vmatprep.subr.mxu0 0.0
    %6149 = vmatpush2.msra.mxu0 0.0
    %6150 = vmatprep.subr.mxu0 0.0
    %6151 = vmatpush2.msra.mxu0 0.0
    %6152 = vmatprep.subr.mxu0 0.0
    %6153 = vmatpush2.msra.mxu0 0.0
    %6154 = vmatprep.mubr.f32.mxu0 0.0
    %v6155 = vand.u32 %v5544, 4294901760
    %6156 = vmatmul.mubr.f32.gmra.mxu0 %v6155
    %v6157 = vpop.f32.mrf.mxu0
    %v6158 = vadd.f32 %v6073, %v6157
    %v6159 = vpop.f32.mrf.mxu0
    %6160 = vdwg.mxu0
    %v6162 = vsel %vm5517, %v5528, 0
    %6164 = vmatprep.subr.mxu0 0.0
    %6165 = vmatpush1.msra.mxu0 0.0
    %6166 = vmatprep.subr.mxu0 0.0
    %6167 = vmatpush1.msra.mxu0 0.0
    %6168 = vmatprep.subr.mxu0 0.0
    %v6169 = vand.u32 %v5542, 4294901760
    %6170 = vmatpush1.msra.mxu0 %v6169
    %6171 = vmatprep.subr.mxu0 0.0
    %v6172 = vand.u32 %v5541, 4294901760
    %6173 = vmatpush1.msra.mxu0 %v6172
    %6174 = vmatprep.subr.mxu0 0.0
    %v6175 = vand.u32 %v5540, 4294901760
    %6176 = vmatpush1.msra.mxu0 %v6175
    %6177 = vmatprep.subr.mxu0 0.0
    %v6178 = vand.u32 %v5539, 4294901760
    %6179 = vmatpush1.msra.mxu0 %v6178
    %6180 = vmatprep.subr.mxu0 0.0
    %v6181 = vand.u32 %v5538, 4294901760
    %6182 = vmatpush1.msra.mxu0 %v6181
    %6183 = vmatprep.subr.mxu0 0.0
    %v6184 = vand.u32 %v5537, 4294901760
    %6185 = vmatpush1.msra.mxu0 %v6184
    %6186 = vmatprep.subr.mxu0 0.0
    %v6187 = vand.u32 %v5536, 4294901760
    %6188 = vmatpush1.msra.mxu0 %v6187
    %6189 = vmatprep.subr.mxu0 0.0
    %v6190 = vand.u32 %v5535, 4294901760
    %6191 = vmatpush1.msra.mxu0 %v6190
    %6192 = vmatprep.subr.mxu0 0.0
    %v6193 = vand.u32 %v5534, 4294901760
    %6194 = vmatpush1.msra.mxu0 %v6193
    %6195 = vmatprep.subr.mxu0 0.0
    %v6196 = vand.u32 %v5533, 4294901760
    %6197 = vmatpush1.msra.mxu0 %v6196
    %6198 = vmatprep.subr.mxu0 0.0
    %v6199 = vand.u32 %v5532, 4294901760
    %6200 = vmatpush1.msra.mxu0 %v6199
    %6201 = vmatprep.subr.mxu0 0.0
    %v6202 = vand.u32 %v5531, 4294901760
    %6203 = vmatpush1.msra.mxu0 %v6202
    %6204 = vmatprep.subr.mxu0 0.0
    %v6205 = vand.u32 %v5530, 4294901760
    %6206 = vmatpush1.msra.mxu0 %v6205
    %6207 = vmatprep.subr.mxu0 0.0
    %v6208 = vand.u32 %v5529, 4294901760
    %6209 = vmatpush1.msra.mxu0 %v6208
    %6210 = vmatprep.subr.mxu0 0.0
    %6211 = vmatpush2.msra.mxu0 0.0
    %6212 = vmatprep.subr.mxu0 0.0
    %6213 = vmatpush2.msra.mxu0 0.0
    %6214 = vmatprep.subr.mxu0 0.0
    %6215 = vmatpush2.msra.mxu0 0.0
    %6216 = vmatprep.subr.mxu0 0.0
    %6217 = vmatpush2.msra.mxu0 0.0
    %6218 = vmatprep.subr.mxu0 0.0
    %6219 = vmatpush2.msra.mxu0 0.0
    %6220 = vmatprep.subr.mxu0 0.0
    %6221 = vmatpush2.msra.mxu0 0.0
    %6222 = vmatprep.subr.mxu0 0.0
    %6223 = vmatpush2.msra.mxu0 0.0
    %6224 = vmatprep.subr.mxu0 0.0
    %6225 = vmatpush2.msra.mxu0 0.0
    %6226 = vmatprep.subr.mxu0 0.0
    %6227 = vmatpush2.msra.mxu0 0.0
    %6228 = vmatprep.subr.mxu0 0.0
    %6229 = vmatpush2.msra.mxu0 0.0
    %6230 = vmatprep.subr.mxu0 0.0
    %6231 = vmatpush2.msra.mxu0 0.0
    %6232 = vmatprep.subr.mxu0 0.0
    %6233 = vmatpush2.msra.mxu0 0.0
    %6234 = vmatprep.subr.mxu0 0.0
    %6235 = vmatpush2.msra.mxu0 0.0
    %6236 = vmatprep.subr.mxu0 0.0
    %6237 = vmatpush2.msra.mxu0 0.0
    %6238 = vmatprep.subr.mxu0 0.0
    %6239 = vmatpush2.msra.mxu0 0.0
    %6240 = vmatprep.subr.mxu0 0.0
    %6241 = vmatpush2.msra.mxu0 0.0
    %6242 = vmatprep.mubr.f32.mxu0 0.0
    %v6243 = vand.u32 %v6162, 4294901760
    %v6244 = vsub.f32 %v6162, %v6243
    %v6245 = vand.u32 %v6244, 4294901760
    %v6246 = vsub.f32 %v6244, %v6245
    %v6247 = vand.u32 %v6246, 4294901760
    %6248 = vmatmul.mubr.f32.gmra.mxu0 %v6247
    %v6249 = vpop.f32.mrf.mxu0
    %v6250 = vadd.f32 0.0, %v6249
    %v6251 = vpop.f32.mrf.mxu0
    %6252 = vdwg.mxu0
    %6253 = vmatprep.subr.mxu0 0.0
    %6254 = vmatpush1.msra.mxu0 0.0
    %6255 = vmatprep.subr.mxu0 0.0
    %6256 = vmatpush1.msra.mxu0 0.0
    %6257 = vmatprep.subr.mxu0 0.0
    %v6258 = vand.u32 %v5542, 4294901760
    %v6259 = vsub.f32 %v5542, %v6258
    %v6260 = vand.u32 %v6259, 4294901760
    %v6261 = vsub.f32 %v6259, %v6260
    %v6262 = vand.u32 %v6261, 4294901760
    %6263 = vmatpush1.msra.mxu0 %v6262
    %6264 = vmatprep.subr.mxu0 0.0
    %v6265 = vand.u32 %v5541, 4294901760
    %v6266 = vsub.f32 %v5541, %v6265
    %v6267 = vand.u32 %v6266, 4294901760
    %v6268 = vsub.f32 %v6266, %v6267
    %v6269 = vand.u32 %v6268, 4294901760
    %6270 = vmatpush1.msra.mxu0 %v6269
    %6271 = vmatprep.subr.mxu0 0.0
    %v6272 = vand.u32 %v5540, 4294901760
    %v6273 = vsub.f32 %v5540, %v6272
    %v6274 = vand.u32 %v6273, 4294901760
    %v6275 = vsub.f32 %v6273, %v6274
    %v6276 = vand.u32 %v6275, 4294901760
    %6277 = vmatpush1.msra.mxu0 %v6276
    %6278 = vmatprep.subr.mxu0 0.0
    %v6279 = vand.u32 %v5539, 4294901760
    %v6280 = vsub.f32 %v5539, %v6279
    %v6281 = vand.u32 %v6280, 4294901760
    %v6282 = vsub.f32 %v6280, %v6281
    %v6283 = vand.u32 %v6282, 4294901760
    %6284 = vmatpush1.msra.mxu0 %v6283
    %6285 = vmatprep.subr.mxu0 0.0
    %v6286 = vand.u32 %v5538, 4294901760
    %v6287 = vsub.f32 %v5538, %v6286
    %v6288 = vand.u32 %v6287, 4294901760
    %v6289 = vsub.f32 %v6287, %v6288
    %v6290 = vand.u32 %v6289, 4294901760
    %6291 = vmatpush1.msra.mxu0 %v6290
    %6292 = vmatprep.subr.mxu0 0.0
    %v6293 = vand.u32 %v5537, 4294901760
    %v6294 = vsub.f32 %v5537, %v6293
    %v6295 = vand.u32 %v6294, 4294901760
    %v6296 = vsub.f32 %v6294, %v6295
    %v6297 = vand.u32 %v6296, 4294901760
    %6298 = vmatpush1.msra.mxu0 %v6297
    %6299 = vmatprep.subr.mxu0 0.0
    %v6300 = vand.u32 %v5536, 4294901760
    %v6301 = vsub.f32 %v5536, %v6300
    %v6302 = vand.u32 %v6301, 4294901760
    %v6303 = vsub.f32 %v6301, %v6302
    %v6304 = vand.u32 %v6303, 4294901760
    %6305 = vmatpush1.msra.mxu0 %v6304
    %6306 = vmatprep.subr.mxu0 0.0
    %v6307 = vand.u32 %v5535, 4294901760
    %v6308 = vsub.f32 %v5535, %v6307
    %v6309 = vand.u32 %v6308, 4294901760
    %v6310 = vsub.f32 %v6308, %v6309
    %v6311 = vand.u32 %v6310, 4294901760
    %6312 = vmatpush1.msra.mxu0 %v6311
    %6313 = vmatprep.subr.mxu0 0.0
    %v6314 = vand.u32 %v5534, 4294901760
    %v6315 = vsub.f32 %v5534, %v6314
    %v6316 = vand.u32 %v6315, 4294901760
    %v6317 = vsub.f32 %v6315, %v6316
    %v6318 = vand.u32 %v6317, 4294901760
    %6319 = vmatpush1.msra.mxu0 %v6318
    %6320 = vmatprep.subr.mxu0 0.0
    %v6321 = vand.u32 %v5533, 4294901760
    %v6322 = vsub.f32 %v5533, %v6321
    %v6323 = vand.u32 %v6322, 4294901760
    %v6324 = vsub.f32 %v6322, %v6323
    %v6325 = vand.u32 %v6324, 4294901760
    %6326 = vmatpush1.msra.mxu0 %v6325
    %6327 = vmatprep.subr.mxu0 0.0
    %v6328 = vand.u32 %v5532, 4294901760
    %v6329 = vsub.f32 %v5532, %v6328
    %v6330 = vand.u32 %v6329, 4294901760
    %v6331 = vsub.f32 %v6329, %v6330
    %v6332 = vand.u32 %v6331, 4294901760
    %6333 = vmatpush1.msra.mxu0 %v6332
    %6334 = vmatprep.subr.mxu0 0.0
    %v6335 = vand.u32 %v5531, 4294901760
    %v6336 = vsub.f32 %v5531, %v6335
    %v6337 = vand.u32 %v6336, 4294901760
    %v6338 = vsub.f32 %v6336, %v6337
    %v6339 = vand.u32 %v6338, 4294901760
    %6340 = vmatpush1.msra.mxu0 %v6339
    %6341 = vmatprep.subr.mxu0 0.0
    %v6342 = vand.u32 %v5530, 4294901760
    %v6343 = vsub.f32 %v5530, %v6342
    %v6344 = vand.u32 %v6343, 4294901760
    %v6345 = vsub.f32 %v6343, %v6344
    %v6346 = vand.u32 %v6345, 4294901760
    %6347 = vmatpush1.msra.mxu0 %v6346
    %6348 = vmatprep.subr.mxu0 0.0
    %v6349 = vand.u32 %v5529, 4294901760
    %v6350 = vsub.f32 %v5529, %v6349
    %v6351 = vand.u32 %v6350, 4294901760
    %v6352 = vsub.f32 %v6350, %v6351
    %v6353 = vand.u32 %v6352, 4294901760
    %6354 = vmatpush1.msra.mxu0 %v6353
    %6355 = vmatprep.subr.mxu0 0.0
    %6356 = vmatpush2.msra.mxu0 0.0
    %6357 = vmatprep.subr.mxu0 0.0
    %6358 = vmatpush2.msra.mxu0 0.0
    %6359 = vmatprep.subr.mxu0 0.0
    %6360 = vmatpush2.msra.mxu0 0.0
    %6361 = vmatprep.subr.mxu0 0.0
    %6362 = vmatpush2.msra.mxu0 0.0
    %6363 = vmatprep.subr.mxu0 0.0
    %6364 = vmatpush2.msra.mxu0 0.0
    %6365 = vmatprep.subr.mxu0 0.0
    %6366 = vmatpush2.msra.mxu0 0.0
    %6367 = vmatprep.subr.mxu0 0.0
    %6368 = vmatpush2.msra.mxu0 0.0
    %6369 = vmatprep.subr.mxu0 0.0
    %6370 = vmatpush2.msra.mxu0 0.0
    %6371 = vmatprep.subr.mxu0 0.0
    %6372 = vmatpush2.msra.mxu0 0.0
    %6373 = vmatprep.subr.mxu0 0.0
    %6374 = vmatpush2.msra.mxu0 0.0
    %6375 = vmatprep.subr.mxu0 0.0
    %6376 = vmatpush2.msra.mxu0 0.0
    %6377 = vmatprep.subr.mxu0 0.0
    %6378 = vmatpush2.msra.mxu0 0.0
    %6379 = vmatprep.subr.mxu0 0.0
    %6380 = vmatpush2.msra.mxu0 0.0
    %6381 = vmatprep.subr.mxu0 0.0
    %6382 = vmatpush2.msra.mxu0 0.0
    %6383 = vmatprep.subr.mxu0 0.0
    %6384 = vmatpush2.msra.mxu0 0.0
    %6385 = vmatprep.subr.mxu0 0.0
    %6386 = vmatpush2.msra.mxu0 0.0
    %6387 = vmatprep.mubr.f32.mxu0 0.0
    %v6388 = vand.u32 %v6162, 4294901760
    %6389 = vmatmul.mubr.f32.gmra.mxu0 %v6388
    %v6390 = vpop.f32.mrf.mxu0
    %v6391 = vadd.f32 %v6250, %v6390
    %v6392 = vpop.f32.mrf.mxu0
    %6393 = vdwg.mxu0
    %6394 = vmatprep.subr.mxu0 0.0
    %6395 = vmatpush1.msra.mxu0 0.0
    %6396 = vmatprep.subr.mxu0 0.0
    %6397 = vmatpush1.msra.mxu0 0.0
    %6398 = vmatprep.subr.mxu0 0.0
    %v6399 = vand.u32 %v5542, 4294901760
    %v6400 = vsub.f32 %v5542, %v6399
    %6401 = vmatpush1.msra.mxu0 %v6400
    %6402 = vmatprep.subr.mxu0 0.0
    %v6403 = vand.u32 %v5541, 4294901760
    %v6404 = vsub.f32 %v5541, %v6403
    %6405 = vmatpush1.msra.mxu0 %v6404
    %6406 = vmatprep.subr.mxu0 0.0
    %v6407 = vand.u32 %v5540, 4294901760
    %v6408 = vsub.f32 %v5540, %v6407
    %6409 = vmatpush1.msra.mxu0 %v6408
    %6410 = vmatprep.subr.mxu0 0.0
    %v6411 = vand.u32 %v5539, 4294901760
    %v6412 = vsub.f32 %v5539, %v6411
    %6413 = vmatpush1.msra.mxu0 %v6412
    %6414 = vmatprep.subr.mxu0 0.0
    %v6415 = vand.u32 %v5538, 4294901760
    %v6416 = vsub.f32 %v5538, %v6415
    %6417 = vmatpush1.msra.mxu0 %v6416
    %6418 = vmatprep.subr.mxu0 0.0
    %v6419 = vand.u32 %v5537, 4294901760
    %v6420 = vsub.f32 %v5537, %v6419
    %6421 = vmatpush1.msra.mxu0 %v6420
    %6422 = vmatprep.subr.mxu0 0.0
    %v6423 = vand.u32 %v5536, 4294901760
    %v6424 = vsub.f32 %v5536, %v6423
    %6425 = vmatpush1.msra.mxu0 %v6424
    %6426 = vmatprep.subr.mxu0 0.0
    %v6427 = vand.u32 %v5535, 4294901760
    %v6428 = vsub.f32 %v5535, %v6427
    %6429 = vmatpush1.msra.mxu0 %v6428
    %6430 = vmatprep.subr.mxu0 0.0
    %v6431 = vand.u32 %v5534, 4294901760
    %v6432 = vsub.f32 %v5534, %v6431
    %6433 = vmatpush1.msra.mxu0 %v6432
    %6434 = vmatprep.subr.mxu0 0.0
    %v6435 = vand.u32 %v5533, 4294901760
    %v6436 = vsub.f32 %v5533, %v6435
    %6437 = vmatpush1.msra.mxu0 %v6436
    %6438 = vmatprep.subr.mxu0 0.0
    %v6439 = vand.u32 %v5532, 4294901760
    %v6440 = vsub.f32 %v5532, %v6439
    %6441 = vmatpush1.msra.mxu0 %v6440
    %6442 = vmatprep.subr.mxu0 0.0
    %v6443 = vand.u32 %v5531, 4294901760
    %v6444 = vsub.f32 %v5531, %v6443
    %6445 = vmatpush1.msra.mxu0 %v6444
    %6446 = vmatprep.subr.mxu0 0.0
    %v6447 = vand.u32 %v5530, 4294901760
    %v6448 = vsub.f32 %v5530, %v6447
    %6449 = vmatpush1.msra.mxu0 %v6448
    %6450 = vmatprep.subr.mxu0 0.0
    %v6451 = vand.u32 %v5529, 4294901760
    %v6452 = vsub.f32 %v5529, %v6451
    %6453 = vmatpush1.msra.mxu0 %v6452
    %6454 = vmatprep.subr.mxu0 0.0
    %6455 = vmatpush2.msra.mxu0 0.0
    %6456 = vmatprep.subr.mxu0 0.0
    %6457 = vmatpush2.msra.mxu0 0.0
    %6458 = vmatprep.subr.mxu0 0.0
    %6459 = vmatpush2.msra.mxu0 0.0
    %6460 = vmatprep.subr.mxu0 0.0
    %6461 = vmatpush2.msra.mxu0 0.0
    %6462 = vmatprep.subr.mxu0 0.0
    %6463 = vmatpush2.msra.mxu0 0.0
    %6464 = vmatprep.subr.mxu0 0.0
    %6465 = vmatpush2.msra.mxu0 0.0
    %6466 = vmatprep.subr.mxu0 0.0
    %6467 = vmatpush2.msra.mxu0 0.0
    %6468 = vmatprep.subr.mxu0 0.0
    %6469 = vmatpush2.msra.mxu0 0.0
    %6470 = vmatprep.subr.mxu0 0.0
    %6471 = vmatpush2.msra.mxu0 0.0
    %6472 = vmatprep.subr.mxu0 0.0
    %6473 = vmatpush2.msra.mxu0 0.0
    %6474 = vmatprep.subr.mxu0 0.0
    %6475 = vmatpush2.msra.mxu0 0.0
    %6476 = vmatprep.subr.mxu0 0.0
    %6477 = vmatpush2.msra.mxu0 0.0
    %6478 = vmatprep.subr.mxu0 0.0
    %6479 = vmatpush2.msra.mxu0 0.0
    %6480 = vmatprep.subr.mxu0 0.0
    %6481 = vmatpush2.msra.mxu0 0.0
    %6482 = vmatprep.subr.mxu0 0.0
    %6483 = vmatpush2.msra.mxu0 0.0
    %6484 = vmatprep.subr.mxu0 0.0
    %6485 = vmatpush2.msra.mxu0 0.0
    %6486 = vmatprep.mubr.f32.mxu0 0.0
    %v6487 = vand.u32 %v6162, 4294901760
    %v6488 = vsub.f32 %v6162, %v6487
    %6489 = vmatmul.mubr.f32.gmra.mxu0 %v6488
    %v6490 = vpop.f32.mrf.mxu0
    %v6491 = vadd.f32 %v6391, %v6490
    %v6492 = vpop.f32.mrf.mxu0
    %6493 = vdwg.mxu0
    %6494 = vmatprep.subr.mxu0 0.0
    %6495 = vmatpush1.msra.mxu0 0.0
    %6496 = vmatprep.subr.mxu0 0.0
    %6497 = vmatpush1.msra.mxu0 0.0
    %6498 = vmatprep.subr.mxu0 0.0
    %v6499 = vand.u32 %v5542, 4294901760
    %6500 = vmatpush1.msra.mxu0 %v6499
    %6501 = vmatprep.subr.mxu0 0.0
    %v6502 = vand.u32 %v5541, 4294901760
    %6503 = vmatpush1.msra.mxu0 %v6502
    %6504 = vmatprep.subr.mxu0 0.0
    %v6505 = vand.u32 %v5540, 4294901760
    %6506 = vmatpush1.msra.mxu0 %v6505
    %6507 = vmatprep.subr.mxu0 0.0
    %v6508 = vand.u32 %v5539, 4294901760
    %6509 = vmatpush1.msra.mxu0 %v6508
    %6510 = vmatprep.subr.mxu0 0.0
    %v6511 = vand.u32 %v5538, 4294901760
    %6512 = vmatpush1.msra.mxu0 %v6511
    %6513 = vmatprep.subr.mxu0 0.0
    %v6514 = vand.u32 %v5537, 4294901760
    %6515 = vmatpush1.msra.mxu0 %v6514
    %6516 = vmatprep.subr.mxu0 0.0
    %v6517 = vand.u32 %v5536, 4294901760
    %6518 = vmatpush1.msra.mxu0 %v6517
    %6519 = vmatprep.subr.mxu0 0.0
    %v6520 = vand.u32 %v5535, 4294901760
    %6521 = vmatpush1.msra.mxu0 %v6520
    %6522 = vmatprep.subr.mxu0 0.0
    %v6523 = vand.u32 %v5534, 4294901760
    %6524 = vmatpush1.msra.mxu0 %v6523
    %6525 = vmatprep.subr.mxu0 0.0
    %v6526 = vand.u32 %v5533, 4294901760
    %6527 = vmatpush1.msra.mxu0 %v6526
    %6528 = vmatprep.subr.mxu0 0.0
    %v6529 = vand.u32 %v5532, 4294901760
    %6530 = vmatpush1.msra.mxu0 %v6529
    %6531 = vmatprep.subr.mxu0 0.0
    %v6532 = vand.u32 %v5531, 4294901760
    %6533 = vmatpush1.msra.mxu0 %v6532
    %6534 = vmatprep.subr.mxu0 0.0
    %v6535 = vand.u32 %v5530, 4294901760
    %6536 = vmatpush1.msra.mxu0 %v6535
    %6537 = vmatprep.subr.mxu0 0.0
    %v6538 = vand.u32 %v5529, 4294901760
    %6539 = vmatpush1.msra.mxu0 %v6538
    %6540 = vmatprep.subr.mxu0 0.0
    %6541 = vmatpush2.msra.mxu0 0.0
    %6542 = vmatprep.subr.mxu0 0.0
    %6543 = vmatpush2.msra.mxu0 0.0
    %6544 = vmatprep.subr.mxu0 0.0
    %6545 = vmatpush2.msra.mxu0 0.0
    %6546 = vmatprep.subr.mxu0 0.0
    %6547 = vmatpush2.msra.mxu0 0.0
    %6548 = vmatprep.subr.mxu0 0.0
    %6549 = vmatpush2.msra.mxu0 0.0
    %6550 = vmatprep.subr.mxu0 0.0
    %6551 = vmatpush2.msra.mxu0 0.0
    %6552 = vmatprep.subr.mxu0 0.0
    %6553 = vmatpush2.msra.mxu0 0.0
    %6554 = vmatprep.subr.mxu0 0.0
    %6555 = vmatpush2.msra.mxu0 0.0
    %6556 = vmatprep.subr.mxu0 0.0
    %6557 = vmatpush2.msra.mxu0 0.0
    %6558 = vmatprep.subr.mxu0 0.0
    %6559 = vmatpush2.msra.mxu0 0.0
    %6560 = vmatprep.subr.mxu0 0.0
    %6561 = vmatpush2.msra.mxu0 0.0
    %6562 = vmatprep.subr.mxu0 0.0
    %6563 = vmatpush2.msra.mxu0 0.0
    %6564 = vmatprep.subr.mxu0 0.0
    %6565 = vmatpush2.msra.mxu0 0.0
    %6566 = vmatprep.subr.mxu0 0.0
    %6567 = vmatpush2.msra.mxu0 0.0
    %6568 = vmatprep.subr.mxu0 0.0
    %6569 = vmatpush2.msra.mxu0 0.0
    %6570 = vmatprep.subr.mxu0 0.0
    %6571 = vmatpush2.msra.mxu0 0.0
    %6572 = vmatprep.mubr.f32.mxu0 0.0
    %v6573 = vand.u32 %v6162, 4294901760
    %v6574 = vsub.f32 %v6162, %v6573
    %v6575 = vand.u32 %v6574, 4294901760
    %6576 = vmatmul.mubr.f32.gmra.mxu0 %v6575
    %v6577 = vpop.f32.mrf.mxu0
    %v6578 = vadd.f32 %v6491, %v6577
    %v6579 = vpop.f32.mrf.mxu0
    %6580 = vdwg.mxu0
    %6581 = vmatprep.subr.mxu0 0.0
    %6582 = vmatpush1.msra.mxu0 0.0
    %6583 = vmatprep.subr.mxu0 0.0
    %6584 = vmatpush1.msra.mxu0 0.0
    %6585 = vmatprep.subr.mxu0 0.0
    %v6586 = vand.u32 %v5542, 4294901760
    %v6587 = vsub.f32 %v5542, %v6586
    %v6588 = vand.u32 %v6587, 4294901760
    %6589 = vmatpush1.msra.mxu0 %v6588
    %6590 = vmatprep.subr.mxu0 0.0
    %v6591 = vand.u32 %v5541, 4294901760
    %v6592 = vsub.f32 %v5541, %v6591
    %v6593 = vand.u32 %v6592, 4294901760
    %6594 = vmatpush1.msra.mxu0 %v6593
    %6595 = vmatprep.subr.mxu0 0.0
    %v6596 = vand.u32 %v5540, 4294901760
    %v6597 = vsub.f32 %v5540, %v6596
    %v6598 = vand.u32 %v6597, 4294901760
    %6599 = vmatpush1.msra.mxu0 %v6598
    %6600 = vmatprep.subr.mxu0 0.0
    %v6601 = vand.u32 %v5539, 4294901760
    %v6602 = vsub.f32 %v5539, %v6601
    %v6603 = vand.u32 %v6602, 4294901760
    %6604 = vmatpush1.msra.mxu0 %v6603
    %6605 = vmatprep.subr.mxu0 0.0
    %v6606 = vand.u32 %v5538, 4294901760
    %v6607 = vsub.f32 %v5538, %v6606
    %v6608 = vand.u32 %v6607, 4294901760
    %6609 = vmatpush1.msra.mxu0 %v6608
    %6610 = vmatprep.subr.mxu0 0.0
    %v6611 = vand.u32 %v5537, 4294901760
    %v6612 = vsub.f32 %v5537, %v6611
    %v6613 = vand.u32 %v6612, 4294901760
    %6614 = vmatpush1.msra.mxu0 %v6613
    %6615 = vmatprep.subr.mxu0 0.0
    %v6616 = vand.u32 %v5536, 4294901760
    %v6617 = vsub.f32 %v5536, %v6616
    %v6618 = vand.u32 %v6617, 4294901760
    %6619 = vmatpush1.msra.mxu0 %v6618
    %6620 = vmatprep.subr.mxu0 0.0
    %v6621 = vand.u32 %v5535, 4294901760
    %v6622 = vsub.f32 %v5535, %v6621
    %v6623 = vand.u32 %v6622, 4294901760
    %6624 = vmatpush1.msra.mxu0 %v6623
    %6625 = vmatprep.subr.mxu0 0.0
    %v6626 = vand.u32 %v5534, 4294901760
    %v6627 = vsub.f32 %v5534, %v6626
    %v6628 = vand.u32 %v6627, 4294901760
    %6629 = vmatpush1.msra.mxu0 %v6628
    %6630 = vmatprep.subr.mxu0 0.0
    %v6631 = vand.u32 %v5533, 4294901760
    %v6632 = vsub.f32 %v5533, %v6631
    %v6633 = vand.u32 %v6632, 4294901760
    %6634 = vmatpush1.msra.mxu0 %v6633
    %6635 = vmatprep.subr.mxu0 0.0
    %v6636 = vand.u32 %v5532, 4294901760
    %v6637 = vsub.f32 %v5532, %v6636
    %v6638 = vand.u32 %v6637, 4294901760
    %6639 = vmatpush1.msra.mxu0 %v6638
    %6640 = vmatprep.subr.mxu0 0.0
    %v6641 = vand.u32 %v5531, 4294901760
    %v6642 = vsub.f32 %v5531, %v6641
    %v6643 = vand.u32 %v6642, 4294901760
    %6644 = vmatpush1.msra.mxu0 %v6643
    %6645 = vmatprep.subr.mxu0 0.0
    %v6646 = vand.u32 %v5530, 4294901760
    %v6647 = vsub.f32 %v5530, %v6646
    %v6648 = vand.u32 %v6647, 4294901760
    %6649 = vmatpush1.msra.mxu0 %v6648
    %6650 = vmatprep.subr.mxu0 0.0
    %v6651 = vand.u32 %v5529, 4294901760
    %v6652 = vsub.f32 %v5529, %v6651
    %v6653 = vand.u32 %v6652, 4294901760
    %6654 = vmatpush1.msra.mxu0 %v6653
    %6655 = vmatprep.subr.mxu0 0.0
    %6656 = vmatpush2.msra.mxu0 0.0
    %6657 = vmatprep.subr.mxu0 0.0
    %6658 = vmatpush2.msra.mxu0 0.0
    %6659 = vmatprep.subr.mxu0 0.0
    %6660 = vmatpush2.msra.mxu0 0.0
    %6661 = vmatprep.subr.mxu0 0.0
    %6662 = vmatpush2.msra.mxu0 0.0
    %6663 = vmatprep.subr.mxu0 0.0
    %6664 = vmatpush2.msra.mxu0 0.0
    %6665 = vmatprep.subr.mxu0 0.0
    %6666 = vmatpush2.msra.mxu0 0.0
    %6667 = vmatprep.subr.mxu0 0.0
    %6668 = vmatpush2.msra.mxu0 0.0
    %6669 = vmatprep.subr.mxu0 0.0
    %6670 = vmatpush2.msra.mxu0 0.0
    %6671 = vmatprep.subr.mxu0 0.0
    %6672 = vmatpush2.msra.mxu0 0.0
    %6673 = vmatprep.subr.mxu0 0.0
    %6674 = vmatpush2.msra.mxu0 0.0
    %6675 = vmatprep.subr.mxu0 0.0
    %6676 = vmatpush2.msra.mxu0 0.0
    %6677 = vmatprep.subr.mxu0 0.0
    %6678 = vmatpush2.msra.mxu0 0.0
    %6679 = vmatprep.subr.mxu0 0.0
    %6680 = vmatpush2.msra.mxu0 0.0
    %6681 = vmatprep.subr.mxu0 0.0
    %6682 = vmatpush2.msra.mxu0 0.0
    %6683 = vmatprep.subr.mxu0 0.0
    %6684 = vmatpush2.msra.mxu0 0.0
    %6685 = vmatprep.subr.mxu0 0.0
    %6686 = vmatpush2.msra.mxu0 0.0
    %6687 = vmatprep.mubr.f32.mxu0 0.0
    %v6688 = vand.u32 %v6162, 4294901760
    %6689 = vmatmul.mubr.f32.gmra.mxu0 %v6688
    %v6690 = vpop.f32.mrf.mxu0
    %v6691 = vadd.f32 %v6578, %v6690
    %v6692 = vpop.f32.mrf.mxu0
    %6693 = vdwg.mxu0
    %6694 = vmatprep.subr.mxu0 0.0
    %6695 = vmatpush1.msra.mxu0 0.0
    %6696 = vmatprep.subr.mxu0 0.0
    %6697 = vmatpush1.msra.mxu0 0.0
    %6698 = vmatprep.subr.mxu0 0.0
    %v6699 = vand.u32 %v5542, 4294901760
    %6700 = vmatpush1.msra.mxu0 %v6699
    %6701 = vmatprep.subr.mxu0 0.0
    %v6702 = vand.u32 %v5541, 4294901760
    %6703 = vmatpush1.msra.mxu0 %v6702
    %6704 = vmatprep.subr.mxu0 0.0
    %v6705 = vand.u32 %v5540, 4294901760
    %6706 = vmatpush1.msra.mxu0 %v6705
    %6707 = vmatprep.subr.mxu0 0.0
    %v6708 = vand.u32 %v5539, 4294901760
    %6709 = vmatpush1.msra.mxu0 %v6708
    %6710 = vmatprep.subr.mxu0 0.0
    %v6711 = vand.u32 %v5538, 4294901760
    %6712 = vmatpush1.msra.mxu0 %v6711
    %6713 = vmatprep.subr.mxu0 0.0
    %v6714 = vand.u32 %v5537, 4294901760
    %6715 = vmatpush1.msra.mxu0 %v6714
    %6716 = vmatprep.subr.mxu0 0.0
    %v6717 = vand.u32 %v5536, 4294901760
    %6718 = vmatpush1.msra.mxu0 %v6717
    %6719 = vmatprep.subr.mxu0 0.0
    %v6720 = vand.u32 %v5535, 4294901760
    %6721 = vmatpush1.msra.mxu0 %v6720
    %6722 = vmatprep.subr.mxu0 0.0
    %v6723 = vand.u32 %v5534, 4294901760
    %6724 = vmatpush1.msra.mxu0 %v6723
    %6725 = vmatprep.subr.mxu0 0.0
    %v6726 = vand.u32 %v5533, 4294901760
    %6727 = vmatpush1.msra.mxu0 %v6726
    %6728 = vmatprep.subr.mxu0 0.0
    %v6729 = vand.u32 %v5532, 4294901760
    %6730 = vmatpush1.msra.mxu0 %v6729
    %6731 = vmatprep.subr.mxu0 0.0
    %v6732 = vand.u32 %v5531, 4294901760
    %6733 = vmatpush1.msra.mxu0 %v6732
    %6734 = vmatprep.subr.mxu0 0.0
    %v6735 = vand.u32 %v5530, 4294901760
    %6736 = vmatpush1.msra.mxu0 %v6735
    %6737 = vmatprep.subr.mxu0 0.0
    %v6738 = vand.u32 %v5529, 4294901760
    %6739 = vmatpush1.msra.mxu0 %v6738
    %6740 = vmatprep.subr.mxu0 0.0
    %6741 = vmatpush2.msra.mxu0 0.0
    %6742 = vmatprep.subr.mxu0 0.0
    %6743 = vmatpush2.msra.mxu0 0.0
    %6744 = vmatprep.subr.mxu0 0.0
    %6745 = vmatpush2.msra.mxu0 0.0
    %6746 = vmatprep.subr.mxu0 0.0
    %6747 = vmatpush2.msra.mxu0 0.0
    %6748 = vmatprep.subr.mxu0 0.0
    %6749 = vmatpush2.msra.mxu0 0.0
    %6750 = vmatprep.subr.mxu0 0.0
    %6751 = vmatpush2.msra.mxu0 0.0
    %6752 = vmatprep.subr.mxu0 0.0
    %6753 = vmatpush2.msra.mxu0 0.0
    %6754 = vmatprep.subr.mxu0 0.0
    %6755 = vmatpush2.msra.mxu0 0.0
    %6756 = vmatprep.subr.mxu0 0.0
    %6757 = vmatpush2.msra.mxu0 0.0
    %6758 = vmatprep.subr.mxu0 0.0
    %6759 = vmatpush2.msra.mxu0 0.0
    %6760 = vmatprep.subr.mxu0 0.0
    %6761 = vmatpush2.msra.mxu0 0.0
    %6762 = vmatprep.subr.mxu0 0.0
    %6763 = vmatpush2.msra.mxu0 0.0
    %6764 = vmatprep.subr.mxu0 0.0
    %6765 = vmatpush2.msra.mxu0 0.0
    %6766 = vmatprep.subr.mxu0 0.0
    %6767 = vmatpush2.msra.mxu0 0.0
    %6768 = vmatprep.subr.mxu0 0.0
    %6769 = vmatpush2.msra.mxu0 0.0
    %6770 = vmatprep.subr.mxu0 0.0
    %6771 = vmatpush2.msra.mxu0 0.0
    %6772 = vmatprep.mubr.f32.mxu0 0.0
    %v6773 = vand.u32 %v6162, 4294901760
    %6774 = vmatmul.mubr.f32.gmra.mxu0 %v6773
    %v6775 = vpop.f32.mrf.mxu0
    %v6776 = vadd.f32 %v6691, %v6775
    %v6777 = vpop.f32.mrf.mxu0
    %6778 = vdwg.mxu0
    %v6779 = vlog2.pop %v6158
    %v6780 = vmul.f32 %v6779, 0.6931472
    %v6781 = vsub.f32 %v6780, %v6776
    %v6782 = vadd.f32 %v5515, %v6781
    %v6783 = vld [vmem:[%s14] sm:$0xff]
    %6784 = vmax.xlane.f32.xlu0 %v6783
    %v6785 = vpop.xlane.xlu0 %6784
    %v6786 = vsub.f32 %v6783, %v6785
    %v6787 = vmul.f32 %v6786, 1.442695
    %v6788 = vpow.pop %v6787
    %6789 = vset.pattern.permute.xlu0 6
    %6790 = vperm.xlu0 %6789, %v204
    %v6791 = vpop.permute.xlu0 %6790
    %vm6792 = vcmp.eq.s32.totalorder %v214, %v6791
    %v6793 = vsel %vm6792, %v6786, 0.0
    %v6794 = vld [vmem:[#allocation14] sm:$0xff]
    %v6795 = vld [vmem:[#allocation14 + $0x8] sm:$0xff]
    %v6796 = vld [vmem:[#allocation14 + $0x10] sm:$0xff]
    %v6797 = vld [vmem:[#allocation14 + $0x18] sm:$0xff]
    %v6798 = vld [vmem:[#allocation14 + $0x20] sm:$0xff]
    %v6799 = vld [vmem:[#allocation14 + $0x28] sm:$0xff]
    %v6800 = vld [vmem:[#allocation14 + $0x30] sm:$0xff]
    %v6801 = vld [vmem:[#allocation14 + $0x38] sm:$0xff]
    %v6802 = vld [vmem:[#allocation14 + $0x40] sm:$0xff]
    %v6803 = vld [vmem:[#allocation14 + $0x48] sm:$0xff]
    %v6804 = vld [vmem:[#allocation14 + $0x50] sm:$0xff]
    %v6805 = vld [vmem:[#allocation14 + $0x58] sm:$0xff]
    %v6806 = vld [vmem:[#allocation14 + $0x60] sm:$0xff]
    %v6807 = vld [vmem:[#allocation14 + $0x68] sm:$0xff]
    %v6808 = vld [vmem:[#allocation14 + $0x70] sm:$0xff]
    %v6809 = vld [vmem:[#allocation14 + $0x78] sm:$0xff]
    %6810 = vmatprep.subr.mxu0 0.0
    %v6811 = vand.u32 %v6809, 4294901760
    %6812 = vmatpush1.msra.mxu0 %v6811
    %6813 = vmatprep.subr.mxu0 0.0
    %v6814 = vand.u32 %v6808, 4294901760
    %6815 = vmatpush1.msra.mxu0 %v6814
    %6816 = vmatprep.subr.mxu0 0.0
    %v6817 = vand.u32 %v6807, 4294901760
    %6818 = vmatpush1.msra.mxu0 %v6817
    %6819 = vmatprep.subr.mxu0 0.0
    %v6820 = vand.u32 %v6806, 4294901760
    %6821 = vmatpush1.msra.mxu0 %v6820
    %6822 = vmatprep.subr.mxu0 0.0
    %v6823 = vand.u32 %v6805, 4294901760
    %6824 = vmatpush1.msra.mxu0 %v6823
    %6825 = vmatprep.subr.mxu0 0.0
    %v6826 = vand.u32 %v6804, 4294901760
    %6827 = vmatpush1.msra.mxu0 %v6826
    %6828 = vmatprep.subr.mxu0 0.0
    %v6829 = vand.u32 %v6803, 4294901760
    %6830 = vmatpush1.msra.mxu0 %v6829
    %6831 = vmatprep.subr.mxu0 0.0
    %v6832 = vand.u32 %v6802, 4294901760
    %6833 = vmatpush1.msra.mxu0 %v6832
    %6834 = vmatprep.subr.mxu0 0.0
    %v6835 = vand.u32 %v6801, 4294901760
    %6836 = vmatpush1.msra.mxu0 %v6835
    %6837 = vmatprep.subr.mxu0 0.0
    %v6838 = vand.u32 %v6800, 4294901760
    %6839 = vmatpush1.msra.mxu0 %v6838
    %6840 = vmatprep.subr.mxu0 0.0
    %v6841 = vand.u32 %v6799, 4294901760
    %6842 = vmatpush1.msra.mxu0 %v6841
    %6843 = vmatprep.subr.mxu0 0.0
    %v6844 = vand.u32 %v6798, 4294901760
    %6845 = vmatpush1.msra.mxu0 %v6844
    %6846 = vmatprep.subr.mxu0 0.0
    %v6847 = vand.u32 %v6797, 4294901760
    %6848 = vmatpush1.msra.mxu0 %v6847
    %6849 = vmatprep.subr.mxu0 0.0
    %v6850 = vand.u32 %v6796, 4294901760
    %6851 = vmatpush1.msra.mxu0 %v6850
    %6852 = vmatprep.subr.mxu0 0.0
    %v6853 = vand.u32 %v6795, 4294901760
    %6854 = vmatpush1.msra.mxu0 %v6853
    %6855 = vmatprep.subr.mxu0 0.0
    %v6856 = vand.u32 %v6794, 4294901760
    %6857 = vmatpush1.msra.mxu0 %v6856
    %6858 = vmatprep.subr.mxu0 0.0
    %6859 = vmatpush2.msra.mxu0 0.0
    %6860 = vmatprep.subr.mxu0 0.0
    %6861 = vmatpush2.msra.mxu0 0.0
    %6862 = vmatprep.subr.mxu0 0.0
    %6863 = vmatpush2.msra.mxu0 0.0
    %6864 = vmatprep.subr.mxu0 0.0
    %6865 = vmatpush2.msra.mxu0 0.0
    %6866 = vmatprep.subr.mxu0 0.0
    %6867 = vmatpush2.msra.mxu0 0.0
    %6868 = vmatprep.subr.mxu0 0.0
    %6869 = vmatpush2.msra.mxu0 0.0
    %6870 = vmatprep.subr.mxu0 0.0
    %6871 = vmatpush2.msra.mxu0 0.0
    %6872 = vmatprep.subr.mxu0 0.0
    %6873 = vmatpush2.msra.mxu0 0.0
    %6874 = vmatprep.subr.mxu0 0.0
    %6875 = vmatpush2.msra.mxu0 0.0
    %6876 = vmatprep.subr.mxu0 0.0
    %6877 = vmatpush2.msra.mxu0 0.0
    %6878 = vmatprep.subr.mxu0 0.0
    %6879 = vmatpush2.msra.mxu0 0.0
    %6880 = vmatprep.subr.mxu0 0.0
    %6881 = vmatpush2.msra.mxu0 0.0
    %6882 = vmatprep.subr.mxu0 0.0
    %6883 = vmatpush2.msra.mxu0 0.0
    %6884 = vmatprep.subr.mxu0 0.0
    %6885 = vmatpush2.msra.mxu0 0.0
    %6886 = vmatprep.subr.mxu0 0.0
    %6887 = vmatpush2.msra.mxu0 0.0
    %6888 = vmatprep.subr.mxu0 0.0
    %6889 = vmatpush2.msra.mxu0 0.0
    %6890 = vmatprep.mubr.f32.mxu0 0.0
    %v6891 = vand.u32 %v6788, 4294901760
    %v6892 = vsub.f32 %v6788, %v6891
    %v6893 = vand.u32 %v6892, 4294901760
    %v6894 = vsub.f32 %v6892, %v6893
    %v6895 = vand.u32 %v6894, 4294901760
    %6896 = vmatmul.mubr.f32.gmra.mxu0 %v6895
    %v6897 = vpop.f32.mrf.mxu0
    %v6898 = vadd.f32 0.0, %v6897
    %v6899 = vpop.f32.mrf.mxu0
    %6900 = vdwg.mxu0
    %6901 = vmatprep.subr.mxu0 0.0
    %v6902 = vand.u32 %v6809, 4294901760
    %v6903 = vsub.f32 %v6809, %v6902
    %v6904 = vand.u32 %v6903, 4294901760
    %v6905 = vsub.f32 %v6903, %v6904
    %v6906 = vand.u32 %v6905, 4294901760
    %6907 = vmatpush1.msra.mxu0 %v6906
    %6908 = vmatprep.subr.mxu0 0.0
    %v6909 = vand.u32 %v6808, 4294901760
    %v6910 = vsub.f32 %v6808, %v6909
    %v6911 = vand.u32 %v6910, 4294901760
    %v6912 = vsub.f32 %v6910, %v6911
    %v6913 = vand.u32 %v6912, 4294901760
    %6914 = vmatpush1.msra.mxu0 %v6913
    %6915 = vmatprep.subr.mxu0 0.0
    %v6916 = vand.u32 %v6807, 4294901760
    %v6917 = vsub.f32 %v6807, %v6916
    %v6918 = vand.u32 %v6917, 4294901760
    %v6919 = vsub.f32 %v6917, %v6918
    %v6920 = vand.u32 %v6919, 4294901760
    %6921 = vmatpush1.msra.mxu0 %v6920
    %6922 = vmatprep.subr.mxu0 0.0
    %v6923 = vand.u32 %v6806, 4294901760
    %v6924 = vsub.f32 %v6806, %v6923
    %v6925 = vand.u32 %v6924, 4294901760
    %v6926 = vsub.f32 %v6924, %v6925
    %v6927 = vand.u32 %v6926, 4294901760
    %6928 = vmatpush1.msra.mxu0 %v6927
    %6929 = vmatprep.subr.mxu0 0.0
    %v6930 = vand.u32 %v6805, 4294901760
    %v6931 = vsub.f32 %v6805, %v6930
    %v6932 = vand.u32 %v6931, 4294901760
    %v6933 = vsub.f32 %v6931, %v6932
    %v6934 = vand.u32 %v6933, 4294901760
    %6935 = vmatpush1.msra.mxu0 %v6934
    %6936 = vmatprep.subr.mxu0 0.0
    %v6937 = vand.u32 %v6804, 4294901760
    %v6938 = vsub.f32 %v6804, %v6937
    %v6939 = vand.u32 %v6938, 4294901760
    %v6940 = vsub.f32 %v6938, %v6939
    %v6941 = vand.u32 %v6940, 4294901760
    %6942 = vmatpush1.msra.mxu0 %v6941
    %6943 = vmatprep.subr.mxu0 0.0
    %v6944 = vand.u32 %v6803, 4294901760
    %v6945 = vsub.f32 %v6803, %v6944
    %v6946 = vand.u32 %v6945, 4294901760
    %v6947 = vsub.f32 %v6945, %v6946
    %v6948 = vand.u32 %v6947, 4294901760
    %6949 = vmatpush1.msra.mxu0 %v6948
    %6950 = vmatprep.subr.mxu0 0.0
    %v6951 = vand.u32 %v6802, 4294901760
    %v6952 = vsub.f32 %v6802, %v6951
    %v6953 = vand.u32 %v6952, 4294901760
    %v6954 = vsub.f32 %v6952, %v6953
    %v6955 = vand.u32 %v6954, 4294901760
    %6956 = vmatpush1.msra.mxu0 %v6955
    %6957 = vmatprep.subr.mxu0 0.0
    %v6958 = vand.u32 %v6801, 4294901760
    %v6959 = vsub.f32 %v6801, %v6958
    %v6960 = vand.u32 %v6959, 4294901760
    %v6961 = vsub.f32 %v6959, %v6960
    %v6962 = vand.u32 %v6961, 4294901760
    %6963 = vmatpush1.msra.mxu0 %v6962
    %6964 = vmatprep.subr.mxu0 0.0
    %v6965 = vand.u32 %v6800, 4294901760
    %v6966 = vsub.f32 %v6800, %v6965
    %v6967 = vand.u32 %v6966, 4294901760
    %v6968 = vsub.f32 %v6966, %v6967
    %v6969 = vand.u32 %v6968, 4294901760
    %6970 = vmatpush1.msra.mxu0 %v6969
    %6971 = vmatprep.subr.mxu0 0.0
    %v6972 = vand.u32 %v6799, 4294901760
    %v6973 = vsub.f32 %v6799, %v6972
    %v6974 = vand.u32 %v6973, 4294901760
    %v6975 = vsub.f32 %v6973, %v6974
    %v6976 = vand.u32 %v6975, 4294901760
    %6977 = vmatpush1.msra.mxu0 %v6976
    %6978 = vmatprep.subr.mxu0 0.0
    %v6979 = vand.u32 %v6798, 4294901760
    %v6980 = vsub.f32 %v6798, %v6979
    %v6981 = vand.u32 %v6980, 4294901760
    %v6982 = vsub.f32 %v6980, %v6981
    %v6983 = vand.u32 %v6982, 4294901760
    %6984 = vmatpush1.msra.mxu0 %v6983
    %6985 = vmatprep.subr.mxu0 0.0
    %v6986 = vand.u32 %v6797, 4294901760
    %v6987 = vsub.f32 %v6797, %v6986
    %v6988 = vand.u32 %v6987, 4294901760
    %v6989 = vsub.f32 %v6987, %v6988
    %v6990 = vand.u32 %v6989, 4294901760
    %6991 = vmatpush1.msra.mxu0 %v6990
    %6992 = vmatprep.subr.mxu0 0.0
    %v6993 = vand.u32 %v6796, 4294901760
    %v6994 = vsub.f32 %v6796, %v6993
    %v6995 = vand.u32 %v6994, 4294901760
    %v6996 = vsub.f32 %v6994, %v6995
    %v6997 = vand.u32 %v6996, 4294901760
    %6998 = vmatpush1.msra.mxu0 %v6997
    %6999 = vmatprep.subr.mxu0 0.0
    %v7000 = vand.u32 %v6795, 4294901760
    %v7001 = vsub.f32 %v6795, %v7000
    %v7002 = vand.u32 %v7001, 4294901760
    %v7003 = vsub.f32 %v7001, %v7002
    %v7004 = vand.u32 %v7003, 4294901760
    %7005 = vmatpush1.msra.mxu0 %v7004
    %7006 = vmatprep.subr.mxu0 0.0
    %v7007 = vand.u32 %v6794, 4294901760
    %v7008 = vsub.f32 %v6794, %v7007
    %v7009 = vand.u32 %v7008, 4294901760
    %v7010 = vsub.f32 %v7008, %v7009
    %v7011 = vand.u32 %v7010, 4294901760
    %7012 = vmatpush1.msra.mxu0 %v7011
    %7013 = vmatprep.subr.mxu0 0.0
    %7014 = vmatpush2.msra.mxu0 0.0
    %7015 = vmatprep.subr.mxu0 0.0
    %7016 = vmatpush2.msra.mxu0 0.0
    %7017 = vmatprep.subr.mxu0 0.0
    %7018 = vmatpush2.msra.mxu0 0.0
    %7019 = vmatprep.subr.mxu0 0.0
    %7020 = vmatpush2.msra.mxu0 0.0
    %7021 = vmatprep.subr.mxu0 0.0
    %7022 = vmatpush2.msra.mxu0 0.0
    %7023 = vmatprep.subr.mxu0 0.0
    %7024 = vmatpush2.msra.mxu0 0.0
    %7025 = vmatprep.subr.mxu0 0.0
    %7026 = vmatpush2.msra.mxu0 0.0
    %7027 = vmatprep.subr.mxu0 0.0
    %7028 = vmatpush2.msra.mxu0 0.0
    %7029 = vmatprep.subr.mxu0 0.0
    %7030 = vmatpush2.msra.mxu0 0.0
    %7031 = vmatprep.subr.mxu0 0.0
    %7032 = vmatpush2.msra.mxu0 0.0
    %7033 = vmatprep.subr.mxu0 0.0
    %7034 = vmatpush2.msra.mxu0 0.0
    %7035 = vmatprep.subr.mxu0 0.0
    %7036 = vmatpush2.msra.mxu0 0.0
    %7037 = vmatprep.subr.mxu0 0.0
    %7038 = vmatpush2.msra.mxu0 0.0
    %7039 = vmatprep.subr.mxu0 0.0
    %7040 = vmatpush2.msra.mxu0 0.0
    %7041 = vmatprep.subr.mxu0 0.0
    %7042 = vmatpush2.msra.mxu0 0.0
    %7043 = vmatprep.subr.mxu0 0.0
    %7044 = vmatpush2.msra.mxu0 0.0
    %7045 = vmatprep.mubr.f32.mxu0 0.0
    %v7046 = vand.u32 %v6788, 4294901760
    %7047 = vmatmul.mubr.f32.gmra.mxu0 %v7046
    %v7048 = vpop.f32.mrf.mxu0
    %v7049 = vadd.f32 %v6898, %v7048
    %v7050 = vpop.f32.mrf.mxu0
    %7051 = vdwg.mxu0
    %7052 = vmatprep.subr.mxu0 0.0
    %v7053 = vand.u32 %v6809, 4294901760
    %v7054 = vsub.f32 %v6809, %v7053
    %7055 = vmatpush1.msra.mxu0 %v7054
    %7056 = vmatprep.subr.mxu0 0.0
    %v7057 = vand.u32 %v6808, 4294901760
    %v7058 = vsub.f32 %v6808, %v7057
    %7059 = vmatpush1.msra.mxu0 %v7058
    %7060 = vmatprep.subr.mxu0 0.0
    %v7061 = vand.u32 %v6807, 4294901760
    %v7062 = vsub.f32 %v6807, %v7061
    %7063 = vmatpush1.msra.mxu0 %v7062
    %7064 = vmatprep.subr.mxu0 0.0
    %v7065 = vand.u32 %v6806, 4294901760
    %v7066 = vsub.f32 %v6806, %v7065
    %7067 = vmatpush1.msra.mxu0 %v7066
    %7068 = vmatprep.subr.mxu0 0.0
    %v7069 = vand.u32 %v6805, 4294901760
    %v7070 = vsub.f32 %v6805, %v7069
    %7071 = vmatpush1.msra.mxu0 %v7070
    %7072 = vmatprep.subr.mxu0 0.0
    %v7073 = vand.u32 %v6804, 4294901760
    %v7074 = vsub.f32 %v6804, %v7073
    %7075 = vmatpush1.msra.mxu0 %v7074
    %7076 = vmatprep.subr.mxu0 0.0
    %v7077 = vand.u32 %v6803, 4294901760
    %v7078 = vsub.f32 %v6803, %v7077
    %7079 = vmatpush1.msra.mxu0 %v7078
    %7080 = vmatprep.subr.mxu0 0.0
    %v7081 = vand.u32 %v6802, 4294901760
    %v7082 = vsub.f32 %v6802, %v7081
    %7083 = vmatpush1.msra.mxu0 %v7082
    %7084 = vmatprep.subr.mxu0 0.0
    %v7085 = vand.u32 %v6801, 4294901760
    %v7086 = vsub.f32 %v6801, %v7085
    %7087 = vmatpush1.msra.mxu0 %v7086
    %7088 = vmatprep.subr.mxu0 0.0
    %v7089 = vand.u32 %v6800, 4294901760
    %v7090 = vsub.f32 %v6800, %v7089
    %7091 = vmatpush1.msra.mxu0 %v7090
    %7092 = vmatprep.subr.mxu0 0.0
    %v7093 = vand.u32 %v6799, 4294901760
    %v7094 = vsub.f32 %v6799, %v7093
    %7095 = vmatpush1.msra.mxu0 %v7094
    %7096 = vmatprep.subr.mxu0 0.0
    %v7097 = vand.u32 %v6798, 4294901760
    %v7098 = vsub.f32 %v6798, %v7097
    %7099 = vmatpush1.msra.mxu0 %v7098
    %7100 = vmatprep.subr.mxu0 0.0
    %v7101 = vand.u32 %v6797, 4294901760
    %v7102 = vsub.f32 %v6797, %v7101
    %7103 = vmatpush1.msra.mxu0 %v7102
    %7104 = vmatprep.subr.mxu0 0.0
    %v7105 = vand.u32 %v6796, 4294901760
    %v7106 = vsub.f32 %v6796, %v7105
    %7107 = vmatpush1.msra.mxu0 %v7106
    %7108 = vmatprep.subr.mxu0 0.0
    %v7109 = vand.u32 %v6795, 4294901760
    %v7110 = vsub.f32 %v6795, %v7109
    %7111 = vmatpush1.msra.mxu0 %v7110
    %7112 = vmatprep.subr.mxu0 0.0
    %v7113 = vand.u32 %v6794, 4294901760
    %v7114 = vsub.f32 %v6794, %v7113
    %7115 = vmatpush1.msra.mxu0 %v7114
    %7116 = vmatprep.subr.mxu0 0.0
    %7117 = vmatpush2.msra.mxu0 0.0
    %7118 = vmatprep.subr.mxu0 0.0
    %7119 = vmatpush2.msra.mxu0 0.0
    %7120 = vmatprep.subr.mxu0 0.0
    %7121 = vmatpush2.msra.mxu0 0.0
    %7122 = vmatprep.subr.mxu0 0.0
    %7123 = vmatpush2.msra.mxu0 0.0
    %7124 = vmatprep.subr.mxu0 0.0
    %7125 = vmatpush2.msra.mxu0 0.0
    %7126 = vmatprep.subr.mxu0 0.0
    %7127 = vmatpush2.msra.mxu0 0.0
    %7128 = vmatprep.subr.mxu0 0.0
    %7129 = vmatpush2.msra.mxu0 0.0
    %7130 = vmatprep.subr.mxu0 0.0
    %7131 = vmatpush2.msra.mxu0 0.0
    %7132 = vmatprep.subr.mxu0 0.0
    %7133 = vmatpush2.msra.mxu0 0.0
    %7134 = vmatprep.subr.mxu0 0.0
    %7135 = vmatpush2.msra.mxu0 0.0
    %7136 = vmatprep.subr.mxu0 0.0
    %7137 = vmatpush2.msra.mxu0 0.0
    %7138 = vmatprep.subr.mxu0 0.0
    %7139 = vmatpush2.msra.mxu0 0.0
    %7140 = vmatprep.subr.mxu0 0.0
    %7141 = vmatpush2.msra.mxu0 0.0
    %7142 = vmatprep.subr.mxu0 0.0
    %7143 = vmatpush2.msra.mxu0 0.0
    %7144 = vmatprep.subr.mxu0 0.0
    %7145 = vmatpush2.msra.mxu0 0.0
    %7146 = vmatprep.subr.mxu0 0.0
    %7147 = vmatpush2.msra.mxu0 0.0
    %7148 = vmatprep.mubr.f32.mxu0 0.0
    %v7149 = vand.u32 %v6788, 4294901760
    %v7150 = vsub.f32 %v6788, %v7149
    %7151 = vmatmul.mubr.f32.gmra.mxu0 %v7150
    %v7152 = vpop.f32.mrf.mxu0
    %v7153 = vadd.f32 %v7049, %v7152
    %v7154 = vpop.f32.mrf.mxu0
    %7155 = vdwg.mxu0
    %7156 = vmatprep.subr.mxu0 0.0
    %v7157 = vand.u32 %v6809, 4294901760
    %7158 = vmatpush1.msra.mxu0 %v7157
    %7159 = vmatprep.subr.mxu0 0.0
    %v7160 = vand.u32 %v6808, 4294901760
    %7161 = vmatpush1.msra.mxu0 %v7160
    %7162 = vmatprep.subr.mxu0 0.0
    %v7163 = vand.u32 %v6807, 4294901760
    %7164 = vmatpush1.msra.mxu0 %v7163
    %7165 = vmatprep.subr.mxu0 0.0
    %v7166 = vand.u32 %v6806, 4294901760
    %7167 = vmatpush1.msra.mxu0 %v7166
    %7168 = vmatprep.subr.mxu0 0.0
    %v7169 = vand.u32 %v6805, 4294901760
    %7170 = vmatpush1.msra.mxu0 %v7169
    %7171 = vmatprep.subr.mxu0 0.0
    %v7172 = vand.u32 %v6804, 4294901760
    %7173 = vmatpush1.msra.mxu0 %v7172
    %7174 = vmatprep.subr.mxu0 0.0
    %v7175 = vand.u32 %v6803, 4294901760
    %7176 = vmatpush1.msra.mxu0 %v7175
    %7177 = vmatprep.subr.mxu0 0.0
    %v7178 = vand.u32 %v6802, 4294901760
    %7179 = vmatpush1.msra.mxu0 %v7178
    %7180 = vmatprep.subr.mxu0 0.0
    %v7181 = vand.u32 %v6801, 4294901760
    %7182 = vmatpush1.msra.mxu0 %v7181
    %7183 = vmatprep.subr.mxu0 0.0
    %v7184 = vand.u32 %v6800, 4294901760
    %7185 = vmatpush1.msra.mxu0 %v7184
    %7186 = vmatprep.subr.mxu0 0.0
    %v7187 = vand.u32 %v6799, 4294901760
    %7188 = vmatpush1.msra.mxu0 %v7187
    %7189 = vmatprep.subr.mxu0 0.0
    %v7190 = vand.u32 %v6798, 4294901760
    %7191 = vmatpush1.msra.mxu0 %v7190
    %7192 = vmatprep.subr.mxu0 0.0
    %v7193 = vand.u32 %v6797, 4294901760
    %7194 = vmatpush1.msra.mxu0 %v7193
    %7195 = vmatprep.subr.mxu0 0.0
    %v7196 = vand.u32 %v6796, 4294901760
    %7197 = vmatpush1.msra.mxu0 %v7196
    %7198 = vmatprep.subr.mxu0 0.0
    %v7199 = vand.u32 %v6795, 4294901760
    %7200 = vmatpush1.msra.mxu0 %v7199
    %7201 = vmatprep.subr.mxu0 0.0
    %v7202 = vand.u32 %v6794, 4294901760
    %7203 = vmatpush1.msra.mxu0 %v7202
    %7204 = vmatprep.subr.mxu0 0.0
    %7205 = vmatpush2.msra.mxu0 0.0
    %7206 = vmatprep.subr.mxu0 0.0
    %7207 = vmatpush2.msra.mxu0 0.0
    %7208 = vmatprep.subr.mxu0 0.0
    %7209 = vmatpush2.msra.mxu0 0.0
    %7210 = vmatprep.subr.mxu0 0.0
    %7211 = vmatpush2.msra.mxu0 0.0
    %7212 = vmatprep.subr.mxu0 0.0
    %7213 = vmatpush2.msra.mxu0 0.0
    %7214 = vmatprep.subr.mxu0 0.0
    %7215 = vmatpush2.msra.mxu0 0.0
    %7216 = vmatprep.subr.mxu0 0.0
    %7217 = vmatpush2.msra.mxu0 0.0
    %7218 = vmatprep.subr.mxu0 0.0
    %7219 = vmatpush2.msra.mxu0 0.0
    %7220 = vmatprep.subr.mxu0 0.0
    %7221 = vmatpush2.msra.mxu0 0.0
    %7222 = vmatprep.subr.mxu0 0.0
    %7223 = vmatpush2.msra.mxu0 0.0
    %7224 = vmatprep.subr.mxu0 0.0
    %7225 = vmatpush2.msra.mxu0 0.0
    %7226 = vmatprep.subr.mxu0 0.0
    %7227 = vmatpush2.msra.mxu0 0.0
    %7228 = vmatprep.subr.mxu0 0.0
    %7229 = vmatpush2.msra.mxu0 0.0
    %7230 = vmatprep.subr.mxu0 0.0
    %7231 = vmatpush2.msra.mxu0 0.0
    %7232 = vmatprep.subr.mxu0 0.0
    %7233 = vmatpush2.msra.mxu0 0.0
    %7234 = vmatprep.subr.mxu0 0.0
    %7235 = vmatpush2.msra.mxu0 0.0
    %7236 = vmatprep.mubr.f32.mxu0 0.0
    %v7237 = vand.u32 %v6788, 4294901760
    %v7238 = vsub.f32 %v6788, %v7237
    %v7239 = vand.u32 %v7238, 4294901760
    %7240 = vmatmul.mubr.f32.gmra.mxu0 %v7239
    %v7241 = vpop.f32.mrf.mxu0
    %v7242 = vadd.f32 %v7153, %v7241
    %v7243 = vpop.f32.mrf.mxu0
    %7244 = vdwg.mxu0
    %7245 = vmatprep.subr.mxu0 0.0
    %v7246 = vand.u32 %v6809, 4294901760
    %v7247 = vsub.f32 %v6809, %v7246
    %v7248 = vand.u32 %v7247, 4294901760
    %7249 = vmatpush1.msra.mxu0 %v7248
    %7250 = vmatprep.subr.mxu0 0.0
    %v7251 = vand.u32 %v6808, 4294901760
    %v7252 = vsub.f32 %v6808, %v7251
    %v7253 = vand.u32 %v7252, 4294901760
    %7254 = vmatpush1.msra.mxu0 %v7253
    %7255 = vmatprep.subr.mxu0 0.0
    %v7256 = vand.u32 %v6807, 4294901760
    %v7257 = vsub.f32 %v6807, %v7256
    %v7258 = vand.u32 %v7257, 4294901760
    %7259 = vmatpush1.msra.mxu0 %v7258
    %7260 = vmatprep.subr.mxu0 0.0
    %v7261 = vand.u32 %v6806, 4294901760
    %v7262 = vsub.f32 %v6806, %v7261
    %v7263 = vand.u32 %v7262, 4294901760
    %7264 = vmatpush1.msra.mxu0 %v7263
    %7265 = vmatprep.subr.mxu0 0.0
    %v7266 = vand.u32 %v6805, 4294901760
    %v7267 = vsub.f32 %v6805, %v7266
    %v7268 = vand.u32 %v7267, 4294901760
    %7269 = vmatpush1.msra.mxu0 %v7268
    %7270 = vmatprep.subr.mxu0 0.0
    %v7271 = vand.u32 %v6804, 4294901760
    %v7272 = vsub.f32 %v6804, %v7271
    %v7273 = vand.u32 %v7272, 4294901760
    %7274 = vmatpush1.msra.mxu0 %v7273
    %7275 = vmatprep.subr.mxu0 0.0
    %v7276 = vand.u32 %v6803, 4294901760
    %v7277 = vsub.f32 %v6803, %v7276
    %v7278 = vand.u32 %v7277, 4294901760
    %7279 = vmatpush1.msra.mxu0 %v7278
    %7280 = vmatprep.subr.mxu0 0.0
    %v7281 = vand.u32 %v6802, 4294901760
    %v7282 = vsub.f32 %v6802, %v7281
    %v7283 = vand.u32 %v7282, 4294901760
    %7284 = vmatpush1.msra.mxu0 %v7283
    %7285 = vmatprep.subr.mxu0 0.0
    %v7286 = vand.u32 %v6801, 4294901760
    %v7287 = vsub.f32 %v6801, %v7286
    %v7288 = vand.u32 %v7287, 4294901760
    %7289 = vmatpush1.msra.mxu0 %v7288
    %7290 = vmatprep.subr.mxu0 0.0
    %v7291 = vand.u32 %v6800, 4294901760
    %v7292 = vsub.f32 %v6800, %v7291
    %v7293 = vand.u32 %v7292, 4294901760
    %7294 = vmatpush1.msra.mxu0 %v7293
    %7295 = vmatprep.subr.mxu0 0.0
    %v7296 = vand.u32 %v6799, 4294901760
    %v7297 = vsub.f32 %v6799, %v7296
    %v7298 = vand.u32 %v7297, 4294901760
    %7299 = vmatpush1.msra.mxu0 %v7298
    %7300 = vmatprep.subr.mxu0 0.0
    %v7301 = vand.u32 %v6798, 4294901760
    %v7302 = vsub.f32 %v6798, %v7301
    %v7303 = vand.u32 %v7302, 4294901760
    %7304 = vmatpush1.msra.mxu0 %v7303
    %7305 = vmatprep.subr.mxu0 0.0
    %v7306 = vand.u32 %v6797, 4294901760
    %v7307 = vsub.f32 %v6797, %v7306
    %v7308 = vand.u32 %v7307, 4294901760
    %7309 = vmatpush1.msra.mxu0 %v7308
    %7310 = vmatprep.subr.mxu0 0.0
    %v7311 = vand.u32 %v6796, 4294901760
    %v7312 = vsub.f32 %v6796, %v7311
    %v7313 = vand.u32 %v7312, 4294901760
    %7314 = vmatpush1.msra.mxu0 %v7313
    %7315 = vmatprep.subr.mxu0 0.0
    %v7316 = vand.u32 %v6795, 4294901760
    %v7317 = vsub.f32 %v6795, %v7316
    %v7318 = vand.u32 %v7317, 4294901760
    %7319 = vmatpush1.msra.mxu0 %v7318
    %7320 = vmatprep.subr.mxu0 0.0
    %v7321 = vand.u32 %v6794, 4294901760
    %v7322 = vsub.f32 %v6794, %v7321
    %v7323 = vand.u32 %v7322, 4294901760
    %7324 = vmatpush1.msra.mxu0 %v7323
    %7325 = vmatprep.subr.mxu0 0.0
    %7326 = vmatpush2.msra.mxu0 0.0
    %7327 = vmatprep.subr.mxu0 0.0
    %7328 = vmatpush2.msra.mxu0 0.0
    %7329 = vmatprep.subr.mxu0 0.0
    %7330 = vmatpush2.msra.mxu0 0.0
    %7331 = vmatprep.subr.mxu0 0.0
    %7332 = vmatpush2.msra.mxu0 0.0
    %7333 = vmatprep.subr.mxu0 0.0
    %7334 = vmatpush2.msra.mxu0 0.0
    %7335 = vmatprep.subr.mxu0 0.0
    %7336 = vmatpush2.msra.mxu0 0.0
    %7337 = vmatprep.subr.mxu0 0.0
    %7338 = vmatpush2.msra.mxu0 0.0
    %7339 = vmatprep.subr.mxu0 0.0
    %7340 = vmatpush2.msra.mxu0 0.0
    %7341 = vmatprep.subr.mxu0 0.0
    %7342 = vmatpush2.msra.mxu0 0.0
    %7343 = vmatprep.subr.mxu0 0.0
    %7344 = vmatpush2.msra.mxu0 0.0
    %7345 = vmatprep.subr.mxu0 0.0
    %7346 = vmatpush2.msra.mxu0 0.0
    %7347 = vmatprep.subr.mxu0 0.0
    %7348 = vmatpush2.msra.mxu0 0.0
    %7349 = vmatprep.subr.mxu0 0.0
    %7350 = vmatpush2.msra.mxu0 0.0
    %7351 = vmatprep.subr.mxu0 0.0
    %7352 = vmatpush2.msra.mxu0 0.0
    %7353 = vmatprep.subr.mxu0 0.0
    %7354 = vmatpush2.msra.mxu0 0.0
    %7355 = vmatprep.subr.mxu0 0.0
    %7356 = vmatpush2.msra.mxu0 0.0
    %7357 = vmatprep.mubr.f32.mxu0 0.0
    %v7358 = vand.u32 %v6788, 4294901760
    %7359 = vmatmul.mubr.f32.gmra.mxu0 %v7358
    %v7360 = vpop.f32.mrf.mxu0
    %v7361 = vadd.f32 %v7242, %v7360
    %v7362 = vpop.f32.mrf.mxu0
    %7363 = vdwg.mxu0
    %7364 = vmatprep.subr.mxu0 0.0
    %v7365 = vand.u32 %v6809, 4294901760
    %7366 = vmatpush1.msra.mxu0 %v7365
    %7367 = vmatprep.subr.mxu0 0.0
    %v7368 = vand.u32 %v6808, 4294901760
    %7369 = vmatpush1.msra.mxu0 %v7368
    %7370 = vmatprep.subr.mxu0 0.0
    %v7371 = vand.u32 %v6807, 4294901760
    %7372 = vmatpush1.msra.mxu0 %v7371
    %7373 = vmatprep.subr.mxu0 0.0
    %v7374 = vand.u32 %v6806, 4294901760
    %7375 = vmatpush1.msra.mxu0 %v7374
    %7376 = vmatprep.subr.mxu0 0.0
    %v7377 = vand.u32 %v6805, 4294901760
    %7378 = vmatpush1.msra.mxu0 %v7377
    %7379 = vmatprep.subr.mxu0 0.0
    %v7380 = vand.u32 %v6804, 4294901760
    %7381 = vmatpush1.msra.mxu0 %v7380
    %7382 = vmatprep.subr.mxu0 0.0
    %v7383 = vand.u32 %v6803, 4294901760
    %7384 = vmatpush1.msra.mxu0 %v7383
    %7385 = vmatprep.subr.mxu0 0.0
    %v7386 = vand.u32 %v6802, 4294901760
    %7387 = vmatpush1.msra.mxu0 %v7386
    %7388 = vmatprep.subr.mxu0 0.0
    %v7389 = vand.u32 %v6801, 4294901760
    %7390 = vmatpush1.msra.mxu0 %v7389
    %7391 = vmatprep.subr.mxu0 0.0
    %v7392 = vand.u32 %v6800, 4294901760
    %7393 = vmatpush1.msra.mxu0 %v7392
    %7394 = vmatprep.subr.mxu0 0.0
    %v7395 = vand.u32 %v6799, 4294901760
    %7396 = vmatpush1.msra.mxu0 %v7395
    %7397 = vmatprep.subr.mxu0 0.0
    %v7398 = vand.u32 %v6798, 4294901760
    %7399 = vmatpush1.msra.mxu0 %v7398
    %7400 = vmatprep.subr.mxu0 0.0
    %v7401 = vand.u32 %v6797, 4294901760
    %7402 = vmatpush1.msra.mxu0 %v7401
    %7403 = vmatprep.subr.mxu0 0.0
    %v7404 = vand.u32 %v6796, 4294901760
    %7405 = vmatpush1.msra.mxu0 %v7404
    %7406 = vmatprep.subr.mxu0 0.0
    %v7407 = vand.u32 %v6795, 4294901760
    %7408 = vmatpush1.msra.mxu0 %v7407
    %7409 = vmatprep.subr.mxu0 0.0
    %v7410 = vand.u32 %v6794, 4294901760
    %7411 = vmatpush1.msra.mxu0 %v7410
    %7412 = vmatprep.subr.mxu0 0.0
    %7413 = vmatpush2.msra.mxu0 0.0
    %7414 = vmatprep.subr.mxu0 0.0
    %7415 = vmatpush2.msra.mxu0 0.0
    %7416 = vmatprep.subr.mxu0 0.0
    %7417 = vmatpush2.msra.mxu0 0.0
    %7418 = vmatprep.subr.mxu0 0.0
    %7419 = vmatpush2.msra.mxu0 0.0
    %7420 = vmatprep.subr.mxu0 0.0
    %7421 = vmatpush2.msra.mxu0 0.0
    %7422 = vmatprep.subr.mxu0 0.0
    %7423 = vmatpush2.msra.mxu0 0.0
    %7424 = vmatprep.subr.mxu0 0.0
    %7425 = vmatpush2.msra.mxu0 0.0
    %7426 = vmatprep.subr.mxu0 0.0
    %7427 = vmatpush2.msra.mxu0 0.0
    %7428 = vmatprep.subr.mxu0 0.0
    %7429 = vmatpush2.msra.mxu0 0.0
    %7430 = vmatprep.subr.mxu0 0.0
    %7431 = vmatpush2.msra.mxu0 0.0
    %7432 = vmatprep.subr.mxu0 0.0
    %7433 = vmatpush2.msra.mxu0 0.0
    %7434 = vmatprep.subr.mxu0 0.0
    %7435 = vmatpush2.msra.mxu0 0.0
    %7436 = vmatprep.subr.mxu0 0.0
    %7437 = vmatpush2.msra.mxu0 0.0
    %7438 = vmatprep.subr.mxu0 0.0
    %7439 = vmatpush2.msra.mxu0 0.0
    %7440 = vmatprep.subr.mxu0 0.0
    %7441 = vmatpush2.msra.mxu0 0.0
    %7442 = vmatprep.subr.mxu0 0.0
    %7443 = vmatpush2.msra.mxu0 0.0
    %7444 = vmatprep.mubr.f32.mxu0 0.0
    %v7445 = vand.u32 %v6788, 4294901760
    %7446 = vmatmul.mubr.f32.gmra.mxu0 %v7445
    %v7447 = vpop.f32.mrf.mxu0
    %v7448 = vadd.f32 %v7361, %v7447
    %v7449 = vpop.f32.mrf.mxu0
    %7450 = vdwg.mxu0
    %7451 = vmatprep.subr.mxu0 0.0
    %v7452 = vand.u32 %v6809, 4294901760
    %7453 = vmatpush1.msra.mxu0 %v7452
    %7454 = vmatprep.subr.mxu0 0.0
    %v7455 = vand.u32 %v6808, 4294901760
    %7456 = vmatpush1.msra.mxu0 %v7455
    %7457 = vmatprep.subr.mxu0 0.0
    %v7458 = vand.u32 %v6807, 4294901760
    %7459 = vmatpush1.msra.mxu0 %v7458
    %7460 = vmatprep.subr.mxu0 0.0
    %v7461 = vand.u32 %v6806, 4294901760
    %7462 = vmatpush1.msra.mxu0 %v7461
    %7463 = vmatprep.subr.mxu0 0.0
    %v7464 = vand.u32 %v6805, 4294901760
    %7465 = vmatpush1.msra.mxu0 %v7464
    %7466 = vmatprep.subr.mxu0 0.0
    %v7467 = vand.u32 %v6804, 4294901760
    %7468 = vmatpush1.msra.mxu0 %v7467
    %7469 = vmatprep.subr.mxu0 0.0
    %v7470 = vand.u32 %v6803, 4294901760
    %7471 = vmatpush1.msra.mxu0 %v7470
    %7472 = vmatprep.subr.mxu0 0.0
    %v7473 = vand.u32 %v6802, 4294901760
    %7474 = vmatpush1.msra.mxu0 %v7473
    %7475 = vmatprep.subr.mxu0 0.0
    %v7476 = vand.u32 %v6801, 4294901760
    %7477 = vmatpush1.msra.mxu0 %v7476
    %7478 = vmatprep.subr.mxu0 0.0
    %v7479 = vand.u32 %v6800, 4294901760
    %7480 = vmatpush1.msra.mxu0 %v7479
    %7481 = vmatprep.subr.mxu0 0.0
    %v7482 = vand.u32 %v6799, 4294901760
    %7483 = vmatpush1.msra.mxu0 %v7482
    %7484 = vmatprep.subr.mxu0 0.0
    %v7485 = vand.u32 %v6798, 4294901760
    %7486 = vmatpush1.msra.mxu0 %v7485
    %7487 = vmatprep.subr.mxu0 0.0
    %v7488 = vand.u32 %v6797, 4294901760
    %7489 = vmatpush1.msra.mxu0 %v7488
    %7490 = vmatprep.subr.mxu0 0.0
    %v7491 = vand.u32 %v6796, 4294901760
    %7492 = vmatpush1.msra.mxu0 %v7491
    %7493 = vmatprep.subr.mxu0 0.0
    %v7494 = vand.u32 %v6795, 4294901760
    %7495 = vmatpush1.msra.mxu0 %v7494
    %7496 = vmatprep.subr.mxu0 0.0
    %v7497 = vand.u32 %v6794, 4294901760
    %7498 = vmatpush1.msra.mxu0 %v7497
    %7499 = vmatprep.subr.mxu0 0.0
    %7500 = vmatpush2.msra.mxu0 0.0
    %7501 = vmatprep.subr.mxu0 0.0
    %7502 = vmatpush2.msra.mxu0 0.0
    %7503 = vmatprep.subr.mxu0 0.0
    %7504 = vmatpush2.msra.mxu0 0.0
    %7505 = vmatprep.subr.mxu0 0.0
    %7506 = vmatpush2.msra.mxu0 0.0
    %7507 = vmatprep.subr.mxu0 0.0
    %7508 = vmatpush2.msra.mxu0 0.0
    %7509 = vmatprep.subr.mxu0 0.0
    %7510 = vmatpush2.msra.mxu0 0.0
    %7511 = vmatprep.subr.mxu0 0.0
    %7512 = vmatpush2.msra.mxu0 0.0
    %7513 = vmatprep.subr.mxu0 0.0
    %7514 = vmatpush2.msra.mxu0 0.0
    %7515 = vmatprep.subr.mxu0 0.0
    %7516 = vmatpush2.msra.mxu0 0.0
    %7517 = vmatprep.subr.mxu0 0.0
    %7518 = vmatpush2.msra.mxu0 0.0
    %7519 = vmatprep.subr.mxu0 0.0
    %7520 = vmatpush2.msra.mxu0 0.0
    %7521 = vmatprep.subr.mxu0 0.0
    %7522 = vmatpush2.msra.mxu0 0.0
    %7523 = vmatprep.subr.mxu0 0.0
    %7524 = vmatpush2.msra.mxu0 0.0
    %7525 = vmatprep.subr.mxu0 0.0
    %7526 = vmatpush2.msra.mxu0 0.0
    %7527 = vmatprep.subr.mxu0 0.0
    %7528 = vmatpush2.msra.mxu0 0.0
    %7529 = vmatprep.subr.mxu0 0.0
    %7530 = vmatpush2.msra.mxu0 0.0
    %7531 = vmatprep.mubr.f32.mxu0 0.0
    %v7532 = vand.u32 %v6793, 4294901760
    %v7533 = vsub.f32 %v6793, %v7532
    %v7534 = vand.u32 %v7533, 4294901760
    %v7535 = vsub.f32 %v7533, %v7534
    %v7536 = vand.u32 %v7535, 4294901760
    %7537 = vmatmul.mubr.f32.gmra.mxu0 %v7536
    %v7538 = vpop.f32.mrf.mxu0
    %v7539 = vadd.f32 0.0, %v7538
    %v7540 = vpop.f32.mrf.mxu0
    %7541 = vdwg.mxu0
    %7542 = vmatprep.subr.mxu0 0.0
    %v7543 = vand.u32 %v6809, 4294901760
    %v7544 = vsub.f32 %v6809, %v7543
    %v7545 = vand.u32 %v7544, 4294901760
    %v7546 = vsub.f32 %v7544, %v7545
    %v7547 = vand.u32 %v7546, 4294901760
    %7548 = vmatpush1.msra.mxu0 %v7547
    %7549 = vmatprep.subr.mxu0 0.0
    %v7550 = vand.u32 %v6808, 4294901760
    %v7551 = vsub.f32 %v6808, %v7550
    %v7552 = vand.u32 %v7551, 4294901760
    %v7553 = vsub.f32 %v7551, %v7552
    %v7554 = vand.u32 %v7553, 4294901760
    %7555 = vmatpush1.msra.mxu0 %v7554
    %7556 = vmatprep.subr.mxu0 0.0
    %v7557 = vand.u32 %v6807, 4294901760
    %v7558 = vsub.f32 %v6807, %v7557
    %v7559 = vand.u32 %v7558, 4294901760
    %v7560 = vsub.f32 %v7558, %v7559
    %v7561 = vand.u32 %v7560, 4294901760
    %7562 = vmatpush1.msra.mxu0 %v7561
    %7563 = vmatprep.subr.mxu0 0.0
    %v7564 = vand.u32 %v6806, 4294901760
    %v7565 = vsub.f32 %v6806, %v7564
    %v7566 = vand.u32 %v7565, 4294901760
    %v7567 = vsub.f32 %v7565, %v7566
    %v7568 = vand.u32 %v7567, 4294901760
    %7569 = vmatpush1.msra.mxu0 %v7568
    %7570 = vmatprep.subr.mxu0 0.0
    %v7571 = vand.u32 %v6805, 4294901760
    %v7572 = vsub.f32 %v6805, %v7571
    %v7573 = vand.u32 %v7572, 4294901760
    %v7574 = vsub.f32 %v7572, %v7573
    %v7575 = vand.u32 %v7574, 4294901760
    %7576 = vmatpush1.msra.mxu0 %v7575
    %7577 = vmatprep.subr.mxu0 0.0
    %v7578 = vand.u32 %v6804, 4294901760
    %v7579 = vsub.f32 %v6804, %v7578
    %v7580 = vand.u32 %v7579, 4294901760
    %v7581 = vsub.f32 %v7579, %v7580
    %v7582 = vand.u32 %v7581, 4294901760
    %7583 = vmatpush1.msra.mxu0 %v7582
    %7584 = vmatprep.subr.mxu0 0.0
    %v7585 = vand.u32 %v6803, 4294901760
    %v7586 = vsub.f32 %v6803, %v7585
    %v7587 = vand.u32 %v7586, 4294901760
    %v7588 = vsub.f32 %v7586, %v7587
    %v7589 = vand.u32 %v7588, 4294901760
    %7590 = vmatpush1.msra.mxu0 %v7589
    %7591 = vmatprep.subr.mxu0 0.0
    %v7592 = vand.u32 %v6802, 4294901760
    %v7593 = vsub.f32 %v6802, %v7592
    %v7594 = vand.u32 %v7593, 4294901760
    %v7595 = vsub.f32 %v7593, %v7594
    %v7596 = vand.u32 %v7595, 4294901760
    %7597 = vmatpush1.msra.mxu0 %v7596
    %7598 = vmatprep.subr.mxu0 0.0
    %v7599 = vand.u32 %v6801, 4294901760
    %v7600 = vsub.f32 %v6801, %v7599
    %v7601 = vand.u32 %v7600, 4294901760
    %v7602 = vsub.f32 %v7600, %v7601
    %v7603 = vand.u32 %v7602, 4294901760
    %7604 = vmatpush1.msra.mxu0 %v7603
    %7605 = vmatprep.subr.mxu0 0.0
    %v7606 = vand.u32 %v6800, 4294901760
    %v7607 = vsub.f32 %v6800, %v7606
    %v7608 = vand.u32 %v7607, 4294901760
    %v7609 = vsub.f32 %v7607, %v7608
    %v7610 = vand.u32 %v7609, 4294901760
    %7611 = vmatpush1.msra.mxu0 %v7610
    %7612 = vmatprep.subr.mxu0 0.0
    %v7613 = vand.u32 %v6799, 4294901760
    %v7614 = vsub.f32 %v6799, %v7613
    %v7615 = vand.u32 %v7614, 4294901760
    %v7616 = vsub.f32 %v7614, %v7615
    %v7617 = vand.u32 %v7616, 4294901760
    %7618 = vmatpush1.msra.mxu0 %v7617
    %7619 = vmatprep.subr.mxu0 0.0
    %v7620 = vand.u32 %v6798, 4294901760
    %v7621 = vsub.f32 %v6798, %v7620
    %v7622 = vand.u32 %v7621, 4294901760
    %v7623 = vsub.f32 %v7621, %v7622
    %v7624 = vand.u32 %v7623, 4294901760
    %7625 = vmatpush1.msra.mxu0 %v7624
    %7626 = vmatprep.subr.mxu0 0.0
    %v7627 = vand.u32 %v6797, 4294901760
    %v7628 = vsub.f32 %v6797, %v7627
    %v7629 = vand.u32 %v7628, 4294901760
    %v7630 = vsub.f32 %v7628, %v7629
    %v7631 = vand.u32 %v7630, 4294901760
    %7632 = vmatpush1.msra.mxu0 %v7631
    %7633 = vmatprep.subr.mxu0 0.0
    %v7634 = vand.u32 %v6796, 4294901760
    %v7635 = vsub.f32 %v6796, %v7634
    %v7636 = vand.u32 %v7635, 4294901760
    %v7637 = vsub.f32 %v7635, %v7636
    %v7638 = vand.u32 %v7637, 4294901760
    %7639 = vmatpush1.msra.mxu0 %v7638
    %7640 = vmatprep.subr.mxu0 0.0
    %v7641 = vand.u32 %v6795, 4294901760
    %v7642 = vsub.f32 %v6795, %v7641
    %v7643 = vand.u32 %v7642, 4294901760
    %v7644 = vsub.f32 %v7642, %v7643
    %v7645 = vand.u32 %v7644, 4294901760
    %7646 = vmatpush1.msra.mxu0 %v7645
    %7647 = vmatprep.subr.mxu0 0.0
    %v7648 = vand.u32 %v6794, 4294901760
    %v7649 = vsub.f32 %v6794, %v7648
    %v7650 = vand.u32 %v7649, 4294901760
    %v7651 = vsub.f32 %v7649, %v7650
    %v7652 = vand.u32 %v7651, 4294901760
    %7653 = vmatpush1.msra.mxu0 %v7652
    %7654 = vmatprep.subr.mxu0 0.0
    %7655 = vmatpush2.msra.mxu0 0.0
    %7656 = vmatprep.subr.mxu0 0.0
    %7657 = vmatpush2.msra.mxu0 0.0
    %7658 = vmatprep.subr.mxu0 0.0
    %7659 = vmatpush2.msra.mxu0 0.0
    %7660 = vmatprep.subr.mxu0 0.0
    %7661 = vmatpush2.msra.mxu0 0.0
    %7662 = vmatprep.subr.mxu0 0.0
    %7663 = vmatpush2.msra.mxu0 0.0
    %7664 = vmatprep.subr.mxu0 0.0
    %7665 = vmatpush2.msra.mxu0 0.0
    %7666 = vmatprep.subr.mxu0 0.0
    %7667 = vmatpush2.msra.mxu0 0.0
    %7668 = vmatprep.subr.mxu0 0.0
    %7669 = vmatpush2.msra.mxu0 0.0
    %7670 = vmatprep.subr.mxu0 0.0
    %7671 = vmatpush2.msra.mxu0 0.0
    %7672 = vmatprep.subr.mxu0 0.0
    %7673 = vmatpush2.msra.mxu0 0.0
    %7674 = vmatprep.subr.mxu0 0.0
    %7675 = vmatpush2.msra.mxu0 0.0
    %7676 = vmatprep.subr.mxu0 0.0
    %7677 = vmatpush2.msra.mxu0 0.0
    %7678 = vmatprep.subr.mxu0 0.0
    %7679 = vmatpush2.msra.mxu0 0.0
    %7680 = vmatprep.subr.mxu0 0.0
    %7681 = vmatpush2.msra.mxu0 0.0
    %7682 = vmatprep.subr.mxu0 0.0
    %7683 = vmatpush2.msra.mxu0 0.0
    %7684 = vmatprep.subr.mxu0 0.0
    %7685 = vmatpush2.msra.mxu0 0.0
    %7686 = vmatprep.mubr.f32.mxu0 0.0
    %v7687 = vand.u32 %v6793, 4294901760
    %7688 = vmatmul.mubr.f32.gmra.mxu0 %v7687
    %v7689 = vpop.f32.mrf.mxu0
    %v7690 = vadd.f32 %v7539, %v7689
    %v7691 = vpop.f32.mrf.mxu0
    %7692 = vdwg.mxu0
    %7693 = vmatprep.subr.mxu0 0.0
    %v7694 = vand.u32 %v6809, 4294901760
    %v7695 = vsub.f32 %v6809, %v7694
    %7696 = vmatpush1.msra.mxu0 %v7695
    %7697 = vmatprep.subr.mxu0 0.0
    %v7698 = vand.u32 %v6808, 4294901760
    %v7699 = vsub.f32 %v6808, %v7698
    %7700 = vmatpush1.msra.mxu0 %v7699
    %7701 = vmatprep.subr.mxu0 0.0
    %v7702 = vand.u32 %v6807, 4294901760
    %v7703 = vsub.f32 %v6807, %v7702
    %7704 = vmatpush1.msra.mxu0 %v7703
    %7705 = vmatprep.subr.mxu0 0.0
    %v7706 = vand.u32 %v6806, 4294901760
    %v7707 = vsub.f32 %v6806, %v7706
    %7708 = vmatpush1.msra.mxu0 %v7707
    %7709 = vmatprep.subr.mxu0 0.0
    %v7710 = vand.u32 %v6805, 4294901760
    %v7711 = vsub.f32 %v6805, %v7710
    %7712 = vmatpush1.msra.mxu0 %v7711
    %7713 = vmatprep.subr.mxu0 0.0
    %v7714 = vand.u32 %v6804, 4294901760
    %v7715 = vsub.f32 %v6804, %v7714
    %7716 = vmatpush1.msra.mxu0 %v7715
    %7717 = vmatprep.subr.mxu0 0.0
    %v7718 = vand.u32 %v6803, 4294901760
    %v7719 = vsub.f32 %v6803, %v7718
    %7720 = vmatpush1.msra.mxu0 %v7719
    %7721 = vmatprep.subr.mxu0 0.0
    %v7722 = vand.u32 %v6802, 4294901760
    %v7723 = vsub.f32 %v6802, %v7722
    %7724 = vmatpush1.msra.mxu0 %v7723
    %7725 = vmatprep.subr.mxu0 0.0
    %v7726 = vand.u32 %v6801, 4294901760
    %v7727 = vsub.f32 %v6801, %v7726
    %7728 = vmatpush1.msra.mxu0 %v7727
    %7729 = vmatprep.subr.mxu0 0.0
    %v7730 = vand.u32 %v6800, 4294901760
    %v7731 = vsub.f32 %v6800, %v7730
    %7732 = vmatpush1.msra.mxu0 %v7731
    %7733 = vmatprep.subr.mxu0 0.0
    %v7734 = vand.u32 %v6799, 4294901760
    %v7735 = vsub.f32 %v6799, %v7734
    %7736 = vmatpush1.msra.mxu0 %v7735
    %7737 = vmatprep.subr.mxu0 0.0
    %v7738 = vand.u32 %v6798, 4294901760
    %v7739 = vsub.f32 %v6798, %v7738
    %7740 = vmatpush1.msra.mxu0 %v7739
    %7741 = vmatprep.subr.mxu0 0.0
    %v7742 = vand.u32 %v6797, 4294901760
    %v7743 = vsub.f32 %v6797, %v7742
    %7744 = vmatpush1.msra.mxu0 %v7743
    %7745 = vmatprep.subr.mxu0 0.0
    %v7746 = vand.u32 %v6796, 4294901760
    %v7747 = vsub.f32 %v6796, %v7746
    %7748 = vmatpush1.msra.mxu0 %v7747
    %7749 = vmatprep.subr.mxu0 0.0
    %v7750 = vand.u32 %v6795, 4294901760
    %v7751 = vsub.f32 %v6795, %v7750
    %7752 = vmatpush1.msra.mxu0 %v7751
    %7753 = vmatprep.subr.mxu0 0.0
    %v7754 = vand.u32 %v6794, 4294901760
    %v7755 = vsub.f32 %v6794, %v7754
    %7756 = vmatpush1.msra.mxu0 %v7755
    %7757 = vmatprep.subr.mxu0 0.0
    %7758 = vmatpush2.msra.mxu0 0.0
    %7759 = vmatprep.subr.mxu0 0.0
    %7760 = vmatpush2.msra.mxu0 0.0
    %7761 = vmatprep.subr.mxu0 0.0
    %7762 = vmatpush2.msra.mxu0 0.0
    %7763 = vmatprep.subr.mxu0 0.0
    %7764 = vmatpush2.msra.mxu0 0.0
    %7765 = vmatprep.subr.mxu0 0.0
    %7766 = vmatpush2.msra.mxu0 0.0
    %7767 = vmatprep.subr.mxu0 0.0
    %7768 = vmatpush2.msra.mxu0 0.0
    %7769 = vmatprep.subr.mxu0 0.0
    %7770 = vmatpush2.msra.mxu0 0.0
    %7771 = vmatprep.subr.mxu0 0.0
    %7772 = vmatpush2.msra.mxu0 0.0
    %7773 = vmatprep.subr.mxu0 0.0
    %7774 = vmatpush2.msra.mxu0 0.0
    %7775 = vmatprep.subr.mxu0 0.0
    %7776 = vmatpush2.msra.mxu0 0.0
    %7777 = vmatprep.subr.mxu0 0.0
    %7778 = vmatpush2.msra.mxu0 0.0
    %7779 = vmatprep.subr.mxu0 0.0
    %7780 = vmatpush2.msra.mxu0 0.0
    %7781 = vmatprep.subr.mxu0 0.0
    %7782 = vmatpush2.msra.mxu0 0.0
    %7783 = vmatprep.subr.mxu0 0.0
    %7784 = vmatpush2.msra.mxu0 0.0
    %7785 = vmatprep.subr.mxu0 0.0
    %7786 = vmatpush2.msra.mxu0 0.0
    %7787 = vmatprep.subr.mxu0 0.0
    %7788 = vmatpush2.msra.mxu0 0.0
    %7789 = vmatprep.mubr.f32.mxu0 0.0
    %v7790 = vand.u32 %v6793, 4294901760
    %v7791 = vsub.f32 %v6793, %v7790
    %7792 = vmatmul.mubr.f32.gmra.mxu0 %v7791
    %v7793 = vpop.f32.mrf.mxu0
    %v7794 = vadd.f32 %v7690, %v7793
    %v7795 = vpop.f32.mrf.mxu0
    %7796 = vdwg.mxu0
    %7797 = vmatprep.subr.mxu0 0.0
    %v7798 = vand.u32 %v6809, 4294901760
    %7799 = vmatpush1.msra.mxu0 %v7798
    %7800 = vmatprep.subr.mxu0 0.0
    %v7801 = vand.u32 %v6808, 4294901760
    %7802 = vmatpush1.msra.mxu0 %v7801
    %7803 = vmatprep.subr.mxu0 0.0
    %v7804 = vand.u32 %v6807, 4294901760
    %7805 = vmatpush1.msra.mxu0 %v7804
    %7806 = vmatprep.subr.mxu0 0.0
    %v7807 = vand.u32 %v6806, 4294901760
    %7808 = vmatpush1.msra.mxu0 %v7807
    %7809 = vmatprep.subr.mxu0 0.0
    %v7810 = vand.u32 %v6805, 4294901760
    %7811 = vmatpush1.msra.mxu0 %v7810
    %7812 = vmatprep.subr.mxu0 0.0
    %v7813 = vand.u32 %v6804, 4294901760
    %7814 = vmatpush1.msra.mxu0 %v7813
    %7815 = vmatprep.subr.mxu0 0.0
    %v7816 = vand.u32 %v6803, 4294901760
    %7817 = vmatpush1.msra.mxu0 %v7816
    %7818 = vmatprep.subr.mxu0 0.0
    %v7819 = vand.u32 %v6802, 4294901760
    %7820 = vmatpush1.msra.mxu0 %v7819
    %7821 = vmatprep.subr.mxu0 0.0
    %v7822 = vand.u32 %v6801, 4294901760
    %7823 = vmatpush1.msra.mxu0 %v7822
    %7824 = vmatprep.subr.mxu0 0.0
    %v7825 = vand.u32 %v6800, 4294901760
    %7826 = vmatpush1.msra.mxu0 %v7825
    %7827 = vmatprep.subr.mxu0 0.0
    %v7828 = vand.u32 %v6799, 4294901760
    %7829 = vmatpush1.msra.mxu0 %v7828
    %7830 = vmatprep.subr.mxu0 0.0
    %v7831 = vand.u32 %v6798, 4294901760
    %7832 = vmatpush1.msra.mxu0 %v7831
    %7833 = vmatprep.subr.mxu0 0.0
    %v7834 = vand.u32 %v6797, 4294901760
    %7835 = vmatpush1.msra.mxu0 %v7834
    %7836 = vmatprep.subr.mxu0 0.0
    %v7837 = vand.u32 %v6796, 4294901760
    %7838 = vmatpush1.msra.mxu0 %v7837
    %7839 = vmatprep.subr.mxu0 0.0
    %v7840 = vand.u32 %v6795, 4294901760
    %7841 = vmatpush1.msra.mxu0 %v7840
    %7842 = vmatprep.subr.mxu0 0.0
    %v7843 = vand.u32 %v6794, 4294901760
    %7844 = vmatpush1.msra.mxu0 %v7843
    %7845 = vmatprep.subr.mxu0 0.0
    %7846 = vmatpush2.msra.mxu0 0.0
    %7847 = vmatprep.subr.mxu0 0.0
    %7848 = vmatpush2.msra.mxu0 0.0
    %7849 = vmatprep.subr.mxu0 0.0
    %7850 = vmatpush2.msra.mxu0 0.0
    %7851 = vmatprep.subr.mxu0 0.0
    %7852 = vmatpush2.msra.mxu0 0.0
    %7853 = vmatprep.subr.mxu0 0.0
    %7854 = vmatpush2.msra.mxu0 0.0
    %7855 = vmatprep.subr.mxu0 0.0
    %7856 = vmatpush2.msra.mxu0 0.0
    %7857 = vmatprep.subr.mxu0 0.0
    %7858 = vmatpush2.msra.mxu0 0.0
    %7859 = vmatprep.subr.mxu0 0.0
    %7860 = vmatpush2.msra.mxu0 0.0
    %7861 = vmatprep.subr.mxu0 0.0
    %7862 = vmatpush2.msra.mxu0 0.0
    %7863 = vmatprep.subr.mxu0 0.0
    %7864 = vmatpush2.msra.mxu0 0.0
    %7865 = vmatprep.subr.mxu0 0.0
    %7866 = vmatpush2.msra.mxu0 0.0
    %7867 = vmatprep.subr.mxu0 0.0
    %7868 = vmatpush2.msra.mxu0 0.0
    %7869 = vmatprep.subr.mxu0 0.0
    %7870 = vmatpush2.msra.mxu0 0.0
    %7871 = vmatprep.subr.mxu0 0.0
    %7872 = vmatpush2.msra.mxu0 0.0
    %7873 = vmatprep.subr.mxu0 0.0
    %7874 = vmatpush2.msra.mxu0 0.0
    %7875 = vmatprep.subr.mxu0 0.0
    %7876 = vmatpush2.msra.mxu0 0.0
    %7877 = vmatprep.mubr.f32.mxu0 0.0
    %v7878 = vand.u32 %v6793, 4294901760
    %v7879 = vsub.f32 %v6793, %v7878
    %v7880 = vand.u32 %v7879, 4294901760
    %7881 = vmatmul.mubr.f32.gmra.mxu0 %v7880
    %v7882 = vpop.f32.mrf.mxu0
    %v7883 = vadd.f32 %v7794, %v7882
    %v7884 = vpop.f32.mrf.mxu0
    %7885 = vdwg.mxu0
    %7886 = vmatprep.subr.mxu0 0.0
    %v7887 = vand.u32 %v6809, 4294901760
    %v7888 = vsub.f32 %v6809, %v7887
    %v7889 = vand.u32 %v7888, 4294901760
    %7890 = vmatpush1.msra.mxu0 %v7889
    %7891 = vmatprep.subr.mxu0 0.0
    %v7892 = vand.u32 %v6808, 4294901760
    %v7893 = vsub.f32 %v6808, %v7892
    %v7894 = vand.u32 %v7893, 4294901760
    %7895 = vmatpush1.msra.mxu0 %v7894
    %7896 = vmatprep.subr.mxu0 0.0
    %v7897 = vand.u32 %v6807, 4294901760
    %v7898 = vsub.f32 %v6807, %v7897
    %v7899 = vand.u32 %v7898, 4294901760
    %7900 = vmatpush1.msra.mxu0 %v7899
    %7901 = vmatprep.subr.mxu0 0.0
    %v7902 = vand.u32 %v6806, 4294901760
    %v7903 = vsub.f32 %v6806, %v7902
    %v7904 = vand.u32 %v7903, 4294901760
    %7905 = vmatpush1.msra.mxu0 %v7904
    %7906 = vmatprep.subr.mxu0 0.0
    %v7907 = vand.u32 %v6805, 4294901760
    %v7908 = vsub.f32 %v6805, %v7907
    %v7909 = vand.u32 %v7908, 4294901760
    %7910 = vmatpush1.msra.mxu0 %v7909
    %7911 = vmatprep.subr.mxu0 0.0
    %v7912 = vand.u32 %v6804, 4294901760
    %v7913 = vsub.f32 %v6804, %v7912
    %v7914 = vand.u32 %v7913, 4294901760
    %7915 = vmatpush1.msra.mxu0 %v7914
    %7916 = vmatprep.subr.mxu0 0.0
    %v7917 = vand.u32 %v6803, 4294901760
    %v7918 = vsub.f32 %v6803, %v7917
    %v7919 = vand.u32 %v7918, 4294901760
    %7920 = vmatpush1.msra.mxu0 %v7919
    %7921 = vmatprep.subr.mxu0 0.0
    %v7922 = vand.u32 %v6802, 4294901760
    %v7923 = vsub.f32 %v6802, %v7922
    %v7924 = vand.u32 %v7923, 4294901760
    %7925 = vmatpush1.msra.mxu0 %v7924
    %7926 = vmatprep.subr.mxu0 0.0
    %v7927 = vand.u32 %v6801, 4294901760
    %v7928 = vsub.f32 %v6801, %v7927
    %v7929 = vand.u32 %v7928, 4294901760
    %7930 = vmatpush1.msra.mxu0 %v7929
    %7931 = vmatprep.subr.mxu0 0.0
    %v7932 = vand.u32 %v6800, 4294901760
    %v7933 = vsub.f32 %v6800, %v7932
    %v7934 = vand.u32 %v7933, 4294901760
    %7935 = vmatpush1.msra.mxu0 %v7934
    %7936 = vmatprep.subr.mxu0 0.0
    %v7937 = vand.u32 %v6799, 4294901760
    %v7938 = vsub.f32 %v6799, %v7937
    %v7939 = vand.u32 %v7938, 4294901760
    %7940 = vmatpush1.msra.mxu0 %v7939
    %7941 = vmatprep.subr.mxu0 0.0
    %v7942 = vand.u32 %v6798, 4294901760
    %v7943 = vsub.f32 %v6798, %v7942
    %v7944 = vand.u32 %v7943, 4294901760
    %7945 = vmatpush1.msra.mxu0 %v7944
    %7946 = vmatprep.subr.mxu0 0.0
    %v7947 = vand.u32 %v6797, 4294901760
    %v7948 = vsub.f32 %v6797, %v7947
    %v7949 = vand.u32 %v7948, 4294901760
    %7950 = vmatpush1.msra.mxu0 %v7949
    %7951 = vmatprep.subr.mxu0 0.0
    %v7952 = vand.u32 %v6796, 4294901760
    %v7953 = vsub.f32 %v6796, %v7952
    %v7954 = vand.u32 %v7953, 4294901760
    %7955 = vmatpush1.msra.mxu0 %v7954
    %7956 = vmatprep.subr.mxu0 0.0
    %v7957 = vand.u32 %v6795, 4294901760
    %v7958 = vsub.f32 %v6795, %v7957
    %v7959 = vand.u32 %v7958, 4294901760
    %7960 = vmatpush1.msra.mxu0 %v7959
    %7961 = vmatprep.subr.mxu0 0.0
    %v7962 = vand.u32 %v6794, 4294901760
    %v7963 = vsub.f32 %v6794, %v7962
    %v7964 = vand.u32 %v7963, 4294901760
    %7965 = vmatpush1.msra.mxu0 %v7964
    %7966 = vmatprep.subr.mxu0 0.0
    %7967 = vmatpush2.msra.mxu0 0.0
    %7968 = vmatprep.subr.mxu0 0.0
    %7969 = vmatpush2.msra.mxu0 0.0
    %7970 = vmatprep.subr.mxu0 0.0
    %7971 = vmatpush2.msra.mxu0 0.0
    %7972 = vmatprep.subr.mxu0 0.0
    %7973 = vmatpush2.msra.mxu0 0.0
    %7974 = vmatprep.subr.mxu0 0.0
    %7975 = vmatpush2.msra.mxu0 0.0
    %7976 = vmatprep.subr.mxu0 0.0
    %7977 = vmatpush2.msra.mxu0 0.0
    %7978 = vmatprep.subr.mxu0 0.0
    %7979 = vmatpush2.msra.mxu0 0.0
    %7980 = vmatprep.subr.mxu0 0.0
    %7981 = vmatpush2.msra.mxu0 0.0
    %7982 = vmatprep.subr.mxu0 0.0
    %7983 = vmatpush2.msra.mxu0 0.0
    %7984 = vmatprep.subr.mxu0 0.0
    %7985 = vmatpush2.msra.mxu0 0.0
    %7986 = vmatprep.subr.mxu0 0.0
    %7987 = vmatpush2.msra.mxu0 0.0
    %7988 = vmatprep.subr.mxu0 0.0
    %7989 = vmatpush2.msra.mxu0 0.0
    %7990 = vmatprep.subr.mxu0 0.0
    %7991 = vmatpush2.msra.mxu0 0.0
    %7992 = vmatprep.subr.mxu0 0.0
    %7993 = vmatpush2.msra.mxu0 0.0
    %7994 = vmatprep.subr.mxu0 0.0
    %7995 = vmatpush2.msra.mxu0 0.0
    %7996 = vmatprep.subr.mxu0 0.0
    %7997 = vmatpush2.msra.mxu0 0.0
    %7998 = vmatprep.mubr.f32.mxu0 0.0
    %v7999 = vand.u32 %v6793, 4294901760
    %8000 = vmatmul.mubr.f32.gmra.mxu0 %v7999
    %v8001 = vpop.f32.mrf.mxu0
    %v8002 = vadd.f32 %v7883, %v8001
    %v8003 = vpop.f32.mrf.mxu0
    %8004 = vdwg.mxu0
    %8005 = vmatprep.subr.mxu0 0.0
    %v8006 = vand.u32 %v6809, 4294901760
    %8007 = vmatpush1.msra.mxu0 %v8006
    %8008 = vmatprep.subr.mxu0 0.0
    %v8009 = vand.u32 %v6808, 4294901760
    %8010 = vmatpush1.msra.mxu0 %v8009
    %8011 = vmatprep.subr.mxu0 0.0
    %v8012 = vand.u32 %v6807, 4294901760
    %8013 = vmatpush1.msra.mxu0 %v8012
    %8014 = vmatprep.subr.mxu0 0.0
    %v8015 = vand.u32 %v6806, 4294901760
    %8016 = vmatpush1.msra.mxu0 %v8015
    %8017 = vmatprep.subr.mxu0 0.0
    %v8018 = vand.u32 %v6805, 4294901760
    %8019 = vmatpush1.msra.mxu0 %v8018
    %8020 = vmatprep.subr.mxu0 0.0
    %v8021 = vand.u32 %v6804, 4294901760
    %8022 = vmatpush1.msra.mxu0 %v8021
    %8023 = vmatprep.subr.mxu0 0.0
    %v8024 = vand.u32 %v6803, 4294901760
    %8025 = vmatpush1.msra.mxu0 %v8024
    %8026 = vmatprep.subr.mxu0 0.0
    %v8027 = vand.u32 %v6802, 4294901760
    %8028 = vmatpush1.msra.mxu0 %v8027
    %8029 = vmatprep.subr.mxu0 0.0
    %v8030 = vand.u32 %v6801, 4294901760
    %8031 = vmatpush1.msra.mxu0 %v8030
    %8032 = vmatprep.subr.mxu0 0.0
    %v8033 = vand.u32 %v6800, 4294901760
    %8034 = vmatpush1.msra.mxu0 %v8033
    %8035 = vmatprep.subr.mxu0 0.0
    %v8036 = vand.u32 %v6799, 4294901760
    %8037 = vmatpush1.msra.mxu0 %v8036
    %8038 = vmatprep.subr.mxu0 0.0
    %v8039 = vand.u32 %v6798, 4294901760
    %8040 = vmatpush1.msra.mxu0 %v8039
    %8041 = vmatprep.subr.mxu0 0.0
    %v8042 = vand.u32 %v6797, 4294901760
    %8043 = vmatpush1.msra.mxu0 %v8042
    %8044 = vmatprep.subr.mxu0 0.0
    %v8045 = vand.u32 %v6796, 4294901760
    %8046 = vmatpush1.msra.mxu0 %v8045
    %8047 = vmatprep.subr.mxu0 0.0
    %v8048 = vand.u32 %v6795, 4294901760
    %8049 = vmatpush1.msra.mxu0 %v8048
    %8050 = vmatprep.subr.mxu0 0.0
    %v8051 = vand.u32 %v6794, 4294901760
    %8052 = vmatpush1.msra.mxu0 %v8051
    %8053 = vmatprep.subr.mxu0 0.0
    %8054 = vmatpush2.msra.mxu0 0.0
    %8055 = vmatprep.subr.mxu0 0.0
    %8056 = vmatpush2.msra.mxu0 0.0
    %8057 = vmatprep.subr.mxu0 0.0
    %8058 = vmatpush2.msra.mxu0 0.0
    %8059 = vmatprep.subr.mxu0 0.0
    %8060 = vmatpush2.msra.mxu0 0.0
    %8061 = vmatprep.subr.mxu0 0.0
    %8062 = vmatpush2.msra.mxu0 0.0
    %8063 = vmatprep.subr.mxu0 0.0
    %8064 = vmatpush2.msra.mxu0 0.0
    %8065 = vmatprep.subr.mxu0 0.0
    %8066 = vmatpush2.msra.mxu0 0.0
    %8067 = vmatprep.subr.mxu0 0.0
    %8068 = vmatpush2.msra.mxu0 0.0
    %8069 = vmatprep.subr.mxu0 0.0
    %8070 = vmatpush2.msra.mxu0 0.0
    %8071 = vmatprep.subr.mxu0 0.0
    %8072 = vmatpush2.msra.mxu0 0.0
    %8073 = vmatprep.subr.mxu0 0.0
    %8074 = vmatpush2.msra.mxu0 0.0
    %8075 = vmatprep.subr.mxu0 0.0
    %8076 = vmatpush2.msra.mxu0 0.0
    %8077 = vmatprep.subr.mxu0 0.0
    %8078 = vmatpush2.msra.mxu0 0.0
    %8079 = vmatprep.subr.mxu0 0.0
    %8080 = vmatpush2.msra.mxu0 0.0
    %8081 = vmatprep.subr.mxu0 0.0
    %8082 = vmatpush2.msra.mxu0 0.0
    %8083 = vmatprep.subr.mxu0 0.0
    %8084 = vmatpush2.msra.mxu0 0.0
    %8085 = vmatprep.mubr.f32.mxu0 0.0
    %v8086 = vand.u32 %v6793, 4294901760
    %8087 = vmatmul.mubr.f32.gmra.mxu0 %v8086
    %v8088 = vpop.f32.mrf.mxu0
    %v8089 = vadd.f32 %v8002, %v8088
    %v8090 = vpop.f32.mrf.mxu0
    %8091 = vdwg.mxu0
    %v8092 = vlog2.pop %v7448
    %v8093 = vmul.f32 %v8092, 0.6931472
    %v8094 = vsub.f32 %v8093, %v8089
    %v8095 = vadd.f32 %v6782, %v8094
    %vm8096 = vcmask 7168
    %v8097 = vsel %vm8096, %v8095, 0.0
    %8098 = vadd.xlane.f32.xlu0 %v8097
    %v8099 = vpop.xlane.xlu0 %8098
    %v8100 = vrot.slane %v8099, 4
    %v8101 = vadd.f32 %v8099, %v8100
    %v8102 = vrot.slane %v8101, 2
    %v8103 = vadd.f32 %v8101, %v8102
    %v8104 = vrot.slane %v8103, 1
    %v8105 = vadd.f32 %v8103, %v8104
    %s8106 = vtos %v8105
    %s8107 = scalar_lea.smem [#allocation22], 0
    %8108 = sst [smem:[%s8107]] %s8106
    // Predicated region
    $region110: #{tpu_custom_call.1} parent=1 // pred_check
      _
    $region111: #{tpu_custom_call.1} parent=1 // pred_check_branch
      %8110 = sbr.rel (0) target = $region113
    $region112: #{tpu_custom_call.1} parent=1 // pred_region
      %s8112 = ssub.s32 16, 16
      %8113 = vsyncadd [#allocation4], %s8112
      %8116 = dma.smem_to_hbm [#allocation22], 16, %s15, [#allocation4]
    $region113: #{tpu_custom_call.1} parent=1 // pred_fallthru
      _
    // Predicated region
    $region114: #{tpu_custom_call.1} parent=1 // pred_check
      _
    $region115: #{tpu_custom_call.1} parent=1 // pred_check_branch
      %8118 = sbr.rel (0) target = $region117
    $region116: #{tpu_custom_call.1} parent=1 // pred_region
      %8119 = dma.done [#allocation4], 16
    $region117: #{tpu_custom_call.1} parent=1 // pred_fallthru
      _
    %8120 = sfence
    %8121 = vsyncpa [#allocation3], 1
    %8122 = vsyncpa [#allocation6], 1
    %8123 = vsyncpa [#allocation9], 1
    %8124 = vsyncpa [#allocation12], 1
    %8125 = vsyncpa [#allocation15], 1
    %8126 = vsyncpa [#allocation18], 1
    %8127 = vsyncpa [#allocation21], 1
    %8128 = vsyncpa [#allocation4], 1

</llo_original>
